<compile_context>
chip_gen: v5e
topology: v5e:2x2
jax: 0.10.0
libtpu: 0.0.40
codegen_flags: <defaults>
</compile_context>

<pallas_src>
import functools

import numpy as np
import jax
import jax.numpy as jnp
from jax import lax
from jax.experimental import pallas as pl
from jax.experimental.pallas import tpu as pltpu


# Column offset of the pad-scratch interior: keeps the (large) interior store
# sublane-aligned; only the small shifted tap reads are unaligned.
_COL0 = 8


def make_divisible(v, divisor=8, min_value=None):
    if min_value is None:
        min_value = divisor
    new_v = max(min_value, int(v + divisor / 2) // divisor * divisor)
    if new_v < 0.9 * v:
        new_v += divisor
    return new_v


def _w_spec(w):
    """Full-array (grid-invariant) BlockSpec for a weight tensor."""
    n = w.ndim
    return pl.BlockSpec(tuple(w.shape), lambda b, n=n: (0,) * n)


# ----------------------------------------------------------------------------
# fused inverted-residual block (values + one VMEM pad scratch)
# ----------------------------------------------------------------------------
def _ir_block(x, brefs, pad_ref, *, H, W, stride, use_res, sel_ref=None):
    f32, bf16 = jnp.float32, jnp.bfloat16
    we, be, wd, bd, ws1, bs1, ws2, bs2, wpj, bpj = brefs
    hid = we.shape[1]
    HW = H * W
    Wp = pad_ref.shape[1]                              # == W + _COL0 + 1

    # --- 1x1 expand (+ folded BN) + ReLU6 ------------------------------------
    h = jnp.dot(x.astype(bf16), we[...], preferred_element_type=f32) + be[...]
    h = jnp.clip(h, 0.0, 6.0)                          # (HW, hid)

    # --- depthwise 3x3 (+ folded BN) + ReLU6, stride-1 over a pad scratch ----
    # halo-only zeroing (interior is fully overwritten every grid step).
    pad_ref[0:1, _COL0 - 1:Wp, :] = jnp.zeros((1, W + 2, hid), f32)
    pad_ref[H + 1:H + 2, _COL0 - 1:Wp, :] = jnp.zeros((1, W + 2, hid), f32)
    pad_ref[1:H + 1, _COL0 - 1:_COL0, :] = jnp.zeros((H, 1, hid), f32)
    pad_ref[1:H + 1, _COL0 + W:_COL0 + W + 1, :] = jnp.zeros((H, 1, hid), f32)
    pad_ref[1:H + 1, _COL0:_COL0 + W, :] = h.reshape(H, W, hid)

    wd_v = wd[...]                                     # (9, hid), loaded once
    w_taps = [wd_v[t] for t in range(9)]               # hoisted tap vectors
    acc = jnp.zeros((H, W, hid), f32)
    for di in range(3):
        for dj in range(3):
            c0 = _COL0 - 1 + dj
            acc = acc + pad_ref[di:di + H, c0:c0 + W, :] * w_taps[3 * di + dj]
    d = jnp.clip(acc.reshape(HW, hid) + bd[...], 0.0, 6.0)

    if stride == 2:
        # stride-2 output == stride-1 output at even rows/cols; gathered with a
        # single tiny MXU matmul against a constant 0/1 selection matrix.
        d = jnp.dot(sel_ref[...], d.astype(bf16), preferred_element_type=f32)

    # --- squeeze-excite ------------------------------------------------------
    s = jnp.mean(d, axis=0, keepdims=True)
    s = jnp.maximum(
        jnp.dot(s.astype(bf16), ws1[...], preferred_element_type=f32) + bs1[...],
        0.0)
    s = jax.nn.sigmoid(
        jnp.dot(s.astype(bf16), ws2[...], preferred_element_type=f32) + bs2[...])
    d = d * s

    # --- 1x1 project (+ folded BN, linear) -----------------------------------
    y = jnp.dot(d.astype(bf16), wpj[...], preferred_element_type=f32) + bpj[...]
    if use_res:
        y = y + x
    return y


# ----------------------------------------------------------------------------
# generator (query_SABlock) + fused gamma/color heads
# ----------------------------------------------------------------------------
def _generator(x, grefs, hw, hb, base, *, num_heads):
    f32, bf16 = jnp.float32, jnp.bfloat16
    (qp, l1g, l1b, wk, bk, wv, bv, wp, bp, l2g, l2b, w1, b1, w2, b2) = grefs
    C = x.shape[-1]
    dh = C // num_heads
    scale = dh ** (-0.5)
    eps = 1e-5

    def layer_norm(z, g, b):
        mu = jnp.mean(z, axis=-1, keepdims=True)
        var = jnp.mean((z - mu) ** 2, axis=-1, keepdims=True)
        return (z - mu) * lax.rsqrt(var + eps) * g[...] + b[...]

    # --- pre_norm_mha: LN -> query attention -> proj (Dropout p=0) ----------
    xn = layer_norm(x, l1g, l1b).astype(bf16)
    k = jnp.dot(xn, wk[...], preferred_element_type=f32) + bk[...]
    v = jnp.dot(xn, wv[...], preferred_element_type=f32) + bv[...]
    qv = qp[...]                                       # (P, C), learned query
    wp_v = wp[...]                                     # (C, C) bf16
    P = qv.shape[0]

    # heads kept in registers; x1 accumulated directly through the projection.
    x1 = jnp.zeros((P, C), f32) + bp[...]
    for hd in range(num_heads):
        lo = hd * dh
        qh = qv[:, lo:lo + dh].astype(bf16)
        kh = k[:, lo:lo + dh].astype(bf16)
        vh = v[:, lo:lo + dh].astype(bf16)
        att = lax.dot_general(qh, kh, (((1,), (1,)), ((), ())),
                              preferred_element_type=f32) * scale     # (P, N)
        att = jnp.exp(att - jnp.max(att, axis=-1, keepdims=True))
        att = att / jnp.sum(att, axis=-1, keepdims=True)              # exact softmax
        hv = jnp.dot(att.astype(bf16), vh, preferred_element_type=f32)
        x1 = x1 + jnp.dot(hv.astype(bf16), wp_v[lo:lo + dh, :],
                          preferred_element_type=f32)

    # --- residual FFN: x1 + Linear(SiLU(Linear(LN(x1)))) ---------------------
    yn = layer_norm(x1, l2g, l2b).astype(bf16)
    hdn = jnp.dot(yn, w1[...], preferred_element_type=f32) + b1[...]
    hdn = hdn * jax.nn.sigmoid(hdn)                                   # SiLU
    ffn = jnp.dot(hdn.astype(bf16), w2[...], preferred_element_type=f32) + b2[...]
    tok = x1 + ffn                                                    # (P, C)

    # --- fused gamma + color linear heads: one (C, 2) matmul -----------------
    proj = jnp.dot(tok.astype(bf16), hw[...], preferred_element_type=f32) + hb[...]
    base_v = base[...]                                                # (P, 1)
    gamma = proj[0:1, 0:1] + base_v[0:1, :]                           # (1, 1)
    color = proj[1:P, 1:2] + base_v[1:P, :]                           # (9, 1)
    return gamma, color


# ----------------------------------------------------------------------------
# the single fused kernel
# ----------------------------------------------------------------------------
def _fused_kernel(*refs, num_heads, cfg):
    f32, bf16 = jnp.float32, jnp.bfloat16
    x_ref, wc_ref, bc_ref, sel2_ref = refs[0:4]
    b1refs = refs[4:14]
    b2refs = refs[14:24]
    b3refs = refs[24:34]
    grefs = refs[34:49]
    hw_ref, hb_ref, base_ref = refs[49:52]
    gamma_ref, color_ref = refs[52:54]
    stem_pad, pad1, pad2, pad3 = refs[54:58]

    (H1, W1, s1, r1), (H2, W2, s2, r2), (H3, W3, s3, r3) = cfg

    # ---- stem: 3x3/stride-2 conv expressed as a 2x2/stride-1 conv on the ----
    # ---- space-to-depth input (only top row / left column need a halo). -----
    xs = x_ref[...]                                    # (H1, W1, CP) bf16
    CP = xs.shape[-1]
    cst = bc_ref.shape[-1]
    stem_pad[0:1, _COL0 - 1:, :] = jnp.zeros((1, W1 + 1, CP), f32)
    stem_pad[1:H1 + 1, _COL0 - 1:_COL0, :] = jnp.zeros((H1, 1, CP), f32)
    stem_pad[1:H1 + 1, _COL0:_COL0 + W1, :] = xs.astype(f32)
    acc = jnp.zeros((H1 * W1, cst), f32)
    for qi in range(2):
        for qj in range(2):
            cc = _COL0 - 1 + qj
            tap = stem_pad[qi:qi + H1, cc:cc + W1, :]
            acc = acc + jnp.dot(tap.reshape(H1 * W1, CP).astype(bf16),
                                wc_ref[2 * qi + qj],
                                preferred_element_type=f32)
    x0 = acc + bc_ref[...]   # relu1 is defined in __init__ but not used in forward()

    # ---- inverted-residual blocks -------------------------------------------
    y = _ir_block(x0, b1refs, pad1, H=H1, W=W1, stride=s1, use_res=r1)
    y = _ir_block(y, b2refs, pad2, H=H2, W=W2, stride=s2, use_res=r2,
                  sel_ref=sel2_ref)
    y = _ir_block(y, b3refs, pad3, H=H3, W=W3, stride=s3, use_res=r3)

    # ---- query_SABlock generator + fused output heads -----------------------
    gamma, color = _generator(y, grefs, hw_ref, hb_ref, base_ref,
                              num_heads=num_heads)
    gamma_ref[...] = gamma.astype(gamma_ref.dtype)
    color_ref[...] = color.astype(color_ref.dtype)


# ----------------------------------------------------------------------------
# forward wrapper (one pallas_call)
# ----------------------------------------------------------------------------
def global_pred_same_forward(x_nchw, params, num_heads=4):
    f32, bf16 = jnp.float32, jnp.bfloat16
    B, Cin, H, W = x_nchw.shape
    conv1, blocks, gen, heads = (params["conv1"], params["blocks"],
                                 params["gen"], params["heads"])
    CP = conv1["w"].shape[1]

    # NCHW -> NHWC -> 2x2 space-to-depth; raw-image sized, the only wrapper-side
    # data movement (no 9x im2col tensor in HBM).
    x = jnp.transpose(x_nchw, (0, 2, 3, 1)).astype(f32)
    H1, W1 = H // 2, W // 2
    xs = x.reshape(B, H1, 2, W1, 2, Cin).transpose(0, 1, 3, 2, 4, 5)
    xs = xs.reshape(B, H1, W1, 4 * Cin)
    if CP > 4 * Cin:
        xs = jnp.pad(xs, ((0, 0), (0, 0), (0, 0), (0, CP - 4 * Cin)))
    xs = xs.astype(bf16)

    # static per-block geometry
    cfg = []
    h, w = H1, W1
    for blk in blocks:
        cfg.append((h, w, blk["stride"], blk["use_res"]))
        h, w = h // blk["stride"], w // blk["stride"]
    cfg = tuple(cfg)

    # constant 0/1 token-selection matrix for the stride-2 block
    sel2 = None
    for (hh, ww, s, _) in cfg:
        if s == 2:
            ho, wo = hh // 2, ww // 2
            m = np.zeros((ho * wo, hh * ww), np.float32)
            for t in range(ho * wo):
                m[t, (2 * (t // wo)) * ww + 2 * (t % wo)] = 1.0
            sel2 = jnp.asarray(m, bf16)
    assert sel2 is not None

    blk_keys = ["w_exp", "b_exp", "w_dw", "b_dw", "w_se1", "b_se1",
                "w_se2", "b_se2", "w_proj", "b_proj"]
    gen_keys = ["q", "ln1_g", "ln1_b", "wk", "bk", "wv", "bv", "wp", "bp",
                "ln2_g", "ln2_b", "w1", "b1", "w2", "b2"]

    operands = [xs, conv1["w"], conv1["b"], sel2]
    for blk in blocks:
        operands += [blk[k] for k in blk_keys]
    operands += [gen[k] for k in gen_keys]
    operands += [heads["head_w"], heads["head_b"], heads["base"]]

    in_specs = [pl.BlockSpec((None, H1, W1, CP), lambda b: (b, 0, 0, 0))]
    in_specs += [_w_spec(o) for o in operands[1:]]

    scratch_shapes = [pltpu.VMEM((H1 + 1, W1 + _COL0, CP), f32)]     # stem pad
    for (hh, ww, _, _), blk in zip(cfg, blocks):
        hid = blk["w_exp"].shape[1]
        scratch_shapes.append(pltpu.VMEM((hh + 2, ww + _COL0 + 1, hid), f32))

    gamma, color = pl.pallas_call(
        functools.partial(_fused_kernel, num_heads=num_heads, cfg=cfg),
        out_shape=(jax.ShapeDtypeStruct((B, 1, 1), f32),
                   jax.ShapeDtypeStruct((B, 9, 1), f32)),
        grid=(B,),
        in_specs=in_specs,
        out_specs=(pl.BlockSpec((None, 1, 1), lambda b: (b, 0, 0)),
                   pl.BlockSpec((None, 9, 1), lambda b: (b, 0, 0))),
        scratch_shapes=scratch_shapes,
        compiler_params=pltpu.CompilerParams(dimension_semantics=("parallel",)),
    )(*operands)
    return gamma.reshape(B, 1), color.reshape(B, 3, 3)


# ----------------------------------------------------------------------------
# deterministic synthetic parameters (shapes per the PyTorch __init__)
# ----------------------------------------------------------------------------
def init_params(seed=0, in_channels=3, scale=0.5, expand_ratio=6):
    keys = iter(jax.random.split(jax.random.PRNGKey(seed), 64))
    nk = lambda: next(keys)
    f32, bf16 = jnp.float32, jnp.bfloat16
    bn_s = 1.0 / np.sqrt(1.0 + 1e-5)   # eval-mode BN fold: gamma=1, var=1, mean=0

    def tnorm(key, shape, std=0.02):
        return (std * jax.random.truncated_normal(key, -2.0, 2.0, shape)).astype(f32)

    def knorm(key, shape, fan_out):
        return (np.sqrt(2.0 / fan_out) * jax.random.normal(key, shape)).astype(f32)

    params = {}
    c0 = make_divisible(32 * scale)                      # 16

    # stem 3x3/s2 conv (HWIO) + folded BN, rearranged to the 2x2/stride-1
    # space-to-depth form used by the kernel:
    #   W_s2d[(qi,qj), (pi,pj,ci), co] = w[di,dj,ci,co], di=2*qi+pi-1, dj=2*qj+pj-1
    # (zero where the tap falls outside the 3x3 window).  Importing real PyTorch
    # conv weights needs this same rearrangement (plus OIHW->HWIO permute).
    w_hwio = np.asarray(knorm(nk(), (3, 3, in_channels, c0), 9 * c0)) * bn_s
    CP = ((4 * in_channels + 7) // 8) * 8
    wq = np.zeros((4, CP, c0), np.float32)
    for qi in range(2):
        for qj in range(2):
            for pi in range(2):
                for pj in range(2):
                    di, dj = 2 * qi + pi - 1, 2 * qj + pj - 1
                    if 0 <= di < 3 and 0 <= dj < 3:
                        cidx = (pi * 2 + pj) * in_channels
                        wq[2 * qi + qj, cidx:cidx + in_channels, :] = w_hwio[di, dj]
    params["conv1"] = {"w": jnp.asarray(wq, bf16),
                       "b": jnp.zeros((1, c0), f32)}

    blocks = []
    cin = c0
    # depthSeparableConvSize = [[32, 64, 1], [64, 128, 2], [128, 128, 1]]
    for _i, o, s in [(32, 64, 1), (64, 128, 2), (128, 128, 1)]:
        cout = make_divisible(o * scale)
        hid = cin * expand_ratio
        cr = max(hid // 4, 8)
        blocks.append({
            "stride": s,
            "use_res": (s == 1 and cin == cout),
            "w_exp": (knorm(nk(), (cin, hid), hid) * bn_s).astype(bf16),
            "b_exp": jnp.zeros((1, hid), f32),
            "w_dw": knorm(nk(), (9, hid), 9) * bn_s,           # (9, hid) taps, f32
            "b_dw": jnp.zeros((1, hid), f32),
            "w_se1": tnorm(nk(), (hid, cr), std=0.05).astype(bf16),
            "b_se1": jnp.zeros((1, cr), f32),
            "w_se2": tnorm(nk(), (cr, hid), std=0.05).astype(bf16),
            "b_se2": jnp.zeros((1, hid), f32),
            "w_proj": (knorm(nk(), (hid, cout), cout) * bn_s).astype(bf16),
            "b_proj": jnp.zeros((1, cout), f32),
        })
        cin = cout
    params["blocks"] = blocks

    C = cin                                              # 64 = embed_dim
    hf = int(C * 4.0)                                    # FFN hidden
    params["gen"] = {
        "q": jnp.ones((10, C), f32),                     # learned query, init ones
        "ln1_g": jnp.ones((1, C), f32), "ln1_b": jnp.zeros((1, C), f32),
        "wk": tnorm(nk(), (C, C)).astype(bf16), "bk": jnp.zeros((1, C), f32),
        "wv": tnorm(nk(), (C, C)).astype(bf16), "bv": jnp.zeros((1, C), f32),
        "wp": tnorm(nk(), (C, C)).astype(bf16), "bp": jnp.zeros((1, C), f32),
        "ln2_g": jnp.ones((1, C), f32), "ln2_b": jnp.zeros((1, C), f32),
        "w1": tnorm(nk(), (C, hf)).astype(bf16), "b1": jnp.zeros((1, hf), f32),
        "w2": tnorm(nk(), (hf, C)).astype(bf16), "b2": jnp.zeros((1, C), f32),
    }

    gamma_w = tnorm(nk(), (C, 1))
    color_w = tnorm(nk(), (C, 1))
    base = np.zeros((10, 1), np.float32)
    base[0, 0] = 1.0                                     # gamma_base (ones(1))
    base[1:, 0] = np.eye(3, dtype=np.float32).reshape(9)  # color_base (eye(3))
    params["heads"] = {
        "head_w": jnp.concatenate([gamma_w, color_w], axis=1).astype(bf16),
        "head_b": jnp.zeros((1, 2), f32),
        "base": jnp.asarray(base, f32),
    }
    return params


# ----------------------------------------------------------------------------
if __name__ == "__main__":
    key = jax.random.PRNGKey(0)
    x = jax.random.normal(key, (2, 3, 16, 16), dtype=jnp.float32)   # NCHW input
    params = init_params(seed=0)

    fwd = jax.jit(lambda inp: global_pred_same_forward(inp, params, num_heads=4))
    gamma, color = fwd(x)
    jax.block_until_ready((gamma, color))

    assert gamma.shape == (2, 1), gamma.shape
    assert color.shape == (2, 3, 3), color.shape
    assert bool(jnp.all(jnp.isfinite(gamma))) and bool(jnp.all(jnp.isfinite(color)))
    print("KERNEL_OK")
</pallas_src>

<mosaic_0001>
module attributes {stable_mosaic.version = 11 : i64} {
  func.func @_fused_kernel(%arg0: i32, %arg1: memref<1x8x8x16xbf16, #tpu.memory_space<vmem>>, %arg2: memref<4x16x16xbf16, #tpu.memory_space<vmem>>, %arg3: memref<1x16xf32, #tpu.memory_space<vmem>>, %arg4: memref<16x64xbf16, #tpu.memory_space<vmem>>, %arg5: memref<16x96xbf16, #tpu.memory_space<vmem>>, %arg6: memref<1x96xf32, #tpu.memory_space<vmem>>, %arg7: memref<9x96xf32, #tpu.memory_space<vmem>>, %arg8: memref<1x96xf32, #tpu.memory_space<vmem>>, %arg9: memref<96x24xbf16, #tpu.memory_space<vmem>>, %arg10: memref<1x24xf32, #tpu.memory_space<vmem>>, %arg11: memref<24x96xbf16, #tpu.memory_space<vmem>>, %arg12: memref<1x96xf32, #tpu.memory_space<vmem>>, %arg13: memref<96x32xbf16, #tpu.memory_space<vmem>>, %arg14: memref<1x32xf32, #tpu.memory_space<vmem>>, %arg15: memref<32x192xbf16, #tpu.memory_space<vmem>>, %arg16: memref<1x192xf32, #tpu.memory_space<vmem>>, %arg17: memref<9x192xf32, #tpu.memory_space<vmem>>, %arg18: memref<1x192xf32, #tpu.memory_space<vmem>>, %arg19: memref<192x48xbf16, #tpu.memory_space<vmem>>, %arg20: memref<1x48xf32, #tpu.memory_space<vmem>>, %arg21: memref<48x192xbf16, #tpu.memory_space<vmem>>, %arg22: memref<1x192xf32, #tpu.memory_space<vmem>>, %arg23: memref<192x64xbf16, #tpu.memory_space<vmem>>, %arg24: memref<1x64xf32, #tpu.memory_space<vmem>>, %arg25: memref<64x384xbf16, #tpu.memory_space<vmem>>, %arg26: memref<1x384xf32, #tpu.memory_space<vmem>>, %arg27: memref<9x384xf32, #tpu.memory_space<vmem>>, %arg28: memref<1x384xf32, #tpu.memory_space<vmem>>, %arg29: memref<384x96xbf16, #tpu.memory_space<vmem>>, %arg30: memref<1x96xf32, #tpu.memory_space<vmem>>, %arg31: memref<96x384xbf16, #tpu.memory_space<vmem>>, %arg32: memref<1x384xf32, #tpu.memory_space<vmem>>, %arg33: memref<384x64xbf16, #tpu.memory_space<vmem>>, %arg34: memref<1x64xf32, #tpu.memory_space<vmem>>, %arg35: memref<10x64xf32, #tpu.memory_space<vmem>>, %arg36: memref<1x64xf32, #tpu.memory_space<vmem>>, %arg37: memref<1x64xf32, #tpu.memory_space<vmem>>, %arg38: memref<64x64xbf16, #tpu.memory_space<vmem>>, %arg39: memref<1x64xf32, #tpu.memory_space<vmem>>, %arg40: memref<64x64xbf16, #tpu.memory_space<vmem>>, %arg41: memref<1x64xf32, #tpu.memory_space<vmem>>, %arg42: memref<64x64xbf16, #tpu.memory_space<vmem>>, %arg43: memref<1x64xf32, #tpu.memory_space<vmem>>, %arg44: memref<1x64xf32, #tpu.memory_space<vmem>>, %arg45: memref<1x64xf32, #tpu.memory_space<vmem>>, %arg46: memref<64x256xbf16, #tpu.memory_space<vmem>>, %arg47: memref<1x256xf32, #tpu.memory_space<vmem>>, %arg48: memref<256x64xbf16, #tpu.memory_space<vmem>>, %arg49: memref<1x64xf32, #tpu.memory_space<vmem>>, %arg50: memref<64x2xbf16, #tpu.memory_space<vmem>>, %arg51: memref<1x2xf32, #tpu.memory_space<vmem>>, %arg52: memref<10x1xf32, #tpu.memory_space<vmem>>, %arg53: memref<1x1x1xf32, #tpu.memory_space<vmem>>, %arg54: memref<1x9x1xf32, #tpu.memory_space<vmem>>, %arg55: memref<9x16x16xf32, #tpu.memory_space<vmem>>, %arg56: memref<10x17x96xf32, #tpu.memory_space<vmem>>, %arg57: memref<10x17x192xf32, #tpu.memory_space<vmem>>, %arg58: memref<6x13x384xf32, #tpu.memory_space<vmem>>) attributes {dimension_semantics = [#tpu.dimension_semantics<parallel>], iteration_bounds = array<i64: 2>, scalar_prefetch = 0 : i64, scratch_operands = 4 : i64, tpu.core_type = #tpu.core_type<tc>, window_params = [{transform_indices = @transform_0, window_bounds = array<i64: 1, 8, 8, 16>}, {pipeline_mode = #tpu.pipeline_mode<synchronous>, transform_indices = @transform_1, window_bounds = array<i64: 4, 16, 16>}, {pipeline_mode = #tpu.pipeline_mode<synchronous>, transform_indices = @transform_2, window_bounds = array<i64: 1, 16>}, {pipeline_mode = #tpu.pipeline_mode<synchronous>, transform_indices = @transform_3, window_bounds = array<i64: 16, 64>}, {pipeline_mode = #tpu.pipeline_mode<synchronous>, transform_indices = @transform_4, window_bounds = array<i64: 16, 96>}, {pipeline_mode = #tpu.pipeline_mode<synchronous>, transform_indices = @transform_5, window_bounds = array<i64: 1, 96>}, {pipeline_mode = #tpu.pipeline_mode<synchronous>, transform_indices = @transform_6, window_bounds = array<i64: 9, 96>}, {pipeline_mode = #tpu.pipeline_mode<synchronous>, transform_indices = @transform_7, window_bounds = array<i64: 1, 96>}, {pipeline_mode = #tpu.pipeline_mode<synchronous>, transform_indices = @transform_8, window_bounds = array<i64: 96, 24>}, {pipeline_mode = #tpu.pipeline_mode<synchronous>, transform_indices = @transform_9, window_bounds = array<i64: 1, 24>}, {pipeline_mode = #tpu.pipeline_mode<synchronous>, transform_indices = @transform_10, window_bounds = array<i64: 24, 96>}, {pipeline_mode = #tpu.pipeline_mode<synchronous>, transform_indices = @transform_11, window_bounds = array<i64: 1, 96>}, {pipeline_mode = #tpu.pipeline_mode<synchronous>, transform_indices = @transform_12, window_bounds = array<i64: 96, 32>}, {pipeline_mode = #tpu.pipeline_mode<synchronous>, transform_indices = @transform_13, window_bounds = array<i64: 1, 32>}, {pipeline_mode = #tpu.pipeline_mode<synchronous>, transform_indices = @transform_14, window_bounds = array<i64: 32, 192>}, {pipeline_mode = #tpu.pipeline_mode<synchronous>, transform_indices = @transform_15, window_bounds = array<i64: 1, 192>}, {pipeline_mode = #tpu.pipeline_mode<synchronous>, transform_indices = @transform_16, window_bounds = array<i64: 9, 192>}, {pipeline_mode = #tpu.pipeline_mode<synchronous>, transform_indices = @transform_17, window_bounds = array<i64: 1, 192>}, {pipeline_mode = #tpu.pipeline_mode<synchronous>, transform_indices = @transform_18, window_bounds = array<i64: 192, 48>}, {pipeline_mode = #tpu.pipeline_mode<synchronous>, transform_indices = @transform_19, window_bounds = array<i64: 1, 48>}, {pipeline_mode = #tpu.pipeline_mode<synchronous>, transform_indices = @transform_20, window_bounds = array<i64: 48, 192>}, {pipeline_mode = #tpu.pipeline_mode<synchronous>, transform_indices = @transform_21, window_bounds = array<i64: 1, 192>}, {pipeline_mode = #tpu.pipeline_mode<synchronous>, transform_indices = @transform_22, window_bounds = array<i64: 192, 64>}, {pipeline_mode = #tpu.pipeline_mode<synchronous>, transform_indices = @transform_23, window_bounds = array<i64: 1, 64>}, {pipeline_mode = #tpu.pipeline_mode<synchronous>, transform_indices = @transform_24, window_bounds = array<i64: 64, 384>}, {pipeline_mode = #tpu.pipeline_mode<synchronous>, transform_indices = @transform_25, window_bounds = array<i64: 1, 384>}, {pipeline_mode = #tpu.pipeline_mode<synchronous>, transform_indices = @transform_26, window_bounds = array<i64: 9, 384>}, {pipeline_mode = #tpu.pipeline_mode<synchronous>, transform_indices = @transform_27, window_bounds = array<i64: 1, 384>}, {pipeline_mode = #tpu.pipeline_mode<synchronous>, transform_indices = @transform_28, window_bounds = array<i64: 384, 96>}, {pipeline_mode = #tpu.pipeline_mode<synchronous>, transform_indices = @transform_29, window_bounds = array<i64: 1, 96>}, {pipeline_mode = #tpu.pipeline_mode<synchronous>, transform_indices = @transform_30, window_bounds = array<i64: 96, 384>}, {pipeline_mode = #tpu.pipeline_mode<synchronous>, transform_indices = @transform_31, window_bounds = array<i64: 1, 384>}, {pipeline_mode = #tpu.pipeline_mode<synchronous>, transform_indices = @transform_32, window_bounds = array<i64: 384, 64>}, {pipeline_mode = #tpu.pipeline_mode<synchronous>, transform_indices = @transform_33, window_bounds = array<i64: 1, 64>}, {pipeline_mode = #tpu.pipeline_mode<synchronous>, transform_indices = @transform_34, window_bounds = array<i64: 10, 64>}, {pipeline_mode = #tpu.pipeline_mode<synchronous>, transform_indices = @transform_35, window_bounds = array<i64: 1, 64>}, {pipeline_mode = #tpu.pipeline_mode<synchronous>, transform_indices = @transform_36, window_bounds = array<i64: 1, 64>}, {pipeline_mode = #tpu.pipeline_mode<synchronous>, transform_indices = @transform_37, window_bounds = array<i64: 64, 64>}, {pipeline_mode = #tpu.pipeline_mode<synchronous>, transform_indices = @transform_38, window_bounds = array<i64: 1, 64>}, {pipeline_mode = #tpu.pipeline_mode<synchronous>, transform_indices = @transform_39, window_bounds = array<i64: 64, 64>}, {pipeline_mode = #tpu.pipeline_mode<synchronous>, transform_indices = @transform_40, window_bounds = array<i64: 1, 64>}, {pipeline_mode = #tpu.pipeline_mode<synchronous>, transform_indices = @transform_41, window_bounds = array<i64: 64, 64>}, {pipeline_mode = #tpu.pipeline_mode<synchronous>, transform_indices = @transform_42, window_bounds = array<i64: 1, 64>}, {pipeline_mode = #tpu.pipeline_mode<synchronous>, transform_indices = @transform_43, window_bounds = array<i64: 1, 64>}, {pipeline_mode = #tpu.pipeline_mode<synchronous>, transform_indices = @transform_44, window_bounds = array<i64: 1, 64>}, {pipeline_mode = #tpu.pipeline_mode<synchronous>, transform_indices = @transform_45, window_bounds = array<i64: 64, 256>}, {pipeline_mode = #tpu.pipeline_mode<synchronous>, transform_indices = @transform_46, window_bounds = array<i64: 1, 256>}, {pipeline_mode = #tpu.pipeline_mode<synchronous>, transform_indices = @transform_47, window_bounds = array<i64: 256, 64>}, {pipeline_mode = #tpu.pipeline_mode<synchronous>, transform_indices = @transform_48, window_bounds = array<i64: 1, 64>}, {pipeline_mode = #tpu.pipeline_mode<synchronous>, transform_indices = @transform_49, window_bounds = array<i64: 64, 2>}, {pipeline_mode = #tpu.pipeline_mode<synchronous>, transform_indices = @transform_50, window_bounds = array<i64: 1, 2>}, {pipeline_mode = #tpu.pipeline_mode<synchronous>, transform_indices = @transform_51, window_bounds = array<i64: 10, 1>}, {transform_indices = @transform_52, window_bounds = array<i64: 1, 1, 1>}, {transform_indices = @transform_53, window_bounds = array<i64: 1, 9, 1>}]} {
    %c0 = arith.constant 0 : index
    %c0_0 = arith.constant 0 : index
    %c0_1 = arith.constant 0 : index
    %c0_2 = arith.constant 0 : index
    %0 = vector.load %arg1[%c0, %c0_0, %c0_1, %c0_2] : memref<1x8x8x16xbf16, #tpu.memory_space<vmem>>, vector<1x8x8x16xbf16>
    %1 = vector.shape_cast %0 : vector<1x8x8x16xbf16> to vector<8x8x16xbf16>
    %cst = arith.constant 0.000000e+00 : f32
    %2 = vector.broadcast %cst : f32 to vector<1x9x16xf32>
    %c0_3 = arith.constant 0 : index
    %c7 = arith.constant 7 : index
    %c0_4 = arith.constant 0 : index
    %3 = vector.load %arg55[%c0_3, %c7, %c0_4] : memref<9x16x16xf32, #tpu.memory_space<vmem>>, vector<1x9x16xf32>
    tpu.vector_store %arg55[%c0_3, %c7, %c0_4], %2 {strides = array<i32>} : memref<9x16x16xf32, #tpu.memory_space<vmem>>, vector<1x9x16xf32>,
    %cst_5 = arith.constant 0.000000e+00 : f32
    %4 = vector.broadcast %cst_5 : f32 to vector<8x1x16xf32>
    %c1 = arith.constant 1 : index
    %c7_6 = arith.constant 7 : index
    %c0_7 = arith.constant 0 : index
    %5 = vector.load %arg55[%c1, %c7_6, %c0_7] : memref<9x16x16xf32, #tpu.memory_space<vmem>>, vector<8x1x16xf32>
    tpu.vector_store %arg55[%c1, %c7_6, %c0_7], %4 {strides = array<i32>} : memref<9x16x16xf32, #tpu.memory_space<vmem>>, vector<8x1x16xf32>,
    %6 = arith.extf %1 : vector<8x8x16xbf16> to vector<8x8x16xf32>
    %c1_8 = arith.constant 1 : index
    %c8 = arith.constant 8 : index
    %c0_9 = arith.constant 0 : index
    %7 = vector.load %arg55[%c1_8, %c8, %c0_9] : memref<9x16x16xf32, #tpu.memory_space<vmem>>, vector<8x8x16xf32>
    tpu.vector_store %arg55[%c1_8, %c8, %c0_9], %6 {strides = array<i32>} : memref<9x16x16xf32, #tpu.memory_space<vmem>>, vector<8x8x16xf32>,
    %cst_10 = arith.constant 0.000000e+00 : f32
    %8 = vector.broadcast %cst_10 : f32 to vector<64x16xf32>
    %c0_11 = arith.constant 0 : index
    %c7_12 = arith.constant 7 : index
    %c0_13 = arith.constant 0 : index
    %9 = vector.load %arg55[%c0_11, %c7_12, %c0_13] : memref<9x16x16xf32, #tpu.memory_space<vmem>>, vector<8x8x16xf32>
    %10 = vector.shape_cast %9 : vector<8x8x16xf32> to vector<64x16xf32>
    %11 = arith.truncf %10 : vector<64x16xf32> to vector<64x16xbf16>
    %c0_14 = arith.constant 0 : index
    %c0_15 = arith.constant 0 : index
    %c0_16 = arith.constant 0 : index
    %12 = vector.load %arg2[%c0_14, %c0_15, %c0_16] : memref<4x16x16xbf16, #tpu.memory_space<vmem>>, vector<1x16x16xbf16>
    %13 = vector.shape_cast %12 : vector<1x16x16xbf16> to vector<16x16xbf16>
    %cst_17 = arith.constant dense<0.000000e+00> : vector<64x16xf32>
    %14 = tpu.matmul %11, %13, %cst_17 {dimension_numbers = #tpu.dot_dimension_numbers<[1], [0], [0], [1], [0, 0, 1, 1], [], []>} : vector<64x16xbf16>, vector<16x16xbf16>, vector<64x16xf32> -> vector<64x16xf32>
    %15 = arith.addf %8, %14 : vector<64x16xf32>
    %c0_18 = arith.constant 0 : index
    %c8_19 = arith.constant 8 : index
    %c0_20 = arith.constant 0 : index
    %16 = vector.load %arg55[%c0_18, %c8_19, %c0_20] : memref<9x16x16xf32, #tpu.memory_space<vmem>>, vector<8x8x16xf32>
    %17 = vector.shape_cast %16 : vector<8x8x16xf32> to vector<64x16xf32>
    %18 = arith.truncf %17 : vector<64x16xf32> to vector<64x16xbf16>
    %c1_21 = arith.constant 1 : index
    %c0_22 = arith.constant 0 : index
    %c0_23 = arith.constant 0 : index
    %19 = vector.load %arg2[%c1_21, %c0_22, %c0_23] : memref<4x16x16xbf16, #tpu.memory_space<vmem>>, vector<1x16x16xbf16>
    %20 = vector.shape_cast %19 : vector<1x16x16xbf16> to vector<16x16xbf16>
    %cst_24 = arith.constant dense<0.000000e+00> : vector<64x16xf32>
    %21 = tpu.matmul %18, %20, %cst_24 {dimension_numbers = #tpu.dot_dimension_numbers<[1], [0], [0], [1], [0, 0, 1, 1], [], []>} : vector<64x16xbf16>, vector<16x16xbf16>, vector<64x16xf32> -> vector<64x16xf32>
    %22 = arith.addf %15, %21 : vector<64x16xf32>
    %c1_25 = arith.constant 1 : index
    %c7_26 = arith.constant 7 : index
    %c0_27 = arith.constant 0 : index
    %23 = vector.load %arg55[%c1_25, %c7_26, %c0_27] : memref<9x16x16xf32, #tpu.memory_space<vmem>>, vector<8x8x16xf32>
    %24 = vector.shape_cast %23 : vector<8x8x16xf32> to vector<64x16xf32>
    %25 = arith.truncf %24 : vector<64x16xf32> to vector<64x16xbf16>
    %c2 = arith.constant 2 : index
    %c0_28 = arith.constant 0 : index
    %c0_29 = arith.constant 0 : index
    %26 = vector.load %arg2[%c2, %c0_28, %c0_29] : memref<4x16x16xbf16, #tpu.memory_space<vmem>>, vector<1x16x16xbf16>
    %27 = vector.shape_cast %26 : vector<1x16x16xbf16> to vector<16x16xbf16>
    %cst_30 = arith.constant dense<0.000000e+00> : vector<64x16xf32>
    %28 = tpu.matmul %25, %27, %cst_30 {dimension_numbers = #tpu.dot_dimension_numbers<[1], [0], [0], [1], [0, 0, 1, 1], [], []>} : vector<64x16xbf16>, vector<16x16xbf16>, vector<64x16xf32> -> vector<64x16xf32>
    %29 = arith.addf %22, %28 : vector<64x16xf32>
    %c1_31 = arith.constant 1 : index
    %c8_32 = arith.constant 8 : index
    %c0_33 = arith.constant 0 : index
    %30 = vector.load %arg55[%c1_31, %c8_32, %c0_33] : memref<9x16x16xf32, #tpu.memory_space<vmem>>, vector<8x8x16xf32>
    %31 = vector.shape_cast %30 : vector<8x8x16xf32> to vector<64x16xf32>
    %32 = arith.truncf %31 : vector<64x16xf32> to vector<64x16xbf16>
    %c3 = arith.constant 3 : index
    %c0_34 = arith.constant 0 : index
    %c0_35 = arith.constant 0 : index
    %33 = vector.load %arg2[%c3, %c0_34, %c0_35] : memref<4x16x16xbf16, #tpu.memory_space<vmem>>, vector<1x16x16xbf16>
    %34 = vector.shape_cast %33 : vector<1x16x16xbf16> to vector<16x16xbf16>
    %cst_36 = arith.constant dense<0.000000e+00> : vector<64x16xf32>
    %35 = tpu.matmul %32, %34, %cst_36 {dimension_numbers = #tpu.dot_dimension_numbers<[1], [0], [0], [1], [0, 0, 1, 1], [], []>} : vector<64x16xbf16>, vector<16x16xbf16>, vector<64x16xf32> -> vector<64x16xf32>
    %36 = arith.addf %29, %35 : vector<64x16xf32>
    %c0_37 = arith.constant 0 : index
    %c0_38 = arith.constant 0 : index
    %37 = vector.load %arg3[%c0_37, %c0_38] : memref<1x16xf32, #tpu.memory_space<vmem>>, vector<1x16xf32>
    %38 = vector.broadcast %37 : vector<1x16xf32> to vector<64x16xf32>
    %39 = arith.addf %36, %38 : vector<64x16xf32>
    %40 = arith.truncf %39 : vector<64x16xf32> to vector<64x16xbf16>
    %c0_39 = arith.constant 0 : index
    %c0_40 = arith.constant 0 : index
    %41 = vector.load %arg5[%c0_39, %c0_40] : memref<16x96xbf16, #tpu.memory_space<vmem>>, vector<16x96xbf16>
    %cst_41 = arith.constant dense<0.000000e+00> : vector<64x96xf32>
    %42 = tpu.matmul %40, %41, %cst_41 {dimension_numbers = #tpu.dot_dimension_numbers<[1], [0], [0], [1], [0, 0, 1, 1], [], []>} : vector<64x16xbf16>, vector<16x96xbf16>, vector<64x96xf32> -> vector<64x96xf32>
    %c0_42 = arith.constant 0 : index
    %c0_43 = arith.constant 0 : index
    %43 = vector.load %arg6[%c0_42, %c0_43] : memref<1x96xf32, #tpu.memory_space<vmem>>, vector<1x96xf32>
    %44 = vector.broadcast %43 : vector<1x96xf32> to vector<64x96xf32>
    %45 = arith.addf %42, %44 : vector<64x96xf32>
    %cst_44 = arith.constant 0.000000e+00 : f32
    %cst_45 = arith.constant 6.000000e+00 : f32
    %46 = vector.broadcast %cst_44 : f32 to vector<64x96xf32>
    %47 = arith.maximumf %46, %45 : vector<64x96xf32>
    %48 = vector.broadcast %cst_45 : f32 to vector<64x96xf32>
    %49 = arith.minimumf %48, %47 : vector<64x96xf32>
    %cst_46 = arith.constant 0.000000e+00 : f32
    %50 = vector.broadcast %cst_46 : f32 to vector<1x10x96xf32>
    %c0_47 = arith.constant 0 : index
    %c7_48 = arith.constant 7 : index
    %c0_49 = arith.constant 0 : index
    %51 = vector.load %arg56[%c0_47, %c7_48, %c0_49] : memref<10x17x96xf32, #tpu.memory_space<vmem>>, vector<1x10x96xf32>
    tpu.vector_store %arg56[%c0_47, %c7_48, %c0_49], %50 {strides = array<i32>} : memref<10x17x96xf32, #tpu.memory_space<vmem>>, vector<1x10x96xf32>,
    %cst_50 = arith.constant 0.000000e+00 : f32
    %52 = vector.broadcast %cst_50 : f32 to vector<1x10x96xf32>
    %c9 = arith.constant 9 : index
    %c7_51 = arith.constant 7 : index
    %c0_52 = arith.constant 0 : index
    %53 = vector.load %arg56[%c9, %c7_51, %c0_52] : memref<10x17x96xf32, #tpu.memory_space<vmem>>, vector<1x10x96xf32>
    tpu.vector_store %arg56[%c9, %c7_51, %c0_52], %52 {strides = array<i32>} : memref<10x17x96xf32, #tpu.memory_space<vmem>>, vector<1x10x96xf32>,
    %cst_53 = arith.constant 0.000000e+00 : f32
    %54 = vector.broadcast %cst_53 : f32 to vector<8x1x96xf32>
    %c1_54 = arith.constant 1 : index
    %c7_55 = arith.constant 7 : index
    %c0_56 = arith.constant 0 : index
    %55 = vector.load %arg56[%c1_54, %c7_55, %c0_56] : memref<10x17x96xf32, #tpu.memory_space<vmem>>, vector<8x1x96xf32>
    tpu.vector_store %arg56[%c1_54, %c7_55, %c0_56], %54 {strides = array<i32>} : memref<10x17x96xf32, #tpu.memory_space<vmem>>, vector<8x1x96xf32>,
    %cst_57 = arith.constant 0.000000e+00 : f32
    %56 = vector.broadcast %cst_57 : f32 to vector<8x1x96xf32>
    %c1_58 = arith.constant 1 : index
    %c16 = arith.constant 16 : index
    %c0_59 = arith.constant 0 : index
    %57 = vector.load %arg56[%c1_58, %c16, %c0_59] : memref<10x17x96xf32, #tpu.memory_space<vmem>>, vector<8x1x96xf32>
    tpu.vector_store %arg56[%c1_58, %c16, %c0_59], %56 {strides = array<i32>} : memref<10x17x96xf32, #tpu.memory_space<vmem>>, vector<8x1x96xf32>,
    %58 = vector.shape_cast %49 : vector<64x96xf32> to vector<8x8x96xf32>
    %c1_60 = arith.constant 1 : index
    %c8_61 = arith.constant 8 : index
    %c0_62 = arith.constant 0 : index
    %59 = vector.load %arg56[%c1_60, %c8_61, %c0_62] : memref<10x17x96xf32, #tpu.memory_space<vmem>>, vector<8x8x96xf32>
    tpu.vector_store %arg56[%c1_60, %c8_61, %c0_62], %58 {strides = array<i32>} : memref<10x17x96xf32, #tpu.memory_space<vmem>>, vector<8x8x96xf32>,
    %c0_63 = arith.constant 0 : index
    %c0_64 = arith.constant 0 : index
    %60 = vector.load %arg7[%c0_63, %c0_64] : memref<9x96xf32, #tpu.memory_space<vmem>>, vector<9x96xf32>
    %61 = vector.extract_strided_slice %60 {offsets = [0, 0], sizes = [1, 96], strides = [1, 1]} : vector<9x96xf32> to vector<1x96xf32>
    %62 = vector.shape_cast %61 : vector<1x96xf32> to vector<96xf32>
    %63 = vector.extract_strided_slice %60 {offsets = [1, 0], sizes = [1, 96], strides = [1, 1]} : vector<9x96xf32> to vector<1x96xf32>
    %64 = vector.shape_cast %63 : vector<1x96xf32> to vector<96xf32>
    %65 = vector.extract_strided_slice %60 {offsets = [2, 0], sizes = [1, 96], strides = [1, 1]} : vector<9x96xf32> to vector<1x96xf32>
    %66 = vector.shape_cast %65 : vector<1x96xf32> to vector<96xf32>
    %67 = vector.extract_strided_slice %60 {offsets = [3, 0], sizes = [1, 96], strides = [1, 1]} : vector<9x96xf32> to vector<1x96xf32>
    %68 = vector.shape_cast %67 : vector<1x96xf32> to vector<96xf32>
    %69 = vector.extract_strided_slice %60 {offsets = [4, 0], sizes = [1, 96], strides = [1, 1]} : vector<9x96xf32> to vector<1x96xf32>
    %70 = vector.shape_cast %69 : vector<1x96xf32> to vector<96xf32>
    %71 = vector.extract_strided_slice %60 {offsets = [5, 0], sizes = [1, 96], strides = [1, 1]} : vector<9x96xf32> to vector<1x96xf32>
    %72 = vector.shape_cast %71 : vector<1x96xf32> to vector<96xf32>
    %73 = vector.extract_strided_slice %60 {offsets = [6, 0], sizes = [1, 96], strides = [1, 1]} : vector<9x96xf32> to vector<1x96xf32>
    %74 = vector.shape_cast %73 : vector<1x96xf32> to vector<96xf32>
    %75 = vector.extract_strided_slice %60 {offsets = [7, 0], sizes = [1, 96], strides = [1, 1]} : vector<9x96xf32> to vector<1x96xf32>
    %76 = vector.shape_cast %75 : vector<1x96xf32> to vector<96xf32>
    %77 = vector.extract_strided_slice %60 {offsets = [8, 0], sizes = [1, 96], strides = [1, 1]} : vector<9x96xf32> to vector<1x96xf32>
    %78 = vector.shape_cast %77 : vector<1x96xf32> to vector<96xf32>
    %cst_65 = arith.constant 0.000000e+00 : f32
    %79 = vector.broadcast %cst_65 : f32 to vector<8x8x96xf32>
    %c0_66 = arith.constant 0 : index
    %c7_67 = arith.constant 7 : index
    %c0_68 = arith.constant 0 : index
    %80 = vector.load %arg56[%c0_66, %c7_67, %c0_68] : memref<10x17x96xf32, #tpu.memory_space<vmem>>, vector<8x8x96xf32>
    %81 = vector.shape_cast %62 : vector<96xf32> to vector<1x1x96xf32>
    %82 = vector.broadcast %81 : vector<1x1x96xf32> to vector<8x8x96xf32>
    %83 = arith.mulf %80, %82 : vector<8x8x96xf32>
    %84 = arith.addf %79, %83 : vector<8x8x96xf32>
    %c0_69 = arith.constant 0 : index
    %c8_70 = arith.constant 8 : index
    %c0_71 = arith.constant 0 : index
    %85 = vector.load %arg56[%c0_69, %c8_70, %c0_71] : memref<10x17x96xf32, #tpu.memory_space<vmem>>, vector<8x8x96xf32>
    %86 = vector.shape_cast %64 : vector<96xf32> to vector<1x1x96xf32>
    %87 = vector.broadcast %86 : vector<1x1x96xf32> to vector<8x8x96xf32>
    %88 = arith.mulf %85, %87 : vector<8x8x96xf32>
    %89 = arith.addf %84, %88 : vector<8x8x96xf32>
    %c0_72 = arith.constant 0 : index
    %c9_73 = arith.constant 9 : index
    %c0_74 = arith.constant 0 : index
    %90 = vector.load %arg56[%c0_72, %c9_73, %c0_74] : memref<10x17x96xf32, #tpu.memory_space<vmem>>, vector<8x8x96xf32>
    %91 = vector.shape_cast %66 : vector<96xf32> to vector<1x1x96xf32>
    %92 = vector.broadcast %91 : vector<1x1x96xf32> to vector<8x8x96xf32>
    %93 = arith.mulf %90, %92 : vector<8x8x96xf32>
    %94 = arith.addf %89, %93 : vector<8x8x96xf32>
    %c1_75 = arith.constant 1 : index
    %c7_76 = arith.constant 7 : index
    %c0_77 = arith.constant 0 : index
    %95 = vector.load %arg56[%c1_75, %c7_76, %c0_77] : memref<10x17x96xf32, #tpu.memory_space<vmem>>, vector<8x8x96xf32>
    %96 = vector.shape_cast %68 : vector<96xf32> to vector<1x1x96xf32>
    %97 = vector.broadcast %96 : vector<1x1x96xf32> to vector<8x8x96xf32>
    %98 = arith.mulf %95, %97 : vector<8x8x96xf32>
    %99 = arith.addf %94, %98 : vector<8x8x96xf32>
    %c1_78 = arith.constant 1 : index
    %c8_79 = arith.constant 8 : index
    %c0_80 = arith.constant 0 : index
    %100 = vector.load %arg56[%c1_78, %c8_79, %c0_80] : memref<10x17x96xf32, #tpu.memory_space<vmem>>, vector<8x8x96xf32>
    %101 = vector.shape_cast %70 : vector<96xf32> to vector<1x1x96xf32>
    %102 = vector.broadcast %101 : vector<1x1x96xf32> to vector<8x8x96xf32>
    %103 = arith.mulf %100, %102 : vector<8x8x96xf32>
    %104 = arith.addf %99, %103 : vector<8x8x96xf32>
    %c1_81 = arith.constant 1 : index
    %c9_82 = arith.constant 9 : index
    %c0_83 = arith.constant 0 : index
    %105 = vector.load %arg56[%c1_81, %c9_82, %c0_83] : memref<10x17x96xf32, #tpu.memory_space<vmem>>, vector<8x8x96xf32>
    %106 = vector.shape_cast %72 : vector<96xf32> to vector<1x1x96xf32>
    %107 = vector.broadcast %106 : vector<1x1x96xf32> to vector<8x8x96xf32>
    %108 = arith.mulf %105, %107 : vector<8x8x96xf32>
    %109 = arith.addf %104, %108 : vector<8x8x96xf32>
    %c2_84 = arith.constant 2 : index
    %c7_85 = arith.constant 7 : index
    %c0_86 = arith.constant 0 : index
    %110 = vector.load %arg56[%c2_84, %c7_85, %c0_86] : memref<10x17x96xf32, #tpu.memory_space<vmem>>, vector<8x8x96xf32>
    %111 = vector.shape_cast %74 : vector<96xf32> to vector<1x1x96xf32>
    %112 = vector.broadcast %111 : vector<1x1x96xf32> to vector<8x8x96xf32>
    %113 = arith.mulf %110, %112 : vector<8x8x96xf32>
    %114 = arith.addf %109, %113 : vector<8x8x96xf32>
    %c2_87 = arith.constant 2 : index
    %c8_88 = arith.constant 8 : index
    %c0_89 = arith.constant 0 : index
    %115 = vector.load %arg56[%c2_87, %c8_88, %c0_89] : memref<10x17x96xf32, #tpu.memory_space<vmem>>, vector<8x8x96xf32>
    %116 = vector.shape_cast %76 : vector<96xf32> to vector<1x1x96xf32>
    %117 = vector.broadcast %116 : vector<1x1x96xf32> to vector<8x8x96xf32>
    %118 = arith.mulf %115, %117 : vector<8x8x96xf32>
    %119 = arith.addf %114, %118 : vector<8x8x96xf32>
    %c2_90 = arith.constant 2 : index
    %c9_91 = arith.constant 9 : index
    %c0_92 = arith.constant 0 : index
    %120 = vector.load %arg56[%c2_90, %c9_91, %c0_92] : memref<10x17x96xf32, #tpu.memory_space<vmem>>, vector<8x8x96xf32>
    %121 = vector.shape_cast %78 : vector<96xf32> to vector<1x1x96xf32>
    %122 = vector.broadcast %121 : vector<1x1x96xf32> to vector<8x8x96xf32>
    %123 = arith.mulf %120, %122 : vector<8x8x96xf32>
    %124 = arith.addf %119, %123 : vector<8x8x96xf32>
    %125 = vector.shape_cast %124 : vector<8x8x96xf32> to vector<64x96xf32>
    %c0_93 = arith.constant 0 : index
    %c0_94 = arith.constant 0 : index
    %126 = vector.load %arg8[%c0_93, %c0_94] : memref<1x96xf32, #tpu.memory_space<vmem>>, vector<1x96xf32>
    %127 = vector.broadcast %126 : vector<1x96xf32> to vector<64x96xf32>
    %128 = arith.addf %125, %127 : vector<64x96xf32>
    %cst_95 = arith.constant 0.000000e+00 : f32
    %cst_96 = arith.constant 6.000000e+00 : f32
    %129 = vector.broadcast %cst_95 : f32 to vector<64x96xf32>
    %130 = arith.maximumf %129, %128 : vector<64x96xf32>
    %131 = vector.broadcast %cst_96 : f32 to vector<64x96xf32>
    %132 = arith.minimumf %131, %130 : vector<64x96xf32>
    %cst_97 = arith.constant dense<0.000000e+00> : vector<96xf32>
    %133 = vector.multi_reduction <add>, %132, %cst_97 [0] : vector<64x96xf32> to vector<96xf32>
    %134 = vector.shape_cast %133 : vector<96xf32> to vector<1x96xf32>
    %cst_98 = arith.constant 6.400000e+01 : f32
    %135 = vector.broadcast %cst_98 : f32 to vector<1x96xf32>
    %136 = arith.divf %134, %135 : vector<1x96xf32>
    %137 = arith.truncf %136 : vector<1x96xf32> to vector<1x96xbf16>
    %c0_99 = arith.constant 0 : index
    %c0_100 = arith.constant 0 : index
    %138 = vector.load %arg9[%c0_99, %c0_100] : memref<96x24xbf16, #tpu.memory_space<vmem>>, vector<96x24xbf16>
    %cst_101 = arith.constant dense<0.000000e+00> : vector<1x24xf32>
    %139 = tpu.matmul %137, %138, %cst_101 {dimension_numbers = #tpu.dot_dimension_numbers<[1], [0], [0], [1], [0, 0, 1, 1], [], []>} : vector<1x96xbf16>, vector<96x24xbf16>, vector<1x24xf32> -> vector<1x24xf32>
    %c0_102 = arith.constant 0 : index
    %c0_103 = arith.constant 0 : index
    %140 = vector.load %arg10[%c0_102, %c0_103] : memref<1x24xf32, #tpu.memory_space<vmem>>, vector<1x24xf32>
    %141 = arith.addf %139, %140 : vector<1x24xf32>
    %cst_104 = arith.constant 0.000000e+00 : f32
    %142 = vector.broadcast %cst_104 : f32 to vector<1x24xf32>
    %143 = arith.maximumf %141, %142 : vector<1x24xf32>
    %144 = arith.truncf %143 : vector<1x24xf32> to vector<1x24xbf16>
    %c0_105 = arith.constant 0 : index
    %c0_106 = arith.constant 0 : index
    %145 = vector.load %arg11[%c0_105, %c0_106] : memref<24x96xbf16, #tpu.memory_space<vmem>>, vector<24x96xbf16>
    %cst_107 = arith.constant dense<0.000000e+00> : vector<1x96xf32>
    %146 = tpu.matmul %144, %145, %cst_107 {dimension_numbers = #tpu.dot_dimension_numbers<[1], [0], [0], [1], [0, 0, 1, 1], [], []>} : vector<1x24xbf16>, vector<24x96xbf16>, vector<1x96xf32> -> vector<1x96xf32>
    %c0_108 = arith.constant 0 : index
    %c0_109 = arith.constant 0 : index
    %147 = vector.load %arg12[%c0_108, %c0_109] : memref<1x96xf32, #tpu.memory_space<vmem>>, vector<1x96xf32>
    %148 = arith.addf %146, %147 : vector<1x96xf32>
    %149 = arith.negf %148 : vector<1x96xf32>
    %150 = math.exp %149 : vector<1x96xf32>
    %cst_110 = arith.constant 1.000000e+00 : f32
    %151 = vector.broadcast %cst_110 : f32 to vector<1x96xf32>
    %152 = arith.addf %151, %150 : vector<1x96xf32>
    %153 = arith.divf %151, %152 : vector<1x96xf32>
    %154 = vector.broadcast %153 : vector<1x96xf32> to vector<64x96xf32>
    %155 = arith.mulf %132, %154 : vector<64x96xf32>
    %156 = arith.truncf %155 : vector<64x96xf32> to vector<64x96xbf16>
    %c0_111 = arith.constant 0 : index
    %c0_112 = arith.constant 0 : index
    %157 = vector.load %arg13[%c0_111, %c0_112] : memref<96x32xbf16, #tpu.memory_space<vmem>>, vector<96x32xbf16>
    %cst_113 = arith.constant dense<0.000000e+00> : vector<64x32xf32>
    %158 = tpu.matmul %156, %157, %cst_113 {dimension_numbers = #tpu.dot_dimension_numbers<[1], [0], [0], [1], [0, 0, 1, 1], [], []>} : vector<64x96xbf16>, vector<96x32xbf16>, vector<64x32xf32> -> vector<64x32xf32>
    %c0_114 = arith.constant 0 : index
    %c0_115 = arith.constant 0 : index
    %159 = vector.load %arg14[%c0_114, %c0_115] : memref<1x32xf32, #tpu.memory_space<vmem>>, vector<1x32xf32>
    %160 = vector.broadcast %159 : vector<1x32xf32> to vector<64x32xf32>
    %161 = arith.addf %158, %160 : vector<64x32xf32>
    %162 = arith.truncf %161 : vector<64x32xf32> to vector<64x32xbf16>
    %c0_116 = arith.constant 0 : index
    %c0_117 = arith.constant 0 : index
    %163 = vector.load %arg15[%c0_116, %c0_117] : memref<32x192xbf16, #tpu.memory_space<vmem>>, vector<32x192xbf16>
    %cst_118 = arith.constant dense<0.000000e+00> : vector<64x192xf32>
    %164 = tpu.matmul %162, %163, %cst_118 {dimension_numbers = #tpu.dot_dimension_numbers<[1], [0], [0], [1], [0, 0, 1, 1], [], []>} : vector<64x32xbf16>, vector<32x192xbf16>, vector<64x192xf32> -> vector<64x192xf32>
    %c0_119 = arith.constant 0 : index
    %c0_120 = arith.constant 0 : index
    %165 = vector.load %arg16[%c0_119, %c0_120] : memref<1x192xf32, #tpu.memory_space<vmem>>, vector<1x192xf32>
    %166 = vector.broadcast %165 : vector<1x192xf32> to vector<64x192xf32>
    %167 = arith.addf %164, %166 : vector<64x192xf32>
    %cst_121 = arith.constant 0.000000e+00 : f32
    %cst_122 = arith.constant 6.000000e+00 : f32
    %168 = vector.broadcast %cst_121 : f32 to vector<64x192xf32>
    %169 = arith.maximumf %168, %167 : vector<64x192xf32>
    %170 = vector.broadcast %cst_122 : f32 to vector<64x192xf32>
    %171 = arith.minimumf %170, %169 : vector<64x192xf32>
    %cst_123 = arith.constant 0.000000e+00 : f32
    %172 = vector.broadcast %cst_123 : f32 to vector<1x10x192xf32>
    %c0_124 = arith.constant 0 : index
    %c7_125 = arith.constant 7 : index
    %c0_126 = arith.constant 0 : index
    %173 = vector.load %arg57[%c0_124, %c7_125, %c0_126] : memref<10x17x192xf32, #tpu.memory_space<vmem>>, vector<1x10x192xf32>
    tpu.vector_store %arg57[%c0_124, %c7_125, %c0_126], %172 {strides = array<i32>} : memref<10x17x192xf32, #tpu.memory_space<vmem>>, vector<1x10x192xf32>,
    %cst_127 = arith.constant 0.000000e+00 : f32
    %174 = vector.broadcast %cst_127 : f32 to vector<1x10x192xf32>
    %c9_128 = arith.constant 9 : index
    %c7_129 = arith.constant 7 : index
    %c0_130 = arith.constant 0 : index
    %175 = vector.load %arg57[%c9_128, %c7_129, %c0_130] : memref<10x17x192xf32, #tpu.memory_space<vmem>>, vector<1x10x192xf32>
    tpu.vector_store %arg57[%c9_128, %c7_129, %c0_130], %174 {strides = array<i32>} : memref<10x17x192xf32, #tpu.memory_space<vmem>>, vector<1x10x192xf32>,
    %cst_131 = arith.constant 0.000000e+00 : f32
    %176 = vector.broadcast %cst_131 : f32 to vector<8x1x192xf32>
    %c1_132 = arith.constant 1 : index
    %c7_133 = arith.constant 7 : index
    %c0_134 = arith.constant 0 : index
    %177 = vector.load %arg57[%c1_132, %c7_133, %c0_134] : memref<10x17x192xf32, #tpu.memory_space<vmem>>, vector<8x1x192xf32>
    tpu.vector_store %arg57[%c1_132, %c7_133, %c0_134], %176 {strides = array<i32>} : memref<10x17x192xf32, #tpu.memory_space<vmem>>, vector<8x1x192xf32>,
    %cst_135 = arith.constant 0.000000e+00 : f32
    %178 = vector.broadcast %cst_135 : f32 to vector<8x1x192xf32>
    %c1_136 = arith.constant 1 : index
    %c16_137 = arith.constant 16 : index
    %c0_138 = arith.constant 0 : index
    %179 = vector.load %arg57[%c1_136, %c16_137, %c0_138] : memref<10x17x192xf32, #tpu.memory_space<vmem>>, vector<8x1x192xf32>
    tpu.vector_store %arg57[%c1_136, %c16_137, %c0_138], %178 {strides = array<i32>} : memref<10x17x192xf32, #tpu.memory_space<vmem>>, vector<8x1x192xf32>,
    %180 = vector.shape_cast %171 : vector<64x192xf32> to vector<8x8x192xf32>
    %c1_139 = arith.constant 1 : index
    %c8_140 = arith.constant 8 : index
    %c0_141 = arith.constant 0 : index
    %181 = vector.load %arg57[%c1_139, %c8_140, %c0_141] : memref<10x17x192xf32, #tpu.memory_space<vmem>>, vector<8x8x192xf32>
    tpu.vector_store %arg57[%c1_139, %c8_140, %c0_141], %180 {strides = array<i32>} : memref<10x17x192xf32, #tpu.memory_space<vmem>>, vector<8x8x192xf32>,
    %c0_142 = arith.constant 0 : index
    %c0_143 = arith.constant 0 : index
    %182 = vector.load %arg17[%c0_142, %c0_143] : memref<9x192xf32, #tpu.memory_space<vmem>>, vector<9x192xf32>
    %183 = vector.extract_strided_slice %182 {offsets = [0, 0], sizes = [1, 192], strides = [1, 1]} : vector<9x192xf32> to vector<1x192xf32>
    %184 = vector.shape_cast %183 : vector<1x192xf32> to vector<192xf32>
    %185 = vector.extract_strided_slice %182 {offsets = [1, 0], sizes = [1, 192], strides = [1, 1]} : vector<9x192xf32> to vector<1x192xf32>
    %186 = vector.shape_cast %185 : vector<1x192xf32> to vector<192xf32>
    %187 = vector.extract_strided_slice %182 {offsets = [2, 0], sizes = [1, 192], strides = [1, 1]} : vector<9x192xf32> to vector<1x192xf32>
    %188 = vector.shape_cast %187 : vector<1x192xf32> to vector<192xf32>
    %189 = vector.extract_strided_slice %182 {offsets = [3, 0], sizes = [1, 192], strides = [1, 1]} : vector<9x192xf32> to vector<1x192xf32>
    %190 = vector.shape_cast %189 : vector<1x192xf32> to vector<192xf32>
    %191 = vector.extract_strided_slice %182 {offsets = [4, 0], sizes = [1, 192], strides = [1, 1]} : vector<9x192xf32> to vector<1x192xf32>
    %192 = vector.shape_cast %191 : vector<1x192xf32> to vector<192xf32>
    %193 = vector.extract_strided_slice %182 {offsets = [5, 0], sizes = [1, 192], strides = [1, 1]} : vector<9x192xf32> to vector<1x192xf32>
    %194 = vector.shape_cast %193 : vector<1x192xf32> to vector<192xf32>
    %195 = vector.extract_strided_slice %182 {offsets = [6, 0], sizes = [1, 192], strides = [1, 1]} : vector<9x192xf32> to vector<1x192xf32>
    %196 = vector.shape_cast %195 : vector<1x192xf32> to vector<192xf32>
    %197 = vector.extract_strided_slice %182 {offsets = [7, 0], sizes = [1, 192], strides = [1, 1]} : vector<9x192xf32> to vector<1x192xf32>
    %198 = vector.shape_cast %197 : vector<1x192xf32> to vector<192xf32>
    %199 = vector.extract_strided_slice %182 {offsets = [8, 0], sizes = [1, 192], strides = [1, 1]} : vector<9x192xf32> to vector<1x192xf32>
    %200 = vector.shape_cast %199 : vector<1x192xf32> to vector<192xf32>
    %cst_144 = arith.constant 0.000000e+00 : f32
    %201 = vector.broadcast %cst_144 : f32 to vector<8x8x192xf32>
    %c0_145 = arith.constant 0 : index
    %c7_146 = arith.constant 7 : index
    %c0_147 = arith.constant 0 : index
    %202 = vector.load %arg57[%c0_145, %c7_146, %c0_147] : memref<10x17x192xf32, #tpu.memory_space<vmem>>, vector<8x8x192xf32>
    %203 = vector.shape_cast %184 : vector<192xf32> to vector<1x1x192xf32>
    %204 = vector.broadcast %203 : vector<1x1x192xf32> to vector<8x8x192xf32>
    %205 = arith.mulf %202, %204 : vector<8x8x192xf32>
    %206 = arith.addf %201, %205 : vector<8x8x192xf32>
    %c0_148 = arith.constant 0 : index
    %c8_149 = arith.constant 8 : index
    %c0_150 = arith.constant 0 : index
    %207 = vector.load %arg57[%c0_148, %c8_149, %c0_150] : memref<10x17x192xf32, #tpu.memory_space<vmem>>, vector<8x8x192xf32>
    %208 = vector.shape_cast %186 : vector<192xf32> to vector<1x1x192xf32>
    %209 = vector.broadcast %208 : vector<1x1x192xf32> to vector<8x8x192xf32>
    %210 = arith.mulf %207, %209 : vector<8x8x192xf32>
    %211 = arith.addf %206, %210 : vector<8x8x192xf32>
    %c0_151 = arith.constant 0 : index
    %c9_152 = arith.constant 9 : index
    %c0_153 = arith.constant 0 : index
    %212 = vector.load %arg57[%c0_151, %c9_152, %c0_153] : memref<10x17x192xf32, #tpu.memory_space<vmem>>, vector<8x8x192xf32>
    %213 = vector.shape_cast %188 : vector<192xf32> to vector<1x1x192xf32>
    %214 = vector.broadcast %213 : vector<1x1x192xf32> to vector<8x8x192xf32>
    %215 = arith.mulf %212, %214 : vector<8x8x192xf32>
    %216 = arith.addf %211, %215 : vector<8x8x192xf32>
    %c1_154 = arith.constant 1 : index
    %c7_155 = arith.constant 7 : index
    %c0_156 = arith.constant 0 : index
    %217 = vector.load %arg57[%c1_154, %c7_155, %c0_156] : memref<10x17x192xf32, #tpu.memory_space<vmem>>, vector<8x8x192xf32>
    %218 = vector.shape_cast %190 : vector<192xf32> to vector<1x1x192xf32>
    %219 = vector.broadcast %218 : vector<1x1x192xf32> to vector<8x8x192xf32>
    %220 = arith.mulf %217, %219 : vector<8x8x192xf32>
    %221 = arith.addf %216, %220 : vector<8x8x192xf32>
    %c1_157 = arith.constant 1 : index
    %c8_158 = arith.constant 8 : index
    %c0_159 = arith.constant 0 : index
    %222 = vector.load %arg57[%c1_157, %c8_158, %c0_159] : memref<10x17x192xf32, #tpu.memory_space<vmem>>, vector<8x8x192xf32>
    %223 = vector.shape_cast %192 : vector<192xf32> to vector<1x1x192xf32>
    %224 = vector.broadcast %223 : vector<1x1x192xf32> to vector<8x8x192xf32>
    %225 = arith.mulf %222, %224 : vector<8x8x192xf32>
    %226 = arith.addf %221, %225 : vector<8x8x192xf32>
    %c1_160 = arith.constant 1 : index
    %c9_161 = arith.constant 9 : index
    %c0_162 = arith.constant 0 : index
    %227 = vector.load %arg57[%c1_160, %c9_161, %c0_162] : memref<10x17x192xf32, #tpu.memory_space<vmem>>, vector<8x8x192xf32>
    %228 = vector.shape_cast %194 : vector<192xf32> to vector<1x1x192xf32>
    %229 = vector.broadcast %228 : vector<1x1x192xf32> to vector<8x8x192xf32>
    %230 = arith.mulf %227, %229 : vector<8x8x192xf32>
    %231 = arith.addf %226, %230 : vector<8x8x192xf32>
    %c2_163 = arith.constant 2 : index
    %c7_164 = arith.constant 7 : index
    %c0_165 = arith.constant 0 : index
    %232 = vector.load %arg57[%c2_163, %c7_164, %c0_165] : memref<10x17x192xf32, #tpu.memory_space<vmem>>, vector<8x8x192xf32>
    %233 = vector.shape_cast %196 : vector<192xf32> to vector<1x1x192xf32>
    %234 = vector.broadcast %233 : vector<1x1x192xf32> to vector<8x8x192xf32>
    %235 = arith.mulf %232, %234 : vector<8x8x192xf32>
    %236 = arith.addf %231, %235 : vector<8x8x192xf32>
    %c2_166 = arith.constant 2 : index
    %c8_167 = arith.constant 8 : index
    %c0_168 = arith.constant 0 : index
    %237 = vector.load %arg57[%c2_166, %c8_167, %c0_168] : memref<10x17x192xf32, #tpu.memory_space<vmem>>, vector<8x8x192xf32>
    %238 = vector.shape_cast %198 : vector<192xf32> to vector<1x1x192xf32>
    %239 = vector.broadcast %238 : vector<1x1x192xf32> to vector<8x8x192xf32>
    %240 = arith.mulf %237, %239 : vector<8x8x192xf32>
    %241 = arith.addf %236, %240 : vector<8x8x192xf32>
    %c2_169 = arith.constant 2 : index
    %c9_170 = arith.constant 9 : index
    %c0_171 = arith.constant 0 : index
    %242 = vector.load %arg57[%c2_169, %c9_170, %c0_171] : memref<10x17x192xf32, #tpu.memory_space<vmem>>, vector<8x8x192xf32>
    %243 = vector.shape_cast %200 : vector<192xf32> to vector<1x1x192xf32>
    %244 = vector.broadcast %243 : vector<1x1x192xf32> to vector<8x8x192xf32>
    %245 = arith.mulf %242, %244 : vector<8x8x192xf32>
    %246 = arith.addf %241, %245 : vector<8x8x192xf32>
    %247 = vector.shape_cast %246 : vector<8x8x192xf32> to vector<64x192xf32>
    %c0_172 = arith.constant 0 : index
    %c0_173 = arith.constant 0 : index
    %248 = vector.load %arg18[%c0_172, %c0_173] : memref<1x192xf32, #tpu.memory_space<vmem>>, vector<1x192xf32>
    %249 = vector.broadcast %248 : vector<1x192xf32> to vector<64x192xf32>
    %250 = arith.addf %247, %249 : vector<64x192xf32>
    %cst_174 = arith.constant 0.000000e+00 : f32
    %cst_175 = arith.constant 6.000000e+00 : f32
    %251 = vector.broadcast %cst_174 : f32 to vector<64x192xf32>
    %252 = arith.maximumf %251, %250 : vector<64x192xf32>
    %253 = vector.broadcast %cst_175 : f32 to vector<64x192xf32>
    %254 = arith.minimumf %253, %252 : vector<64x192xf32>
    %c0_176 = arith.constant 0 : index
    %c0_177 = arith.constant 0 : index
    %255 = vector.load %arg4[%c0_176, %c0_177] : memref<16x64xbf16, #tpu.memory_space<vmem>>, vector<16x64xbf16>
    %256 = arith.truncf %254 : vector<64x192xf32> to vector<64x192xbf16>
    %cst_178 = arith.constant dense<0.000000e+00> : vector<16x192xf32>
    %257 = tpu.matmul %255, %256, %cst_178 {dimension_numbers = #tpu.dot_dimension_numbers<[1], [0], [0], [1], [0, 0, 1, 1], [], []>} : vector<16x64xbf16>, vector<64x192xbf16>, vector<16x192xf32> -> vector<16x192xf32>
    %cst_179 = arith.constant dense<0.000000e+00> : vector<192xf32>
    %258 = vector.multi_reduction <add>, %257, %cst_179 [0] : vector<16x192xf32> to vector<192xf32>
    %259 = vector.shape_cast %258 : vector<192xf32> to vector<1x192xf32>
    %cst_180 = arith.constant 1.600000e+01 : f32
    %260 = vector.broadcast %cst_180 : f32 to vector<1x192xf32>
    %261 = arith.divf %259, %260 : vector<1x192xf32>
    %262 = arith.truncf %261 : vector<1x192xf32> to vector<1x192xbf16>
    %c0_181 = arith.constant 0 : index
    %c0_182 = arith.constant 0 : index
    %263 = vector.load %arg19[%c0_181, %c0_182] : memref<192x48xbf16, #tpu.memory_space<vmem>>, vector<192x48xbf16>
    %cst_183 = arith.constant dense<0.000000e+00> : vector<1x48xf32>
    %264 = tpu.matmul %262, %263, %cst_183 {dimension_numbers = #tpu.dot_dimension_numbers<[1], [0], [0], [1], [0, 0, 1, 1], [], []>} : vector<1x192xbf16>, vector<192x48xbf16>, vector<1x48xf32> -> vector<1x48xf32>
    %c0_184 = arith.constant 0 : index
    %c0_185 = arith.constant 0 : index
    %265 = vector.load %arg20[%c0_184, %c0_185] : memref<1x48xf32, #tpu.memory_space<vmem>>, vector<1x48xf32>
    %266 = arith.addf %264, %265 : vector<1x48xf32>
    %cst_186 = arith.constant 0.000000e+00 : f32
    %267 = vector.broadcast %cst_186 : f32 to vector<1x48xf32>
    %268 = arith.maximumf %266, %267 : vector<1x48xf32>
    %269 = arith.truncf %268 : vector<1x48xf32> to vector<1x48xbf16>
    %c0_187 = arith.constant 0 : index
    %c0_188 = arith.constant 0 : index
    %270 = vector.load %arg21[%c0_187, %c0_188] : memref<48x192xbf16, #tpu.memory_space<vmem>>, vector<48x192xbf16>
    %cst_189 = arith.constant dense<0.000000e+00> : vector<1x192xf32>
    %271 = tpu.matmul %269, %270, %cst_189 {dimension_numbers = #tpu.dot_dimension_numbers<[1], [0], [0], [1], [0, 0, 1, 1], [], []>} : vector<1x48xbf16>, vector<48x192xbf16>, vector<1x192xf32> -> vector<1x192xf32>
    %c0_190 = arith.constant 0 : index
    %c0_191 = arith.constant 0 : index
    %272 = vector.load %arg22[%c0_190, %c0_191] : memref<1x192xf32, #tpu.memory_space<vmem>>, vector<1x192xf32>
    %273 = arith.addf %271, %272 : vector<1x192xf32>
    %274 = arith.negf %273 : vector<1x192xf32>
    %275 = math.exp %274 : vector<1x192xf32>
    %cst_192 = arith.constant 1.000000e+00 : f32
    %276 = vector.broadcast %cst_192 : f32 to vector<1x192xf32>
    %277 = arith.addf %276, %275 : vector<1x192xf32>
    %278 = arith.divf %276, %277 : vector<1x192xf32>
    %279 = vector.broadcast %278 : vector<1x192xf32> to vector<16x192xf32>
    %280 = arith.mulf %257, %279 : vector<16x192xf32>
    %281 = arith.truncf %280 : vector<16x192xf32> to vector<16x192xbf16>
    %c0_193 = arith.constant 0 : index
    %c0_194 = arith.constant 0 : index
    %282 = vector.load %arg23[%c0_193, %c0_194] : memref<192x64xbf16, #tpu.memory_space<vmem>>, vector<192x64xbf16>
    %cst_195 = arith.constant dense<0.000000e+00> : vector<16x64xf32>
    %283 = tpu.matmul %281, %282, %cst_195 {dimension_numbers = #tpu.dot_dimension_numbers<[1], [0], [0], [1], [0, 0, 1, 1], [], []>} : vector<16x192xbf16>, vector<192x64xbf16>, vector<16x64xf32> -> vector<16x64xf32>
    %c0_196 = arith.constant 0 : index
    %c0_197 = arith.constant 0 : index
    %284 = vector.load %arg24[%c0_196, %c0_197] : memref<1x64xf32, #tpu.memory_space<vmem>>, vector<1x64xf32>
    %285 = vector.broadcast %284 : vector<1x64xf32> to vector<16x64xf32>
    %286 = arith.addf %283, %285 : vector<16x64xf32>
    %287 = arith.truncf %286 : vector<16x64xf32> to vector<16x64xbf16>
    %c0_198 = arith.constant 0 : index
    %c0_199 = arith.constant 0 : index
    %288 = vector.load %arg25[%c0_198, %c0_199] : memref<64x384xbf16, #tpu.memory_space<vmem>>, vector<64x384xbf16>
    %cst_200 = arith.constant dense<0.000000e+00> : vector<16x384xf32>
    %289 = tpu.matmul %287, %288, %cst_200 {dimension_numbers = #tpu.dot_dimension_numbers<[1], [0], [0], [1], [0, 0, 1, 1], [], []>} : vector<16x64xbf16>, vector<64x384xbf16>, vector<16x384xf32> -> vector<16x384xf32>
    %c0_201 = arith.constant 0 : index
    %c0_202 = arith.constant 0 : index
    %290 = vector.load %arg26[%c0_201, %c0_202] : memref<1x384xf32, #tpu.memory_space<vmem>>, vector<1x384xf32>
    %291 = vector.broadcast %290 : vector<1x384xf32> to vector<16x384xf32>
    %292 = arith.addf %289, %291 : vector<16x384xf32>
    %cst_203 = arith.constant 0.000000e+00 : f32
    %cst_204 = arith.constant 6.000000e+00 : f32
    %293 = vector.broadcast %cst_203 : f32 to vector<16x384xf32>
    %294 = arith.maximumf %293, %292 : vector<16x384xf32>
    %295 = vector.broadcast %cst_204 : f32 to vector<16x384xf32>
    %296 = arith.minimumf %295, %294 : vector<16x384xf32>
    %cst_205 = arith.constant 0.000000e+00 : f32
    %297 = vector.broadcast %cst_205 : f32 to vector<1x6x384xf32>
    %c0_206 = arith.constant 0 : index
    %c7_207 = arith.constant 7 : index
    %c0_208 = arith.constant 0 : index
    %298 = vector.load %arg58[%c0_206, %c7_207, %c0_208] : memref<6x13x384xf32, #tpu.memory_space<vmem>>, vector<1x6x384xf32>
    tpu.vector_store %arg58[%c0_206, %c7_207, %c0_208], %297 {strides = array<i32>} : memref<6x13x384xf32, #tpu.memory_space<vmem>>, vector<1x6x384xf32>,
    %cst_209 = arith.constant 0.000000e+00 : f32
    %299 = vector.broadcast %cst_209 : f32 to vector<1x6x384xf32>
    %c5 = arith.constant 5 : index
    %c7_210 = arith.constant 7 : index
    %c0_211 = arith.constant 0 : index
    %300 = vector.load %arg58[%c5, %c7_210, %c0_211] : memref<6x13x384xf32, #tpu.memory_space<vmem>>, vector<1x6x384xf32>
    tpu.vector_store %arg58[%c5, %c7_210, %c0_211], %299 {strides = array<i32>} : memref<6x13x384xf32, #tpu.memory_space<vmem>>, vector<1x6x384xf32>,
    %cst_212 = arith.constant 0.000000e+00 : f32
    %301 = vector.broadcast %cst_212 : f32 to vector<4x1x384xf32>
    %c1_213 = arith.constant 1 : index
    %c7_214 = arith.constant 7 : index
    %c0_215 = arith.constant 0 : index
    %302 = vector.load %arg58[%c1_213, %c7_214, %c0_215] : memref<6x13x384xf32, #tpu.memory_space<vmem>>, vector<4x1x384xf32>
    tpu.vector_store %arg58[%c1_213, %c7_214, %c0_215], %301 {strides = array<i32>} : memref<6x13x384xf32, #tpu.memory_space<vmem>>, vector<4x1x384xf32>,
    %cst_216 = arith.constant 0.000000e+00 : f32
    %303 = vector.broadcast %cst_216 : f32 to vector<4x1x384xf32>
    %c1_217 = arith.constant 1 : index
    %c12 = arith.constant 12 : index
    %c0_218 = arith.constant 0 : index
    %304 = vector.load %arg58[%c1_217, %c12, %c0_218] : memref<6x13x384xf32, #tpu.memory_space<vmem>>, vector<4x1x384xf32>
    tpu.vector_store %arg58[%c1_217, %c12, %c0_218], %303 {strides = array<i32>} : memref<6x13x384xf32, #tpu.memory_space<vmem>>, vector<4x1x384xf32>,
    %305 = vector.shape_cast %296 : vector<16x384xf32> to vector<4x4x384xf32>
    %c1_219 = arith.constant 1 : index
    %c8_220 = arith.constant 8 : index
    %c0_221 = arith.constant 0 : index
    %306 = vector.load %arg58[%c1_219, %c8_220, %c0_221] : memref<6x13x384xf32, #tpu.memory_space<vmem>>, vector<4x4x384xf32>
    tpu.vector_store %arg58[%c1_219, %c8_220, %c0_221], %305 {strides = array<i32>} : memref<6x13x384xf32, #tpu.memory_space<vmem>>, vector<4x4x384xf32>,
    %c0_222 = arith.constant 0 : index
    %c0_223 = arith.constant 0 : index
    %307 = vector.load %arg27[%c0_222, %c0_223] : memref<9x384xf32, #tpu.memory_space<vmem>>, vector<9x384xf32>
    %308 = vector.extract_strided_slice %307 {offsets = [0, 0], sizes = [1, 384], strides = [1, 1]} : vector<9x384xf32> to vector<1x384xf32>
    %309 = vector.shape_cast %308 : vector<1x384xf32> to vector<384xf32>
    %310 = vector.extract_strided_slice %307 {offsets = [1, 0], sizes = [1, 384], strides = [1, 1]} : vector<9x384xf32> to vector<1x384xf32>
    %311 = vector.shape_cast %310 : vector<1x384xf32> to vector<384xf32>
    %312 = vector.extract_strided_slice %307 {offsets = [2, 0], sizes = [1, 384], strides = [1, 1]} : vector<9x384xf32> to vector<1x384xf32>
    %313 = vector.shape_cast %312 : vector<1x384xf32> to vector<384xf32>
    %314 = vector.extract_strided_slice %307 {offsets = [3, 0], sizes = [1, 384], strides = [1, 1]} : vector<9x384xf32> to vector<1x384xf32>
    %315 = vector.shape_cast %314 : vector<1x384xf32> to vector<384xf32>
    %316 = vector.extract_strided_slice %307 {offsets = [4, 0], sizes = [1, 384], strides = [1, 1]} : vector<9x384xf32> to vector<1x384xf32>
    %317 = vector.shape_cast %316 : vector<1x384xf32> to vector<384xf32>
    %318 = vector.extract_strided_slice %307 {offsets = [5, 0], sizes = [1, 384], strides = [1, 1]} : vector<9x384xf32> to vector<1x384xf32>
    %319 = vector.shape_cast %318 : vector<1x384xf32> to vector<384xf32>
    %320 = vector.extract_strided_slice %307 {offsets = [6, 0], sizes = [1, 384], strides = [1, 1]} : vector<9x384xf32> to vector<1x384xf32>
    %321 = vector.shape_cast %320 : vector<1x384xf32> to vector<384xf32>
    %322 = vector.extract_strided_slice %307 {offsets = [7, 0], sizes = [1, 384], strides = [1, 1]} : vector<9x384xf32> to vector<1x384xf32>
    %323 = vector.shape_cast %322 : vector<1x384xf32> to vector<384xf32>
    %324 = vector.extract_strided_slice %307 {offsets = [8, 0], sizes = [1, 384], strides = [1, 1]} : vector<9x384xf32> to vector<1x384xf32>
    %325 = vector.shape_cast %324 : vector<1x384xf32> to vector<384xf32>
    %cst_224 = arith.constant 0.000000e+00 : f32
    %326 = vector.broadcast %cst_224 : f32 to vector<4x4x384xf32>
    %c0_225 = arith.constant 0 : index
    %c7_226 = arith.constant 7 : index
    %c0_227 = arith.constant 0 : index
    %327 = vector.load %arg58[%c0_225, %c7_226, %c0_227] : memref<6x13x384xf32, #tpu.memory_space<vmem>>, vector<4x4x384xf32>
    %328 = vector.shape_cast %309 : vector<384xf32> to vector<1x1x384xf32>
    %329 = vector.broadcast %328 : vector<1x1x384xf32> to vector<4x4x384xf32>
    %330 = arith.mulf %327, %329 : vector<4x4x384xf32>
    %331 = arith.addf %326, %330 : vector<4x4x384xf32>
    %c0_228 = arith.constant 0 : index
    %c8_229 = arith.constant 8 : index
    %c0_230 = arith.constant 0 : index
    %332 = vector.load %arg58[%c0_228, %c8_229, %c0_230] : memref<6x13x384xf32, #tpu.memory_space<vmem>>, vector<4x4x384xf32>
    %333 = vector.shape_cast %311 : vector<384xf32> to vector<1x1x384xf32>
    %334 = vector.broadcast %333 : vector<1x1x384xf32> to vector<4x4x384xf32>
    %335 = arith.mulf %332, %334 : vector<4x4x384xf32>
    %336 = arith.addf %331, %335 : vector<4x4x384xf32>
    %c0_231 = arith.constant 0 : index
    %c9_232 = arith.constant 9 : index
    %c0_233 = arith.constant 0 : index
    %337 = vector.load %arg58[%c0_231, %c9_232, %c0_233] : memref<6x13x384xf32, #tpu.memory_space<vmem>>, vector<4x4x384xf32>
    %338 = vector.shape_cast %313 : vector<384xf32> to vector<1x1x384xf32>
    %339 = vector.broadcast %338 : vector<1x1x384xf32> to vector<4x4x384xf32>
    %340 = arith.mulf %337, %339 : vector<4x4x384xf32>
    %341 = arith.addf %336, %340 : vector<4x4x384xf32>
    %c1_234 = arith.constant 1 : index
    %c7_235 = arith.constant 7 : index
    %c0_236 = arith.constant 0 : index
    %342 = vector.load %arg58[%c1_234, %c7_235, %c0_236] : memref<6x13x384xf32, #tpu.memory_space<vmem>>, vector<4x4x384xf32>
    %343 = vector.shape_cast %315 : vector<384xf32> to vector<1x1x384xf32>
    %344 = vector.broadcast %343 : vector<1x1x384xf32> to vector<4x4x384xf32>
    %345 = arith.mulf %342, %344 : vector<4x4x384xf32>
    %346 = arith.addf %341, %345 : vector<4x4x384xf32>
    %c1_237 = arith.constant 1 : index
    %c8_238 = arith.constant 8 : index
    %c0_239 = arith.constant 0 : index
    %347 = vector.load %arg58[%c1_237, %c8_238, %c0_239] : memref<6x13x384xf32, #tpu.memory_space<vmem>>, vector<4x4x384xf32>
    %348 = vector.shape_cast %317 : vector<384xf32> to vector<1x1x384xf32>
    %349 = vector.broadcast %348 : vector<1x1x384xf32> to vector<4x4x384xf32>
    %350 = arith.mulf %347, %349 : vector<4x4x384xf32>
    %351 = arith.addf %346, %350 : vector<4x4x384xf32>
    %c1_240 = arith.constant 1 : index
    %c9_241 = arith.constant 9 : index
    %c0_242 = arith.constant 0 : index
    %352 = vector.load %arg58[%c1_240, %c9_241, %c0_242] : memref<6x13x384xf32, #tpu.memory_space<vmem>>, vector<4x4x384xf32>
    %353 = vector.shape_cast %319 : vector<384xf32> to vector<1x1x384xf32>
    %354 = vector.broadcast %353 : vector<1x1x384xf32> to vector<4x4x384xf32>
    %355 = arith.mulf %352, %354 : vector<4x4x384xf32>
    %356 = arith.addf %351, %355 : vector<4x4x384xf32>
    %c2_243 = arith.constant 2 : index
    %c7_244 = arith.constant 7 : index
    %c0_245 = arith.constant 0 : index
    %357 = vector.load %arg58[%c2_243, %c7_244, %c0_245] : memref<6x13x384xf32, #tpu.memory_space<vmem>>, vector<4x4x384xf32>
    %358 = vector.shape_cast %321 : vector<384xf32> to vector<1x1x384xf32>
    %359 = vector.broadcast %358 : vector<1x1x384xf32> to vector<4x4x384xf32>
    %360 = arith.mulf %357, %359 : vector<4x4x384xf32>
    %361 = arith.addf %356, %360 : vector<4x4x384xf32>
    %c2_246 = arith.constant 2 : index
    %c8_247 = arith.constant 8 : index
    %c0_248 = arith.constant 0 : index
    %362 = vector.load %arg58[%c2_246, %c8_247, %c0_248] : memref<6x13x384xf32, #tpu.memory_space<vmem>>, vector<4x4x384xf32>
    %363 = vector.shape_cast %323 : vector<384xf32> to vector<1x1x384xf32>
    %364 = vector.broadcast %363 : vector<1x1x384xf32> to vector<4x4x384xf32>
    %365 = arith.mulf %362, %364 : vector<4x4x384xf32>
    %366 = arith.addf %361, %365 : vector<4x4x384xf32>
    %c2_249 = arith.constant 2 : index
    %c9_250 = arith.constant 9 : index
    %c0_251 = arith.constant 0 : index
    %367 = vector.load %arg58[%c2_249, %c9_250, %c0_251] : memref<6x13x384xf32, #tpu.memory_space<vmem>>, vector<4x4x384xf32>
    %368 = vector.shape_cast %325 : vector<384xf32> to vector<1x1x384xf32>
    %369 = vector.broadcast %368 : vector<1x1x384xf32> to vector<4x4x384xf32>
    %370 = arith.mulf %367, %369 : vector<4x4x384xf32>
    %371 = arith.addf %366, %370 : vector<4x4x384xf32>
    %372 = vector.shape_cast %371 : vector<4x4x384xf32> to vector<16x384xf32>
    %c0_252 = arith.constant 0 : index
    %c0_253 = arith.constant 0 : index
    %373 = vector.load %arg28[%c0_252, %c0_253] : memref<1x384xf32, #tpu.memory_space<vmem>>, vector<1x384xf32>
    %374 = vector.broadcast %373 : vector<1x384xf32> to vector<16x384xf32>
    %375 = arith.addf %372, %374 : vector<16x384xf32>
    %cst_254 = arith.constant 0.000000e+00 : f32
    %cst_255 = arith.constant 6.000000e+00 : f32
    %376 = vector.broadcast %cst_254 : f32 to vector<16x384xf32>
    %377 = arith.maximumf %376, %375 : vector<16x384xf32>
    %378 = vector.broadcast %cst_255 : f32 to vector<16x384xf32>
    %379 = arith.minimumf %378, %377 : vector<16x384xf32>
    %cst_256 = arith.constant dense<0.000000e+00> : vector<384xf32>
    %380 = vector.multi_reduction <add>, %379, %cst_256 [0] : vector<16x384xf32> to vector<384xf32>
    %381 = vector.shape_cast %380 : vector<384xf32> to vector<1x384xf32>
    %cst_257 = arith.constant 1.600000e+01 : f32
    %382 = vector.broadcast %cst_257 : f32 to vector<1x384xf32>
    %383 = arith.divf %381, %382 : vector<1x384xf32>
    %384 = arith.truncf %383 : vector<1x384xf32> to vector<1x384xbf16>
    %c0_258 = arith.constant 0 : index
    %c0_259 = arith.constant 0 : index
    %385 = vector.load %arg29[%c0_258, %c0_259] : memref<384x96xbf16, #tpu.memory_space<vmem>>, vector<384x96xbf16>
    %cst_260 = arith.constant dense<0.000000e+00> : vector<1x96xf32>
    %386 = tpu.matmul %384, %385, %cst_260 {dimension_numbers = #tpu.dot_dimension_numbers<[1], [0], [0], [1], [0, 0, 1, 1], [], []>} : vector<1x384xbf16>, vector<384x96xbf16>, vector<1x96xf32> -> vector<1x96xf32>
    %c0_261 = arith.constant 0 : index
    %c0_262 = arith.constant 0 : index
    %387 = vector.load %arg30[%c0_261, %c0_262] : memref<1x96xf32, #tpu.memory_space<vmem>>, vector<1x96xf32>
    %388 = arith.addf %386, %387 : vector<1x96xf32>
    %cst_263 = arith.constant 0.000000e+00 : f32
    %389 = vector.broadcast %cst_263 : f32 to vector<1x96xf32>
    %390 = arith.maximumf %388, %389 : vector<1x96xf32>
    %391 = arith.truncf %390 : vector<1x96xf32> to vector<1x96xbf16>
    %c0_264 = arith.constant 0 : index
    %c0_265 = arith.constant 0 : index
    %392 = vector.load %arg31[%c0_264, %c0_265] : memref<96x384xbf16, #tpu.memory_space<vmem>>, vector<96x384xbf16>
    %cst_266 = arith.constant dense<0.000000e+00> : vector<1x384xf32>
    %393 = tpu.matmul %391, %392, %cst_266 {dimension_numbers = #tpu.dot_dimension_numbers<[1], [0], [0], [1], [0, 0, 1, 1], [], []>} : vector<1x96xbf16>, vector<96x384xbf16>, vector<1x384xf32> -> vector<1x384xf32>
    %c0_267 = arith.constant 0 : index
    %c0_268 = arith.constant 0 : index
    %394 = vector.load %arg32[%c0_267, %c0_268] : memref<1x384xf32, #tpu.memory_space<vmem>>, vector<1x384xf32>
    %395 = arith.addf %393, %394 : vector<1x384xf32>
    %396 = arith.negf %395 : vector<1x384xf32>
    %397 = math.exp %396 : vector<1x384xf32>
    %cst_269 = arith.constant 1.000000e+00 : f32
    %398 = vector.broadcast %cst_269 : f32 to vector<1x384xf32>
    %399 = arith.addf %398, %397 : vector<1x384xf32>
    %400 = arith.divf %398, %399 : vector<1x384xf32>
    %401 = vector.broadcast %400 : vector<1x384xf32> to vector<16x384xf32>
    %402 = arith.mulf %379, %401 : vector<16x384xf32>
    %403 = arith.truncf %402 : vector<16x384xf32> to vector<16x384xbf16>
    %c0_270 = arith.constant 0 : index
    %c0_271 = arith.constant 0 : index
    %404 = vector.load %arg33[%c0_270, %c0_271] : memref<384x64xbf16, #tpu.memory_space<vmem>>, vector<384x64xbf16>
    %cst_272 = arith.constant dense<0.000000e+00> : vector<16x64xf32>
    %405 = tpu.matmul %403, %404, %cst_272 {dimension_numbers = #tpu.dot_dimension_numbers<[1], [0], [0], [1], [0, 0, 1, 1], [], []>} : vector<16x384xbf16>, vector<384x64xbf16>, vector<16x64xf32> -> vector<16x64xf32>
    %c0_273 = arith.constant 0 : index
    %c0_274 = arith.constant 0 : index
    %406 = vector.load %arg34[%c0_273, %c0_274] : memref<1x64xf32, #tpu.memory_space<vmem>>, vector<1x64xf32>
    %407 = vector.broadcast %406 : vector<1x64xf32> to vector<16x64xf32>
    %408 = arith.addf %405, %407 : vector<16x64xf32>
    %409 = arith.addf %408, %286 : vector<16x64xf32>
    %cst_275 = arith.constant dense<0.000000e+00> : vector<16xf32>
    %410 = vector.multi_reduction <add>, %409, %cst_275 [1] : vector<16x64xf32> to vector<16xf32>
    %411 = vector.shape_cast %410 : vector<16xf32> to vector<16x1xf32>
    %cst_276 = arith.constant 6.400000e+01 : f32
    %412 = vector.broadcast %cst_276 : f32 to vector<16x1xf32>
    %413 = arith.divf %411, %412 : vector<16x1xf32>
    %414 = vector.broadcast %413 : vector<16x1xf32> to vector<16x64xf32>
    %415 = arith.subf %409, %414 : vector<16x64xf32>
    %416 = arith.mulf %415, %415 : vector<16x64xf32>
    %cst_277 = arith.constant dense<0.000000e+00> : vector<16xf32>
    %417 = vector.multi_reduction <add>, %416, %cst_277 [1] : vector<16x64xf32> to vector<16xf32>
    %418 = vector.shape_cast %417 : vector<16xf32> to vector<16x1xf32>
    %cst_278 = arith.constant 6.400000e+01 : f32
    %419 = vector.broadcast %cst_278 : f32 to vector<16x1xf32>
    %420 = arith.divf %418, %419 : vector<16x1xf32>
    %421 = vector.broadcast %413 : vector<16x1xf32> to vector<16x64xf32>
    %422 = arith.subf %409, %421 : vector<16x64xf32>
    %cst_279 = arith.constant 9.99999974E-6 : f32
    %423 = vector.broadcast %cst_279 : f32 to vector<16x1xf32>
    %424 = arith.addf %420, %423 : vector<16x1xf32>
    %425 = math.rsqrt %424 : vector<16x1xf32>
    %426 = vector.broadcast %425 : vector<16x1xf32> to vector<16x64xf32>
    %427 = arith.mulf %422, %426 : vector<16x64xf32>
    %c0_280 = arith.constant 0 : index
    %c0_281 = arith.constant 0 : index
    %428 = vector.load %arg36[%c0_280, %c0_281] : memref<1x64xf32, #tpu.memory_space<vmem>>, vector<1x64xf32>
    %429 = vector.broadcast %428 : vector<1x64xf32> to vector<16x64xf32>
    %430 = arith.mulf %427, %429 : vector<16x64xf32>
    %c0_282 = arith.constant 0 : index
    %c0_283 = arith.constant 0 : index
    %431 = vector.load %arg37[%c0_282, %c0_283] : memref<1x64xf32, #tpu.memory_space<vmem>>, vector<1x64xf32>
    %432 = vector.broadcast %431 : vector<1x64xf32> to vector<16x64xf32>
    %433 = arith.addf %430, %432 : vector<16x64xf32>
    %434 = arith.truncf %433 : vector<16x64xf32> to vector<16x64xbf16>
    %c0_284 = arith.constant 0 : index
    %c0_285 = arith.constant 0 : index
    %435 = vector.load %arg38[%c0_284, %c0_285] : memref<64x64xbf16, #tpu.memory_space<vmem>>, vector<64x64xbf16>
    %cst_286 = arith.constant dense<0.000000e+00> : vector<16x64xf32>
    %436 = tpu.matmul %434, %435, %cst_286 {dimension_numbers = #tpu.dot_dimension_numbers<[1], [0], [0], [1], [0, 0, 1, 1], [], []>} : vector<16x64xbf16>, vector<64x64xbf16>, vector<16x64xf32> -> vector<16x64xf32>
    %c0_287 = arith.constant 0 : index
    %c0_288 = arith.constant 0 : index
    %437 = vector.load %arg39[%c0_287, %c0_288] : memref<1x64xf32, #tpu.memory_space<vmem>>, vector<1x64xf32>
    %438 = vector.broadcast %437 : vector<1x64xf32> to vector<16x64xf32>
    %439 = arith.addf %436, %438 : vector<16x64xf32>
    %c0_289 = arith.constant 0 : index
    %c0_290 = arith.constant 0 : index
    %440 = vector.load %arg40[%c0_289, %c0_290] : memref<64x64xbf16, #tpu.memory_space<vmem>>, vector<64x64xbf16>
    %cst_291 = arith.constant dense<0.000000e+00> : vector<16x64xf32>
    %441 = tpu.matmul %434, %440, %cst_291 {dimension_numbers = #tpu.dot_dimension_numbers<[1], [0], [0], [1], [0, 0, 1, 1], [], []>} : vector<16x64xbf16>, vector<64x64xbf16>, vector<16x64xf32> -> vector<16x64xf32>
    %c0_292 = arith.constant 0 : index
    %c0_293 = arith.constant 0 : index
    %442 = vector.load %arg41[%c0_292, %c0_293] : memref<1x64xf32, #tpu.memory_space<vmem>>, vector<1x64xf32>
    %443 = vector.broadcast %442 : vector<1x64xf32> to vector<16x64xf32>
    %444 = arith.addf %441, %443 : vector<16x64xf32>
    %c0_294 = arith.constant 0 : index
    %c0_295 = arith.constant 0 : index
    %445 = vector.load %arg35[%c0_294, %c0_295] : memref<10x64xf32, #tpu.memory_space<vmem>>, vector<10x64xf32>
    %c0_296 = arith.constant 0 : index
    %c0_297 = arith.constant 0 : index
    %446 = vector.load %arg42[%c0_296, %c0_297] : memref<64x64xbf16, #tpu.memory_space<vmem>>, vector<64x64xbf16>
    %cst_298 = arith.constant 0.000000e+00 : f32
    %447 = vector.broadcast %cst_298 : f32 to vector<10x64xf32>
    %c0_299 = arith.constant 0 : index
    %c0_300 = arith.constant 0 : index
    %448 = vector.load %arg43[%c0_299, %c0_300] : memref<1x64xf32, #tpu.memory_space<vmem>>, vector<1x64xf32>
    %449 = vector.broadcast %448 : vector<1x64xf32> to vector<10x64xf32>
    %450 = arith.addf %447, %449 : vector<10x64xf32>
    %451 = vector.extract_strided_slice %445 {offsets = [0, 0], sizes = [10, 16], strides = [1, 1]} : vector<10x64xf32> to vector<10x16xf32>
    %452 = arith.truncf %451 : vector<10x16xf32> to vector<10x16xbf16>
    %453 = vector.extract_strided_slice %439 {offsets = [0, 0], sizes = [16, 16], strides = [1, 1]} : vector<16x64xf32> to vector<16x16xf32>
    %454 = arith.truncf %453 : vector<16x16xf32> to vector<16x16xbf16>
    %455 = vector.extract_strided_slice %444 {offsets = [0, 0], sizes = [16, 16], strides = [1, 1]} : vector<16x64xf32> to vector<16x16xf32>
    %456 = arith.truncf %455 : vector<16x16xf32> to vector<16x16xbf16>
    %cst_301 = arith.constant dense<0.000000e+00> : vector<10x16xf32>
    %457 = tpu.matmul %452, %454, %cst_301 {dimension_numbers = #tpu.dot_dimension_numbers<[1], [1], [0], [0], [0, 0, 1, 0], [], []>} : vector<10x16xbf16>, vector<16x16xbf16>, vector<10x16xf32> -> vector<10x16xf32>
    %cst_302 = arith.constant 2.500000e-01 : f32
    %458 = vector.broadcast %cst_302 : f32 to vector<10x16xf32>
    %459 = arith.mulf %457, %458 : vector<10x16xf32>
    %cst_303 = arith.constant dense<0xFF800000> : vector<10xf32>
    %460 = vector.multi_reduction <maximumf>, %459, %cst_303 [1] : vector<10x16xf32> to vector<10xf32>
    %461 = vector.shape_cast %460 : vector<10xf32> to vector<10x1xf32>
    %462 = vector.broadcast %461 : vector<10x1xf32> to vector<10x16xf32>
    %463 = arith.subf %459, %462 : vector<10x16xf32>
    %464 = math.exp %463 : vector<10x16xf32>
    %cst_304 = arith.constant dense<0.000000e+00> : vector<10xf32>
    %465 = vector.multi_reduction <add>, %464, %cst_304 [1] : vector<10x16xf32> to vector<10xf32>
    %466 = vector.shape_cast %465 : vector<10xf32> to vector<10x1xf32>
    %467 = vector.broadcast %466 : vector<10x1xf32> to vector<10x16xf32>
    %468 = arith.divf %464, %467 : vector<10x16xf32>
    %469 = arith.truncf %468 : vector<10x16xf32> to vector<10x16xbf16>
    %cst_305 = arith.constant dense<0.000000e+00> : vector<10x16xf32>
    %470 = tpu.matmul %469, %456, %cst_305 {dimension_numbers = #tpu.dot_dimension_numbers<[1], [0], [0], [1], [0, 0, 1, 1], [], []>} : vector<10x16xbf16>, vector<16x16xbf16>, vector<10x16xf32> -> vector<10x16xf32>
    %471 = arith.truncf %470 : vector<10x16xf32> to vector<10x16xbf16>
    %472 = vector.extract_strided_slice %446 {offsets = [0, 0], sizes = [16, 64], strides = [1, 1]} : vector<64x64xbf16> to vector<16x64xbf16>
    %cst_306 = arith.constant dense<0.000000e+00> : vector<10x64xf32>
    %473 = tpu.matmul %471, %472, %cst_306 {dimension_numbers = #tpu.dot_dimension_numbers<[1], [0], [0], [1], [0, 0, 1, 1], [], []>} : vector<10x16xbf16>, vector<16x64xbf16>, vector<10x64xf32> -> vector<10x64xf32>
    %474 = arith.addf %450, %473 : vector<10x64xf32>
    %475 = vector.extract_strided_slice %445 {offsets = [0, 16], sizes = [10, 16], strides = [1, 1]} : vector<10x64xf32> to vector<10x16xf32>
    %476 = arith.truncf %475 : vector<10x16xf32> to vector<10x16xbf16>
    %477 = vector.extract_strided_slice %439 {offsets = [0, 16], sizes = [16, 16], strides = [1, 1]} : vector<16x64xf32> to vector<16x16xf32>
    %478 = arith.truncf %477 : vector<16x16xf32> to vector<16x16xbf16>
    %479 = vector.extract_strided_slice %444 {offsets = [0, 16], sizes = [16, 16], strides = [1, 1]} : vector<16x64xf32> to vector<16x16xf32>
    %480 = arith.truncf %479 : vector<16x16xf32> to vector<16x16xbf16>
    %cst_307 = arith.constant dense<0.000000e+00> : vector<10x16xf32>
    %481 = tpu.matmul %476, %478, %cst_307 {dimension_numbers = #tpu.dot_dimension_numbers<[1], [1], [0], [0], [0, 0, 1, 0], [], []>} : vector<10x16xbf16>, vector<16x16xbf16>, vector<10x16xf32> -> vector<10x16xf32>
    %cst_308 = arith.constant 2.500000e-01 : f32
    %482 = vector.broadcast %cst_308 : f32 to vector<10x16xf32>
    %483 = arith.mulf %481, %482 : vector<10x16xf32>
    %cst_309 = arith.constant dense<0xFF800000> : vector<10xf32>
    %484 = vector.multi_reduction <maximumf>, %483, %cst_309 [1] : vector<10x16xf32> to vector<10xf32>
    %485 = vector.shape_cast %484 : vector<10xf32> to vector<10x1xf32>
    %486 = vector.broadcast %485 : vector<10x1xf32> to vector<10x16xf32>
    %487 = arith.subf %483, %486 : vector<10x16xf32>
    %488 = math.exp %487 : vector<10x16xf32>
    %cst_310 = arith.constant dense<0.000000e+00> : vector<10xf32>
    %489 = vector.multi_reduction <add>, %488, %cst_310 [1] : vector<10x16xf32> to vector<10xf32>
    %490 = vector.shape_cast %489 : vector<10xf32> to vector<10x1xf32>
    %491 = vector.broadcast %490 : vector<10x1xf32> to vector<10x16xf32>
    %492 = arith.divf %488, %491 : vector<10x16xf32>
    %493 = arith.truncf %492 : vector<10x16xf32> to vector<10x16xbf16>
    %cst_311 = arith.constant dense<0.000000e+00> : vector<10x16xf32>
    %494 = tpu.matmul %493, %480, %cst_311 {dimension_numbers = #tpu.dot_dimension_numbers<[1], [0], [0], [1], [0, 0, 1, 1], [], []>} : vector<10x16xbf16>, vector<16x16xbf16>, vector<10x16xf32> -> vector<10x16xf32>
    %495 = arith.truncf %494 : vector<10x16xf32> to vector<10x16xbf16>
    %496 = vector.extract_strided_slice %446 {offsets = [16, 0], sizes = [16, 64], strides = [1, 1]} : vector<64x64xbf16> to vector<16x64xbf16>
    %cst_312 = arith.constant dense<0.000000e+00> : vector<10x64xf32>
    %497 = tpu.matmul %495, %496, %cst_312 {dimension_numbers = #tpu.dot_dimension_numbers<[1], [0], [0], [1], [0, 0, 1, 1], [], []>} : vector<10x16xbf16>, vector<16x64xbf16>, vector<10x64xf32> -> vector<10x64xf32>
    %498 = arith.addf %474, %497 : vector<10x64xf32>
    %499 = vector.extract_strided_slice %445 {offsets = [0, 32], sizes = [10, 16], strides = [1, 1]} : vector<10x64xf32> to vector<10x16xf32>
    %500 = arith.truncf %499 : vector<10x16xf32> to vector<10x16xbf16>
    %501 = vector.extract_strided_slice %439 {offsets = [0, 32], sizes = [16, 16], strides = [1, 1]} : vector<16x64xf32> to vector<16x16xf32>
    %502 = arith.truncf %501 : vector<16x16xf32> to vector<16x16xbf16>
    %503 = vector.extract_strided_slice %444 {offsets = [0, 32], sizes = [16, 16], strides = [1, 1]} : vector<16x64xf32> to vector<16x16xf32>
    %504 = arith.truncf %503 : vector<16x16xf32> to vector<16x16xbf16>
    %cst_313 = arith.constant dense<0.000000e+00> : vector<10x16xf32>
    %505 = tpu.matmul %500, %502, %cst_313 {dimension_numbers = #tpu.dot_dimension_numbers<[1], [1], [0], [0], [0, 0, 1, 0], [], []>} : vector<10x16xbf16>, vector<16x16xbf16>, vector<10x16xf32> -> vector<10x16xf32>
    %cst_314 = arith.constant 2.500000e-01 : f32
    %506 = vector.broadcast %cst_314 : f32 to vector<10x16xf32>
    %507 = arith.mulf %505, %506 : vector<10x16xf32>
    %cst_315 = arith.constant dense<0xFF800000> : vector<10xf32>
    %508 = vector.multi_reduction <maximumf>, %507, %cst_315 [1] : vector<10x16xf32> to vector<10xf32>
    %509 = vector.shape_cast %508 : vector<10xf32> to vector<10x1xf32>
    %510 = vector.broadcast %509 : vector<10x1xf32> to vector<10x16xf32>
    %511 = arith.subf %507, %510 : vector<10x16xf32>
    %512 = math.exp %511 : vector<10x16xf32>
    %cst_316 = arith.constant dense<0.000000e+00> : vector<10xf32>
    %513 = vector.multi_reduction <add>, %512, %cst_316 [1] : vector<10x16xf32> to vector<10xf32>
    %514 = vector.shape_cast %513 : vector<10xf32> to vector<10x1xf32>
    %515 = vector.broadcast %514 : vector<10x1xf32> to vector<10x16xf32>
    %516 = arith.divf %512, %515 : vector<10x16xf32>
    %517 = arith.truncf %516 : vector<10x16xf32> to vector<10x16xbf16>
    %cst_317 = arith.constant dense<0.000000e+00> : vector<10x16xf32>
    %518 = tpu.matmul %517, %504, %cst_317 {dimension_numbers = #tpu.dot_dimension_numbers<[1], [0], [0], [1], [0, 0, 1, 1], [], []>} : vector<10x16xbf16>, vector<16x16xbf16>, vector<10x16xf32> -> vector<10x16xf32>
    %519 = arith.truncf %518 : vector<10x16xf32> to vector<10x16xbf16>
    %520 = vector.extract_strided_slice %446 {offsets = [32, 0], sizes = [16, 64], strides = [1, 1]} : vector<64x64xbf16> to vector<16x64xbf16>
    %cst_318 = arith.constant dense<0.000000e+00> : vector<10x64xf32>
    %521 = tpu.matmul %519, %520, %cst_318 {dimension_numbers = #tpu.dot_dimension_numbers<[1], [0], [0], [1], [0, 0, 1, 1], [], []>} : vector<10x16xbf16>, vector<16x64xbf16>, vector<10x64xf32> -> vector<10x64xf32>
    %522 = arith.addf %498, %521 : vector<10x64xf32>
    %523 = vector.extract_strided_slice %445 {offsets = [0, 48], sizes = [10, 16], strides = [1, 1]} : vector<10x64xf32> to vector<10x16xf32>
    %524 = arith.truncf %523 : vector<10x16xf32> to vector<10x16xbf16>
    %525 = vector.extract_strided_slice %439 {offsets = [0, 48], sizes = [16, 16], strides = [1, 1]} : vector<16x64xf32> to vector<16x16xf32>
    %526 = arith.truncf %525 : vector<16x16xf32> to vector<16x16xbf16>
    %527 = vector.extract_strided_slice %444 {offsets = [0, 48], sizes = [16, 16], strides = [1, 1]} : vector<16x64xf32> to vector<16x16xf32>
    %528 = arith.truncf %527 : vector<16x16xf32> to vector<16x16xbf16>
    %cst_319 = arith.constant dense<0.000000e+00> : vector<10x16xf32>
    %529 = tpu.matmul %524, %526, %cst_319 {dimension_numbers = #tpu.dot_dimension_numbers<[1], [1], [0], [0], [0, 0, 1, 0], [], []>} : vector<10x16xbf16>, vector<16x16xbf16>, vector<10x16xf32> -> vector<10x16xf32>
    %cst_320 = arith.constant 2.500000e-01 : f32
    %530 = vector.broadcast %cst_320 : f32 to vector<10x16xf32>
    %531 = arith.mulf %529, %530 : vector<10x16xf32>
    %cst_321 = arith.constant dense<0xFF800000> : vector<10xf32>
    %532 = vector.multi_reduction <maximumf>, %531, %cst_321 [1] : vector<10x16xf32> to vector<10xf32>
    %533 = vector.shape_cast %532 : vector<10xf32> to vector<10x1xf32>
    %534 = vector.broadcast %533 : vector<10x1xf32> to vector<10x16xf32>
    %535 = arith.subf %531, %534 : vector<10x16xf32>
    %536 = math.exp %535 : vector<10x16xf32>
    %cst_322 = arith.constant dense<0.000000e+00> : vector<10xf32>
    %537 = vector.multi_reduction <add>, %536, %cst_322 [1] : vector<10x16xf32> to vector<10xf32>
    %538 = vector.shape_cast %537 : vector<10xf32> to vector<10x1xf32>
    %539 = vector.broadcast %538 : vector<10x1xf32> to vector<10x16xf32>
    %540 = arith.divf %536, %539 : vector<10x16xf32>
    %541 = arith.truncf %540 : vector<10x16xf32> to vector<10x16xbf16>
    %cst_323 = arith.constant dense<0.000000e+00> : vector<10x16xf32>
    %542 = tpu.matmul %541, %528, %cst_323 {dimension_numbers = #tpu.dot_dimension_numbers<[1], [0], [0], [1], [0, 0, 1, 1], [], []>} : vector<10x16xbf16>, vector<16x16xbf16>, vector<10x16xf32> -> vector<10x16xf32>
    %543 = arith.truncf %542 : vector<10x16xf32> to vector<10x16xbf16>
    %544 = vector.extract_strided_slice %446 {offsets = [48, 0], sizes = [16, 64], strides = [1, 1]} : vector<64x64xbf16> to vector<16x64xbf16>
    %cst_324 = arith.constant dense<0.000000e+00> : vector<10x64xf32>
    %545 = tpu.matmul %543, %544, %cst_324 {dimension_numbers = #tpu.dot_dimension_numbers<[1], [0], [0], [1], [0, 0, 1, 1], [], []>} : vector<10x16xbf16>, vector<16x64xbf16>, vector<10x64xf32> -> vector<10x64xf32>
    %546 = arith.addf %522, %545 : vector<10x64xf32>
    %cst_325 = arith.constant dense<0.000000e+00> : vector<10xf32>
    %547 = vector.multi_reduction <add>, %546, %cst_325 [1] : vector<10x64xf32> to vector<10xf32>
    %548 = vector.shape_cast %547 : vector<10xf32> to vector<10x1xf32>
    %cst_326 = arith.constant 6.400000e+01 : f32
    %549 = vector.broadcast %cst_326 : f32 to vector<10x1xf32>
    %550 = arith.divf %548, %549 : vector<10x1xf32>
    %551 = vector.broadcast %550 : vector<10x1xf32> to vector<10x64xf32>
    %552 = arith.subf %546, %551 : vector<10x64xf32>
    %553 = arith.mulf %552, %552 : vector<10x64xf32>
    %cst_327 = arith.constant dense<0.000000e+00> : vector<10xf32>
    %554 = vector.multi_reduction <add>, %553, %cst_327 [1] : vector<10x64xf32> to vector<10xf32>
    %555 = vector.shape_cast %554 : vector<10xf32> to vector<10x1xf32>
    %cst_328 = arith.constant 6.400000e+01 : f32
    %556 = vector.broadcast %cst_328 : f32 to vector<10x1xf32>
    %557 = arith.divf %555, %556 : vector<10x1xf32>
    %558 = vector.broadcast %550 : vector<10x1xf32> to vector<10x64xf32>
    %559 = arith.subf %546, %558 : vector<10x64xf32>
    %cst_329 = arith.constant 9.99999974E-6 : f32
    %560 = vector.broadcast %cst_329 : f32 to vector<10x1xf32>
    %561 = arith.addf %557, %560 : vector<10x1xf32>
    %562 = math.rsqrt %561 : vector<10x1xf32>
    %563 = vector.broadcast %562 : vector<10x1xf32> to vector<10x64xf32>
    %564 = arith.mulf %559, %563 : vector<10x64xf32>
    %c0_330 = arith.constant 0 : index
    %c0_331 = arith.constant 0 : index
    %565 = vector.load %arg44[%c0_330, %c0_331] : memref<1x64xf32, #tpu.memory_space<vmem>>, vector<1x64xf32>
    %566 = vector.broadcast %565 : vector<1x64xf32> to vector<10x64xf32>
    %567 = arith.mulf %564, %566 : vector<10x64xf32>
    %c0_332 = arith.constant 0 : index
    %c0_333 = arith.constant 0 : index
    %568 = vector.load %arg45[%c0_332, %c0_333] : memref<1x64xf32, #tpu.memory_space<vmem>>, vector<1x64xf32>
    %569 = vector.broadcast %568 : vector<1x64xf32> to vector<10x64xf32>
    %570 = arith.addf %567, %569 : vector<10x64xf32>
    %571 = arith.truncf %570 : vector<10x64xf32> to vector<10x64xbf16>
    %c0_334 = arith.constant 0 : index
    %c0_335 = arith.constant 0 : index
    %572 = vector.load %arg46[%c0_334, %c0_335] : memref<64x256xbf16, #tpu.memory_space<vmem>>, vector<64x256xbf16>
    %cst_336 = arith.constant dense<0.000000e+00> : vector<10x256xf32>
    %573 = tpu.matmul %571, %572, %cst_336 {dimension_numbers = #tpu.dot_dimension_numbers<[1], [0], [0], [1], [0, 0, 1, 1], [], []>} : vector<10x64xbf16>, vector<64x256xbf16>, vector<10x256xf32> -> vector<10x256xf32>
    %c0_337 = arith.constant 0 : index
    %c0_338 = arith.constant 0 : index
    %574 = vector.load %arg47[%c0_337, %c0_338] : memref<1x256xf32, #tpu.memory_space<vmem>>, vector<1x256xf32>
    %575 = vector.broadcast %574 : vector<1x256xf32> to vector<10x256xf32>
    %576 = arith.addf %573, %575 : vector<10x256xf32>
    %577 = arith.negf %576 : vector<10x256xf32>
    %578 = math.exp %577 : vector<10x256xf32>
    %cst_339 = arith.constant 1.000000e+00 : f32
    %579 = vector.broadcast %cst_339 : f32 to vector<10x256xf32>
    %580 = arith.addf %579, %578 : vector<10x256xf32>
    %581 = arith.divf %579, %580 : vector<10x256xf32>
    %582 = arith.mulf %576, %581 : vector<10x256xf32>
    %583 = arith.truncf %582 : vector<10x256xf32> to vector<10x256xbf16>
    %c0_340 = arith.constant 0 : index
    %c0_341 = arith.constant 0 : index
    %584 = vector.load %arg48[%c0_340, %c0_341] : memref<256x64xbf16, #tpu.memory_space<vmem>>, vector<256x64xbf16>
    %cst_342 = arith.constant dense<0.000000e+00> : vector<10x64xf32>
    %585 = tpu.matmul %583, %584, %cst_342 {dimension_numbers = #tpu.dot_dimension_numbers<[1], [0], [0], [1], [0, 0, 1, 1], [], []>} : vector<10x256xbf16>, vector<256x64xbf16>, vector<10x64xf32> -> vector<10x64xf32>
    %c0_343 = arith.constant 0 : index
    %c0_344 = arith.constant 0 : index
    %586 = vector.load %arg49[%c0_343, %c0_344] : memref<1x64xf32, #tpu.memory_space<vmem>>, vector<1x64xf32>
    %587 = vector.broadcast %586 : vector<1x64xf32> to vector<10x64xf32>
    %588 = arith.addf %585, %587 : vector<10x64xf32>
    %589 = arith.addf %546, %588 : vector<10x64xf32>
    %590 = arith.truncf %589 : vector<10x64xf32> to vector<10x64xbf16>
    %c0_345 = arith.constant 0 : index
    %c0_346 = arith.constant 0 : index
    %591 = vector.load %arg50[%c0_345, %c0_346] : memref<64x2xbf16, #tpu.memory_space<vmem>>, vector<64x2xbf16>
    %cst_347 = arith.constant dense<0.000000e+00> : vector<10x2xf32>
    %592 = tpu.matmul %590, %591, %cst_347 {dimension_numbers = #tpu.dot_dimension_numbers<[1], [0], [0], [1], [0, 0, 1, 1], [], []>} : vector<10x64xbf16>, vector<64x2xbf16>, vector<10x2xf32> -> vector<10x2xf32>
    %c0_348 = arith.constant 0 : index
    %c0_349 = arith.constant 0 : index
    %593 = vector.load %arg51[%c0_348, %c0_349] : memref<1x2xf32, #tpu.memory_space<vmem>>, vector<1x2xf32>
    %594 = vector.broadcast %593 : vector<1x2xf32> to vector<10x2xf32>
    %595 = arith.addf %592, %594 : vector<10x2xf32>
    %c0_350 = arith.constant 0 : index
    %c0_351 = arith.constant 0 : index
    %596 = vector.load %arg52[%c0_350, %c0_351] : memref<10x1xf32, #tpu.memory_space<vmem>>, vector<10x1xf32>
    %597 = vector.extract_strided_slice %595 {offsets = [0, 0], sizes = [1, 1], strides = [1, 1]} : vector<10x2xf32> to vector<1x1xf32>
    %598 = vector.extract_strided_slice %596 {offsets = [0, 0], sizes = [1, 1], strides = [1, 1]} : vector<10x1xf32> to vector<1x1xf32>
    %599 = arith.addf %597, %598 : vector<1x1xf32>
    %600 = vector.extract_strided_slice %595 {offsets = [1, 1], sizes = [9, 1], strides = [1, 1]} : vector<10x2xf32> to vector<9x1xf32>
    %601 = vector.extract_strided_slice %596 {offsets = [1, 0], sizes = [9, 1], strides = [1, 1]} : vector<10x1xf32> to vector<9x1xf32>
    %602 = arith.addf %600, %601 : vector<9x1xf32>
    %c0_352 = arith.constant 0 : index
    %c0_353 = arith.constant 0 : index
    %c0_354 = arith.constant 0 : index
    %603 = vector.load %arg53[%c0_352, %c0_353, %c0_354] : memref<1x1x1xf32, #tpu.memory_space<vmem>>, vector<1x1x1xf32>
    %604 = vector.shape_cast %603 : vector<1x1x1xf32> to vector<1x1xf32>
    %605 = vector.shape_cast %599 : vector<1x1xf32> to vector<1x1x1xf32>
    tpu.vector_store %arg53[%c0_352, %c0_353, %c0_354], %605 {strides = array<i32>} : memref<1x1x1xf32, #tpu.memory_space<vmem>>, vector<1x1x1xf32>,
    %c0_355 = arith.constant 0 : index
    %c0_356 = arith.constant 0 : index
    %c0_357 = arith.constant 0 : index
    %606 = vector.load %arg54[%c0_355, %c0_356, %c0_357] : memref<1x9x1xf32, #tpu.memory_space<vmem>>, vector<1x9x1xf32>
    %607 = vector.shape_cast %606 : vector<1x9x1xf32> to vector<9x1xf32>
    %608 = vector.shape_cast %602 : vector<9x1xf32> to vector<1x9x1xf32>
    tpu.vector_store %arg54[%c0_355, %c0_356, %c0_357], %608 {strides = array<i32>} : memref<1x9x1xf32, #tpu.memory_space<vmem>>, vector<1x9x1xf32>,
    return
  }
  func.func @transform_0(%arg0: i32) -> (i32, i32, i32, i32) {
    %c0_i32 = arith.constant 0 : i32
    %c0_i32_0 = arith.constant 0 : i32
    %c0_i32_1 = arith.constant 0 : i32
    %c0_i32_2 = arith.constant 0 : i32
    return %arg0, %c0_i32, %c0_i32_0, %c0_i32_1 : i32, i32, i32, i32
  }
  func.func @transform_1(%arg0: i32) -> (i32, i32, i32) {
    %c0_i32 = arith.constant 0 : i32
    %c0_i32_0 = arith.constant 0 : i32
    %c0_i32_1 = arith.constant 0 : i32
    %c0_i32_2 = arith.constant 0 : i32
    return %c0_i32, %c0_i32_0, %c0_i32_1 : i32, i32, i32
  }
  func.func @transform_2(%arg0: i32) -> (i32, i32) {
    %c0_i32 = arith.constant 0 : i32
    %c0_i32_0 = arith.constant 0 : i32
    %c0_i32_1 = arith.constant 0 : i32
    return %c0_i32, %c0_i32_0 : i32, i32
  }
  func.func @transform_3(%arg0: i32) -> (i32, i32) {
    %c0_i32 = arith.constant 0 : i32
    %c0_i32_0 = arith.constant 0 : i32
    %c0_i32_1 = arith.constant 0 : i32
    return %c0_i32, %c0_i32_0 : i32, i32
  }
  func.func @transform_4(%arg0: i32) -> (i32, i32) {
    %c0_i32 = arith.constant 0 : i32
    %c0_i32_0 = arith.constant 0 : i32
    %c0_i32_1 = arith.constant 0 : i32
    return %c0_i32, %c0_i32_0 : i32, i32
  }
  func.func @transform_5(%arg0: i32) -> (i32, i32) {
    %c0_i32 = arith.constant 0 : i32
    %c0_i32_0 = arith.constant 0 : i32
    %c0_i32_1 = arith.constant 0 : i32
    return %c0_i32, %c0_i32_0 : i32, i32
  }
  func.func @transform_6(%arg0: i32) -> (i32, i32) {
    %c0_i32 = arith.constant 0 : i32
    %c0_i32_0 = arith.constant 0 : i32
    %c0_i32_1 = arith.constant 0 : i32
    return %c0_i32, %c0_i32_0 : i32, i32
  }
  func.func @transform_7(%arg0: i32) -> (i32, i32) {
    %c0_i32 = arith.constant 0 : i32
    %c0_i32_0 = arith.constant 0 : i32
    %c0_i32_1 = arith.constant 0 : i32
    return %c0_i32, %c0_i32_0 : i32, i32
  }
  func.func @transform_8(%arg0: i32) -> (i32, i32) {
    %c0_i32 = arith.constant 0 : i32
    %c0_i32_0 = arith.constant 0 : i32
    %c0_i32_1 = arith.constant 0 : i32
    return %c0_i32, %c0_i32_0 : i32, i32
  }
  func.func @transform_9(%arg0: i32) -> (i32, i32) {
    %c0_i32 = arith.constant 0 : i32
    %c0_i32_0 = arith.constant 0 : i32
    %c0_i32_1 = arith.constant 0 : i32
    return %c0_i32, %c0_i32_0 : i32, i32
  }
  func.func @transform_10(%arg0: i32) -> (i32, i32) {
    %c0_i32 = arith.constant 0 : i32
    %c0_i32_0 = arith.constant 0 : i32
    %c0_i32_1 = arith.constant 0 : i32
    return %c0_i32, %c0_i32_0 : i32, i32
  }
  func.func @transform_11(%arg0: i32) -> (i32, i32) {
    %c0_i32 = arith.constant 0 : i32
    %c0_i32_0 = arith.constant 0 : i32
    %c0_i32_1 = arith.constant 0 : i32
    return %c0_i32, %c0_i32_0 : i32, i32
  }
  func.func @transform_12(%arg0: i32) -> (i32, i32) {
    %c0_i32 = arith.constant 0 : i32
    %c0_i32_0 = arith.constant 0 : i32
    %c0_i32_1 = arith.constant 0 : i32
    return %c0_i32, %c0_i32_0 : i32, i32
  }
  func.func @transform_13(%arg0: i32) -> (i32, i32) {
    %c0_i32 = arith.constant 0 : i32
    %c0_i32_0 = arith.constant 0 : i32
    %c0_i32_1 = arith.constant 0 : i32
    return %c0_i32, %c0_i32_0 : i32, i32
  }
  func.func @transform_14(%arg0: i32) -> (i32, i32) {
    %c0_i32 = arith.constant 0 : i32
    %c0_i32_0 = arith.constant 0 : i32
    %c0_i32_1 = arith.constant 0 : i32
    return %c0_i32, %c0_i32_0 : i32, i32
  }
  func.func @transform_15(%arg0: i32) -> (i32, i32) {
    %c0_i32 = arith.constant 0 : i32
    %c0_i32_0 = arith.constant 0 : i32
    %c0_i32_1 = arith.constant 0 : i32
    return %c0_i32, %c0_i32_0 : i32, i32
  }
  func.func @transform_16(%arg0: i32) -> (i32, i32) {
    %c0_i32 = arith.constant 0 : i32
    %c0_i32_0 = arith.constant 0 : i32
    %c0_i32_1 = arith.constant 0 : i32
    return %c0_i32, %c0_i32_0 : i32, i32
  }
  func.func @transform_17(%arg0: i32) -> (i32, i32) {
    %c0_i32 = arith.constant 0 : i32
    %c0_i32_0 = arith.constant 0 : i32
    %c0_i32_1 = arith.constant 0 : i32
    return %c0_i32, %c0_i32_0 : i32, i32
  }
  func.func @transform_18(%arg0: i32) -> (i32, i32) {
    %c0_i32 = arith.constant 0 : i32
    %c0_i32_0 = arith.constant 0 : i32
    %c0_i32_1 = arith.constant 0 : i32
    return %c0_i32, %c0_i32_0 : i32, i32
  }
  func.func @transform_19(%arg0: i32) -> (i32, i32) {
    %c0_i32 = arith.constant 0 : i32
    %c0_i32_0 = arith.constant 0 : i32
    %c0_i32_1 = arith.constant 0 : i32
    return %c0_i32, %c0_i32_0 : i32, i32
  }
  func.func @transform_20(%arg0: i32) -> (i32, i32) {
    %c0_i32 = arith.constant 0 : i32
    %c0_i32_0 = arith.constant 0 : i32
    %c0_i32_1 = arith.constant 0 : i32
    return %c0_i32, %c0_i32_0 : i32, i32
  }
  func.func @transform_21(%arg0: i32) -> (i32, i32) {
    %c0_i32 = arith.constant 0 : i32
    %c0_i32_0 = arith.constant 0 : i32
    %c0_i32_1 = arith.constant 0 : i32
    return %c0_i32, %c0_i32_0 : i32, i32
  }
  func.func @transform_22(%arg0: i32) -> (i32, i32) {
    %c0_i32 = arith.constant 0 : i32
    %c0_i32_0 = arith.constant 0 : i32
    %c0_i32_1 = arith.constant 0 : i32
    return %c0_i32, %c0_i32_0 : i32, i32
  }
  func.func @transform_23(%arg0: i32) -> (i32, i32) {
    %c0_i32 = arith.constant 0 : i32
    %c0_i32_0 = arith.constant 0 : i32
    %c0_i32_1 = arith.constant 0 : i32
    return %c0_i32, %c0_i32_0 : i32, i32
  }
  func.func @transform_24(%arg0: i32) -> (i32, i32) {
    %c0_i32 = arith.constant 0 : i32
    %c0_i32_0 = arith.constant 0 : i32
    %c0_i32_1 = arith.constant 0 : i32
    return %c0_i32, %c0_i32_0 : i32, i32
  }
  func.func @transform_25(%arg0: i32) -> (i32, i32) {
    %c0_i32 = arith.constant 0 : i32
    %c0_i32_0 = arith.constant 0 : i32
    %c0_i32_1 = arith.constant 0 : i32
    return %c0_i32, %c0_i32_0 : i32, i32
  }
  func.func @transform_26(%arg0: i32) -> (i32, i32) {
    %c0_i32 = arith.constant 0 : i32
    %c0_i32_0 = arith.constant 0 : i32
    %c0_i32_1 = arith.constant 0 : i32
    return %c0_i32, %c0_i32_0 : i32, i32
  }
  func.func @transform_27(%arg0: i32) -> (i32, i32) {
    %c0_i32 = arith.constant 0 : i32
    %c0_i32_0 = arith.constant 0 : i32
    %c0_i32_1 = arith.constant 0 : i32
    return %c0_i32, %c0_i32_0 : i32, i32
  }
  func.func @transform_28(%arg0: i32) -> (i32, i32) {
    %c0_i32 = arith.constant 0 : i32
    %c0_i32_0 = arith.constant 0 : i32
    %c0_i32_1 = arith.constant 0 : i32
    return %c0_i32, %c0_i32_0 : i32, i32
  }
  func.func @transform_29(%arg0: i32) -> (i32, i32) {
    %c0_i32 = arith.constant 0 : i32
    %c0_i32_0 = arith.constant 0 : i32
    %c0_i32_1 = arith.constant 0 : i32
    return %c0_i32, %c0_i32_0 : i32, i32
  }
  func.func @transform_30(%arg0: i32) -> (i32, i32) {
    %c0_i32 = arith.constant 0 : i32
    %c0_i32_0 = arith.constant 0 : i32
    %c0_i32_1 = arith.constant 0 : i32
    return %c0_i32, %c0_i32_0 : i32, i32
  }
  func.func @transform_31(%arg0: i32) -> (i32, i32) {
    %c0_i32 = arith.constant 0 : i32
    %c0_i32_0 = arith.constant 0 : i32
    %c0_i32_1 = arith.constant 0 : i32
    return %c0_i32, %c0_i32_0 : i32, i32
  }
  func.func @transform_32(%arg0: i32) -> (i32, i32) {
    %c0_i32 = arith.constant 0 : i32
    %c0_i32_0 = arith.constant 0 : i32
    %c0_i32_1 = arith.constant 0 : i32
    return %c0_i32, %c0_i32_0 : i32, i32
  }
  func.func @transform_33(%arg0: i32) -> (i32, i32) {
    %c0_i32 = arith.constant 0 : i32
    %c0_i32_0 = arith.constant 0 : i32
    %c0_i32_1 = arith.constant 0 : i32
    return %c0_i32, %c0_i32_0 : i32, i32
  }
  func.func @transform_34(%arg0: i32) -> (i32, i32) {
    %c0_i32 = arith.constant 0 : i32
    %c0_i32_0 = arith.constant 0 : i32
    %c0_i32_1 = arith.constant 0 : i32
    return %c0_i32, %c0_i32_0 : i32, i32
  }
  func.func @transform_35(%arg0: i32) -> (i32, i32) {
    %c0_i32 = arith.constant 0 : i32
    %c0_i32_0 = arith.constant 0 : i32
    %c0_i32_1 = arith.constant 0 : i32
    return %c0_i32, %c0_i32_0 : i32, i32
  }
  func.func @transform_36(%arg0: i32) -> (i32, i32) {
    %c0_i32 = arith.constant 0 : i32
    %c0_i32_0 = arith.constant 0 : i32
    %c0_i32_1 = arith.constant 0 : i32
    return %c0_i32, %c0_i32_0 : i32, i32
  }
  func.func @transform_37(%arg0: i32) -> (i32, i32) {
    %c0_i32 = arith.constant 0 : i32
    %c0_i32_0 = arith.constant 0 : i32
    %c0_i32_1 = arith.constant 0 : i32
    return %c0_i32, %c0_i32_0 : i32, i32
  }
  func.func @transform_38(%arg0: i32) -> (i32, i32) {
    %c0_i32 = arith.constant 0 : i32
    %c0_i32_0 = arith.constant 0 : i32
    %c0_i32_1 = arith.constant 0 : i32
    return %c0_i32, %c0_i32_0 : i32, i32
  }
  func.func @transform_39(%arg0: i32) -> (i32, i32) {
    %c0_i32 = arith.constant 0 : i32
    %c0_i32_0 = arith.constant 0 : i32
    %c0_i32_1 = arith.constant 0 : i32
    return %c0_i32, %c0_i32_0 : i32, i32
  }
  func.func @transform_40(%arg0: i32) -> (i32, i32) {
    %c0_i32 = arith.constant 0 : i32
    %c0_i32_0 = arith.constant 0 : i32
    %c0_i32_1 = arith.constant 0 : i32
    return %c0_i32, %c0_i32_0 : i32, i32
  }
  func.func @transform_41(%arg0: i32) -> (i32, i32) {
    %c0_i32 = arith.constant 0 : i32
    %c0_i32_0 = arith.constant 0 : i32
    %c0_i32_1 = arith.constant 0 : i32
    return %c0_i32, %c0_i32_0 : i32, i32
  }
  func.func @transform_42(%arg0: i32) -> (i32, i32) {
    %c0_i32 = arith.constant 0 : i32
    %c0_i32_0 = arith.constant 0 : i32
    %c0_i32_1 = arith.constant 0 : i32
    return %c0_i32, %c0_i32_0 : i32, i32
  }
  func.func @transform_43(%arg0: i32) -> (i32, i32) {
    %c0_i32 = arith.constant 0 : i32
    %c0_i32_0 = arith.constant 0 : i32
    %c0_i32_1 = arith.constant 0 : i32
    return %c0_i32, %c0_i32_0 : i32, i32
  }
  func.func @transform_44(%arg0: i32) -> (i32, i32) {
    %c0_i32 = arith.constant 0 : i32
    %c0_i32_0 = arith.constant 0 : i32
    %c0_i32_1 = arith.constant 0 : i32
    return %c0_i32, %c0_i32_0 : i32, i32
  }
  func.func @transform_45(%arg0: i32) -> (i32, i32) {
    %c0_i32 = arith.constant 0 : i32
    %c0_i32_0 = arith.constant 0 : i32
    %c0_i32_1 = arith.constant 0 : i32
    return %c0_i32, %c0_i32_0 : i32, i32
  }
  func.func @transform_46(%arg0: i32) -> (i32, i32) {
    %c0_i32 = arith.constant 0 : i32
    %c0_i32_0 = arith.constant 0 : i32
    %c0_i32_1 = arith.constant 0 : i32
    return %c0_i32, %c0_i32_0 : i32, i32
  }
  func.func @transform_47(%arg0: i32) -> (i32, i32) {
    %c0_i32 = arith.constant 0 : i32
    %c0_i32_0 = arith.constant 0 : i32
    %c0_i32_1 = arith.constant 0 : i32
    return %c0_i32, %c0_i32_0 : i32, i32
  }
  func.func @transform_48(%arg0: i32) -> (i32, i32) {
    %c0_i32 = arith.constant 0 : i32
    %c0_i32_0 = arith.constant 0 : i32
    %c0_i32_1 = arith.constant 0 : i32
    return %c0_i32, %c0_i32_0 : i32, i32
  }
  func.func @transform_49(%arg0: i32) -> (i32, i32) {
    %c0_i32 = arith.constant 0 : i32
    %c0_i32_0 = arith.constant 0 : i32
    %c0_i32_1 = arith.constant 0 : i32
    return %c0_i32, %c0_i32_0 : i32, i32
  }
  func.func @transform_50(%arg0: i32) -> (i32, i32) {
    %c0_i32 = arith.constant 0 : i32
    %c0_i32_0 = arith.constant 0 : i32
    %c0_i32_1 = arith.constant 0 : i32
    return %c0_i32, %c0_i32_0 : i32, i32
  }
  func.func @transform_51(%arg0: i32) -> (i32, i32) {
    %c0_i32 = arith.constant 0 : i32
    %c0_i32_0 = arith.constant 0 : i32
    %c0_i32_1 = arith.constant 0 : i32
    return %c0_i32, %c0_i32_0 : i32, i32
  }
  func.func @transform_52(%arg0: i32) -> (i32, i32, i32) {
    %c0_i32 = arith.constant 0 : i32
    %c0_i32_0 = arith.constant 0 : i32
    %c0_i32_1 = arith.constant 0 : i32
    return %arg0, %c0_i32, %c0_i32_0 : i32, i32, i32
  }
  func.func @transform_53(%arg0: i32) -> (i32, i32, i32) {
    %c0_i32 = arith.constant 0 : i32
    %c0_i32_0 = arith.constant 0 : i32
    %c0_i32_1 = arith.constant 0 : i32
    return %arg0, %c0_i32, %c0_i32_0 : i32, i32, i32
  }
}

</mosaic_0001>

<llo_original>
// kernel: _lambda_.1
$region0: #{_lambda_.1}
  #allocation0 [shape = 'u32[]', space=smem, size = 0x4, offset = 0x4, fixed_abs, tag = 'smem constant byte address 0x4 - core index']
  #allocation1 [shape = 'u32[72,128]{1,0:T(1,128)}', space=vmem, size = 0x9000, scoped, tag = 'internal scratch']
  #allocation2 [shape = 'f32[9,16,16]{2,1,0:T(8,128)}', space=vmem, size = 0x12000, scoped, tag = 'scratch operand']
  #allocation3 [shape = 'f32[10,17,96]{2,1,0:T(8,128)}', space=vmem, size = 0x1e000, scoped, tag = 'scratch operand']
  #allocation4 [shape = 'f32[10,17,192]{2,1,0:T(8,128)}', space=vmem, size = 0x3c000, scoped, tag = 'scratch operand']
  #allocation5 [shape = 'f32[6,13,384]{2,1,0:T(8,128)}', space=vmem, size = 0x24000, scoped, tag = 'scratch operand']
  %s0 = inlined_call_operand.smem [shape: u32[54], index: -1, kind: input, shape index: {}]
  %s1 = sld [smem:[%s0]]
  %s2 = scalar_lea.smem %s0, 1
  %s3 = sld [smem:[%s2]]
  %s4 = scalar_lea.smem %s0, 2
  %s5 = sld [smem:[%s4]]
  %s6 = scalar_lea.smem %s0, 3
  %s7 = sld [smem:[%s6]]
  %s8 = scalar_lea.smem %s0, 4
  %s9 = sld [smem:[%s8]]
  %s10 = scalar_lea.smem %s0, 5
  %s11 = sld [smem:[%s10]]
  %s12 = scalar_lea.smem %s0, 6
  %s13 = sld [smem:[%s12]]
  %s14 = scalar_lea.smem %s0, 7
  %s15 = sld [smem:[%s14]]
  %s16 = scalar_lea.smem %s0, 8
  %s17 = sld [smem:[%s16]]
  %s18 = scalar_lea.smem %s0, 9
  %s19 = sld [smem:[%s18]]
  %s20 = scalar_lea.smem %s0, 10
  %s21 = sld [smem:[%s20]]
  %s22 = scalar_lea.smem %s0, 11
  %s23 = sld [smem:[%s22]]
  %s24 = scalar_lea.smem %s0, 12
  %s25 = sld [smem:[%s24]]
  %s26 = scalar_lea.smem %s0, 13
  %s27 = sld [smem:[%s26]]
  %s28 = scalar_lea.smem %s0, 14
  %s29 = sld [smem:[%s28]]
  %s30 = scalar_lea.smem %s0, 15
  %s31 = sld [smem:[%s30]]
  %s32 = scalar_lea.smem %s0, 16
  %s33 = sld [smem:[%s32]]
  %s34 = scalar_lea.smem %s0, 17
  %s35 = sld [smem:[%s34]]
  %s36 = scalar_lea.smem %s0, 18
  %s37 = sld [smem:[%s36]]
  %s38 = scalar_lea.smem %s0, 19
  %s39 = sld [smem:[%s38]]
  %s40 = scalar_lea.smem %s0, 20
  %s41 = sld [smem:[%s40]]
  %s42 = scalar_lea.smem %s0, 21
  %s43 = sld [smem:[%s42]]
  %s44 = scalar_lea.smem %s0, 22
  %s45 = sld [smem:[%s44]]
  %s46 = scalar_lea.smem %s0, 23
  %s47 = sld [smem:[%s46]]
  %s48 = scalar_lea.smem %s0, 24
  %s49 = sld [smem:[%s48]]
  %s50 = scalar_lea.smem %s0, 25
  %s51 = sld [smem:[%s50]]
  %s52 = scalar_lea.smem %s0, 26
  %s53 = sld [smem:[%s52]]
  %s54 = scalar_lea.smem %s0, 27
  %s55 = sld [smem:[%s54]]
  %s56 = scalar_lea.smem %s0, 28
  %s57 = sld [smem:[%s56]]
  %s58 = scalar_lea.smem %s0, 29
  %s59 = sld [smem:[%s58]]
  %s60 = scalar_lea.smem %s0, 30
  %s61 = sld [smem:[%s60]]
  %s62 = scalar_lea.smem %s0, 31
  %s63 = sld [smem:[%s62]]
  %s64 = scalar_lea.smem %s0, 32
  %s65 = sld [smem:[%s64]]
  %s66 = scalar_lea.smem %s0, 33
  %s67 = sld [smem:[%s66]]
  %s68 = scalar_lea.smem %s0, 34
  %s69 = sld [smem:[%s68]]
  %s70 = scalar_lea.smem %s0, 35
  %s71 = sld [smem:[%s70]]
  %s72 = scalar_lea.smem %s0, 36
  %s73 = sld [smem:[%s72]]
  %s74 = scalar_lea.smem %s0, 37
  %s75 = sld [smem:[%s74]]
  %s76 = scalar_lea.smem %s0, 38
  %s77 = sld [smem:[%s76]]
  %s78 = scalar_lea.smem %s0, 39
  %s79 = sld [smem:[%s78]]
  %s80 = scalar_lea.smem %s0, 40
  %s81 = sld [smem:[%s80]]
  %s82 = scalar_lea.smem %s0, 41
  %s83 = sld [smem:[%s82]]
  %s84 = scalar_lea.smem %s0, 42
  %s85 = sld [smem:[%s84]]
  %s86 = scalar_lea.smem %s0, 43
  %s87 = sld [smem:[%s86]]
  %s88 = scalar_lea.smem %s0, 44
  %s89 = sld [smem:[%s88]]
  %s90 = scalar_lea.smem %s0, 45
  %s91 = sld [smem:[%s90]]
  %s92 = scalar_lea.smem %s0, 46
  %s93 = sld [smem:[%s92]]
  %s94 = scalar_lea.smem %s0, 47
  %s95 = sld [smem:[%s94]]
  %s96 = scalar_lea.smem %s0, 48
  %s97 = sld [smem:[%s96]]
  %s98 = scalar_lea.smem %s0, 49
  %s99 = sld [smem:[%s98]]
  %s100 = scalar_lea.smem %s0, 50
  %s101 = sld [smem:[%s100]]
  %s102 = scalar_lea.smem %s0, 51
  %s103 = sld [smem:[%s102]]
  %s104 = scalar_lea.smem %s0, 52
  %s105 = sld [smem:[%s104]]
  %s106 = scalar_lea.smem %s0, 53
  %s107 = sld [smem:[%s106]]
  %108 = xla_tuple %s105, %s107
  %s109 = sld [smem:[#allocation0]]
  $region261: #{_lambda_.1} parent=0
    _
  %s111 = ssub.s32 1, %s109
  %s112 = scalar_select 0, %s111, %s109
  $region1: #{_lambda_.1} parent=0
    #allocation6 [shape = 'u8[16384]{0}', space=vmem, size = 0x4000, scoped, tag = 'input window, operand 41, single buffered']
    #allocation7 [shape = 's32[2]{0}', space=sflag, size = 0x8, scoped, tag = 'scoped memory for _lambda_.1']
    #allocation8 [shape = 'u8[16384]{0}', space=vmem, size = 0x4000, scoped, tag = 'input window, operand 49, single buffered']
    #allocation9 [shape = 's32[1]{0}', space=sflag, size = 0x4, scoped, tag = 'scoped memory for _lambda_.1']
    #allocation10 [shape = 'u8[8192]{0}', space=vmem, size = 0x2000, scoped, tag = 'input window, operand 51, single buffered']
    %113 = vsyncpa [#allocation7], 0
    %114 = vsyncpa [#allocation9], 0
    loop: start=0, step=1, limit=4
    $region2: #{_lambda_.1} parent=1 // loop_pre_header
      _
    $region3: #{_lambda_.1} parent=1 // loop_header
      %s116 = sphi 0, %s120
      %p117 = scmp.ge.s32.totalorder %s116, 4
      %s126 = sphi 0, %s128
      %s129 = sphi 0, %s126
      %s130 = sphi 0, %s129
      %s146 = sphi 0, %s130
      %s150 = sphi 0, %s150
      %s152 = sphi 0, %s150
      %s153 = sphi 0, %s152
      %s167 = sphi 0, %s153
      %s171 = sphi 0, %s171
      %s173 = sphi 0, %s171
      %s174 = sphi 0, %s173
      %s188 = sphi 0, %s174
      %s192 = sphi 0, %s192
      %s194 = sphi 0, %s192
      %s195 = sphi 0, %s194
      %s209 = sphi 0, %s195
      %s213 = sphi 0, %s213
      %s215 = sphi 0, %s213
      %s216 = sphi 0, %s215
      %s230 = sphi 0, %s216
      %s234 = sphi 0, %s234
      %s236 = sphi 0, %s234
      %s237 = sphi 0, %s236
      %s251 = sphi 0, %s237
      %s255 = sphi 0, %s255
      %s257 = sphi 0, %s255
      %s258 = sphi 0, %s257
      %s272 = sphi 0, %s258
      %s276 = sphi 0, %s276
      %s278 = sphi 0, %s276
      %s279 = sphi 0, %s278
      %s293 = sphi 0, %s279
      %s297 = sphi 0, %s297
      %s299 = sphi 0, %s297
      %s300 = sphi 0, %s299
      %s314 = sphi 0, %s300
      %s318 = sphi 0, %s318
      %s320 = sphi 0, %s318
      %s321 = sphi 0, %s320
      %s335 = sphi 0, %s321
      %s339 = sphi 0, %s339
      %s341 = sphi 0, %s339
      %s342 = sphi 0, %s341
      %s356 = sphi 0, %s342
      %s360 = sphi 0, %s360
      %s362 = sphi 0, %s360
      %s363 = sphi 0, %s362
      %s377 = sphi 0, %s363
      %s381 = sphi 0, %s381
      %s383 = sphi 0, %s381
      %s384 = sphi 0, %s383
      %s398 = sphi 0, %s384
      %s402 = sphi 0, %s402
      %s404 = sphi 0, %s402
      %s405 = sphi 0, %s404
      %s419 = sphi 0, %s405
      %s423 = sphi 0, %s423
      %s425 = sphi 0, %s423
      %s426 = sphi 0, %s425
      %s440 = sphi 0, %s426
      %s444 = sphi 0, %s444
      %s446 = sphi 0, %s444
      %s447 = sphi 0, %s446
      %s461 = sphi 0, %s447
      %s465 = sphi 0, %s465
      %s467 = sphi 0, %s465
      %s468 = sphi 0, %s467
      %s482 = sphi 0, %s468
      %s486 = sphi 0, %s486
      %s488 = sphi 0, %s486
      %s489 = sphi 0, %s488
      %s503 = sphi 0, %s489
      %s507 = sphi 0, %s507
      %s509 = sphi 0, %s507
      %s510 = sphi 0, %s509
      %s524 = sphi 0, %s510
      %s528 = sphi 0, %s528
      %s530 = sphi 0, %s528
      %s531 = sphi 0, %s530
      %s545 = sphi 0, %s531
      %s549 = sphi 0, %s549
      %s551 = sphi 0, %s549
      %s552 = sphi 0, %s551
      %s566 = sphi 0, %s552
      %s570 = sphi 0, %s570
      %s572 = sphi 0, %s570
      %s573 = sphi 0, %s572
      %s587 = sphi 0, %s573
      %s591 = sphi 0, %s591
      %s593 = sphi 0, %s591
      %s594 = sphi 0, %s593
      %s608 = sphi 0, %s594
      %s612 = sphi 0, %s612
      %s614 = sphi 0, %s612
      %s615 = sphi 0, %s614
      %s629 = sphi 0, %s615
      %s633 = sphi 0, %s633
      %s635 = sphi 0, %s633
      %s636 = sphi 0, %s635
      %s650 = sphi 0, %s636
      %s654 = sphi 0, %s654
      %s656 = sphi 0, %s654
      %s657 = sphi 0, %s656
      %s671 = sphi 0, %s657
      %s675 = sphi 0, %s675
      %s677 = sphi 0, %s675
      %s678 = sphi 0, %s677
      %s692 = sphi 0, %s678
      %s696 = sphi 0, %s696
      %s698 = sphi 0, %s696
      %s699 = sphi 0, %s698
      %s713 = sphi 0, %s699
      %s717 = sphi 0, %s717
      %s719 = sphi 0, %s717
      %s720 = sphi 0, %s719
      %s734 = sphi 0, %s720
      %s738 = sphi 0, %s738
      %s740 = sphi 0, %s738
      %s741 = sphi 0, %s740
      %s755 = sphi 0, %s741
      %s759 = sphi 0, %s759
      %s761 = sphi 0, %s759
      %s762 = sphi 0, %s761
      %s776 = sphi 0, %s762
      %s780 = sphi 0, %s780
      %s782 = sphi 0, %s780
      %s783 = sphi 0, %s782
      %s797 = sphi 0, %s783
      %s801 = sphi 0, %s801
      %s803 = sphi 0, %s801
      %s804 = sphi 0, %s803
      %s818 = sphi 0, %s804
      %s822 = sphi 0, %s822
      %s824 = sphi 0, %s822
      %s825 = sphi 0, %s824
      %s839 = sphi 0, %s825
      %s843 = sphi 0, %s843
      %s845 = sphi 0, %s843
      %s846 = sphi 0, %s845
      %s860 = sphi 0, %s846
      %s864 = sphi 0, %s864
      %s866 = sphi 0, %s864
      %s867 = sphi 0, %s866
      %s881 = sphi 0, %s867
      %s885 = sphi 0, %s885
      %s887 = sphi 0, %s885
      %s888 = sphi 0, %s887
      %s902 = sphi 0, %s888
      %s906 = sphi 0, %s906
      %s908 = sphi 0, %s906
      %s909 = sphi 0, %s908
      %s923 = sphi 0, %s909
      %s927 = sphi 0, %s927
      %s929 = sphi 0, %s927
      %s930 = sphi 0, %s929
      %s944 = sphi 0, %s930
      %s948 = sphi 0, %s948
      %s950 = sphi 0, %s948
      %s951 = sphi 0, %s950
      %s965 = sphi 0, %s951
      %s969 = sphi 0, %s969
      %s971 = sphi 0, %s969
      %s972 = sphi 0, %s971
      %s986 = sphi 0, %s972
      %s990 = sphi 0, %s990
      %s992 = sphi 0, %s990
      %s993 = sphi 0, %s992
      %s1007 = sphi 0, %s993
      %s1011 = sphi 0, %s1011
      %s1013 = sphi 0, %s1011
      %s1014 = sphi 0, %s1013
      %s1028 = sphi 0, %s1014
      %s1032 = sphi 0, %s1032
      %s1034 = sphi 0, %s1032
      %s1035 = sphi 0, %s1034
      %s1049 = sphi 0, %s1035
      %s1053 = sphi 0, %s1053
      %s1055 = sphi 0, %s1053
      %s1056 = sphi 0, %s1055
      %s1070 = sphi 0, %s1056
      %s1074 = sphi 0, %s1074
      %s1076 = sphi 0, %s1074
      %s1077 = sphi 0, %s1076
      %s1091 = sphi 0, %s1077
      %s1095 = sphi 0, %s1095
      %s1097 = sphi 0, %s1095
      %s1098 = sphi 0, %s1097
      %s1112 = sphi 0, %s1098
      %s1116 = sphi 0, %s1116
      %s1118 = sphi 0, %s1116
      %s1119 = sphi 0, %s1118
      %s1133 = sphi 0, %s1119
      %s1137 = sphi 0, %s1137
      %s1139 = sphi 0, %s1137
      %s1140 = sphi 0, %s1139
      %s1154 = sphi 0, %s1140
      %s1158 = sphi 0, %s1158
      %s1160 = sphi 0, %s1158
      %s1161 = sphi 0, %s1160
      %s1175 = sphi 0, %s1161
      %s1179 = sphi 0, %s1179
      %s1181 = sphi 0, %s1179
      %s1182 = sphi 0, %s1181
      %s1196 = sphi 0, %s1182
      %s1200 = sphi 0, %s1200
      %s1202 = sphi 0, %s1200
      %s1203 = sphi 0, %s1202
      %s1217 = sphi 0, %s1203
      %s1223 = sphi 0, %s1225
      %s1226 = sphi 0, %s1223
      %s1227 = sphi 0, %s1226
      %s1243 = sphi 0, %s1227
      %s1249 = sphi 0, %s1251
      %s1252 = sphi 0, %s1249
      %s1253 = sphi 0, %s1252
      %s1269 = sphi 0, %s1253
    $region4: #{_lambda_.1} parent=1 // loop_header_branch
      %119 = sbr.rel (%p117) target = $region8
    $region5: #{_lambda_.1} parent=1 // loop_body
      %s121 = ssub.s32 %s116, 1
      %s122 = ssub.s32 %s116, 2
      %s123 = sadd.s32 %s116, 1
      %s124 = ssub.s32 %s116, %s123
      %p125 = scmp.eq.s32.totalorder %s124, 0
      %s127 = sadd.s32 %s126, 1
      %s128 = scalar_select %p125, %s126, %s127
      %p131 = pneg %p125
      %p132 = scmp.eq.s32.totalorder %s116, 1
      %p133 = por %p131, %p132
      %p134 = scmp.ne.s32.totalorder %s126, %s129
      %p135 = scmp.eq.s32.totalorder %s116, 0
      %p136 = por %p134, %p135
      %p137 = scmp.ne.s32.totalorder %s126, %s129
      %p138 = scmp.eq.s32.totalorder %s121, 1
      %p139 = por %p137, %p138
      %p140 = scmp.ne.s32.totalorder %s129, %s130
      %p141 = scmp.eq.s32.totalorder %s121, 0
      %p142 = por %p140, %p141
      %p143 = scmp.ne.s32.totalorder %s129, %s130
      %p144 = scmp.eq.s32.totalorder %s122, 1
      %p145 = por %p143, %p144
      %p147 = scmp.ne.s32.totalorder %s130, %s146
      %p148 = scmp.eq.s32.totalorder %s122, 0
      %p149 = por %p147, %p148
      %s151 = sadd.s32 %s150, 1
      %p154 = scmp.eq.s32.totalorder %s116, 1
      %p155 = scmp.ne.s32.totalorder %s150, %s152
      %p156 = scmp.eq.s32.totalorder %s116, 0
      %p157 = por %p155, %p156
      %p158 = scmp.ne.s32.totalorder %s150, %s152
      %p159 = scmp.eq.s32.totalorder %s121, 1
      %p160 = por %p158, %p159
      %p161 = scmp.ne.s32.totalorder %s152, %s153
      %p162 = scmp.eq.s32.totalorder %s121, 0
      %p163 = por %p161, %p162
      %p164 = scmp.ne.s32.totalorder %s152, %s153
      %p165 = scmp.eq.s32.totalorder %s122, 1
      %p166 = por %p164, %p165
      %p168 = scmp.ne.s32.totalorder %s153, %s167
      %p169 = scmp.eq.s32.totalorder %s122, 0
      %p170 = por %p168, %p169
      %s172 = sadd.s32 %s171, 1
      %p175 = scmp.eq.s32.totalorder %s116, 1
      %p176 = scmp.ne.s32.totalorder %s171, %s173
      %p177 = scmp.eq.s32.totalorder %s116, 0
      %p178 = por %p176, %p177
      %p179 = scmp.ne.s32.totalorder %s171, %s173
      %p180 = scmp.eq.s32.totalorder %s121, 1
      %p181 = por %p179, %p180
      %p182 = scmp.ne.s32.totalorder %s173, %s174
      %p183 = scmp.eq.s32.totalorder %s121, 0
      %p184 = por %p182, %p183
      %p185 = scmp.ne.s32.totalorder %s173, %s174
      %p186 = scmp.eq.s32.totalorder %s122, 1
      %p187 = por %p185, %p186
      %p189 = scmp.ne.s32.totalorder %s174, %s188
      %p190 = scmp.eq.s32.totalorder %s122, 0
      %p191 = por %p189, %p190
      %s193 = sadd.s32 %s192, 1
      %p196 = scmp.eq.s32.totalorder %s116, 1
      %p197 = scmp.ne.s32.totalorder %s192, %s194
      %p198 = scmp.eq.s32.totalorder %s116, 0
      %p199 = por %p197, %p198
      %p200 = scmp.ne.s32.totalorder %s192, %s194
      %p201 = scmp.eq.s32.totalorder %s121, 1
      %p202 = por %p200, %p201
      %p203 = scmp.ne.s32.totalorder %s194, %s195
      %p204 = scmp.eq.s32.totalorder %s121, 0
      %p205 = por %p203, %p204
      %p206 = scmp.ne.s32.totalorder %s194, %s195
      %p207 = scmp.eq.s32.totalorder %s122, 1
      %p208 = por %p206, %p207
      %p210 = scmp.ne.s32.totalorder %s195, %s209
      %p211 = scmp.eq.s32.totalorder %s122, 0
      %p212 = por %p210, %p211
      %s214 = sadd.s32 %s213, 1
      %p217 = scmp.eq.s32.totalorder %s116, 1
      %p218 = scmp.ne.s32.totalorder %s213, %s215
      %p219 = scmp.eq.s32.totalorder %s116, 0
      %p220 = por %p218, %p219
      %p221 = scmp.ne.s32.totalorder %s213, %s215
      %p222 = scmp.eq.s32.totalorder %s121, 1
      %p223 = por %p221, %p222
      %p224 = scmp.ne.s32.totalorder %s215, %s216
      %p225 = scmp.eq.s32.totalorder %s121, 0
      %p226 = por %p224, %p225
      %p227 = scmp.ne.s32.totalorder %s215, %s216
      %p228 = scmp.eq.s32.totalorder %s122, 1
      %p229 = por %p227, %p228
      %p231 = scmp.ne.s32.totalorder %s216, %s230
      %p232 = scmp.eq.s32.totalorder %s122, 0
      %p233 = por %p231, %p232
      %s235 = sadd.s32 %s234, 1
      %p238 = scmp.eq.s32.totalorder %s116, 1
      %p239 = scmp.ne.s32.totalorder %s234, %s236
      %p240 = scmp.eq.s32.totalorder %s116, 0
      %p241 = por %p239, %p240
      %p242 = scmp.ne.s32.totalorder %s234, %s236
      %p243 = scmp.eq.s32.totalorder %s121, 1
      %p244 = por %p242, %p243
      %p245 = scmp.ne.s32.totalorder %s236, %s237
      %p246 = scmp.eq.s32.totalorder %s121, 0
      %p247 = por %p245, %p246
      %p248 = scmp.ne.s32.totalorder %s236, %s237
      %p249 = scmp.eq.s32.totalorder %s122, 1
      %p250 = por %p248, %p249
      %p252 = scmp.ne.s32.totalorder %s237, %s251
      %p253 = scmp.eq.s32.totalorder %s122, 0
      %p254 = por %p252, %p253
      %s256 = sadd.s32 %s255, 1
      %p259 = scmp.eq.s32.totalorder %s116, 1
      %p260 = scmp.ne.s32.totalorder %s255, %s257
      %p261 = scmp.eq.s32.totalorder %s116, 0
      %p262 = por %p260, %p261
      %p263 = scmp.ne.s32.totalorder %s255, %s257
      %p264 = scmp.eq.s32.totalorder %s121, 1
      %p265 = por %p263, %p264
      %p266 = scmp.ne.s32.totalorder %s257, %s258
      %p267 = scmp.eq.s32.totalorder %s121, 0
      %p268 = por %p266, %p267
      %p269 = scmp.ne.s32.totalorder %s257, %s258
      %p270 = scmp.eq.s32.totalorder %s122, 1
      %p271 = por %p269, %p270
      %p273 = scmp.ne.s32.totalorder %s258, %s272
      %p274 = scmp.eq.s32.totalorder %s122, 0
      %p275 = por %p273, %p274
      %s277 = sadd.s32 %s276, 1
      %p280 = scmp.eq.s32.totalorder %s116, 1
      %p281 = scmp.ne.s32.totalorder %s276, %s278
      %p282 = scmp.eq.s32.totalorder %s116, 0
      %p283 = por %p281, %p282
      %p284 = scmp.ne.s32.totalorder %s276, %s278
      %p285 = scmp.eq.s32.totalorder %s121, 1
      %p286 = por %p284, %p285
      %p287 = scmp.ne.s32.totalorder %s278, %s279
      %p288 = scmp.eq.s32.totalorder %s121, 0
      %p289 = por %p287, %p288
      %p290 = scmp.ne.s32.totalorder %s278, %s279
      %p291 = scmp.eq.s32.totalorder %s122, 1
      %p292 = por %p290, %p291
      %p294 = scmp.ne.s32.totalorder %s279, %s293
      %p295 = scmp.eq.s32.totalorder %s122, 0
      %p296 = por %p294, %p295
      %s298 = sadd.s32 %s297, 1
      %p301 = scmp.eq.s32.totalorder %s116, 1
      %p302 = scmp.ne.s32.totalorder %s297, %s299
      %p303 = scmp.eq.s32.totalorder %s116, 0
      %p304 = por %p302, %p303
      %p305 = scmp.ne.s32.totalorder %s297, %s299
      %p306 = scmp.eq.s32.totalorder %s121, 1
      %p307 = por %p305, %p306
      %p308 = scmp.ne.s32.totalorder %s299, %s300
      %p309 = scmp.eq.s32.totalorder %s121, 0
      %p310 = por %p308, %p309
      %p311 = scmp.ne.s32.totalorder %s299, %s300
      %p312 = scmp.eq.s32.totalorder %s122, 1
      %p313 = por %p311, %p312
      %p315 = scmp.ne.s32.totalorder %s300, %s314
      %p316 = scmp.eq.s32.totalorder %s122, 0
      %p317 = por %p315, %p316
      %s319 = sadd.s32 %s318, 1
      %p322 = scmp.eq.s32.totalorder %s116, 1
      %p323 = scmp.ne.s32.totalorder %s318, %s320
      %p324 = scmp.eq.s32.totalorder %s116, 0
      %p325 = por %p323, %p324
      %p326 = scmp.ne.s32.totalorder %s318, %s320
      %p327 = scmp.eq.s32.totalorder %s121, 1
      %p328 = por %p326, %p327
      %p329 = scmp.ne.s32.totalorder %s320, %s321
      %p330 = scmp.eq.s32.totalorder %s121, 0
      %p331 = por %p329, %p330
      %p332 = scmp.ne.s32.totalorder %s320, %s321
      %p333 = scmp.eq.s32.totalorder %s122, 1
      %p334 = por %p332, %p333
      %p336 = scmp.ne.s32.totalorder %s321, %s335
      %p337 = scmp.eq.s32.totalorder %s122, 0
      %p338 = por %p336, %p337
      %s340 = sadd.s32 %s339, 1
      %p343 = scmp.eq.s32.totalorder %s116, 1
      %p344 = scmp.ne.s32.totalorder %s339, %s341
      %p345 = scmp.eq.s32.totalorder %s116, 0
      %p346 = por %p344, %p345
      %p347 = scmp.ne.s32.totalorder %s339, %s341
      %p348 = scmp.eq.s32.totalorder %s121, 1
      %p349 = por %p347, %p348
      %p350 = scmp.ne.s32.totalorder %s341, %s342
      %p351 = scmp.eq.s32.totalorder %s121, 0
      %p352 = por %p350, %p351
      %p353 = scmp.ne.s32.totalorder %s341, %s342
      %p354 = scmp.eq.s32.totalorder %s122, 1
      %p355 = por %p353, %p354
      %p357 = scmp.ne.s32.totalorder %s342, %s356
      %p358 = scmp.eq.s32.totalorder %s122, 0
      %p359 = por %p357, %p358
      %s361 = sadd.s32 %s360, 1
      %p364 = scmp.eq.s32.totalorder %s116, 1
      %p365 = scmp.ne.s32.totalorder %s360, %s362
      %p366 = scmp.eq.s32.totalorder %s116, 0
      %p367 = por %p365, %p366
      %p368 = scmp.ne.s32.totalorder %s360, %s362
      %p369 = scmp.eq.s32.totalorder %s121, 1
      %p370 = por %p368, %p369
      %p371 = scmp.ne.s32.totalorder %s362, %s363
      %p372 = scmp.eq.s32.totalorder %s121, 0
      %p373 = por %p371, %p372
      %p374 = scmp.ne.s32.totalorder %s362, %s363
      %p375 = scmp.eq.s32.totalorder %s122, 1
      %p376 = por %p374, %p375
      %p378 = scmp.ne.s32.totalorder %s363, %s377
      %p379 = scmp.eq.s32.totalorder %s122, 0
      %p380 = por %p378, %p379
      %s382 = sadd.s32 %s381, 1
      %p385 = scmp.eq.s32.totalorder %s116, 1
      %p386 = scmp.ne.s32.totalorder %s381, %s383
      %p387 = scmp.eq.s32.totalorder %s116, 0
      %p388 = por %p386, %p387
      %p389 = scmp.ne.s32.totalorder %s381, %s383
      %p390 = scmp.eq.s32.totalorder %s121, 1
      %p391 = por %p389, %p390
      %p392 = scmp.ne.s32.totalorder %s383, %s384
      %p393 = scmp.eq.s32.totalorder %s121, 0
      %p394 = por %p392, %p393
      %p395 = scmp.ne.s32.totalorder %s383, %s384
      %p396 = scmp.eq.s32.totalorder %s122, 1
      %p397 = por %p395, %p396
      %p399 = scmp.ne.s32.totalorder %s384, %s398
      %p400 = scmp.eq.s32.totalorder %s122, 0
      %p401 = por %p399, %p400
      %s403 = sadd.s32 %s402, 1
      %p406 = scmp.eq.s32.totalorder %s116, 1
      %p407 = scmp.ne.s32.totalorder %s402, %s404
      %p408 = scmp.eq.s32.totalorder %s116, 0
      %p409 = por %p407, %p408
      %p410 = scmp.ne.s32.totalorder %s402, %s404
      %p411 = scmp.eq.s32.totalorder %s121, 1
      %p412 = por %p410, %p411
      %p413 = scmp.ne.s32.totalorder %s404, %s405
      %p414 = scmp.eq.s32.totalorder %s121, 0
      %p415 = por %p413, %p414
      %p416 = scmp.ne.s32.totalorder %s404, %s405
      %p417 = scmp.eq.s32.totalorder %s122, 1
      %p418 = por %p416, %p417
      %p420 = scmp.ne.s32.totalorder %s405, %s419
      %p421 = scmp.eq.s32.totalorder %s122, 0
      %p422 = por %p420, %p421
      %s424 = sadd.s32 %s423, 1
      %p427 = scmp.eq.s32.totalorder %s116, 1
      %p428 = scmp.ne.s32.totalorder %s423, %s425
      %p429 = scmp.eq.s32.totalorder %s116, 0
      %p430 = por %p428, %p429
      %p431 = scmp.ne.s32.totalorder %s423, %s425
      %p432 = scmp.eq.s32.totalorder %s121, 1
      %p433 = por %p431, %p432
      %p434 = scmp.ne.s32.totalorder %s425, %s426
      %p435 = scmp.eq.s32.totalorder %s121, 0
      %p436 = por %p434, %p435
      %p437 = scmp.ne.s32.totalorder %s425, %s426
      %p438 = scmp.eq.s32.totalorder %s122, 1
      %p439 = por %p437, %p438
      %p441 = scmp.ne.s32.totalorder %s426, %s440
      %p442 = scmp.eq.s32.totalorder %s122, 0
      %p443 = por %p441, %p442
      %s445 = sadd.s32 %s444, 1
      %p448 = scmp.eq.s32.totalorder %s116, 1
      %p449 = scmp.ne.s32.totalorder %s444, %s446
      %p450 = scmp.eq.s32.totalorder %s116, 0
      %p451 = por %p449, %p450
      %p452 = scmp.ne.s32.totalorder %s444, %s446
      %p453 = scmp.eq.s32.totalorder %s121, 1
      %p454 = por %p452, %p453
      %p455 = scmp.ne.s32.totalorder %s446, %s447
      %p456 = scmp.eq.s32.totalorder %s121, 0
      %p457 = por %p455, %p456
      %p458 = scmp.ne.s32.totalorder %s446, %s447
      %p459 = scmp.eq.s32.totalorder %s122, 1
      %p460 = por %p458, %p459
      %p462 = scmp.ne.s32.totalorder %s447, %s461
      %p463 = scmp.eq.s32.totalorder %s122, 0
      %p464 = por %p462, %p463
      %s466 = sadd.s32 %s465, 1
      %p469 = scmp.eq.s32.totalorder %s116, 1
      %p470 = scmp.ne.s32.totalorder %s465, %s467
      %p471 = scmp.eq.s32.totalorder %s116, 0
      %p472 = por %p470, %p471
      %p473 = scmp.ne.s32.totalorder %s465, %s467
      %p474 = scmp.eq.s32.totalorder %s121, 1
      %p475 = por %p473, %p474
      %p476 = scmp.ne.s32.totalorder %s467, %s468
      %p477 = scmp.eq.s32.totalorder %s121, 0
      %p478 = por %p476, %p477
      %p479 = scmp.ne.s32.totalorder %s467, %s468
      %p480 = scmp.eq.s32.totalorder %s122, 1
      %p481 = por %p479, %p480
      %p483 = scmp.ne.s32.totalorder %s468, %s482
      %p484 = scmp.eq.s32.totalorder %s122, 0
      %p485 = por %p483, %p484
      %s487 = sadd.s32 %s486, 1
      %p490 = scmp.eq.s32.totalorder %s116, 1
      %p491 = scmp.ne.s32.totalorder %s486, %s488
      %p492 = scmp.eq.s32.totalorder %s116, 0
      %p493 = por %p491, %p492
      %p494 = scmp.ne.s32.totalorder %s486, %s488
      %p495 = scmp.eq.s32.totalorder %s121, 1
      %p496 = por %p494, %p495
      %p497 = scmp.ne.s32.totalorder %s488, %s489
      %p498 = scmp.eq.s32.totalorder %s121, 0
      %p499 = por %p497, %p498
      %p500 = scmp.ne.s32.totalorder %s488, %s489
      %p501 = scmp.eq.s32.totalorder %s122, 1
      %p502 = por %p500, %p501
      %p504 = scmp.ne.s32.totalorder %s489, %s503
      %p505 = scmp.eq.s32.totalorder %s122, 0
      %p506 = por %p504, %p505
      %s508 = sadd.s32 %s507, 1
      %p511 = scmp.eq.s32.totalorder %s116, 1
      %p512 = scmp.ne.s32.totalorder %s507, %s509
      %p513 = scmp.eq.s32.totalorder %s116, 0
      %p514 = por %p512, %p513
      %p515 = scmp.ne.s32.totalorder %s507, %s509
      %p516 = scmp.eq.s32.totalorder %s121, 1
      %p517 = por %p515, %p516
      %p518 = scmp.ne.s32.totalorder %s509, %s510
      %p519 = scmp.eq.s32.totalorder %s121, 0
      %p520 = por %p518, %p519
      %p521 = scmp.ne.s32.totalorder %s509, %s510
      %p522 = scmp.eq.s32.totalorder %s122, 1
      %p523 = por %p521, %p522
      %p525 = scmp.ne.s32.totalorder %s510, %s524
      %p526 = scmp.eq.s32.totalorder %s122, 0
      %p527 = por %p525, %p526
      %s529 = sadd.s32 %s528, 1
      %p532 = scmp.eq.s32.totalorder %s116, 1
      %p533 = scmp.ne.s32.totalorder %s528, %s530
      %p534 = scmp.eq.s32.totalorder %s116, 0
      %p535 = por %p533, %p534
      %p536 = scmp.ne.s32.totalorder %s528, %s530
      %p537 = scmp.eq.s32.totalorder %s121, 1
      %p538 = por %p536, %p537
      %p539 = scmp.ne.s32.totalorder %s530, %s531
      %p540 = scmp.eq.s32.totalorder %s121, 0
      %p541 = por %p539, %p540
      %p542 = scmp.ne.s32.totalorder %s530, %s531
      %p543 = scmp.eq.s32.totalorder %s122, 1
      %p544 = por %p542, %p543
      %p546 = scmp.ne.s32.totalorder %s531, %s545
      %p547 = scmp.eq.s32.totalorder %s122, 0
      %p548 = por %p546, %p547
      %s550 = sadd.s32 %s549, 1
      %p553 = scmp.eq.s32.totalorder %s116, 1
      %p554 = scmp.ne.s32.totalorder %s549, %s551
      %p555 = scmp.eq.s32.totalorder %s116, 0
      %p556 = por %p554, %p555
      %p557 = scmp.ne.s32.totalorder %s549, %s551
      %p558 = scmp.eq.s32.totalorder %s121, 1
      %p559 = por %p557, %p558
      %p560 = scmp.ne.s32.totalorder %s551, %s552
      %p561 = scmp.eq.s32.totalorder %s121, 0
      %p562 = por %p560, %p561
      %p563 = scmp.ne.s32.totalorder %s551, %s552
      %p564 = scmp.eq.s32.totalorder %s122, 1
      %p565 = por %p563, %p564
      %p567 = scmp.ne.s32.totalorder %s552, %s566
      %p568 = scmp.eq.s32.totalorder %s122, 0
      %p569 = por %p567, %p568
      %s571 = sadd.s32 %s570, 1
      %p574 = scmp.eq.s32.totalorder %s116, 1
      %p575 = scmp.ne.s32.totalorder %s570, %s572
      %p576 = scmp.eq.s32.totalorder %s116, 0
      %p577 = por %p575, %p576
      %p578 = scmp.ne.s32.totalorder %s570, %s572
      %p579 = scmp.eq.s32.totalorder %s121, 1
      %p580 = por %p578, %p579
      %p581 = scmp.ne.s32.totalorder %s572, %s573
      %p582 = scmp.eq.s32.totalorder %s121, 0
      %p583 = por %p581, %p582
      %p584 = scmp.ne.s32.totalorder %s572, %s573
      %p585 = scmp.eq.s32.totalorder %s122, 1
      %p586 = por %p584, %p585
      %p588 = scmp.ne.s32.totalorder %s573, %s587
      %p589 = scmp.eq.s32.totalorder %s122, 0
      %p590 = por %p588, %p589
      %s592 = sadd.s32 %s591, 1
      %p595 = scmp.eq.s32.totalorder %s116, 1
      %p596 = scmp.ne.s32.totalorder %s591, %s593
      %p597 = scmp.eq.s32.totalorder %s116, 0
      %p598 = por %p596, %p597
      %p599 = scmp.ne.s32.totalorder %s591, %s593
      %p600 = scmp.eq.s32.totalorder %s121, 1
      %p601 = por %p599, %p600
      %p602 = scmp.ne.s32.totalorder %s593, %s594
      %p603 = scmp.eq.s32.totalorder %s121, 0
      %p604 = por %p602, %p603
      %p605 = scmp.ne.s32.totalorder %s593, %s594
      %p606 = scmp.eq.s32.totalorder %s122, 1
      %p607 = por %p605, %p606
      %p609 = scmp.ne.s32.totalorder %s594, %s608
      %p610 = scmp.eq.s32.totalorder %s122, 0
      %p611 = por %p609, %p610
      %s613 = sadd.s32 %s612, 1
      %p616 = scmp.eq.s32.totalorder %s116, 1
      %p617 = scmp.ne.s32.totalorder %s612, %s614
      %p618 = scmp.eq.s32.totalorder %s116, 0
      %p619 = por %p617, %p618
      %p620 = scmp.ne.s32.totalorder %s612, %s614
      %p621 = scmp.eq.s32.totalorder %s121, 1
      %p622 = por %p620, %p621
      %p623 = scmp.ne.s32.totalorder %s614, %s615
      %p624 = scmp.eq.s32.totalorder %s121, 0
      %p625 = por %p623, %p624
      %p626 = scmp.ne.s32.totalorder %s614, %s615
      %p627 = scmp.eq.s32.totalorder %s122, 1
      %p628 = por %p626, %p627
      %p630 = scmp.ne.s32.totalorder %s615, %s629
      %p631 = scmp.eq.s32.totalorder %s122, 0
      %p632 = por %p630, %p631
      %s634 = sadd.s32 %s633, 1
      %p637 = scmp.eq.s32.totalorder %s116, 1
      %p638 = scmp.ne.s32.totalorder %s633, %s635
      %p639 = scmp.eq.s32.totalorder %s116, 0
      %p640 = por %p638, %p639
      %p641 = scmp.ne.s32.totalorder %s633, %s635
      %p642 = scmp.eq.s32.totalorder %s121, 1
      %p643 = por %p641, %p642
      %p644 = scmp.ne.s32.totalorder %s635, %s636
      %p645 = scmp.eq.s32.totalorder %s121, 0
      %p646 = por %p644, %p645
      %p647 = scmp.ne.s32.totalorder %s635, %s636
      %p648 = scmp.eq.s32.totalorder %s122, 1
      %p649 = por %p647, %p648
      %p651 = scmp.ne.s32.totalorder %s636, %s650
      %p652 = scmp.eq.s32.totalorder %s122, 0
      %p653 = por %p651, %p652
      %s655 = sadd.s32 %s654, 1
      %p658 = scmp.eq.s32.totalorder %s116, 1
      %p659 = scmp.ne.s32.totalorder %s654, %s656
      %p660 = scmp.eq.s32.totalorder %s116, 0
      %p661 = por %p659, %p660
      %p662 = scmp.ne.s32.totalorder %s654, %s656
      %p663 = scmp.eq.s32.totalorder %s121, 1
      %p664 = por %p662, %p663
      %p665 = scmp.ne.s32.totalorder %s656, %s657
      %p666 = scmp.eq.s32.totalorder %s121, 0
      %p667 = por %p665, %p666
      %p668 = scmp.ne.s32.totalorder %s656, %s657
      %p669 = scmp.eq.s32.totalorder %s122, 1
      %p670 = por %p668, %p669
      %p672 = scmp.ne.s32.totalorder %s657, %s671
      %p673 = scmp.eq.s32.totalorder %s122, 0
      %p674 = por %p672, %p673
      %s676 = sadd.s32 %s675, 1
      %p679 = scmp.eq.s32.totalorder %s116, 1
      %p680 = scmp.ne.s32.totalorder %s675, %s677
      %p681 = scmp.eq.s32.totalorder %s116, 0
      %p682 = por %p680, %p681
      %p683 = scmp.ne.s32.totalorder %s675, %s677
      %p684 = scmp.eq.s32.totalorder %s121, 1
      %p685 = por %p683, %p684
      %p686 = scmp.ne.s32.totalorder %s677, %s678
      %p687 = scmp.eq.s32.totalorder %s121, 0
      %p688 = por %p686, %p687
      %p689 = scmp.ne.s32.totalorder %s677, %s678
      %p690 = scmp.eq.s32.totalorder %s122, 1
      %p691 = por %p689, %p690
      %p693 = scmp.ne.s32.totalorder %s678, %s692
      %p694 = scmp.eq.s32.totalorder %s122, 0
      %p695 = por %p693, %p694
      %s697 = sadd.s32 %s696, 1
      %p700 = scmp.eq.s32.totalorder %s116, 1
      %p701 = scmp.ne.s32.totalorder %s696, %s698
      %p702 = scmp.eq.s32.totalorder %s116, 0
      %p703 = por %p701, %p702
      %p704 = scmp.ne.s32.totalorder %s696, %s698
      %p705 = scmp.eq.s32.totalorder %s121, 1
      %p706 = por %p704, %p705
      %p707 = scmp.ne.s32.totalorder %s698, %s699
      %p708 = scmp.eq.s32.totalorder %s121, 0
      %p709 = por %p707, %p708
      %p710 = scmp.ne.s32.totalorder %s698, %s699
      %p711 = scmp.eq.s32.totalorder %s122, 1
      %p712 = por %p710, %p711
      %p714 = scmp.ne.s32.totalorder %s699, %s713
      %p715 = scmp.eq.s32.totalorder %s122, 0
      %p716 = por %p714, %p715
      %s718 = sadd.s32 %s717, 1
      %p721 = scmp.eq.s32.totalorder %s116, 1
      %p722 = scmp.ne.s32.totalorder %s717, %s719
      %p723 = scmp.eq.s32.totalorder %s116, 0
      %p724 = por %p722, %p723
      %p725 = scmp.ne.s32.totalorder %s717, %s719
      %p726 = scmp.eq.s32.totalorder %s121, 1
      %p727 = por %p725, %p726
      %p728 = scmp.ne.s32.totalorder %s719, %s720
      %p729 = scmp.eq.s32.totalorder %s121, 0
      %p730 = por %p728, %p729
      %p731 = scmp.ne.s32.totalorder %s719, %s720
      %p732 = scmp.eq.s32.totalorder %s122, 1
      %p733 = por %p731, %p732
      %p735 = scmp.ne.s32.totalorder %s720, %s734
      %p736 = scmp.eq.s32.totalorder %s122, 0
      %p737 = por %p735, %p736
      %s739 = sadd.s32 %s738, 1
      %p742 = scmp.eq.s32.totalorder %s116, 1
      %p743 = scmp.ne.s32.totalorder %s738, %s740
      %p744 = scmp.eq.s32.totalorder %s116, 0
      %p745 = por %p743, %p744
      %p746 = scmp.ne.s32.totalorder %s738, %s740
      %p747 = scmp.eq.s32.totalorder %s121, 1
      %p748 = por %p746, %p747
      %p749 = scmp.ne.s32.totalorder %s740, %s741
      %p750 = scmp.eq.s32.totalorder %s121, 0
      %p751 = por %p749, %p750
      %p752 = scmp.ne.s32.totalorder %s740, %s741
      %p753 = scmp.eq.s32.totalorder %s122, 1
      %p754 = por %p752, %p753
      %p756 = scmp.ne.s32.totalorder %s741, %s755
      %p757 = scmp.eq.s32.totalorder %s122, 0
      %p758 = por %p756, %p757
      %s760 = sadd.s32 %s759, 1
      %p763 = scmp.eq.s32.totalorder %s116, 1
      %p764 = scmp.ne.s32.totalorder %s759, %s761
      %p765 = scmp.eq.s32.totalorder %s116, 0
      %p766 = por %p764, %p765
      %p767 = scmp.ne.s32.totalorder %s759, %s761
      %p768 = scmp.eq.s32.totalorder %s121, 1
      %p769 = por %p767, %p768
      %p770 = scmp.ne.s32.totalorder %s761, %s762
      %p771 = scmp.eq.s32.totalorder %s121, 0
      %p772 = por %p770, %p771
      %p773 = scmp.ne.s32.totalorder %s761, %s762
      %p774 = scmp.eq.s32.totalorder %s122, 1
      %p775 = por %p773, %p774
      %p777 = scmp.ne.s32.totalorder %s762, %s776
      %p778 = scmp.eq.s32.totalorder %s122, 0
      %p779 = por %p777, %p778
      %s781 = sadd.s32 %s780, 1
      %p784 = scmp.eq.s32.totalorder %s116, 1
      %p785 = scmp.ne.s32.totalorder %s780, %s782
      %p786 = scmp.eq.s32.totalorder %s116, 0
      %p787 = por %p785, %p786
      %p788 = scmp.ne.s32.totalorder %s780, %s782
      %p789 = scmp.eq.s32.totalorder %s121, 1
      %p790 = por %p788, %p789
      %p791 = scmp.ne.s32.totalorder %s782, %s783
      %p792 = scmp.eq.s32.totalorder %s121, 0
      %p793 = por %p791, %p792
      %p794 = scmp.ne.s32.totalorder %s782, %s783
      %p795 = scmp.eq.s32.totalorder %s122, 1
      %p796 = por %p794, %p795
      %p798 = scmp.ne.s32.totalorder %s783, %s797
      %p799 = scmp.eq.s32.totalorder %s122, 0
      %p800 = por %p798, %p799
      %s802 = sadd.s32 %s801, 1
      %p805 = scmp.eq.s32.totalorder %s116, 1
      %p806 = scmp.ne.s32.totalorder %s801, %s803
      %p807 = scmp.eq.s32.totalorder %s116, 0
      %p808 = por %p806, %p807
      %p809 = scmp.ne.s32.totalorder %s801, %s803
      %p810 = scmp.eq.s32.totalorder %s121, 1
      %p811 = por %p809, %p810
      %p812 = scmp.ne.s32.totalorder %s803, %s804
      %p813 = scmp.eq.s32.totalorder %s121, 0
      %p814 = por %p812, %p813
      %p815 = scmp.ne.s32.totalorder %s803, %s804
      %p816 = scmp.eq.s32.totalorder %s122, 1
      %p817 = por %p815, %p816
      %p819 = scmp.ne.s32.totalorder %s804, %s818
      %p820 = scmp.eq.s32.totalorder %s122, 0
      %p821 = por %p819, %p820
      %s823 = sadd.s32 %s822, 1
      %p826 = scmp.eq.s32.totalorder %s116, 1
      %p827 = scmp.ne.s32.totalorder %s822, %s824
      %p828 = scmp.eq.s32.totalorder %s116, 0
      %p829 = por %p827, %p828
      %p830 = scmp.ne.s32.totalorder %s822, %s824
      %p831 = scmp.eq.s32.totalorder %s121, 1
      %p832 = por %p830, %p831
      %p833 = scmp.ne.s32.totalorder %s824, %s825
      %p834 = scmp.eq.s32.totalorder %s121, 0
      %p835 = por %p833, %p834
      %p836 = scmp.ne.s32.totalorder %s824, %s825
      %p837 = scmp.eq.s32.totalorder %s122, 1
      %p838 = por %p836, %p837
      %p840 = scmp.ne.s32.totalorder %s825, %s839
      %p841 = scmp.eq.s32.totalorder %s122, 0
      %p842 = por %p840, %p841
      %s844 = sadd.s32 %s843, 1
      %p847 = scmp.eq.s32.totalorder %s116, 1
      %p848 = scmp.ne.s32.totalorder %s843, %s845
      %p849 = scmp.eq.s32.totalorder %s116, 0
      %p850 = por %p848, %p849
      %p851 = scmp.ne.s32.totalorder %s843, %s845
      %p852 = scmp.eq.s32.totalorder %s121, 1
      %p853 = por %p851, %p852
      %p854 = scmp.ne.s32.totalorder %s845, %s846
      %p855 = scmp.eq.s32.totalorder %s121, 0
      %p856 = por %p854, %p855
      %p857 = scmp.ne.s32.totalorder %s845, %s846
      %p858 = scmp.eq.s32.totalorder %s122, 1
      %p859 = por %p857, %p858
      %p861 = scmp.ne.s32.totalorder %s846, %s860
      %p862 = scmp.eq.s32.totalorder %s122, 0
      %p863 = por %p861, %p862
      %s865 = sadd.s32 %s864, 1
      %p868 = scmp.eq.s32.totalorder %s116, 1
      %p869 = scmp.ne.s32.totalorder %s864, %s866
      %p870 = scmp.eq.s32.totalorder %s116, 0
      %p871 = por %p869, %p870
      %p872 = scmp.ne.s32.totalorder %s864, %s866
      %p873 = scmp.eq.s32.totalorder %s121, 1
      %p874 = por %p872, %p873
      %p875 = scmp.ne.s32.totalorder %s866, %s867
      %p876 = scmp.eq.s32.totalorder %s121, 0
      %p877 = por %p875, %p876
      %p878 = scmp.ne.s32.totalorder %s866, %s867
      %p879 = scmp.eq.s32.totalorder %s122, 1
      %p880 = por %p878, %p879
      %p882 = scmp.ne.s32.totalorder %s867, %s881
      %p883 = scmp.eq.s32.totalorder %s122, 0
      %p884 = por %p882, %p883
      %s886 = sadd.s32 %s885, 1
      %p889 = scmp.eq.s32.totalorder %s116, 1
      %p890 = scmp.ne.s32.totalorder %s885, %s887
      %p891 = scmp.eq.s32.totalorder %s116, 0
      %p892 = por %p890, %p891
      %p893 = scmp.ne.s32.totalorder %s885, %s887
      %p894 = scmp.eq.s32.totalorder %s121, 1
      %p895 = por %p893, %p894
      %p896 = scmp.ne.s32.totalorder %s887, %s888
      %p897 = scmp.eq.s32.totalorder %s121, 0
      %p898 = por %p896, %p897
      %p899 = scmp.ne.s32.totalorder %s887, %s888
      %p900 = scmp.eq.s32.totalorder %s122, 1
      %p901 = por %p899, %p900
      %p903 = scmp.ne.s32.totalorder %s888, %s902
      %p904 = scmp.eq.s32.totalorder %s122, 0
      %p905 = por %p903, %p904
      %s907 = sadd.s32 %s906, 1
      %p910 = scmp.eq.s32.totalorder %s116, 1
      %p911 = scmp.ne.s32.totalorder %s906, %s908
      %p912 = scmp.eq.s32.totalorder %s116, 0
      %p913 = por %p911, %p912
      %p914 = scmp.ne.s32.totalorder %s906, %s908
      %p915 = scmp.eq.s32.totalorder %s121, 1
      %p916 = por %p914, %p915
      %p917 = scmp.ne.s32.totalorder %s908, %s909
      %p918 = scmp.eq.s32.totalorder %s121, 0
      %p919 = por %p917, %p918
      %p920 = scmp.ne.s32.totalorder %s908, %s909
      %p921 = scmp.eq.s32.totalorder %s122, 1
      %p922 = por %p920, %p921
      %p924 = scmp.ne.s32.totalorder %s909, %s923
      %p925 = scmp.eq.s32.totalorder %s122, 0
      %p926 = por %p924, %p925
      %s928 = sadd.s32 %s927, 1
      %p931 = scmp.eq.s32.totalorder %s116, 1
      %p932 = scmp.ne.s32.totalorder %s927, %s929
      %p933 = scmp.eq.s32.totalorder %s116, 0
      %p934 = por %p932, %p933
      %p935 = scmp.ne.s32.totalorder %s927, %s929
      %p936 = scmp.eq.s32.totalorder %s121, 1
      %p937 = por %p935, %p936
      %p938 = scmp.ne.s32.totalorder %s929, %s930
      %p939 = scmp.eq.s32.totalorder %s121, 0
      %p940 = por %p938, %p939
      %p941 = scmp.ne.s32.totalorder %s929, %s930
      %p942 = scmp.eq.s32.totalorder %s122, 1
      %p943 = por %p941, %p942
      %p945 = scmp.ne.s32.totalorder %s930, %s944
      %p946 = scmp.eq.s32.totalorder %s122, 0
      %p947 = por %p945, %p946
      %s949 = sadd.s32 %s948, 1
      %p952 = scmp.eq.s32.totalorder %s116, 1
      %p953 = scmp.ne.s32.totalorder %s948, %s950
      %p954 = scmp.eq.s32.totalorder %s116, 0
      %p955 = por %p953, %p954
      %p956 = scmp.ne.s32.totalorder %s948, %s950
      %p957 = scmp.eq.s32.totalorder %s121, 1
      %p958 = por %p956, %p957
      %p959 = scmp.ne.s32.totalorder %s950, %s951
      %p960 = scmp.eq.s32.totalorder %s121, 0
      %p961 = por %p959, %p960
      %p962 = scmp.ne.s32.totalorder %s950, %s951
      %p963 = scmp.eq.s32.totalorder %s122, 1
      %p964 = por %p962, %p963
      %p966 = scmp.ne.s32.totalorder %s951, %s965
      %p967 = scmp.eq.s32.totalorder %s122, 0
      %p968 = por %p966, %p967
      %s970 = sadd.s32 %s969, 1
      %p973 = scmp.eq.s32.totalorder %s116, 1
      %p974 = scmp.ne.s32.totalorder %s969, %s971
      %p975 = scmp.eq.s32.totalorder %s116, 0
      %p976 = por %p974, %p975
      %p977 = scmp.ne.s32.totalorder %s969, %s971
      %p978 = scmp.eq.s32.totalorder %s121, 1
      %p979 = por %p977, %p978
      %p980 = scmp.ne.s32.totalorder %s971, %s972
      %p981 = scmp.eq.s32.totalorder %s121, 0
      %p982 = por %p980, %p981
      %p983 = scmp.ne.s32.totalorder %s971, %s972
      %p984 = scmp.eq.s32.totalorder %s122, 1
      %p985 = por %p983, %p984
      %p987 = scmp.ne.s32.totalorder %s972, %s986
      %p988 = scmp.eq.s32.totalorder %s122, 0
      %p989 = por %p987, %p988
      %s991 = sadd.s32 %s990, 1
      %p994 = scmp.eq.s32.totalorder %s116, 1
      %p995 = scmp.ne.s32.totalorder %s990, %s992
      %p996 = scmp.eq.s32.totalorder %s116, 0
      %p997 = por %p995, %p996
      %p998 = scmp.ne.s32.totalorder %s990, %s992
      %p999 = scmp.eq.s32.totalorder %s121, 1
      %p1000 = por %p998, %p999
      %p1001 = scmp.ne.s32.totalorder %s992, %s993
      %p1002 = scmp.eq.s32.totalorder %s121, 0
      %p1003 = por %p1001, %p1002
      %p1004 = scmp.ne.s32.totalorder %s992, %s993
      %p1005 = scmp.eq.s32.totalorder %s122, 1
      %p1006 = por %p1004, %p1005
      %p1008 = scmp.ne.s32.totalorder %s993, %s1007
      %p1009 = scmp.eq.s32.totalorder %s122, 0
      %p1010 = por %p1008, %p1009
      %s1012 = sadd.s32 %s1011, 1
      %p1015 = scmp.eq.s32.totalorder %s116, 1
      %p1016 = scmp.ne.s32.totalorder %s1011, %s1013
      %p1017 = scmp.eq.s32.totalorder %s116, 0
      %p1018 = por %p1016, %p1017
      %p1019 = scmp.ne.s32.totalorder %s1011, %s1013
      %p1020 = scmp.eq.s32.totalorder %s121, 1
      %p1021 = por %p1019, %p1020
      %p1022 = scmp.ne.s32.totalorder %s1013, %s1014
      %p1023 = scmp.eq.s32.totalorder %s121, 0
      %p1024 = por %p1022, %p1023
      %p1025 = scmp.ne.s32.totalorder %s1013, %s1014
      %p1026 = scmp.eq.s32.totalorder %s122, 1
      %p1027 = por %p1025, %p1026
      %p1029 = scmp.ne.s32.totalorder %s1014, %s1028
      %p1030 = scmp.eq.s32.totalorder %s122, 0
      %p1031 = por %p1029, %p1030
      %s1033 = sadd.s32 %s1032, 1
      %p1036 = scmp.eq.s32.totalorder %s116, 1
      %p1037 = scmp.ne.s32.totalorder %s1032, %s1034
      %p1038 = scmp.eq.s32.totalorder %s116, 0
      %p1039 = por %p1037, %p1038
      %p1040 = scmp.ne.s32.totalorder %s1032, %s1034
      %p1041 = scmp.eq.s32.totalorder %s121, 1
      %p1042 = por %p1040, %p1041
      %p1043 = scmp.ne.s32.totalorder %s1034, %s1035
      %p1044 = scmp.eq.s32.totalorder %s121, 0
      %p1045 = por %p1043, %p1044
      %p1046 = scmp.ne.s32.totalorder %s1034, %s1035
      %p1047 = scmp.eq.s32.totalorder %s122, 1
      %p1048 = por %p1046, %p1047
      %p1050 = scmp.ne.s32.totalorder %s1035, %s1049
      %p1051 = scmp.eq.s32.totalorder %s122, 0
      %p1052 = por %p1050, %p1051
      %s1054 = sadd.s32 %s1053, 1
      %p1057 = scmp.eq.s32.totalorder %s116, 1
      %p1058 = scmp.ne.s32.totalorder %s1053, %s1055
      %p1059 = scmp.eq.s32.totalorder %s116, 0
      %p1060 = por %p1058, %p1059
      %p1061 = scmp.ne.s32.totalorder %s1053, %s1055
      %p1062 = scmp.eq.s32.totalorder %s121, 1
      %p1063 = por %p1061, %p1062
      %p1064 = scmp.ne.s32.totalorder %s1055, %s1056
      %p1065 = scmp.eq.s32.totalorder %s121, 0
      %p1066 = por %p1064, %p1065
      %p1067 = scmp.ne.s32.totalorder %s1055, %s1056
      %p1068 = scmp.eq.s32.totalorder %s122, 1
      %p1069 = por %p1067, %p1068
      %p1071 = scmp.ne.s32.totalorder %s1056, %s1070
      %p1072 = scmp.eq.s32.totalorder %s122, 0
      %p1073 = por %p1071, %p1072
      %s1075 = sadd.s32 %s1074, 1
      %p1078 = scmp.eq.s32.totalorder %s116, 1
      %p1079 = scmp.ne.s32.totalorder %s1074, %s1076
      %p1080 = scmp.eq.s32.totalorder %s116, 0
      %p1081 = por %p1079, %p1080
      %p1082 = scmp.ne.s32.totalorder %s1074, %s1076
      %p1083 = scmp.eq.s32.totalorder %s121, 1
      %p1084 = por %p1082, %p1083
      %p1085 = scmp.ne.s32.totalorder %s1076, %s1077
      %p1086 = scmp.eq.s32.totalorder %s121, 0
      %p1087 = por %p1085, %p1086
      %p1088 = scmp.ne.s32.totalorder %s1076, %s1077
      %p1089 = scmp.eq.s32.totalorder %s122, 1
      %p1090 = por %p1088, %p1089
      %p1092 = scmp.ne.s32.totalorder %s1077, %s1091
      %p1093 = scmp.eq.s32.totalorder %s122, 0
      %p1094 = por %p1092, %p1093
      %s1096 = sadd.s32 %s1095, 1
      %p1099 = scmp.eq.s32.totalorder %s116, 1
      %p1100 = scmp.ne.s32.totalorder %s1095, %s1097
      %p1101 = scmp.eq.s32.totalorder %s116, 0
      %p1102 = por %p1100, %p1101
      %p1103 = scmp.ne.s32.totalorder %s1095, %s1097
      %p1104 = scmp.eq.s32.totalorder %s121, 1
      %p1105 = por %p1103, %p1104
      %p1106 = scmp.ne.s32.totalorder %s1097, %s1098
      %p1107 = scmp.eq.s32.totalorder %s121, 0
      %p1108 = por %p1106, %p1107
      %p1109 = scmp.ne.s32.totalorder %s1097, %s1098
      %p1110 = scmp.eq.s32.totalorder %s122, 1
      %p1111 = por %p1109, %p1110
      %p1113 = scmp.ne.s32.totalorder %s1098, %s1112
      %p1114 = scmp.eq.s32.totalorder %s122, 0
      %p1115 = por %p1113, %p1114
      %s1117 = sadd.s32 %s1116, 1
      %p1120 = scmp.eq.s32.totalorder %s116, 1
      %p1121 = scmp.ne.s32.totalorder %s1116, %s1118
      %p1122 = scmp.eq.s32.totalorder %s116, 0
      %p1123 = por %p1121, %p1122
      %p1124 = scmp.ne.s32.totalorder %s1116, %s1118
      %p1125 = scmp.eq.s32.totalorder %s121, 1
      %p1126 = por %p1124, %p1125
      %p1127 = scmp.ne.s32.totalorder %s1118, %s1119
      %p1128 = scmp.eq.s32.totalorder %s121, 0
      %p1129 = por %p1127, %p1128
      %p1130 = scmp.ne.s32.totalorder %s1118, %s1119
      %p1131 = scmp.eq.s32.totalorder %s122, 1
      %p1132 = por %p1130, %p1131
      %p1134 = scmp.ne.s32.totalorder %s1119, %s1133
      %p1135 = scmp.eq.s32.totalorder %s122, 0
      %p1136 = por %p1134, %p1135
      %s1138 = sadd.s32 %s1137, 1
      %p1141 = scmp.eq.s32.totalorder %s116, 1
      %p1142 = scmp.ne.s32.totalorder %s1137, %s1139
      %p1143 = scmp.eq.s32.totalorder %s116, 0
      %p1144 = por %p1142, %p1143
      %p1145 = scmp.ne.s32.totalorder %s1137, %s1139
      %p1146 = scmp.eq.s32.totalorder %s121, 1
      %p1147 = por %p1145, %p1146
      %p1148 = scmp.ne.s32.totalorder %s1139, %s1140
      %p1149 = scmp.eq.s32.totalorder %s121, 0
      %p1150 = por %p1148, %p1149
      %p1151 = scmp.ne.s32.totalorder %s1139, %s1140
      %p1152 = scmp.eq.s32.totalorder %s122, 1
      %p1153 = por %p1151, %p1152
      %p1155 = scmp.ne.s32.totalorder %s1140, %s1154
      %p1156 = scmp.eq.s32.totalorder %s122, 0
      %p1157 = por %p1155, %p1156
      %s1159 = sadd.s32 %s1158, 1
      %p1162 = scmp.eq.s32.totalorder %s116, 1
      %p1163 = scmp.ne.s32.totalorder %s1158, %s1160
      %p1164 = scmp.eq.s32.totalorder %s116, 0
      %p1165 = por %p1163, %p1164
      %p1166 = scmp.ne.s32.totalorder %s1158, %s1160
      %p1167 = scmp.eq.s32.totalorder %s121, 1
      %p1168 = por %p1166, %p1167
      %p1169 = scmp.ne.s32.totalorder %s1160, %s1161
      %p1170 = scmp.eq.s32.totalorder %s121, 0
      %p1171 = por %p1169, %p1170
      %p1172 = scmp.ne.s32.totalorder %s1160, %s1161
      %p1173 = scmp.eq.s32.totalorder %s122, 1
      %p1174 = por %p1172, %p1173
      %p1176 = scmp.ne.s32.totalorder %s1161, %s1175
      %p1177 = scmp.eq.s32.totalorder %s122, 0
      %p1178 = por %p1176, %p1177
      %s1180 = sadd.s32 %s1179, 1
      %p1183 = scmp.eq.s32.totalorder %s116, 1
      %p1184 = scmp.ne.s32.totalorder %s1179, %s1181
      %p1185 = scmp.eq.s32.totalorder %s116, 0
      %p1186 = por %p1184, %p1185
      %p1187 = scmp.ne.s32.totalorder %s1179, %s1181
      %p1188 = scmp.eq.s32.totalorder %s121, 1
      %p1189 = por %p1187, %p1188
      %p1190 = scmp.ne.s32.totalorder %s1181, %s1182
      %p1191 = scmp.eq.s32.totalorder %s121, 0
      %p1192 = por %p1190, %p1191
      %p1193 = scmp.ne.s32.totalorder %s1181, %s1182
      %p1194 = scmp.eq.s32.totalorder %s122, 1
      %p1195 = por %p1193, %p1194
      %p1197 = scmp.ne.s32.totalorder %s1182, %s1196
      %p1198 = scmp.eq.s32.totalorder %s122, 0
      %p1199 = por %p1197, %p1198
      %s1201 = sadd.s32 %s1200, 1
      %p1204 = scmp.eq.s32.totalorder %s116, 1
      %p1205 = scmp.ne.s32.totalorder %s1200, %s1202
      %p1206 = scmp.eq.s32.totalorder %s116, 0
      %p1207 = por %p1205, %p1206
      %p1208 = scmp.ne.s32.totalorder %s1200, %s1202
      %p1209 = scmp.eq.s32.totalorder %s121, 1
      %p1210 = por %p1208, %p1209
      %p1211 = scmp.ne.s32.totalorder %s1202, %s1203
      %p1212 = scmp.eq.s32.totalorder %s121, 0
      %p1213 = por %p1211, %p1212
      %p1214 = scmp.ne.s32.totalorder %s1202, %s1203
      %p1215 = scmp.eq.s32.totalorder %s122, 1
      %p1216 = por %p1214, %p1215
      %p1218 = scmp.ne.s32.totalorder %s1203, %s1217
      %p1219 = scmp.eq.s32.totalorder %s122, 0
      %p1220 = por %p1218, %p1219
      %s1221 = ssub.s32 %s116, %s123
      %p1222 = scmp.eq.s32.totalorder %s1221, 0
      %s1224 = sadd.s32 %s1223, 1
      %s1225 = scalar_select %p1222, %s1223, %s1224
      %p1228 = pneg %p1222
      %p1229 = scmp.eq.s32.totalorder %s116, 1
      %p1230 = por %p1228, %p1229
      %p1231 = scmp.ne.s32.totalorder %s1223, %s1226
      %p1232 = scmp.eq.s32.totalorder %s116, 0
      %p1233 = por %p1231, %p1232
      %p1234 = scmp.ne.s32.totalorder %s1223, %s1226
      %p1235 = scmp.eq.s32.totalorder %s121, 1
      %p1236 = por %p1234, %p1235
      %p1237 = scmp.ne.s32.totalorder %s1226, %s1227
      %p1238 = scmp.eq.s32.totalorder %s121, 0
      %p1239 = por %p1237, %p1238
      %p1240 = scmp.ne.s32.totalorder %s1226, %s1227
      %p1241 = scmp.eq.s32.totalorder %s122, 1
      %p1242 = por %p1240, %p1241
      %p1244 = scmp.ne.s32.totalorder %s1227, %s1243
      %p1245 = scmp.eq.s32.totalorder %s122, 0
      %p1246 = por %p1244, %p1245
      %s1247 = ssub.s32 %s116, %s123
      %p1248 = scmp.eq.s32.totalorder %s1247, 0
      %s1250 = sadd.s32 %s1249, 1
      %s1251 = scalar_select %p1248, %s1249, %s1250
      %p1254 = pneg %p1248
      %p1255 = scmp.eq.s32.totalorder %s116, 1
      %p1256 = por %p1254, %p1255
      %p1257 = scmp.ne.s32.totalorder %s1249, %s1252
      %p1258 = scmp.eq.s32.totalorder %s116, 0
      %p1259 = por %p1257, %p1258
      %p1260 = scmp.ne.s32.totalorder %s1249, %s1252
      %p1261 = scmp.eq.s32.totalorder %s121, 1
      %p1262 = por %p1260, %p1261
      %p1263 = scmp.ne.s32.totalorder %s1252, %s1253
      %p1264 = scmp.eq.s32.totalorder %s121, 0
      %p1265 = por %p1263, %p1264
      %p1266 = scmp.ne.s32.totalorder %s1252, %s1253
      %p1267 = scmp.eq.s32.totalorder %s122, 1
      %p1268 = por %p1266, %p1267
      %p1270 = scmp.ne.s32.totalorder %s1253, %s1269
      %p1271 = scmp.eq.s32.totalorder %s122, 0
      %p1272 = por %p1270, %p1271
      %p1273 = scmp.le.s32.totalorder 1, %s116
      %p1274 = scmp.lt.s32.totalorder %s116, 3
      %p1275 = pnand %p1273, %p1274
      %p1276 = pneg %p1275
      // Predicated region
      $region9: #{_lambda_.1} parent=5 // pred_check
        _
      $region10: #{_lambda_.1} parent=5 // pred_check_branch
        %1278 = sbr.rel (%p1275) target = $region12
      $region11: #{_lambda_.1} parent=5 // pred_region
        %s1279 = ssub.s32 %s116, 1
        // Predicated region
        $region13: #{_lambda_.1} parent=11 // pred_check
          %p1280 = pneg %p163
        $region14: #{_lambda_.1} parent=11 // pred_check_branch
          %1282 = sbr.rel (%p1280) target = $region16
        $region15: #{_lambda_.1} parent=11 // pred_region
          _
        $region16: #{_lambda_.1} parent=11 // pred_fallthru
          _
        // Predicated region
        $region17: #{_lambda_.1} parent=11 // pred_check
          %p1283 = pneg %p184
        $region18: #{_lambda_.1} parent=11 // pred_check_branch
          %1285 = sbr.rel (%p1283) target = $region20
        $region19: #{_lambda_.1} parent=11 // pred_region
          _
        $region20: #{_lambda_.1} parent=11 // pred_fallthru
          _
        // Predicated region
        $region21: #{_lambda_.1} parent=11 // pred_check
          %p1286 = pneg %p205
        $region22: #{_lambda_.1} parent=11 // pred_check_branch
          %1288 = sbr.rel (%p1286) target = $region24
        $region23: #{_lambda_.1} parent=11 // pred_region
          _
        $region24: #{_lambda_.1} parent=11 // pred_fallthru
          _
        // Predicated region
        $region25: #{_lambda_.1} parent=11 // pred_check
          %p1289 = pneg %p226
        $region26: #{_lambda_.1} parent=11 // pred_check_branch
          %1291 = sbr.rel (%p1289) target = $region28
        $region27: #{_lambda_.1} parent=11 // pred_region
          _
        $region28: #{_lambda_.1} parent=11 // pred_fallthru
          _
        // Predicated region
        $region29: #{_lambda_.1} parent=11 // pred_check
          %p1292 = pneg %p247
        $region30: #{_lambda_.1} parent=11 // pred_check_branch
          %1294 = sbr.rel (%p1292) target = $region32
        $region31: #{_lambda_.1} parent=11 // pred_region
          _
        $region32: #{_lambda_.1} parent=11 // pred_fallthru
          _
        // Predicated region
        $region33: #{_lambda_.1} parent=11 // pred_check
          %p1295 = pneg %p268
        $region34: #{_lambda_.1} parent=11 // pred_check_branch
          %1297 = sbr.rel (%p1295) target = $region36
        $region35: #{_lambda_.1} parent=11 // pred_region
          _
        $region36: #{_lambda_.1} parent=11 // pred_fallthru
          _
        // Predicated region
        $region37: #{_lambda_.1} parent=11 // pred_check
          %p1298 = pneg %p289
        $region38: #{_lambda_.1} parent=11 // pred_check_branch
          %1300 = sbr.rel (%p1298) target = $region40
        $region39: #{_lambda_.1} parent=11 // pred_region
          _
        $region40: #{_lambda_.1} parent=11 // pred_fallthru
          _
        // Predicated region
        $region41: #{_lambda_.1} parent=11 // pred_check
          %p1301 = pneg %p310
        $region42: #{_lambda_.1} parent=11 // pred_check_branch
          %1303 = sbr.rel (%p1301) target = $region44
        $region43: #{_lambda_.1} parent=11 // pred_region
          _
        $region44: #{_lambda_.1} parent=11 // pred_fallthru
          _
        // Predicated region
        $region45: #{_lambda_.1} parent=11 // pred_check
          %p1304 = pneg %p331
        $region46: #{_lambda_.1} parent=11 // pred_check_branch
          %1306 = sbr.rel (%p1304) target = $region48
        $region47: #{_lambda_.1} parent=11 // pred_region
          _
        $region48: #{_lambda_.1} parent=11 // pred_fallthru
          _
        // Predicated region
        $region49: #{_lambda_.1} parent=11 // pred_check
          %p1307 = pneg %p352
        $region50: #{_lambda_.1} parent=11 // pred_check_branch
          %1309 = sbr.rel (%p1307) target = $region52
        $region51: #{_lambda_.1} parent=11 // pred_region
          _
        $region52: #{_lambda_.1} parent=11 // pred_fallthru
          _
        // Predicated region
        $region53: #{_lambda_.1} parent=11 // pred_check
          %p1310 = pneg %p373
        $region54: #{_lambda_.1} parent=11 // pred_check_branch
          %1312 = sbr.rel (%p1310) target = $region56
        $region55: #{_lambda_.1} parent=11 // pred_region
          _
        $region56: #{_lambda_.1} parent=11 // pred_fallthru
          _
        // Predicated region
        $region57: #{_lambda_.1} parent=11 // pred_check
          %p1313 = pneg %p394
        $region58: #{_lambda_.1} parent=11 // pred_check_branch
          %1315 = sbr.rel (%p1313) target = $region60
        $region59: #{_lambda_.1} parent=11 // pred_region
          _
        $region60: #{_lambda_.1} parent=11 // pred_fallthru
          _
        // Predicated region
        $region61: #{_lambda_.1} parent=11 // pred_check
          %p1316 = pneg %p415
        $region62: #{_lambda_.1} parent=11 // pred_check_branch
          %1318 = sbr.rel (%p1316) target = $region64
        $region63: #{_lambda_.1} parent=11 // pred_region
          _
        $region64: #{_lambda_.1} parent=11 // pred_fallthru
          _
        // Predicated region
        $region65: #{_lambda_.1} parent=11 // pred_check
          %p1319 = pneg %p436
        $region66: #{_lambda_.1} parent=11 // pred_check_branch
          %1321 = sbr.rel (%p1319) target = $region68
        $region67: #{_lambda_.1} parent=11 // pred_region
          _
        $region68: #{_lambda_.1} parent=11 // pred_fallthru
          _
        // Predicated region
        $region69: #{_lambda_.1} parent=11 // pred_check
          %p1322 = pneg %p457
        $region70: #{_lambda_.1} parent=11 // pred_check_branch
          %1324 = sbr.rel (%p1322) target = $region72
        $region71: #{_lambda_.1} parent=11 // pred_region
          _
        $region72: #{_lambda_.1} parent=11 // pred_fallthru
          _
        // Predicated region
        $region73: #{_lambda_.1} parent=11 // pred_check
          %p1325 = pneg %p478
        $region74: #{_lambda_.1} parent=11 // pred_check_branch
          %1327 = sbr.rel (%p1325) target = $region76
        $region75: #{_lambda_.1} parent=11 // pred_region
          _
        $region76: #{_lambda_.1} parent=11 // pred_fallthru
          _
        // Predicated region
        $region77: #{_lambda_.1} parent=11 // pred_check
          %p1328 = pneg %p499
        $region78: #{_lambda_.1} parent=11 // pred_check_branch
          %1330 = sbr.rel (%p1328) target = $region80
        $region79: #{_lambda_.1} parent=11 // pred_region
          _
        $region80: #{_lambda_.1} parent=11 // pred_fallthru
          _
        // Predicated region
        $region81: #{_lambda_.1} parent=11 // pred_check
          %p1331 = pneg %p520
        $region82: #{_lambda_.1} parent=11 // pred_check_branch
          %1333 = sbr.rel (%p1331) target = $region84
        $region83: #{_lambda_.1} parent=11 // pred_region
          _
        $region84: #{_lambda_.1} parent=11 // pred_fallthru
          _
        // Predicated region
        $region85: #{_lambda_.1} parent=11 // pred_check
          %p1334 = pneg %p541
        $region86: #{_lambda_.1} parent=11 // pred_check_branch
          %1336 = sbr.rel (%p1334) target = $region88
        $region87: #{_lambda_.1} parent=11 // pred_region
          _
        $region88: #{_lambda_.1} parent=11 // pred_fallthru
          _
        // Predicated region
        $region89: #{_lambda_.1} parent=11 // pred_check
          %p1337 = pneg %p562
        $region90: #{_lambda_.1} parent=11 // pred_check_branch
          %1339 = sbr.rel (%p1337) target = $region92
        $region91: #{_lambda_.1} parent=11 // pred_region
          _
        $region92: #{_lambda_.1} parent=11 // pred_fallthru
          _
        // Predicated region
        $region93: #{_lambda_.1} parent=11 // pred_check
          %p1340 = pneg %p583
        $region94: #{_lambda_.1} parent=11 // pred_check_branch
          %1342 = sbr.rel (%p1340) target = $region96
        $region95: #{_lambda_.1} parent=11 // pred_region
          _
        $region96: #{_lambda_.1} parent=11 // pred_fallthru
          _
        // Predicated region
        $region97: #{_lambda_.1} parent=11 // pred_check
          %p1343 = pneg %p604
        $region98: #{_lambda_.1} parent=11 // pred_check_branch
          %1345 = sbr.rel (%p1343) target = $region100
        $region99: #{_lambda_.1} parent=11 // pred_region
          _
        $region100: #{_lambda_.1} parent=11 // pred_fallthru
          _
        // Predicated region
        $region101: #{_lambda_.1} parent=11 // pred_check
          %p1346 = pneg %p625
        $region102: #{_lambda_.1} parent=11 // pred_check_branch
          %1348 = sbr.rel (%p1346) target = $region104
        $region103: #{_lambda_.1} parent=11 // pred_region
          _
        $region104: #{_lambda_.1} parent=11 // pred_fallthru
          _
        // Predicated region
        $region105: #{_lambda_.1} parent=11 // pred_check
          %p1349 = pneg %p646
        $region106: #{_lambda_.1} parent=11 // pred_check_branch
          %1351 = sbr.rel (%p1349) target = $region108
        $region107: #{_lambda_.1} parent=11 // pred_region
          _
        $region108: #{_lambda_.1} parent=11 // pred_fallthru
          _
        // Predicated region
        $region109: #{_lambda_.1} parent=11 // pred_check
          %p1352 = pneg %p667
        $region110: #{_lambda_.1} parent=11 // pred_check_branch
          %1354 = sbr.rel (%p1352) target = $region112
        $region111: #{_lambda_.1} parent=11 // pred_region
          _
        $region112: #{_lambda_.1} parent=11 // pred_fallthru
          _
        // Predicated region
        $region113: #{_lambda_.1} parent=11 // pred_check
          %p1355 = pneg %p688
        $region114: #{_lambda_.1} parent=11 // pred_check_branch
          %1357 = sbr.rel (%p1355) target = $region116
        $region115: #{_lambda_.1} parent=11 // pred_region
          _
        $region116: #{_lambda_.1} parent=11 // pred_fallthru
          _
        // Predicated region
        $region117: #{_lambda_.1} parent=11 // pred_check
          %p1358 = pneg %p709
        $region118: #{_lambda_.1} parent=11 // pred_check_branch
          %1360 = sbr.rel (%p1358) target = $region120
        $region119: #{_lambda_.1} parent=11 // pred_region
          _
        $region120: #{_lambda_.1} parent=11 // pred_fallthru
          _
        // Predicated region
        $region121: #{_lambda_.1} parent=11 // pred_check
          %p1361 = pneg %p730
        $region122: #{_lambda_.1} parent=11 // pred_check_branch
          %1363 = sbr.rel (%p1361) target = $region124
        $region123: #{_lambda_.1} parent=11 // pred_region
          _
        $region124: #{_lambda_.1} parent=11 // pred_fallthru
          _
        // Predicated region
        $region125: #{_lambda_.1} parent=11 // pred_check
          %p1364 = pneg %p751
        $region126: #{_lambda_.1} parent=11 // pred_check_branch
          %1366 = sbr.rel (%p1364) target = $region128
        $region127: #{_lambda_.1} parent=11 // pred_region
          _
        $region128: #{_lambda_.1} parent=11 // pred_fallthru
          _
        // Predicated region
        $region129: #{_lambda_.1} parent=11 // pred_check
          %p1367 = pneg %p772
        $region130: #{_lambda_.1} parent=11 // pred_check_branch
          %1369 = sbr.rel (%p1367) target = $region132
        $region131: #{_lambda_.1} parent=11 // pred_region
          _
        $region132: #{_lambda_.1} parent=11 // pred_fallthru
          _
        // Predicated region
        $region133: #{_lambda_.1} parent=11 // pred_check
          %p1370 = pneg %p793
        $region134: #{_lambda_.1} parent=11 // pred_check_branch
          %1372 = sbr.rel (%p1370) target = $region136
        $region135: #{_lambda_.1} parent=11 // pred_region
          _
        $region136: #{_lambda_.1} parent=11 // pred_fallthru
          _
        // Predicated region
        $region137: #{_lambda_.1} parent=11 // pred_check
          %p1373 = pneg %p814
        $region138: #{_lambda_.1} parent=11 // pred_check_branch
          %1375 = sbr.rel (%p1373) target = $region140
        $region139: #{_lambda_.1} parent=11 // pred_region
          _
        $region140: #{_lambda_.1} parent=11 // pred_fallthru
          _
        // Predicated region
        $region141: #{_lambda_.1} parent=11 // pred_check
          %p1376 = pneg %p835
        $region142: #{_lambda_.1} parent=11 // pred_check_branch
          %1378 = sbr.rel (%p1376) target = $region144
        $region143: #{_lambda_.1} parent=11 // pred_region
          _
        $region144: #{_lambda_.1} parent=11 // pred_fallthru
          _
        // Predicated region
        $region145: #{_lambda_.1} parent=11 // pred_check
          %p1379 = pneg %p856
        $region146: #{_lambda_.1} parent=11 // pred_check_branch
          %1381 = sbr.rel (%p1379) target = $region148
        $region147: #{_lambda_.1} parent=11 // pred_region
          _
        $region148: #{_lambda_.1} parent=11 // pred_fallthru
          _
        // Predicated region
        $region149: #{_lambda_.1} parent=11 // pred_check
          %p1382 = pneg %p877
        $region150: #{_lambda_.1} parent=11 // pred_check_branch
          %1384 = sbr.rel (%p1382) target = $region152
        $region151: #{_lambda_.1} parent=11 // pred_region
          _
        $region152: #{_lambda_.1} parent=11 // pred_fallthru
          _
        // Predicated region
        $region153: #{_lambda_.1} parent=11 // pred_check
          %p1385 = pneg %p898
        $region154: #{_lambda_.1} parent=11 // pred_check_branch
          %1387 = sbr.rel (%p1385) target = $region156
        $region155: #{_lambda_.1} parent=11 // pred_region
          _
        $region156: #{_lambda_.1} parent=11 // pred_fallthru
          _
        // Predicated region
        $region157: #{_lambda_.1} parent=11 // pred_check
          %p1388 = pneg %p919
        $region158: #{_lambda_.1} parent=11 // pred_check_branch
          %1390 = sbr.rel (%p1388) target = $region160
        $region159: #{_lambda_.1} parent=11 // pred_region
          _
        $region160: #{_lambda_.1} parent=11 // pred_fallthru
          _
        // Predicated region
        $region161: #{_lambda_.1} parent=11 // pred_check
          %p1391 = pneg %p940
        $region162: #{_lambda_.1} parent=11 // pred_check_branch
          %1393 = sbr.rel (%p1391) target = $region164
        $region163: #{_lambda_.1} parent=11 // pred_region
          _
        $region164: #{_lambda_.1} parent=11 // pred_fallthru
          _
        // Predicated region
        $region165: #{_lambda_.1} parent=11 // pred_check
          %p1394 = pneg %p961
        $region166: #{_lambda_.1} parent=11 // pred_check_branch
          %1396 = sbr.rel (%p1394) target = $region168
        $region167: #{_lambda_.1} parent=11 // pred_region
          _
        $region168: #{_lambda_.1} parent=11 // pred_fallthru
          _
        // Predicated region
        $region169: #{_lambda_.1} parent=11 // pred_check
          %p1397 = pneg %p982
        $region170: #{_lambda_.1} parent=11 // pred_check_branch
          %1399 = sbr.rel (%p1397) target = $region172
        $region171: #{_lambda_.1} parent=11 // pred_region
          _
        $region172: #{_lambda_.1} parent=11 // pred_fallthru
          _
        // Predicated region
        $region173: #{_lambda_.1} parent=11 // pred_check
          %p1400 = pneg %p1003
        $region174: #{_lambda_.1} parent=11 // pred_check_branch
          %1402 = sbr.rel (%p1400) target = $region176
        $region175: #{_lambda_.1} parent=11 // pred_region
          %1404 = vsyncadd [#allocation7], 0
          %s1405 = sshll.u32 %s83, 4
          %s1406 = int_to_ptr.hbm [resolvable:$true] %s1405
          %s1407 = sshll.u32 [#allocation6], 4
          %s1408 = int_to_ptr.vmem [resolvable:$true] %s1407
          %1413 = dma.hbm_to_vmem [thread:$0]  %s1406, 512, %s1408, [#allocation7], 64, 64, 4
        $region176: #{_lambda_.1} parent=11 // pred_fallthru
          _
        // Predicated region
        $region177: #{_lambda_.1} parent=11 // pred_check
          %p1414 = pneg %p1024
        $region178: #{_lambda_.1} parent=11 // pred_check_branch
          %1416 = sbr.rel (%p1414) target = $region180
        $region179: #{_lambda_.1} parent=11 // pred_region
          _
        $region180: #{_lambda_.1} parent=11 // pred_fallthru
          _
        // Predicated region
        $region181: #{_lambda_.1} parent=11 // pred_check
          %p1417 = pneg %p1045
        $region182: #{_lambda_.1} parent=11 // pred_check_branch
          %1419 = sbr.rel (%p1417) target = $region184
        $region183: #{_lambda_.1} parent=11 // pred_region
          _
        $region184: #{_lambda_.1} parent=11 // pred_fallthru
          _
        // Predicated region
        $region185: #{_lambda_.1} parent=11 // pred_check
          %p1420 = pneg %p1066
        $region186: #{_lambda_.1} parent=11 // pred_check_branch
          %1422 = sbr.rel (%p1420) target = $region188
        $region187: #{_lambda_.1} parent=11 // pred_region
          _
        $region188: #{_lambda_.1} parent=11 // pred_fallthru
          _
        // Predicated region
        $region189: #{_lambda_.1} parent=11 // pred_check
          %p1423 = pneg %p1087
        $region190: #{_lambda_.1} parent=11 // pred_check_branch
          %1425 = sbr.rel (%p1423) target = $region192
        $region191: #{_lambda_.1} parent=11 // pred_region
          _
        $region192: #{_lambda_.1} parent=11 // pred_fallthru
          _
        // Predicated region
        $region193: #{_lambda_.1} parent=11 // pred_check
          %p1426 = pneg %p1108
        $region194: #{_lambda_.1} parent=11 // pred_check_branch
          %1428 = sbr.rel (%p1426) target = $region196
        $region195: #{_lambda_.1} parent=11 // pred_region
          _
        $region196: #{_lambda_.1} parent=11 // pred_fallthru
          _
        // Predicated region
        $region197: #{_lambda_.1} parent=11 // pred_check
          %p1429 = pneg %p1129
        $region198: #{_lambda_.1} parent=11 // pred_check_branch
          %1431 = sbr.rel (%p1429) target = $region200
        $region199: #{_lambda_.1} parent=11 // pred_region
          _
        $region200: #{_lambda_.1} parent=11 // pred_fallthru
          _
        // Predicated region
        $region201: #{_lambda_.1} parent=11 // pred_check
          %p1432 = pneg %p1150
        $region202: #{_lambda_.1} parent=11 // pred_check_branch
          %1434 = sbr.rel (%p1432) target = $region204
        $region203: #{_lambda_.1} parent=11 // pred_region
          _
        $region204: #{_lambda_.1} parent=11 // pred_fallthru
          _
        // Predicated region
        $region205: #{_lambda_.1} parent=11 // pred_check
          %p1435 = pneg %p1171
        $region206: #{_lambda_.1} parent=11 // pred_check_branch
          %1437 = sbr.rel (%p1435) target = $region208
        $region207: #{_lambda_.1} parent=11 // pred_region
          %1439 = vsyncadd [#allocation9], 0
          %s1440 = sshll.u32 %s99, 4
          %s1441 = int_to_ptr.hbm [resolvable:$true] %s1440
          %s1442 = sshll.u32 [#allocation8], 4
          %s1443 = int_to_ptr.vmem [resolvable:$true] %s1442
          %1448 = dma.hbm_to_vmem [thread:$0]  %s1441, 512, %s1443, [#allocation9], 64, 64, 4
        $region208: #{_lambda_.1} parent=11 // pred_fallthru
          _
        // Predicated region
        $region209: #{_lambda_.1} parent=11 // pred_check
          %p1449 = pneg %p1192
        $region210: #{_lambda_.1} parent=11 // pred_check_branch
          %1451 = sbr.rel (%p1449) target = $region212
        $region211: #{_lambda_.1} parent=11 // pred_region
          _
        $region212: #{_lambda_.1} parent=11 // pred_fallthru
          _
        // Predicated region
        $region213: #{_lambda_.1} parent=11 // pred_check
          %p1452 = pneg %p1213
        $region214: #{_lambda_.1} parent=11 // pred_check_branch
          %1454 = sbr.rel (%p1452) target = $region216
        $region215: #{_lambda_.1} parent=11 // pred_region
          %1456 = vsyncadd [#allocation9], 0
          %s1457 = sshll.u32 %s103, 4
          %s1458 = int_to_ptr.hbm [resolvable:$true] %s1457
          %s1459 = sshll.u32 [#allocation10], 4
          %s1460 = int_to_ptr.vmem [resolvable:$true] %s1459
          %1465 = dma.hbm_to_vmem [thread:$0]  %s1458, 256, %s1460, [#allocation9], 128, 128, 8
        $region216: #{_lambda_.1} parent=11 // pred_fallthru
          _
      $region12: #{_lambda_.1} parent=5 // pred_fallthru
        _
      %p1466 = scmp.lt.s32.totalorder %s116, 2
      // Predicated region
      $region217: #{_lambda_.1} parent=5 // pred_check
        %p1467 = pneg %p1466
      $region218: #{_lambda_.1} parent=5 // pred_check_branch
        %1469 = sbr.rel (%p1467) target = $region220
      $region219: #{_lambda_.1} parent=5 // pred_region
        // Predicated region
        $region221: #{_lambda_.1} parent=219 // pred_check
          %p1470 = pneg %p136
        $region222: #{_lambda_.1} parent=219 // pred_check_branch
          %1472 = sbr.rel (%p1470) target = $region224
        $region223: #{_lambda_.1} parent=219 // pred_region
          %p1473 = scmp.lt.s32.totalorder %s116, 1
          %s1474 = scalar_select %p1473, %s116, 1
          %s1475 = smul.addr %s1474, 8
          %s1476 = smul.addr %s1475, 4
          %s1477 = scalar_lea.vmem %s1, %s1476
        $region224: #{_lambda_.1} parent=219 // pred_fallthru
          _
      $region220: #{_lambda_.1} parent=5 // pred_fallthru
        _
      %p1478 = scmp.le.s32.totalorder 1, %s116
      %p1479 = scmp.lt.s32.totalorder %s116, 3
      %p1480 = pnand %p1478, %p1479
      %p1481 = pneg %p1480
      // Predicated region
      $region225: #{_lambda_.1} parent=5 // pred_check
        _
      $region226: #{_lambda_.1} parent=5 // pred_check_branch
        %1483 = sbr.rel (%p1480) target = $region228
      $region227: #{_lambda_.1} parent=5 // pred_region
        %s1484 = ssub.s32 %s116, 1
        // Predicated region
        $region229: #{_lambda_.1} parent=227 // pred_check
          %p1485 = pneg %p1003
        $region230: #{_lambda_.1} parent=227 // pred_check_branch
          %1487 = sbr.rel (%p1485) target = $region232
        $region231: #{_lambda_.1} parent=227 // pred_region
          %1489 = dma.done [#allocation7], 512
        $region232: #{_lambda_.1} parent=227 // pred_fallthru
          _
        // Predicated region
        $region233: #{_lambda_.1} parent=227 // pred_check
          %p1490 = pneg %p1171
        $region234: #{_lambda_.1} parent=227 // pred_check_branch
          %1492 = sbr.rel (%p1490) target = $region236
        $region235: #{_lambda_.1} parent=227 // pred_region
          %1494 = dma.done [#allocation9], 512
        $region236: #{_lambda_.1} parent=227 // pred_fallthru
          _
        // Predicated region
        $region237: #{_lambda_.1} parent=227 // pred_check
          %p1495 = pneg %p1213
        $region238: #{_lambda_.1} parent=227 // pred_check_branch
          %1497 = sbr.rel (%p1495) target = $region240
        $region239: #{_lambda_.1} parent=227 // pred_region
          %1499 = dma.done [#allocation9], 256
        $region240: #{_lambda_.1} parent=227 // pred_fallthru
          _
        %p1500 = scmp.lt.s32.totalorder %s121, 1
        %s1501 = scalar_select %p1500, %s121, 1
        %s1502 = smul.addr %s1501, 8
        %s1503 = smul.addr %s1502, 4
        %s1504 = scalar_lea.vmem %s1, %s1503
        %p1505 = pneg %p142
        %p1506 = pneg %p139
        %p1507 = pneg %p163
        %p1508 = pneg %p160
        %p1509 = pneg %p184
        %p1510 = pneg %p181
        %p1511 = pneg %p205
        %p1512 = pneg %p202
        %p1513 = pneg %p226
        %p1514 = pneg %p223
        %p1515 = pneg %p247
        %p1516 = pneg %p244
        %p1517 = pneg %p268
        %p1518 = pneg %p265
        %p1519 = pneg %p289
        %p1520 = pneg %p286
        %p1521 = pneg %p310
        %p1522 = pneg %p307
        %p1523 = pneg %p331
        %p1524 = pneg %p328
        %p1525 = pneg %p352
        %p1526 = pneg %p349
        %p1527 = pneg %p373
        %p1528 = pneg %p370
        %p1529 = pneg %p394
        %p1530 = pneg %p391
        %p1531 = pneg %p415
        %p1532 = pneg %p412
        %p1533 = pneg %p436
        %p1534 = pneg %p433
        %p1535 = pneg %p457
        %p1536 = pneg %p454
        %p1537 = pneg %p478
        %p1538 = pneg %p475
        %p1539 = pneg %p499
        %p1540 = pneg %p496
        %p1541 = pneg %p520
        %p1542 = pneg %p517
        %p1543 = pneg %p541
        %p1544 = pneg %p538
        %p1545 = pneg %p562
        %p1546 = pneg %p559
        %p1547 = pneg %p583
        %p1548 = pneg %p580
        %p1549 = pneg %p604
        %p1550 = pneg %p601
        %p1551 = pneg %p625
        %p1552 = pneg %p622
        %p1553 = pneg %p646
        %p1554 = pneg %p643
        %p1555 = pneg %p667
        %p1556 = pneg %p664
        %p1557 = pneg %p688
        %p1558 = pneg %p685
        %p1559 = pneg %p709
        %p1560 = pneg %p706
        %p1561 = pneg %p730
        %p1562 = pneg %p727
        %p1563 = pneg %p751
        %p1564 = pneg %p748
        %p1565 = pneg %p772
        %p1566 = pneg %p769
        %p1567 = pneg %p793
        %p1568 = pneg %p790
        %p1569 = pneg %p814
        %p1570 = pneg %p811
        %p1571 = pneg %p835
        %p1572 = pneg %p832
        %p1573 = pneg %p856
        %p1574 = pneg %p853
        %p1575 = pneg %p877
        %p1576 = pneg %p874
        %p1577 = pneg %p898
        %p1578 = pneg %p895
        %p1579 = pneg %p919
        %p1580 = pneg %p916
        %p1581 = pneg %p940
        %p1582 = pneg %p937
        %p1583 = pneg %p961
        %p1584 = pneg %p958
        %p1585 = pneg %p982
        %p1586 = pneg %p979
        %p1587 = pneg %p1003
        %p1588 = pneg %p1000
        %p1589 = pneg %p1024
        %p1590 = pneg %p1021
        %p1591 = pneg %p1045
        %p1592 = pneg %p1042
        %p1593 = pneg %p1066
        %p1594 = pneg %p1063
        %p1595 = pneg %p1087
        %p1596 = pneg %p1084
        %p1597 = pneg %p1108
        %p1598 = pneg %p1105
        %p1599 = pneg %p1129
        %p1600 = pneg %p1126
        %p1601 = pneg %p1150
        %p1602 = pneg %p1147
        %p1603 = pneg %p1171
        %p1604 = pneg %p1168
        %p1605 = pneg %p1192
        %p1606 = pneg %p1189
        %p1607 = pneg %p1213
        %p1608 = pneg %p1210
        %p1609 = pneg %p1239
        %p1610 = pneg %p1236
        %p1611 = scmp.lt.s32.totalorder %s121, 1
        %s1612 = scalar_select %p1611, %s121, 1
        %s1613 = scalar_lea.vmem %s105, %s1612
        %p1614 = pneg %p1265
        %p1615 = pneg %p1262
        %p1616 = scmp.lt.s32.totalorder %s121, 1
        %s1617 = scalar_select %p1616, %s121, 1
        %s1618 = smul.addr %s1617, 2
        %s1619 = smul.addr %s1618, 8
        %s1620 = scalar_lea.vmem %s107, %s1619
        %p1621 = scmp.lt.s32.totalorder %s121, 1
        %s1622 = scalar_select %p1621, %s121, 1
        %s1623 = smul.addr %s1622, 8
        %s1624 = smul.addr %s1623, 4
        %s1625 = scalar_lea.vmem %s1, %s1624
        %p1626 = scmp.lt.s32.totalorder %s121, 1
        %s1627 = scalar_select %p1626, %s121, 1
        %s1628 = scalar_lea.vmem %s105, %s1627
        %p1629 = scmp.lt.s32.totalorder %s121, 1
        %s1630 = scalar_select %p1629, %s121, 1
        %s1631 = smul.addr %s1630, 2
        %s1632 = smul.addr %s1631, 8
        %s1633 = scalar_lea.vmem %s107, %s1632
        %v1635 = vld [vmem:[%s1625] sm:$0xf]
        %v1636 = vld [vmem:[%s1625 + $0x4] sm:$0xf]
        %v1637 = vld [vmem:[%s1625 + $0x8] sm:$0xf]
        %v1638 = vld [vmem:[%s1625 + $0xc] sm:$0xf]
        %v1639 = vld [vmem:[%s1625 + $0x10] sm:$0xf]
        %v1640 = vld [vmem:[%s1625 + $0x14] sm:$0xf]
        %v1641 = vld [vmem:[%s1625 + $0x18] sm:$0xf]
        %v1642 = vld [vmem:[%s1625 + $0x1c] sm:$0xf]
        %vm1643 = vcmask 130048
        %1644 = vst.msk [vmem:[#allocation2 + $0x7] sm:$0xff] %vm1643, 0.0
        %vm1645 = vcmask 122880
        %1646 = vst.msk [vmem:[#allocation2 + $0xf] sm:$0x1] %vm1645, 0.0
        %s1647 = scalar_lea.vmem [#allocation2], 16
        %1648 = vst.msk [vmem:[%s1647 + $0x7] sm:$0x1] %vm1645, 0.0
        %1649 = vst.msk [vmem:[%s1647 + $0x17] sm:$0x1] %vm1645, 0.0
        %1650 = vst.msk [vmem:[%s1647 + $0x27] sm:$0x1] %vm1645, 0.0
        %1651 = vst.msk [vmem:[%s1647 + $0x37] sm:$0x1] %vm1645, 0.0
        %1652 = vst.msk [vmem:[%s1647 + $0x47] sm:$0x1] %vm1645, 0.0
        %1653 = vst.msk [vmem:[%s1647 + $0x57] sm:$0x1] %vm1645, 0.0
        %1654 = vst.msk [vmem:[%s1647 + $0x67] sm:$0x1] %vm1645, 0.0
        %1655 = vst.msk [vmem:[%s1647 + $0x77] sm:$0x1] %vm1645, 0.0
        %v1656 = vunpack.c.l.bf16 %v1635
        %v1657 = vunpack.c.l.bf16 %v1636
        %v1658 = vunpack.c.l.bf16 %v1637
        %v1659 = vunpack.c.l.bf16 %v1638
        %v1660 = vunpack.c.l.bf16 %v1639
        %v1661 = vunpack.c.l.bf16 %v1640
        %v1662 = vunpack.c.l.bf16 %v1641
        %v1663 = vunpack.c.l.bf16 %v1642
        %1664 = vst.msk [vmem:[%s1647 + $0x8] sm:$0xff] %vm1643, %v1656
        %1665 = vst.msk [vmem:[%s1647 + $0x18] sm:$0xff] %vm1643, %v1657
        %1666 = vst.msk [vmem:[%s1647 + $0x28] sm:$0xff] %vm1643, %v1658
        %1667 = vst.msk [vmem:[%s1647 + $0x38] sm:$0xff] %vm1643, %v1659
        %1668 = vst.msk [vmem:[%s1647 + $0x48] sm:$0xff] %vm1643, %v1660
        %1669 = vst.msk [vmem:[%s1647 + $0x58] sm:$0xff] %vm1643, %v1661
        %1670 = vst.msk [vmem:[%s1647 + $0x68] sm:$0xff] %vm1643, %v1662
        %1671 = vst.msk [vmem:[%s1647 + $0x78] sm:$0xff] %vm1643, %v1663
        %v1672 = vld [vmem:[#allocation2 + $0x7] sm:$0xff]
        %v1673 = vld [vmem:[#allocation2 + $0x17] sm:$0xff]
        %v1674 = vld [vmem:[#allocation2 + $0x27] sm:$0xff]
        %v1675 = vld [vmem:[#allocation2 + $0x37] sm:$0xff]
        %v1676 = vld [vmem:[#allocation2 + $0x47] sm:$0xff]
        %v1677 = vld [vmem:[#allocation2 + $0x57] sm:$0xff]
        %v1678 = vld [vmem:[#allocation2 + $0x67] sm:$0xff]
        %v1679 = vld [vmem:[#allocation2 + $0x77] sm:$0xff]
        %v1680 = vpack.c.bf16 %v1673, %v1672
        %v1681 = vpack.c.bf16 %v1675, %v1674
        %v1682 = vpack.c.bf16 %v1677, %v1676
        %v1683 = vpack.c.bf16 %v1679, %v1678
        %v1684 = vld [vmem:[%s3] sm:$0xf]
        %v1685 = vld [vmem:[%s3 + $0x4] sm:$0xf]
        %v1686 = vld [vmem:[#allocation2 + $0x8] sm:$0xff]
        %v1687 = vld [vmem:[#allocation2 + $0x18] sm:$0xff]
        %v1688 = vld [vmem:[#allocation2 + $0x28] sm:$0xff]
        %v1689 = vld [vmem:[#allocation2 + $0x38] sm:$0xff]
        %v1690 = vld [vmem:[#allocation2 + $0x48] sm:$0xff]
        %v1691 = vld [vmem:[#allocation2 + $0x58] sm:$0xff]
        %v1692 = vld [vmem:[#allocation2 + $0x68] sm:$0xff]
        %v1693 = vld [vmem:[#allocation2 + $0x78] sm:$0xff]
        %v1694 = vpack.c.bf16 %v1687, %v1686
        %v1695 = vpack.c.bf16 %v1689, %v1688
        %v1696 = vpack.c.bf16 %v1691, %v1690
        %v1697 = vpack.c.bf16 %v1693, %v1692
        %s1698 = scalar_lea.vmem %s3, 8
        %v1699 = vld [vmem:[%s1698] sm:$0xf]
        %v1700 = vld [vmem:[%s1698 + $0x4] sm:$0xf]
        %v1703 = vunpack.c.l.b16 %v1699
        %v1704 = vunpack.c.l.b16 %v1700
        %v1705 = vpack.c.b16 %v1704, %v1703
        %v1708 = vsel %vm1643, %v1694, 0
        %v1711 = vsel %vm1643, %v1695, 0
        %v1714 = vsel %vm1643, %v1696, 0
        %v1717 = vsel %vm1643, %v1697, 0
        %1719 = vmatpush.bf16.msra.mxu0 0
        %1720 = vmatpush.bf16.msra.mxu0 0
        %1721 = vmatpush.bf16.msra.mxu0 0
        %1722 = vmatpush.bf16.msra.mxu0 0
        %1723 = vmatpush.bf16.msra.mxu0 0
        %1724 = vmatpush.bf16.msra.mxu0 0
        %1725 = vmatpush.bf16.msra.mxu0 0
        %1726 = vmatpush.bf16.msra.mxu0 %v1705
        %1727 = vmatmul.bf16.gmra.mxu0 %v1708
        %v1728 = vpop.f32.mrf.mxu0
        %v1729 = vadd.f32 0.0, %v1728
        %v1730 = vpop.f32.mrf.mxu0
        %v1731 = vadd.f32 0.0, %v1730
        %1732 = vmatmul.bf16.gmra.mxu0 %v1711
        %v1733 = vpop.f32.mrf.mxu0
        %v1734 = vadd.f32 0.0, %v1733
        %v1735 = vpop.f32.mrf.mxu0
        %v1736 = vadd.f32 0.0, %v1735
        %1737 = vmatmul.bf16.gmra.mxu0 %v1714
        %v1738 = vpop.f32.mrf.mxu0
        %v1739 = vadd.f32 0.0, %v1738
        %v1740 = vpop.f32.mrf.mxu0
        %v1741 = vadd.f32 0.0, %v1740
        %1742 = vmatmul.bf16.gmra.mxu0 %v1717
        %v1743 = vpop.f32.mrf.mxu0
        %v1744 = vadd.f32 0.0, %v1743
        %v1745 = vpop.f32.mrf.mxu0
        %v1746 = vadd.f32 0.0, %v1745
        %1747 = vdwg.mxu0
        %v1750 = vunpack.c.l.b16 %v1684
        %v1751 = vunpack.c.l.b16 %v1685
        %v1752 = vpack.c.b16 %v1751, %v1750
        %v1755 = vsel %vm1643, %v1680, 0
        %v1758 = vsel %vm1643, %v1681, 0
        %v1761 = vsel %vm1643, %v1682, 0
        %v1764 = vsel %vm1643, %v1683, 0
        %1766 = vmatpush.bf16.msra.mxu0 0
        %1767 = vmatpush.bf16.msra.mxu0 0
        %1768 = vmatpush.bf16.msra.mxu0 0
        %1769 = vmatpush.bf16.msra.mxu0 0
        %1770 = vmatpush.bf16.msra.mxu0 0
        %1771 = vmatpush.bf16.msra.mxu0 0
        %1772 = vmatpush.bf16.msra.mxu0 0
        %1773 = vmatpush.bf16.msra.mxu0 %v1752
        %1774 = vmatmul.bf16.gmra.mxu0 %v1755
        %v1775 = vpop.f32.mrf.mxu0
        %v1776 = vadd.f32 %v1729, %v1775
        %v1777 = vpop.f32.mrf.mxu0
        %v1778 = vadd.f32 %v1731, %v1777
        %1779 = vmatmul.bf16.gmra.mxu0 %v1758
        %v1780 = vpop.f32.mrf.mxu0
        %v1781 = vadd.f32 %v1734, %v1780
        %v1782 = vpop.f32.mrf.mxu0
        %v1783 = vadd.f32 %v1736, %v1782
        %1784 = vmatmul.bf16.gmra.mxu0 %v1761
        %v1785 = vpop.f32.mrf.mxu0
        %v1786 = vadd.f32 %v1739, %v1785
        %v1787 = vpop.f32.mrf.mxu0
        %v1788 = vadd.f32 %v1741, %v1787
        %1789 = vmatmul.bf16.gmra.mxu0 %v1764
        %v1790 = vpop.f32.mrf.mxu0
        %v1791 = vadd.f32 %v1744, %v1790
        %v1792 = vpop.f32.mrf.mxu0
        %v1793 = vadd.f32 %v1746, %v1792
        %1794 = vdwg.mxu0
        %v1795 = vld [vmem:[%s1647 + $0x7] sm:$0xff]
        %v1796 = vld [vmem:[%s1647 + $0x17] sm:$0xff]
        %v1797 = vld [vmem:[%s1647 + $0x27] sm:$0xff]
        %v1798 = vld [vmem:[%s1647 + $0x37] sm:$0xff]
        %v1799 = vld [vmem:[%s1647 + $0x47] sm:$0xff]
        %v1800 = vld [vmem:[%s1647 + $0x57] sm:$0xff]
        %v1801 = vld [vmem:[%s1647 + $0x67] sm:$0xff]
        %v1802 = vld [vmem:[%s1647 + $0x77] sm:$0xff]
        %v1803 = vpack.c.bf16 %v1796, %v1795
        %v1804 = vpack.c.bf16 %v1798, %v1797
        %v1805 = vpack.c.bf16 %v1800, %v1799
        %v1806 = vpack.c.bf16 %v1802, %v1801
        %s1807 = scalar_lea.vmem %s3, 16
        %v1808 = vld [vmem:[%s1807] sm:$0xf]
        %v1809 = vld [vmem:[%s1807 + $0x4] sm:$0xf]
        %v1812 = vunpack.c.l.b16 %v1808
        %v1813 = vunpack.c.l.b16 %v1809
        %v1814 = vpack.c.b16 %v1813, %v1812
        %v1817 = vsel %vm1643, %v1803, 0
        %v1820 = vsel %vm1643, %v1804, 0
        %v1823 = vsel %vm1643, %v1805, 0
        %v1826 = vsel %vm1643, %v1806, 0
        %1828 = vmatpush.bf16.msra.mxu0 0
        %1829 = vmatpush.bf16.msra.mxu0 0
        %1830 = vmatpush.bf16.msra.mxu0 0
        %1831 = vmatpush.bf16.msra.mxu0 0
        %1832 = vmatpush.bf16.msra.mxu0 0
        %1833 = vmatpush.bf16.msra.mxu0 0
        %1834 = vmatpush.bf16.msra.mxu0 0
        %1835 = vmatpush.bf16.msra.mxu0 %v1814
        %1836 = vmatmul.bf16.gmra.mxu0 %v1817
        %v1837 = vpop.f32.mrf.mxu0
        %v1838 = vadd.f32 0.0, %v1837
        %v1839 = vpop.f32.mrf.mxu0
        %v1840 = vadd.f32 0.0, %v1839
        %1841 = vmatmul.bf16.gmra.mxu0 %v1820
        %v1842 = vpop.f32.mrf.mxu0
        %v1843 = vadd.f32 0.0, %v1842
        %v1844 = vpop.f32.mrf.mxu0
        %v1845 = vadd.f32 0.0, %v1844
        %1846 = vmatmul.bf16.gmra.mxu0 %v1823
        %v1847 = vpop.f32.mrf.mxu0
        %v1848 = vadd.f32 0.0, %v1847
        %v1849 = vpop.f32.mrf.mxu0
        %v1850 = vadd.f32 0.0, %v1849
        %1851 = vmatmul.bf16.gmra.mxu0 %v1826
        %v1852 = vpop.f32.mrf.mxu0
        %v1853 = vadd.f32 0.0, %v1852
        %v1854 = vpop.f32.mrf.mxu0
        %v1855 = vadd.f32 0.0, %v1854
        %1856 = vdwg.mxu0
        %v1857 = vadd.f32 %v1776, %v1838
        %v1858 = vadd.f32 %v1778, %v1840
        %v1859 = vadd.f32 %v1781, %v1843
        %v1860 = vadd.f32 %v1783, %v1845
        %v1861 = vadd.f32 %v1786, %v1848
        %v1862 = vadd.f32 %v1788, %v1850
        %v1863 = vadd.f32 %v1791, %v1853
        %v1864 = vadd.f32 %v1793, %v1855
        %v1865 = vld [vmem:[%s1647 + $0x8] sm:$0xff]
        %v1866 = vld [vmem:[%s1647 + $0x18] sm:$0xff]
        %v1867 = vld [vmem:[%s1647 + $0x28] sm:$0xff]
        %v1868 = vld [vmem:[%s1647 + $0x38] sm:$0xff]
        %v1869 = vld [vmem:[%s1647 + $0x48] sm:$0xff]
        %v1870 = vld [vmem:[%s1647 + $0x58] sm:$0xff]
        %v1871 = vld [vmem:[%s1647 + $0x68] sm:$0xff]
        %v1872 = vld [vmem:[%s1647 + $0x78] sm:$0xff]
        %v1873 = vpack.c.bf16 %v1866, %v1865
        %v1874 = vpack.c.bf16 %v1868, %v1867
        %v1875 = vpack.c.bf16 %v1870, %v1869
        %v1876 = vpack.c.bf16 %v1872, %v1871
        %s1877 = scalar_lea.vmem %s3, 24
        %v1878 = vld [vmem:[%s1877] sm:$0xf]
        %v1879 = vld [vmem:[%s1877 + $0x4] sm:$0xf]
        %v1882 = vunpack.c.l.b16 %v1878
        %v1883 = vunpack.c.l.b16 %v1879
        %v1884 = vpack.c.b16 %v1883, %v1882
        %v1887 = vsel %vm1643, %v1873, 0
        %v1890 = vsel %vm1643, %v1874, 0
        %v1893 = vsel %vm1643, %v1875, 0
        %v1896 = vsel %vm1643, %v1876, 0
        %1898 = vmatpush.bf16.msra.mxu0 0
        %1899 = vmatpush.bf16.msra.mxu0 0
        %1900 = vmatpush.bf16.msra.mxu0 0
        %1901 = vmatpush.bf16.msra.mxu0 0
        %1902 = vmatpush.bf16.msra.mxu0 0
        %1903 = vmatpush.bf16.msra.mxu0 0
        %1904 = vmatpush.bf16.msra.mxu0 0
        %1905 = vmatpush.bf16.msra.mxu0 %v1884
        %1906 = vmatmul.bf16.gmra.mxu0 %v1887
        %v1907 = vpop.f32.mrf.mxu0
        %v1908 = vadd.f32 0.0, %v1907
        %v1909 = vpop.f32.mrf.mxu0
        %v1910 = vadd.f32 0.0, %v1909
        %1911 = vmatmul.bf16.gmra.mxu0 %v1890
        %v1912 = vpop.f32.mrf.mxu0
        %v1913 = vadd.f32 0.0, %v1912
        %v1914 = vpop.f32.mrf.mxu0
        %v1915 = vadd.f32 0.0, %v1914
        %1916 = vmatmul.bf16.gmra.mxu0 %v1893
        %v1917 = vpop.f32.mrf.mxu0
        %v1918 = vadd.f32 0.0, %v1917
        %v1919 = vpop.f32.mrf.mxu0
        %v1920 = vadd.f32 0.0, %v1919
        %1921 = vmatmul.bf16.gmra.mxu0 %v1896
        %v1922 = vpop.f32.mrf.mxu0
        %v1923 = vadd.f32 0.0, %v1922
        %v1924 = vpop.f32.mrf.mxu0
        %v1925 = vadd.f32 0.0, %v1924
        %1926 = vdwg.mxu0
        %v1927 = vadd.f32 %v1857, %v1908
        %v1928 = vadd.f32 %v1858, %v1910
        %v1929 = vadd.f32 %v1859, %v1913
        %v1930 = vadd.f32 %v1860, %v1915
        %v1931 = vadd.f32 %v1861, %v1918
        %v1932 = vadd.f32 %v1862, %v1920
        %v1933 = vadd.f32 %v1863, %v1923
        %v1934 = vadd.f32 %v1864, %v1925
        %v1935 = vld [vmem:[%s5] sm:$0x1]
        %v1937 = vperm.slane %v1935, 0
        %v1939 = vadd.f32 %v1927, %v1937
        %v1940 = vadd.f32 %v1928, %v1937
        %v1941 = vadd.f32 %v1929, %v1937
        %v1942 = vadd.f32 %v1930, %v1937
        %v1943 = vadd.f32 %v1931, %v1937
        %v1944 = vadd.f32 %v1932, %v1937
        %v1945 = vadd.f32 %v1933, %v1937
        %v1946 = vadd.f32 %v1934, %v1937
        %v1947 = vpack.c.bf16 %v1940, %v1939
        %v1948 = vpack.c.bf16 %v1942, %v1941
        %v1949 = vpack.c.bf16 %v1944, %v1943
        %v1950 = vpack.c.bf16 %v1946, %v1945
        %v1951 = vld [vmem:[%s9] sm:$0xf]
        %v1952 = vld [vmem:[%s9 + $0x4] sm:$0xf]
        %v1953 = vld [vmem:[%s11] sm:$0x1]
        %v1955 = vperm.slane %v1953, 0
        %v1959 = vunpack.c.l.b16 %v1951
        %v1960 = vunpack.c.l.b16 %v1952
        %v1961 = vpack.c.b16 %v1960, %v1959
        %v1964 = vsel %vm1643, %v1947, 0
        %v1967 = vsel %vm1643, %v1948, 0
        %v1970 = vsel %vm1643, %v1949, 0
        %v1973 = vsel %vm1643, %v1950, 0
        %1975 = vmatpush.bf16.msra.mxu0 0
        %1976 = vmatpush.bf16.msra.mxu0 0
        %1977 = vmatpush.bf16.msra.mxu0 0
        %1978 = vmatpush.bf16.msra.mxu0 0
        %1979 = vmatpush.bf16.msra.mxu0 0
        %1980 = vmatpush.bf16.msra.mxu0 0
        %1981 = vmatpush.bf16.msra.mxu0 0
        %1982 = vmatpush.bf16.msra.mxu0 %v1961
        %1983 = vmatmul.bf16.gmra.mxu0 %v1964
        %v1984 = vpop.f32.mrf.mxu0
        %v1985 = vadd.f32 %v1955, %v1984
        %v1986 = vpop.f32.mrf.mxu0
        %v1987 = vadd.f32 %v1955, %v1986
        %1988 = vmatmul.bf16.gmra.mxu0 %v1967
        %v1989 = vpop.f32.mrf.mxu0
        %v1990 = vadd.f32 %v1955, %v1989
        %v1991 = vpop.f32.mrf.mxu0
        %v1992 = vadd.f32 %v1955, %v1991
        %1993 = vmatmul.bf16.gmra.mxu0 %v1970
        %v1994 = vpop.f32.mrf.mxu0
        %v1995 = vadd.f32 %v1955, %v1994
        %v1996 = vpop.f32.mrf.mxu0
        %v1997 = vadd.f32 %v1955, %v1996
        %1998 = vmatmul.bf16.gmra.mxu0 %v1973
        %v1999 = vpop.f32.mrf.mxu0
        %v2000 = vadd.f32 %v1955, %v1999
        %v2001 = vpop.f32.mrf.mxu0
        %v2002 = vadd.f32 %v1955, %v2001
        %2003 = vdwg.mxu0
        %v2004 = vmax.f32 %v1985, 0.0
        %v2005 = vmax.f32 %v1987, 0.0
        %v2006 = vmax.f32 %v1990, 0.0
        %v2007 = vmax.f32 %v1992, 0.0
        %v2008 = vmax.f32 %v1995, 0.0
        %v2009 = vmax.f32 %v1997, 0.0
        %v2010 = vmax.f32 %v2000, 0.0
        %v2011 = vmax.f32 %v2002, 0.0
        %v2012 = vmin.f32 %v2004, 6.0
        %v2013 = vmin.f32 %v2005, 6.0
        %v2014 = vmin.f32 %v2006, 6.0
        %v2015 = vmin.f32 %v2007, 6.0
        %v2016 = vmin.f32 %v2008, 6.0
        %v2017 = vmin.f32 %v2009, 6.0
        %v2018 = vmin.f32 %v2010, 6.0
        %v2019 = vmin.f32 %v2011, 6.0
        %vm2020 = vcmask 785408
        %2021 = vst.msk [vmem:[#allocation3 + $0x7] sm:$0xff] %vm2020, 0.0
        %vm2022 = vcmask 779264
        %2023 = vst.msk [vmem:[#allocation3 + $0xf] sm:$0x3] %vm2022, 0.0
        %s2024 = scalar_lea.vmem [#allocation3], 216
        %2025 = vst.msk [vmem:[%s2024 + $0x7] sm:$0xff] %vm2020, 0.0
        %2026 = vst.msk [vmem:[%s2024 + $0xf] sm:$0x3] %vm2022, 0.0
        %s2027 = scalar_lea.vmem [#allocation3], 24
        %vm2028 = vcmask 778240
        %2029 = vst.msk [vmem:[%s2027 + $0x7] sm:$0x1] %vm2028, 0.0
        %2030 = vst.msk [vmem:[%s2027 + $0x1f] sm:$0x1] %vm2028, 0.0
        %2031 = vst.msk [vmem:[%s2027 + $0x37] sm:$0x1] %vm2028, 0.0
        %2032 = vst.msk [vmem:[%s2027 + $0x4f] sm:$0x1] %vm2028, 0.0
        %2033 = vst.msk [vmem:[%s2027 + $0x67] sm:$0x1] %vm2028, 0.0
        %2034 = vst.msk [vmem:[%s2027 + $0x7f] sm:$0x1] %vm2028, 0.0
        %2035 = vst.msk [vmem:[%s2027 + $0x97] sm:$0x1] %vm2028, 0.0
        %2036 = vst.msk [vmem:[%s2027 + $0xaf] sm:$0x1] %vm2028, 0.0
        %2037 = vst.msk [vmem:[%s2027 + $0x10] sm:$0x1] %vm2028, 0.0
        %2038 = vst.msk [vmem:[%s2027 + $0x28] sm:$0x1] %vm2028, 0.0
        %2039 = vst.msk [vmem:[%s2027 + $0x40] sm:$0x1] %vm2028, 0.0
        %2040 = vst.msk [vmem:[%s2027 + $0x58] sm:$0x1] %vm2028, 0.0
        %2041 = vst.msk [vmem:[%s2027 + $0x70] sm:$0x1] %vm2028, 0.0
        %2042 = vst.msk [vmem:[%s2027 + $0x88] sm:$0x1] %vm2028, 0.0
        %2043 = vst.msk [vmem:[%s2027 + $0xa0] sm:$0x1] %vm2028, 0.0
        %2044 = vst.msk [vmem:[%s2027 + $0xb8] sm:$0x1] %vm2028, 0.0
        %2045 = vst.msk [vmem:[%s2027 + $0x8] sm:$0xff] %vm2020, %v2012
        %2046 = vst.msk [vmem:[%s2027 + $0x20] sm:$0xff] %vm2020, %v2013
        %2047 = vst.msk [vmem:[%s2027 + $0x38] sm:$0xff] %vm2020, %v2014
        %2048 = vst.msk [vmem:[%s2027 + $0x50] sm:$0xff] %vm2020, %v2015
        %2049 = vst.msk [vmem:[%s2027 + $0x68] sm:$0xff] %vm2020, %v2016
        %2050 = vst.msk [vmem:[%s2027 + $0x80] sm:$0xff] %vm2020, %v2017
        %2051 = vst.msk [vmem:[%s2027 + $0x98] sm:$0xff] %vm2020, %v2018
        %2052 = vst.msk [vmem:[%s2027 + $0xb0] sm:$0xff] %vm2020, %v2019
        %v2053 = vld [vmem:[%s13] sm:$0xff]
        %v2054 = vld [vmem:[%s13 + $0x8] sm:$0x1]
        %v2055 = vld [vmem:[#allocation3 + $0x7] sm:$0xff]
        %v2056 = vld [vmem:[#allocation3 + $0x1f] sm:$0xff]
        %v2057 = vld [vmem:[#allocation3 + $0x37] sm:$0xff]
        %v2058 = vld [vmem:[#allocation3 + $0x4f] sm:$0xff]
        %v2059 = vld [vmem:[#allocation3 + $0x67] sm:$0xff]
        %v2060 = vld [vmem:[#allocation3 + $0x7f] sm:$0xff]
        %v2061 = vld [vmem:[#allocation3 + $0x97] sm:$0xff]
        %v2062 = vld [vmem:[#allocation3 + $0xaf] sm:$0xff]
        %v2063 = vperm.slane %v2053, 0
        %v2064 = vmul.f32 %v2055, %v2063
        %v2065 = vmul.f32 %v2056, %v2063
        %v2066 = vmul.f32 %v2057, %v2063
        %v2067 = vmul.f32 %v2058, %v2063
        %v2068 = vmul.f32 %v2059, %v2063
        %v2069 = vmul.f32 %v2060, %v2063
        %v2070 = vmul.f32 %v2061, %v2063
        %v2071 = vmul.f32 %v2062, %v2063
        %v2072 = vadd.f32 %v2064, 0.0
        %v2073 = vadd.f32 %v2065, 0.0
        %v2074 = vadd.f32 %v2066, 0.0
        %v2075 = vadd.f32 %v2067, 0.0
        %v2076 = vadd.f32 %v2068, 0.0
        %v2077 = vadd.f32 %v2069, 0.0
        %v2078 = vadd.f32 %v2070, 0.0
        %v2079 = vadd.f32 %v2071, 0.0
        %v2080 = vld [vmem:[#allocation3 + $0x8] sm:$0xff]
        %v2081 = vld [vmem:[#allocation3 + $0x20] sm:$0xff]
        %v2082 = vld [vmem:[#allocation3 + $0x38] sm:$0xff]
        %v2083 = vld [vmem:[#allocation3 + $0x50] sm:$0xff]
        %v2084 = vld [vmem:[#allocation3 + $0x68] sm:$0xff]
        %v2085 = vld [vmem:[#allocation3 + $0x80] sm:$0xff]
        %v2086 = vld [vmem:[#allocation3 + $0x98] sm:$0xff]
        %v2087 = vld [vmem:[#allocation3 + $0xb0] sm:$0xff]
        %v2088 = vperm.slane %v2053, 1
        %v2089 = vmul.f32 %v2080, %v2088
        %v2090 = vmul.f32 %v2081, %v2088
        %v2091 = vmul.f32 %v2082, %v2088
        %v2092 = vmul.f32 %v2083, %v2088
        %v2093 = vmul.f32 %v2084, %v2088
        %v2094 = vmul.f32 %v2085, %v2088
        %v2095 = vmul.f32 %v2086, %v2088
        %v2096 = vmul.f32 %v2087, %v2088
        %v2097 = vadd.f32 %v2072, %v2089
        %v2098 = vadd.f32 %v2073, %v2090
        %v2099 = vadd.f32 %v2074, %v2091
        %v2100 = vadd.f32 %v2075, %v2092
        %v2101 = vadd.f32 %v2076, %v2093
        %v2102 = vadd.f32 %v2077, %v2094
        %v2103 = vadd.f32 %v2078, %v2095
        %v2104 = vadd.f32 %v2079, %v2096
        %v2105 = vld [vmem:[#allocation3 + $0x9] sm:$0xff]
        %v2106 = vld [vmem:[#allocation3 + $0x21] sm:$0xff]
        %v2107 = vld [vmem:[#allocation3 + $0x39] sm:$0xff]
        %v2108 = vld [vmem:[#allocation3 + $0x51] sm:$0xff]
        %v2109 = vld [vmem:[#allocation3 + $0x69] sm:$0xff]
        %v2110 = vld [vmem:[#allocation3 + $0x81] sm:$0xff]
        %v2111 = vld [vmem:[#allocation3 + $0x99] sm:$0xff]
        %v2112 = vld [vmem:[#allocation3 + $0xb1] sm:$0xff]
        %v2113 = vperm.slane %v2053, 2
        %v2114 = vmul.f32 %v2105, %v2113
        %v2115 = vmul.f32 %v2106, %v2113
        %v2116 = vmul.f32 %v2107, %v2113
        %v2117 = vmul.f32 %v2108, %v2113
        %v2118 = vmul.f32 %v2109, %v2113
        %v2119 = vmul.f32 %v2110, %v2113
        %v2120 = vmul.f32 %v2111, %v2113
        %v2121 = vmul.f32 %v2112, %v2113
        %v2122 = vadd.f32 %v2097, %v2114
        %v2123 = vadd.f32 %v2098, %v2115
        %v2124 = vadd.f32 %v2099, %v2116
        %v2125 = vadd.f32 %v2100, %v2117
        %v2126 = vadd.f32 %v2101, %v2118
        %v2127 = vadd.f32 %v2102, %v2119
        %v2128 = vadd.f32 %v2103, %v2120
        %v2129 = vadd.f32 %v2104, %v2121
        %v2130 = vld [vmem:[%s2027 + $0x7] sm:$0xff]
        %v2131 = vld [vmem:[%s2027 + $0x1f] sm:$0xff]
        %v2132 = vld [vmem:[%s2027 + $0x37] sm:$0xff]
        %v2133 = vld [vmem:[%s2027 + $0x4f] sm:$0xff]
        %v2134 = vld [vmem:[%s2027 + $0x67] sm:$0xff]
        %v2135 = vld [vmem:[%s2027 + $0x7f] sm:$0xff]
        %v2136 = vld [vmem:[%s2027 + $0x97] sm:$0xff]
        %v2137 = vld [vmem:[%s2027 + $0xaf] sm:$0xff]
        %v2138 = vperm.slane %v2053, 3
        %v2139 = vmul.f32 %v2130, %v2138
        %v2140 = vmul.f32 %v2131, %v2138
        %v2141 = vmul.f32 %v2132, %v2138
        %v2142 = vmul.f32 %v2133, %v2138
        %v2143 = vmul.f32 %v2134, %v2138
        %v2144 = vmul.f32 %v2135, %v2138
        %v2145 = vmul.f32 %v2136, %v2138
        %v2146 = vmul.f32 %v2137, %v2138
        %v2147 = vadd.f32 %v2122, %v2139
        %v2148 = vadd.f32 %v2123, %v2140
        %v2149 = vadd.f32 %v2124, %v2141
        %v2150 = vadd.f32 %v2125, %v2142
        %v2151 = vadd.f32 %v2126, %v2143
        %v2152 = vadd.f32 %v2127, %v2144
        %v2153 = vadd.f32 %v2128, %v2145
        %v2154 = vadd.f32 %v2129, %v2146
        %v2155 = vld [vmem:[%s2027 + $0x8] sm:$0xff]
        %v2156 = vld [vmem:[%s2027 + $0x20] sm:$0xff]
        %v2157 = vld [vmem:[%s2027 + $0x38] sm:$0xff]
        %v2158 = vld [vmem:[%s2027 + $0x50] sm:$0xff]
        %v2159 = vld [vmem:[%s2027 + $0x68] sm:$0xff]
        %v2160 = vld [vmem:[%s2027 + $0x80] sm:$0xff]
        %v2161 = vld [vmem:[%s2027 + $0x98] sm:$0xff]
        %v2162 = vld [vmem:[%s2027 + $0xb0] sm:$0xff]
        %v2163 = vperm.slane %v2053, 4
        %v2164 = vmul.f32 %v2155, %v2163
        %v2165 = vmul.f32 %v2156, %v2163
        %v2166 = vmul.f32 %v2157, %v2163
        %v2167 = vmul.f32 %v2158, %v2163
        %v2168 = vmul.f32 %v2159, %v2163
        %v2169 = vmul.f32 %v2160, %v2163
        %v2170 = vmul.f32 %v2161, %v2163
        %v2171 = vmul.f32 %v2162, %v2163
        %v2172 = vadd.f32 %v2147, %v2164
        %v2173 = vadd.f32 %v2148, %v2165
        %v2174 = vadd.f32 %v2149, %v2166
        %v2175 = vadd.f32 %v2150, %v2167
        %v2176 = vadd.f32 %v2151, %v2168
        %v2177 = vadd.f32 %v2152, %v2169
        %v2178 = vadd.f32 %v2153, %v2170
        %v2179 = vadd.f32 %v2154, %v2171
        %v2180 = vld [vmem:[%s2027 + $0x9] sm:$0xff]
        %v2181 = vld [vmem:[%s2027 + $0x21] sm:$0xff]
        %v2182 = vld [vmem:[%s2027 + $0x39] sm:$0xff]
        %v2183 = vld [vmem:[%s2027 + $0x51] sm:$0xff]
        %v2184 = vld [vmem:[%s2027 + $0x69] sm:$0xff]
        %v2185 = vld [vmem:[%s2027 + $0x81] sm:$0xff]
        %v2186 = vld [vmem:[%s2027 + $0x99] sm:$0xff]
        %v2187 = vld [vmem:[%s2027 + $0xb1] sm:$0xff]
        %v2188 = vperm.slane %v2053, 5
        %v2189 = vmul.f32 %v2180, %v2188
        %v2190 = vmul.f32 %v2181, %v2188
        %v2191 = vmul.f32 %v2182, %v2188
        %v2192 = vmul.f32 %v2183, %v2188
        %v2193 = vmul.f32 %v2184, %v2188
        %v2194 = vmul.f32 %v2185, %v2188
        %v2195 = vmul.f32 %v2186, %v2188
        %v2196 = vmul.f32 %v2187, %v2188
        %v2197 = vadd.f32 %v2172, %v2189
        %v2198 = vadd.f32 %v2173, %v2190
        %v2199 = vadd.f32 %v2174, %v2191
        %v2200 = vadd.f32 %v2175, %v2192
        %v2201 = vadd.f32 %v2176, %v2193
        %v2202 = vadd.f32 %v2177, %v2194
        %v2203 = vadd.f32 %v2178, %v2195
        %v2204 = vadd.f32 %v2179, %v2196
        %s2205 = scalar_lea.vmem [#allocation3], 48
        %v2206 = vld [vmem:[%s2205 + $0x7] sm:$0xff]
        %v2207 = vld [vmem:[%s2205 + $0x1f] sm:$0xff]
        %v2208 = vld [vmem:[%s2205 + $0x37] sm:$0xff]
        %v2209 = vld [vmem:[%s2205 + $0x4f] sm:$0xff]
        %v2210 = vld [vmem:[%s2205 + $0x67] sm:$0xff]
        %v2211 = vld [vmem:[%s2205 + $0x7f] sm:$0xff]
        %v2212 = vld [vmem:[%s2205 + $0x97] sm:$0xff]
        %v2213 = vld [vmem:[%s2205 + $0xaf] sm:$0xff]
        %v2214 = vperm.slane %v2053, 6
        %v2215 = vmul.f32 %v2206, %v2214
        %v2216 = vmul.f32 %v2207, %v2214
        %v2217 = vmul.f32 %v2208, %v2214
        %v2218 = vmul.f32 %v2209, %v2214
        %v2219 = vmul.f32 %v2210, %v2214
        %v2220 = vmul.f32 %v2211, %v2214
        %v2221 = vmul.f32 %v2212, %v2214
        %v2222 = vmul.f32 %v2213, %v2214
        %v2223 = vadd.f32 %v2197, %v2215
        %v2224 = vadd.f32 %v2198, %v2216
        %v2225 = vadd.f32 %v2199, %v2217
        %v2226 = vadd.f32 %v2200, %v2218
        %v2227 = vadd.f32 %v2201, %v2219
        %v2228 = vadd.f32 %v2202, %v2220
        %v2229 = vadd.f32 %v2203, %v2221
        %v2230 = vadd.f32 %v2204, %v2222
        %v2231 = vld [vmem:[%s2205 + $0x8] sm:$0xff]
        %v2232 = vld [vmem:[%s2205 + $0x20] sm:$0xff]
        %v2233 = vld [vmem:[%s2205 + $0x38] sm:$0xff]
        %v2234 = vld [vmem:[%s2205 + $0x50] sm:$0xff]
        %v2235 = vld [vmem:[%s2205 + $0x68] sm:$0xff]
        %v2236 = vld [vmem:[%s2205 + $0x80] sm:$0xff]
        %v2237 = vld [vmem:[%s2205 + $0x98] sm:$0xff]
        %v2238 = vld [vmem:[%s2205 + $0xb0] sm:$0xff]
        %v2239 = vperm.slane %v2053, 7
        %v2240 = vmul.f32 %v2231, %v2239
        %v2241 = vmul.f32 %v2232, %v2239
        %v2242 = vmul.f32 %v2233, %v2239
        %v2243 = vmul.f32 %v2234, %v2239
        %v2244 = vmul.f32 %v2235, %v2239
        %v2245 = vmul.f32 %v2236, %v2239
        %v2246 = vmul.f32 %v2237, %v2239
        %v2247 = vmul.f32 %v2238, %v2239
        %v2248 = vadd.f32 %v2223, %v2240
        %v2249 = vadd.f32 %v2224, %v2241
        %v2250 = vadd.f32 %v2225, %v2242
        %v2251 = vadd.f32 %v2226, %v2243
        %v2252 = vadd.f32 %v2227, %v2244
        %v2253 = vadd.f32 %v2228, %v2245
        %v2254 = vadd.f32 %v2229, %v2246
        %v2255 = vadd.f32 %v2230, %v2247
        %v2256 = vld [vmem:[%s2205 + $0x9] sm:$0xff]
        %v2257 = vld [vmem:[%s2205 + $0x21] sm:$0xff]
        %v2258 = vld [vmem:[%s2205 + $0x39] sm:$0xff]
        %v2259 = vld [vmem:[%s2205 + $0x51] sm:$0xff]
        %v2260 = vld [vmem:[%s2205 + $0x69] sm:$0xff]
        %v2261 = vld [vmem:[%s2205 + $0x81] sm:$0xff]
        %v2262 = vld [vmem:[%s2205 + $0x99] sm:$0xff]
        %v2263 = vld [vmem:[%s2205 + $0xb1] sm:$0xff]
        %v2264 = vperm.slane %v2054, 0
        %v2265 = vmul.f32 %v2256, %v2264
        %v2266 = vmul.f32 %v2257, %v2264
        %v2267 = vmul.f32 %v2258, %v2264
        %v2268 = vmul.f32 %v2259, %v2264
        %v2269 = vmul.f32 %v2260, %v2264
        %v2270 = vmul.f32 %v2261, %v2264
        %v2271 = vmul.f32 %v2262, %v2264
        %v2272 = vmul.f32 %v2263, %v2264
        %v2273 = vadd.f32 %v2248, %v2265
        %v2274 = vadd.f32 %v2249, %v2266
        %v2275 = vadd.f32 %v2250, %v2267
        %v2276 = vadd.f32 %v2251, %v2268
        %v2277 = vadd.f32 %v2252, %v2269
        %v2278 = vadd.f32 %v2253, %v2270
        %v2279 = vadd.f32 %v2254, %v2271
        %v2280 = vadd.f32 %v2255, %v2272
        %v2281 = vld [vmem:[%s15] sm:$0x1]
        %v2283 = vperm.slane %v2281, 0
        %v2285 = vadd.f32 %v2273, %v2283
        %v2286 = vadd.f32 %v2274, %v2283
        %v2287 = vadd.f32 %v2275, %v2283
        %v2288 = vadd.f32 %v2276, %v2283
        %v2289 = vadd.f32 %v2277, %v2283
        %v2290 = vadd.f32 %v2278, %v2283
        %v2291 = vadd.f32 %v2279, %v2283
        %v2292 = vadd.f32 %v2280, %v2283
        %v2293 = vmax.f32 %v2285, 0.0
        %v2294 = vmax.f32 %v2286, 0.0
        %v2295 = vmax.f32 %v2287, 0.0
        %v2296 = vmax.f32 %v2288, 0.0
        %v2297 = vmax.f32 %v2289, 0.0
        %v2298 = vmax.f32 %v2290, 0.0
        %v2299 = vmax.f32 %v2291, 0.0
        %v2300 = vmax.f32 %v2292, 0.0
        %v2301 = vmin.f32 %v2293, 6.0
        %v2302 = vmin.f32 %v2294, 6.0
        %v2303 = vmin.f32 %v2295, 6.0
        %v2304 = vmin.f32 %v2296, 6.0
        %v2305 = vmin.f32 %v2297, 6.0
        %v2306 = vmin.f32 %v2298, 6.0
        %v2307 = vmin.f32 %v2299, 6.0
        %v2308 = vmin.f32 %v2300, 6.0
        %v2309 = vsel %vm2020, %v2301, 0.0
        %v2310 = vsel %vm2020, %v2302, 0.0
        %v2311 = vadd.f32 %v2309, %v2310
        %v2312 = vsel %vm2020, %v2303, 0.0
        %v2313 = vadd.f32 %v2311, %v2312
        %v2314 = vsel %vm2020, %v2304, 0.0
        %v2315 = vadd.f32 %v2313, %v2314
        %v2316 = vsel %vm2020, %v2305, 0.0
        %v2317 = vadd.f32 %v2315, %v2316
        %v2318 = vsel %vm2020, %v2306, 0.0
        %v2319 = vadd.f32 %v2317, %v2318
        %v2320 = vsel %vm2020, %v2307, 0.0
        %v2321 = vadd.f32 %v2319, %v2320
        %v2322 = vsel %vm2020, %v2308, 0.0
        %v2323 = vadd.f32 %v2321, %v2322
        %v2324 = vrot.slane %v2323, 4
        %v2325 = vadd.f32 %v2323, %v2324
        %v2326 = vrot.slane %v2325, 2
        %v2327 = vadd.f32 %v2325, %v2326
        %v2328 = vrot.slane %v2327, 1
        %v2329 = vadd.f32 %v2327, %v2328
        %v2330 = vrcp.pop 64.0
        %v2331 = vmul.f32 64.0, %v2330
        %v2332 = vsub.f32 1.0, %v2331
        %v2333 = vmul.f32 %v2330, %v2332
        %v2334 = vadd.f32 %v2330, %v2333
        %vm2335 = vweird.f32 %v2330
        %v2336 = vsel %vm2335, %v2330, %v2334
        %v2337 = vmul.f32 %v2329, %v2336
        %v2338 = vpack.c.bf16 %v2337, %v2337
        %v2339 = vld [vmem:[%s17] sm:$0xf]
        %v2340 = vld [vmem:[%s17 + $0x4] sm:$0xf]
        %v2341 = vld [vmem:[%s17 + $0x8] sm:$0xf]
        %v2342 = vld [vmem:[%s17 + $0xc] sm:$0xf]
        %v2343 = vld [vmem:[%s17 + $0x10] sm:$0xf]
        %v2344 = vld [vmem:[%s17 + $0x14] sm:$0xf]
        %v2345 = vld [vmem:[%s17 + $0x18] sm:$0xf]
        %v2346 = vld [vmem:[%s17 + $0x1c] sm:$0xf]
        %v2347 = vld [vmem:[%s17 + $0x20] sm:$0xf]
        %v2348 = vld [vmem:[%s17 + $0x24] sm:$0xf]
        %v2349 = vld [vmem:[%s17 + $0x28] sm:$0xf]
        %v2350 = vld [vmem:[%s17 + $0x2c] sm:$0xf]
        %v2351 = vld [vmem:[%s19] sm:$0x1]
        %v2364 = vunpack.c.l.b16 %v2339
        %v2365 = vunpack.c.l.b16 %v2340
        %v2366 = vunpack.c.l.b16 %v2341
        %v2367 = vunpack.c.l.b16 %v2342
        %v2368 = vunpack.c.l.b16 %v2343
        %v2369 = vunpack.c.l.b16 %v2344
        %v2370 = vunpack.c.l.b16 %v2345
        %v2371 = vunpack.c.l.b16 %v2346
        %v2372 = vunpack.c.l.b16 %v2347
        %v2373 = vunpack.c.l.b16 %v2348
        %v2374 = vunpack.c.l.b16 %v2349
        %v2375 = vunpack.c.l.b16 %v2350
        %v2376 = vpack.c.b16 %v2365, %v2364
        %v2377 = vpack.c.b16 %v2367, %v2366
        %v2378 = vpack.c.b16 %v2369, %v2368
        %v2379 = vpack.c.b16 %v2371, %v2370
        %v2380 = vpack.c.b16 %v2373, %v2372
        %v2381 = vpack.c.b16 %v2375, %v2374
        %v2389 = vsel %vm2020, %v2338, 0
        %2391 = vmatpush.bf16.msra.mxu0 0
        %2392 = vmatpush.bf16.msra.mxu0 0
        %2393 = vmatpush.bf16.msra.mxu0 %v2381
        %2394 = vmatpush.bf16.msra.mxu0 %v2380
        %2395 = vmatpush.bf16.msra.mxu0 %v2379
        %2396 = vmatpush.bf16.msra.mxu0 %v2378
        %2397 = vmatpush.bf16.msra.mxu0 %v2377
        %2398 = vmatpush.bf16.msra.mxu0 %v2376
        %2399 = vmatmul.bf16.gmra.mxu0 %v2389
        %v2400 = vpop.f32.mrf.mxu0
        %v2401 = vadd.f32 %v2351, %v2400
        %v2402 = vpop.f32.mrf.mxu0
        %2403 = vdwg.mxu0
        %v2404 = vmax.f32 %v2401, 0.0
        %v2405 = vpack.c.bf16 %v2404, %v2404
        %v2406 = vld [vmem:[%s21] sm:$0xf]
        %v2407 = vld [vmem:[%s21 + $0x4] sm:$0xf]
        %v2408 = vld [vmem:[%s21 + $0x8] sm:$0xf]
        %v2409 = vld [vmem:[%s23] sm:$0x1]
        %v2413 = vunpack.c.l.b16 %v2406
        %v2414 = vunpack.c.l.b16 %v2407
        %v2415 = vunpack.c.l.b16 %v2408
        %v2416 = vpack.c.b16 %v2414, %v2413
        %v2417 = vpack.c.b16 %v2415, %v2415
        %vm2419 = vcmask 195584
        %v2421 = vsel %vm2419, %v2405, 0
        %vm2423 = vcmask 1043456
        %v2425 = vsel %vm2423, %v2417, 0
        %2427 = vmatpush.bf16.msra.mxu0 0
        %2428 = vmatpush.bf16.msra.mxu0 0
        %2429 = vmatpush.bf16.msra.mxu0 0
        %2430 = vmatpush.bf16.msra.mxu0 0
        %2431 = vmatpush.bf16.msra.mxu0 0
        %2432 = vmatpush.bf16.msra.mxu0 0
        %2433 = vmatpush.bf16.msra.mxu0 %v2425
        %2434 = vmatpush.bf16.msra.mxu0 %v2416
        %2435 = vmatmul.bf16.gmra.mxu0 %v2421
        %v2436 = vpop.f32.mrf.mxu0
        %v2437 = vadd.f32 %v2409, %v2436
        %v2438 = vpop.f32.mrf.mxu0
        %2439 = vdwg.mxu0
        %v2440 = vxor.u32 %v2437, 2147483648
        %v2441 = vmul.f32 %v2440, 1.442695
        %v2442 = vpow.pop %v2441
        %v2443 = vadd.f32 %v2442, 1.0
        %v2444 = vrcp.pop %v2443
        %v2445 = vmul.f32 %v2443, %v2444
        %v2446 = vsub.f32 1.0, %v2445
        %v2447 = vmul.f32 %v2444, %v2446
        %v2448 = vadd.f32 %v2444, %v2447
        %vm2449 = vweird.f32 %v2443
        %vm2450 = vweird.f32 %v2444
        %vm2451 = vmor %vm2449, %vm2450
        %v2452 = vsel %vm2451, %v2444, %v2448
        %v2453 = vand.u32 2147483647, %v2443
        %vm2454 = vcmp.eq.f32.partialorder %v2453, 8.507059e+37
        %v2455 = vand.u32 %v2443, 2147483648
        %v2456 = vor.u32 1.1754944e-38, %v2455
        %v2457 = vsel %vm2454, %v2456, %v2452
        %v2458 = vmul.f32 1.0, %v2457
        %v2459 = vperm.slane %v2458, 0
        %v2460 = vmul.f32 %v2301, %v2459
        %v2461 = vmul.f32 %v2302, %v2459
        %v2462 = vmul.f32 %v2303, %v2459
        %v2463 = vmul.f32 %v2304, %v2459
        %v2464 = vmul.f32 %v2305, %v2459
        %v2465 = vmul.f32 %v2306, %v2459
        %v2466 = vmul.f32 %v2307, %v2459
        %v2467 = vmul.f32 %v2308, %v2459
        %v2468 = vpack.c.bf16 %v2461, %v2460
        %v2469 = vpack.c.bf16 %v2463, %v2462
        %v2470 = vpack.c.bf16 %v2465, %v2464
        %v2471 = vpack.c.bf16 %v2467, %v2466
        %v2472 = vld [vmem:[%s25] sm:$0xf]
        %v2473 = vld [vmem:[%s25 + $0x4] sm:$0xf]
        %v2474 = vld [vmem:[%s25 + $0x8] sm:$0xf]
        %v2475 = vld [vmem:[%s25 + $0xc] sm:$0xf]
        %v2476 = vld [vmem:[%s25 + $0x10] sm:$0xf]
        %v2477 = vld [vmem:[%s25 + $0x14] sm:$0xf]
        %v2478 = vld [vmem:[%s25 + $0x18] sm:$0xf]
        %v2479 = vld [vmem:[%s25 + $0x1c] sm:$0xf]
        %v2480 = vld [vmem:[%s25 + $0x20] sm:$0xf]
        %v2481 = vld [vmem:[%s25 + $0x24] sm:$0xf]
        %v2482 = vld [vmem:[%s25 + $0x28] sm:$0xf]
        %v2483 = vld [vmem:[%s25 + $0x2c] sm:$0xf]
        %v2484 = vld [vmem:[%s27] sm:$0x1]
        %v2486 = vperm.slane %v2484, 0
        %v2500 = vunpack.c.l.b16 %v2472
        %v2501 = vunpack.c.l.b16 %v2473
        %v2502 = vunpack.c.l.b16 %v2474
        %v2503 = vunpack.c.l.b16 %v2475
        %v2504 = vunpack.c.l.b16 %v2476
        %v2505 = vunpack.c.l.b16 %v2477
        %v2506 = vunpack.c.l.b16 %v2478
        %v2507 = vunpack.c.l.b16 %v2479
        %v2508 = vunpack.c.l.b16 %v2480
        %v2509 = vunpack.c.l.b16 %v2481
        %v2510 = vunpack.c.l.b16 %v2482
        %v2511 = vunpack.c.l.b16 %v2483
        %v2512 = vpack.c.b16 %v2501, %v2500
        %v2513 = vpack.c.b16 %v2503, %v2502
        %v2514 = vpack.c.b16 %v2505, %v2504
        %v2515 = vpack.c.b16 %v2507, %v2506
        %v2516 = vpack.c.b16 %v2509, %v2508
        %v2517 = vpack.c.b16 %v2511, %v2510
        %v2525 = vsel %vm2020, %v2468, 0
        %v2528 = vsel %vm2020, %v2469, 0
        %v2531 = vsel %vm2020, %v2470, 0
        %v2534 = vsel %vm2020, %v2471, 0
        %2536 = vmatpush.bf16.msra.mxu0 0
        %2537 = vmatpush.bf16.msra.mxu0 0
        %2538 = vmatpush.bf16.msra.mxu0 %v2517
        %2539 = vmatpush.bf16.msra.mxu0 %v2516
        %2540 = vmatpush.bf16.msra.mxu0 %v2515
        %2541 = vmatpush.bf16.msra.mxu0 %v2514
        %2542 = vmatpush.bf16.msra.mxu0 %v2513
        %2543 = vmatpush.bf16.msra.mxu0 %v2512
        %2544 = vmatmul.bf16.gmra.mxu0 %v2525
        %v2545 = vpop.f32.mrf.mxu0
        %v2546 = vadd.f32 %v2486, %v2545
        %v2547 = vpop.f32.mrf.mxu0
        %v2548 = vadd.f32 %v2486, %v2547
        %2549 = vmatmul.bf16.gmra.mxu0 %v2528
        %v2550 = vpop.f32.mrf.mxu0
        %v2551 = vadd.f32 %v2486, %v2550
        %v2552 = vpop.f32.mrf.mxu0
        %v2553 = vadd.f32 %v2486, %v2552
        %2554 = vmatmul.bf16.gmra.mxu0 %v2531
        %v2555 = vpop.f32.mrf.mxu0
        %v2556 = vadd.f32 %v2486, %v2555
        %v2557 = vpop.f32.mrf.mxu0
        %v2558 = vadd.f32 %v2486, %v2557
        %2559 = vmatmul.bf16.gmra.mxu0 %v2534
        %v2560 = vpop.f32.mrf.mxu0
        %v2561 = vadd.f32 %v2486, %v2560
        %v2562 = vpop.f32.mrf.mxu0
        %v2563 = vadd.f32 %v2486, %v2562
        %2564 = vdwg.mxu0
        %v2565 = vpack.c.bf16 %v2548, %v2546
        %v2566 = vpack.c.bf16 %v2553, %v2551
        %v2567 = vpack.c.bf16 %v2558, %v2556
        %v2568 = vpack.c.bf16 %v2563, %v2561
        %v2569 = vld [vmem:[%s29] sm:$0xff]
        %v2570 = vld [vmem:[%s29 + $0x8] sm:$0xff]
        %v2571 = vld [vmem:[%s29 + $0x10] sm:$0xff]
        %v2572 = vld [vmem:[%s29 + $0x18] sm:$0xff]
        %v2573 = vld [vmem:[%s31] sm:$0x3]
        %v2575 = vperm.slane %v2573, 0
        %v2576 = vperm.slane %v2573, 1
        %v2583 = vunpack.c.l.b16 %v2569
        %v2584 = vunpack.c.h.b16 %v2569
        %v2585 = vunpack.c.l.b16 %v2570
        %v2586 = vunpack.c.h.b16 %v2570
        %v2587 = vunpack.c.l.b16 %v2571
        %v2588 = vunpack.c.h.b16 %v2571
        %v2589 = vunpack.c.l.b16 %v2572
        %v2590 = vunpack.c.h.b16 %v2572
        %v2591 = vpack.c.b16 %v2585, %v2583
        %v2592 = vpack.c.b16 %v2586, %v2584
        %v2593 = vpack.c.b16 %v2589, %v2587
        %v2594 = vpack.c.b16 %v2590, %v2588
        %vm2599 = vcmask 261120
        %v2601 = vsel %vm2599, %v2565, 0
        %v2604 = vsel %vm2599, %v2566, 0
        %v2607 = vsel %vm2599, %v2567, 0
        %v2610 = vsel %vm2599, %v2568, 0
        %2612 = vmatpush.bf16.msra.mxu0 0
        %2613 = vmatpush.bf16.msra.mxu0 0
        %2614 = vmatpush.bf16.msra.mxu0 0
        %2615 = vmatpush.bf16.msra.mxu0 0
        %2616 = vmatpush.bf16.msra.mxu0 0
        %2617 = vmatpush.bf16.msra.mxu0 0
        %2618 = vmatpush.bf16.msra.mxu0 %v2593
        %2619 = vmatpush.bf16.msra.mxu0 %v2591
        %2620 = vmatmul.bf16.gmra.mxu0 %v2601
        %v2621 = vpop.f32.mrf.mxu0
        %v2622 = vadd.f32 %v2575, %v2621
        %v2623 = vpop.f32.mrf.mxu0
        %v2624 = vadd.f32 %v2575, %v2623
        %2625 = vmatmul.bf16.gmra.mxu0 %v2604
        %v2626 = vpop.f32.mrf.mxu0
        %v2627 = vadd.f32 %v2575, %v2626
        %v2628 = vpop.f32.mrf.mxu0
        %v2629 = vadd.f32 %v2575, %v2628
        %2630 = vmatmul.bf16.gmra.mxu0 %v2607
        %v2631 = vpop.f32.mrf.mxu0
        %v2632 = vadd.f32 %v2575, %v2631
        %v2633 = vpop.f32.mrf.mxu0
        %v2634 = vadd.f32 %v2575, %v2633
        %2635 = vmatmul.bf16.gmra.mxu0 %v2610
        %v2636 = vpop.f32.mrf.mxu0
        %v2637 = vadd.f32 %v2575, %v2636
        %v2638 = vpop.f32.mrf.mxu0
        %v2639 = vadd.f32 %v2575, %v2638
        %2640 = vdwg.mxu0
        %2641 = vmatpush.bf16.msra.mxu0 0
        %2642 = vmatpush.bf16.msra.mxu0 0
        %2643 = vmatpush.bf16.msra.mxu0 0
        %2644 = vmatpush.bf16.msra.mxu0 0
        %2645 = vmatpush.bf16.msra.mxu0 0
        %2646 = vmatpush.bf16.msra.mxu0 0
        %2647 = vmatpush.bf16.msra.mxu0 %v2594
        %2648 = vmatpush.bf16.msra.mxu0 %v2592
        %2649 = vmatmul.bf16.gmra.mxu0 %v2601
        %v2650 = vpop.f32.mrf.mxu0
        %v2651 = vadd.f32 %v2576, %v2650
        %v2652 = vpop.f32.mrf.mxu0
        %v2653 = vadd.f32 %v2576, %v2652
        %2654 = vmatmul.bf16.gmra.mxu0 %v2604
        %v2655 = vpop.f32.mrf.mxu0
        %v2656 = vadd.f32 %v2576, %v2655
        %v2657 = vpop.f32.mrf.mxu0
        %v2658 = vadd.f32 %v2576, %v2657
        %2659 = vmatmul.bf16.gmra.mxu0 %v2607
        %v2660 = vpop.f32.mrf.mxu0
        %v2661 = vadd.f32 %v2576, %v2660
        %v2662 = vpop.f32.mrf.mxu0
        %v2663 = vadd.f32 %v2576, %v2662
        %2664 = vmatmul.bf16.gmra.mxu0 %v2610
        %v2665 = vpop.f32.mrf.mxu0
        %v2666 = vadd.f32 %v2576, %v2665
        %v2667 = vpop.f32.mrf.mxu0
        %v2668 = vadd.f32 %v2576, %v2667
        %2669 = vdwg.mxu0
        %v2670 = vmax.f32 %v2622, 0.0
        %v2671 = vmax.f32 %v2651, 0.0
        %v2672 = vmax.f32 %v2624, 0.0
        %v2673 = vmax.f32 %v2653, 0.0
        %v2674 = vmax.f32 %v2627, 0.0
        %v2675 = vmax.f32 %v2656, 0.0
        %v2676 = vmax.f32 %v2629, 0.0
        %v2677 = vmax.f32 %v2658, 0.0
        %v2678 = vmax.f32 %v2632, 0.0
        %v2679 = vmax.f32 %v2661, 0.0
        %v2680 = vmax.f32 %v2634, 0.0
        %v2681 = vmax.f32 %v2663, 0.0
        %v2682 = vmax.f32 %v2637, 0.0
        %v2683 = vmax.f32 %v2666, 0.0
        %v2684 = vmax.f32 %v2639, 0.0
        %v2685 = vmax.f32 %v2668, 0.0
        %v2686 = vmin.f32 %v2670, 6.0
        %v2687 = vmin.f32 %v2671, 6.0
        %v2688 = vmin.f32 %v2672, 6.0
        %v2689 = vmin.f32 %v2673, 6.0
        %v2690 = vmin.f32 %v2674, 6.0
        %v2691 = vmin.f32 %v2675, 6.0
        %v2692 = vmin.f32 %v2676, 6.0
        %v2693 = vmin.f32 %v2677, 6.0
        %v2694 = vmin.f32 %v2678, 6.0
        %v2695 = vmin.f32 %v2679, 6.0
        %v2696 = vmin.f32 %v2680, 6.0
        %v2697 = vmin.f32 %v2681, 6.0
        %v2698 = vmin.f32 %v2682, 6.0
        %v2699 = vmin.f32 %v2683, 6.0
        %v2700 = vmin.f32 %v2684, 6.0
        %v2701 = vmin.f32 %v2685, 6.0
        %2702 = vst [vmem:[#allocation4] sm:$0x80] 0.0
        %vm2703 = vcmask 523271
        %2704 = vst.msk [vmem:[#allocation4 + $0x8] sm:$0x80] %vm2703, 0.0
        %2705 = vst [vmem:[#allocation4 + $0x10] sm:$0xff] 0.0
        %vm2706 = vcmask 523264
        %2707 = vst.msk [vmem:[#allocation4 + $0x18] sm:$0xff] %vm2706, 0.0
        %2708 = vst [vmem:[#allocation4 + $0x20] sm:$0x1] 0.0
        %vm2709 = vcmask 516096
        %2710 = vst.msk [vmem:[#allocation4 + $0x28] sm:$0x1] %vm2709, 0.0
        %s2711 = scalar_lea.vmem [#allocation4], 432
        %2712 = vst [vmem:[%s2711] sm:$0x80] 0.0
        %2713 = vst.msk [vmem:[%s2711 + $0x8] sm:$0x80] %vm2703, 0.0
        %2714 = vst [vmem:[%s2711 + $0x10] sm:$0xff] 0.0
        %2715 = vst.msk [vmem:[%s2711 + $0x18] sm:$0xff] %vm2706, 0.0
        %2716 = vst [vmem:[%s2711 + $0x20] sm:$0x1] 0.0
        %2717 = vst.msk [vmem:[%s2711 + $0x28] sm:$0x1] %vm2709, 0.0
        %s2718 = scalar_lea.vmem [#allocation4], 48
        %v2719 = vlaneseq
        %vm2720 = vcmp.ge.s32.totalorder %v2719, 0
        %vm2721 = vcmp.lt.s32.totalorder %v2719, 192
        %vm2722 = vmand %vm2720, %vm2721
        %s2723 = scalar_lea.vmem %s2718, 7 [#allocation4]
        %2724 = vst.msk [vmem:[%s2723] ss:$8 sm:$0x3] %vm2722, 0.0
        %2725 = vst.msk [vmem:[%s2723] ss:$8 sm:$0x0] %vm2722, 0.0
        %s2726 = scalar_lea.vmem %s2718, 55 [#allocation4]
        %2727 = vst.msk [vmem:[%s2726] ss:$8 sm:$0x3] %vm2722, 0.0
        %2728 = vst.msk [vmem:[%s2726] ss:$8 sm:$0x0] %vm2722, 0.0
        %s2729 = scalar_lea.vmem %s2718, 103 [#allocation4]
        %2730 = vst.msk [vmem:[%s2729] ss:$8 sm:$0x3] %vm2722, 0.0
        %2731 = vst.msk [vmem:[%s2729] ss:$8 sm:$0x0] %vm2722, 0.0
        %s2732 = scalar_lea.vmem %s2718, 151 [#allocation4]
        %2733 = vst.msk [vmem:[%s2732] ss:$8 sm:$0x3] %vm2722, 0.0
        %2734 = vst.msk [vmem:[%s2732] ss:$8 sm:$0x0] %vm2722, 0.0
        %s2735 = scalar_lea.vmem %s2718, 199 [#allocation4]
        %2736 = vst.msk [vmem:[%s2735] ss:$8 sm:$0x3] %vm2722, 0.0
        %2737 = vst.msk [vmem:[%s2735] ss:$8 sm:$0x0] %vm2722, 0.0
        %s2738 = scalar_lea.vmem %s2718, 247 [#allocation4]
        %2739 = vst.msk [vmem:[%s2738] ss:$8 sm:$0x3] %vm2722, 0.0
        %2740 = vst.msk [vmem:[%s2738] ss:$8 sm:$0x0] %vm2722, 0.0
        %s2741 = scalar_lea.vmem %s2718, 295 [#allocation4]
        %2742 = vst.msk [vmem:[%s2741] ss:$8 sm:$0x3] %vm2722, 0.0
        %2743 = vst.msk [vmem:[%s2741] ss:$8 sm:$0x0] %vm2722, 0.0
        %s2744 = scalar_lea.vmem %s2718, 343 [#allocation4]
        %2745 = vst.msk [vmem:[%s2744] ss:$8 sm:$0x3] %vm2722, 0.0
        %2746 = vst.msk [vmem:[%s2744] ss:$8 sm:$0x0] %vm2722, 0.0
        %s2747 = scalar_lea.vmem %s2718, 32 [#allocation4]
        %2748 = vst.msk [vmem:[%s2747] ss:$8 sm:$0x3] %vm2722, 0.0
        %2749 = vst.msk [vmem:[%s2747] ss:$8 sm:$0x0] %vm2722, 0.0
        %s2750 = scalar_lea.vmem %s2718, 80 [#allocation4]
        %2751 = vst.msk [vmem:[%s2750] ss:$8 sm:$0x3] %vm2722, 0.0
        %2752 = vst.msk [vmem:[%s2750] ss:$8 sm:$0x0] %vm2722, 0.0
        %s2753 = scalar_lea.vmem %s2718, 128 [#allocation4]
        %2754 = vst.msk [vmem:[%s2753] ss:$8 sm:$0x3] %vm2722, 0.0
        %2755 = vst.msk [vmem:[%s2753] ss:$8 sm:$0x0] %vm2722, 0.0
        %s2756 = scalar_lea.vmem %s2718, 176 [#allocation4]
        %2757 = vst.msk [vmem:[%s2756] ss:$8 sm:$0x3] %vm2722, 0.0
        %2758 = vst.msk [vmem:[%s2756] ss:$8 sm:$0x0] %vm2722, 0.0
        %s2759 = scalar_lea.vmem %s2718, 224 [#allocation4]
        %2760 = vst.msk [vmem:[%s2759] ss:$8 sm:$0x3] %vm2722, 0.0
        %2761 = vst.msk [vmem:[%s2759] ss:$8 sm:$0x0] %vm2722, 0.0
        %s2762 = scalar_lea.vmem %s2718, 272 [#allocation4]
        %2763 = vst.msk [vmem:[%s2762] ss:$8 sm:$0x3] %vm2722, 0.0
        %2764 = vst.msk [vmem:[%s2762] ss:$8 sm:$0x0] %vm2722, 0.0
        %s2765 = scalar_lea.vmem %s2718, 320 [#allocation4]
        %2766 = vst.msk [vmem:[%s2765] ss:$8 sm:$0x3] %vm2722, 0.0
        %2767 = vst.msk [vmem:[%s2765] ss:$8 sm:$0x0] %vm2722, 0.0
        %s2768 = scalar_lea.vmem %s2718, 368 [#allocation4]
        %2769 = vst.msk [vmem:[%s2768] ss:$8 sm:$0x3] %vm2722, 0.0
        %2770 = vst.msk [vmem:[%s2768] ss:$8 sm:$0x0] %vm2722, 0.0
        %2771 = vst [vmem:[%s2718 + $0x10] sm:$0xff] %v2686
        %2772 = vst.msk [vmem:[%s2718 + $0x18] sm:$0xff] %vm2706, %v2687
        %2773 = vst [vmem:[%s2718 + $0x40] sm:$0xff] %v2688
        %2774 = vst.msk [vmem:[%s2718 + $0x48] sm:$0xff] %vm2706, %v2689
        %2775 = vst [vmem:[%s2718 + $0x70] sm:$0xff] %v2690
        %2776 = vst.msk [vmem:[%s2718 + $0x78] sm:$0xff] %vm2706, %v2691
        %2777 = vst [vmem:[%s2718 + $0xa0] sm:$0xff] %v2692
        %2778 = vst.msk [vmem:[%s2718 + $0xa8] sm:$0xff] %vm2706, %v2693
        %2779 = vst [vmem:[%s2718 + $0xd0] sm:$0xff] %v2694
        %2780 = vst.msk [vmem:[%s2718 + $0xd8] sm:$0xff] %vm2706, %v2695
        %2781 = vst [vmem:[%s2718 + $0x100] sm:$0xff] %v2696
        %2782 = vst.msk [vmem:[%s2718 + $0x108] sm:$0xff] %vm2706, %v2697
        %2783 = vst [vmem:[%s2718 + $0x130] sm:$0xff] %v2698
        %2784 = vst.msk [vmem:[%s2718 + $0x138] sm:$0xff] %vm2706, %v2699
        %2785 = vst [vmem:[%s2718 + $0x160] sm:$0xff] %v2700
        %2786 = vst.msk [vmem:[%s2718 + $0x168] sm:$0xff] %vm2706, %v2701
        %v2787 = vld [vmem:[%s33] sm:$0xff]
        %v2788 = vld [vmem:[%s33 + $0x8] sm:$0xff]
        %v2789 = vld [vmem:[%s33 + $0x10] sm:$0x1]
        %v2790 = vld [vmem:[%s33 + $0x18] sm:$0x1]
        %v2791 = vld [vmem:[#allocation4] sm:$0x80]
        %v2792 = vld [vmem:[#allocation4 + $0x8] sm:$0x80]
        %v2793 = vld [vmem:[#allocation4 + $0x10] sm:$0x7f]
        %v2794 = vld [vmem:[#allocation4 + $0x18] sm:$0x7f]
        %v2795 = vld [vmem:[#allocation4 + $0x30] sm:$0x80]
        %v2796 = vld [vmem:[#allocation4 + $0x38] sm:$0x80]
        %v2797 = vld [vmem:[#allocation4 + $0x40] sm:$0x7f]
        %v2798 = vld [vmem:[#allocation4 + $0x48] sm:$0x7f]
        %v2799 = vld [vmem:[#allocation4 + $0x60] sm:$0x80]
        %v2800 = vld [vmem:[#allocation4 + $0x68] sm:$0x80]
        %v2801 = vld [vmem:[#allocation4 + $0x70] sm:$0x7f]
        %v2802 = vld [vmem:[#allocation4 + $0x78] sm:$0x7f]
        %v2803 = vld [vmem:[#allocation4 + $0x90] sm:$0x80]
        %v2804 = vld [vmem:[#allocation4 + $0x98] sm:$0x80]
        %v2805 = vld [vmem:[#allocation4 + $0xa0] sm:$0x7f]
        %v2806 = vld [vmem:[#allocation4 + $0xa8] sm:$0x7f]
        %v2807 = vld [vmem:[#allocation4 + $0xc0] sm:$0x80]
        %v2808 = vld [vmem:[#allocation4 + $0xc8] sm:$0x80]
        %v2809 = vld [vmem:[#allocation4 + $0xd0] sm:$0x7f]
        %v2810 = vld [vmem:[#allocation4 + $0xd8] sm:$0x7f]
        %v2811 = vld [vmem:[#allocation4 + $0xf0] sm:$0x80]
        %v2812 = vld [vmem:[#allocation4 + $0xf8] sm:$0x80]
        %v2813 = vld [vmem:[#allocation4 + $0x100] sm:$0x7f]
        %v2814 = vld [vmem:[#allocation4 + $0x108] sm:$0x7f]
        %v2815 = vld [vmem:[#allocation4 + $0x120] sm:$0x80]
        %v2816 = vld [vmem:[#allocation4 + $0x128] sm:$0x80]
        %v2817 = vld [vmem:[#allocation4 + $0x130] sm:$0x7f]
        %v2818 = vld [vmem:[#allocation4 + $0x138] sm:$0x7f]
        %v2819 = vld [vmem:[#allocation4 + $0x150] sm:$0x80]
        %v2820 = vld [vmem:[#allocation4 + $0x158] sm:$0x80]
        %v2821 = vld [vmem:[#allocation4 + $0x160] sm:$0x7f]
        %v2822 = vld [vmem:[#allocation4 + $0x168] sm:$0x7f]
        %v2823 = vperm.slane %v2787, 0
        %v2824 = vperm.slane %v2788, 0
        %v2825 = vmul.f32 %v2791, %v2823
        %v2826 = vmul.f32 %v2792, %v2824
        %v2827 = vmul.f32 %v2793, %v2823
        %v2828 = vmul.f32 %v2794, %v2824
        %v2829 = vmul.f32 %v2795, %v2823
        %v2830 = vmul.f32 %v2796, %v2824
        %v2831 = vmul.f32 %v2797, %v2823
        %v2832 = vmul.f32 %v2798, %v2824
        %v2833 = vmul.f32 %v2799, %v2823
        %v2834 = vmul.f32 %v2800, %v2824
        %v2835 = vmul.f32 %v2801, %v2823
        %v2836 = vmul.f32 %v2802, %v2824
        %v2837 = vmul.f32 %v2803, %v2823
        %v2838 = vmul.f32 %v2804, %v2824
        %v2839 = vmul.f32 %v2805, %v2823
        %v2840 = vmul.f32 %v2806, %v2824
        %v2841 = vmul.f32 %v2807, %v2823
        %v2842 = vmul.f32 %v2808, %v2824
        %v2843 = vmul.f32 %v2809, %v2823
        %v2844 = vmul.f32 %v2810, %v2824
        %v2845 = vmul.f32 %v2811, %v2823
        %v2846 = vmul.f32 %v2812, %v2824
        %v2847 = vmul.f32 %v2813, %v2823
        %v2848 = vmul.f32 %v2814, %v2824
        %v2849 = vmul.f32 %v2815, %v2823
        %v2850 = vmul.f32 %v2816, %v2824
        %v2851 = vmul.f32 %v2817, %v2823
        %v2852 = vmul.f32 %v2818, %v2824
        %v2853 = vmul.f32 %v2819, %v2823
        %v2854 = vmul.f32 %v2820, %v2824
        %v2855 = vmul.f32 %v2821, %v2823
        %v2856 = vmul.f32 %v2822, %v2824
        %v2857 = vadd.f32 %v2825, 0.0
        %v2858 = vadd.f32 %v2826, 0.0
        %v2859 = vadd.f32 %v2827, 0.0
        %v2860 = vadd.f32 %v2828, 0.0
        %v2861 = vadd.f32 %v2829, 0.0
        %v2862 = vadd.f32 %v2830, 0.0
        %v2863 = vadd.f32 %v2831, 0.0
        %v2864 = vadd.f32 %v2832, 0.0
        %v2865 = vadd.f32 %v2833, 0.0
        %v2866 = vadd.f32 %v2834, 0.0
        %v2867 = vadd.f32 %v2835, 0.0
        %v2868 = vadd.f32 %v2836, 0.0
        %v2869 = vadd.f32 %v2837, 0.0
        %v2870 = vadd.f32 %v2838, 0.0
        %v2871 = vadd.f32 %v2839, 0.0
        %v2872 = vadd.f32 %v2840, 0.0
        %v2873 = vadd.f32 %v2841, 0.0
        %v2874 = vadd.f32 %v2842, 0.0
        %v2875 = vadd.f32 %v2843, 0.0
        %v2876 = vadd.f32 %v2844, 0.0
        %v2877 = vadd.f32 %v2845, 0.0
        %v2878 = vadd.f32 %v2846, 0.0
        %v2879 = vadd.f32 %v2847, 0.0
        %v2880 = vadd.f32 %v2848, 0.0
        %v2881 = vadd.f32 %v2849, 0.0
        %v2882 = vadd.f32 %v2850, 0.0
        %v2883 = vadd.f32 %v2851, 0.0
        %v2884 = vadd.f32 %v2852, 0.0
        %v2885 = vadd.f32 %v2853, 0.0
        %v2886 = vadd.f32 %v2854, 0.0
        %v2887 = vadd.f32 %v2855, 0.0
        %v2888 = vadd.f32 %v2856, 0.0
        %v2889 = vld [vmem:[#allocation4 + $0x10] sm:$0xff]
        %v2890 = vld [vmem:[#allocation4 + $0x18] sm:$0xff]
        %v2891 = vld [vmem:[#allocation4 + $0x40] sm:$0xff]
        %v2892 = vld [vmem:[#allocation4 + $0x48] sm:$0xff]
        %v2893 = vld [vmem:[#allocation4 + $0x70] sm:$0xff]
        %v2894 = vld [vmem:[#allocation4 + $0x78] sm:$0xff]
        %v2895 = vld [vmem:[#allocation4 + $0xa0] sm:$0xff]
        %v2896 = vld [vmem:[#allocation4 + $0xa8] sm:$0xff]
        %v2897 = vld [vmem:[#allocation4 + $0xd0] sm:$0xff]
        %v2898 = vld [vmem:[#allocation4 + $0xd8] sm:$0xff]
        %v2899 = vld [vmem:[#allocation4 + $0x100] sm:$0xff]
        %v2900 = vld [vmem:[#allocation4 + $0x108] sm:$0xff]
        %v2901 = vld [vmem:[#allocation4 + $0x130] sm:$0xff]
        %v2902 = vld [vmem:[#allocation4 + $0x138] sm:$0xff]
        %v2903 = vld [vmem:[#allocation4 + $0x160] sm:$0xff]
        %v2904 = vld [vmem:[#allocation4 + $0x168] sm:$0xff]
        %v2905 = vperm.slane %v2787, 1
        %v2906 = vperm.slane %v2788, 1
        %v2907 = vmul.f32 %v2889, %v2905
        %v2908 = vmul.f32 %v2890, %v2906
        %v2909 = vmul.f32 %v2891, %v2905
        %v2910 = vmul.f32 %v2892, %v2906
        %v2911 = vmul.f32 %v2893, %v2905
        %v2912 = vmul.f32 %v2894, %v2906
        %v2913 = vmul.f32 %v2895, %v2905
        %v2914 = vmul.f32 %v2896, %v2906
        %v2915 = vmul.f32 %v2897, %v2905
        %v2916 = vmul.f32 %v2898, %v2906
        %v2917 = vmul.f32 %v2899, %v2905
        %v2918 = vmul.f32 %v2900, %v2906
        %v2919 = vmul.f32 %v2901, %v2905
        %v2920 = vmul.f32 %v2902, %v2906
        %v2921 = vmul.f32 %v2903, %v2905
        %v2922 = vmul.f32 %v2904, %v2906
        %v2939 = vrot.slane %v2907, 1
        %v2940 = vrot.slane %v2908, 1
        %v2941 = vrot.slane %v2909, 1
        %v2942 = vrot.slane %v2910, 1
        %v2943 = vrot.slane %v2911, 1
        %v2944 = vrot.slane %v2912, 1
        %v2945 = vrot.slane %v2913, 1
        %v2946 = vrot.slane %v2914, 1
        %v2947 = vrot.slane %v2915, 1
        %v2948 = vrot.slane %v2916, 1
        %v2949 = vrot.slane %v2917, 1
        %v2950 = vrot.slane %v2918, 1
        %v2951 = vrot.slane %v2919, 1
        %v2952 = vrot.slane %v2920, 1
        %v2953 = vrot.slane %v2921, 1
        %v2954 = vrot.slane %v2922, 1
        %v2971 = vadd.f32 %v2857, %v2939
        %v2972 = vadd.f32 %v2858, %v2940
        %v2973 = vadd.f32 %v2859, %v2939
        %v2974 = vadd.f32 %v2860, %v2940
        %v2975 = vadd.f32 %v2861, %v2941
        %v2976 = vadd.f32 %v2862, %v2942
        %v2977 = vadd.f32 %v2863, %v2941
        %v2978 = vadd.f32 %v2864, %v2942
        %v2979 = vadd.f32 %v2865, %v2943
        %v2980 = vadd.f32 %v2866, %v2944
        %v2981 = vadd.f32 %v2867, %v2943
        %v2982 = vadd.f32 %v2868, %v2944
        %v2983 = vadd.f32 %v2869, %v2945
        %v2984 = vadd.f32 %v2870, %v2946
        %v2985 = vadd.f32 %v2871, %v2945
        %v2986 = vadd.f32 %v2872, %v2946
        %v2987 = vadd.f32 %v2873, %v2947
        %v2988 = vadd.f32 %v2874, %v2948
        %v2989 = vadd.f32 %v2875, %v2947
        %v2990 = vadd.f32 %v2876, %v2948
        %v2991 = vadd.f32 %v2877, %v2949
        %v2992 = vadd.f32 %v2878, %v2950
        %v2993 = vadd.f32 %v2879, %v2949
        %v2994 = vadd.f32 %v2880, %v2950
        %v2995 = vadd.f32 %v2881, %v2951
        %v2996 = vadd.f32 %v2882, %v2952
        %v2997 = vadd.f32 %v2883, %v2951
        %v2998 = vadd.f32 %v2884, %v2952
        %v2999 = vadd.f32 %v2885, %v2953
        %v3000 = vadd.f32 %v2886, %v2954
        %v3001 = vadd.f32 %v2887, %v2953
        %v3002 = vadd.f32 %v2888, %v2954
        %v3003 = vld [vmem:[#allocation4 + $0x10] sm:$0xfe]
        %v3004 = vld [vmem:[#allocation4 + $0x18] sm:$0xfe]
        %v3005 = vld [vmem:[#allocation4 + $0x20] sm:$0x1]
        %v3006 = vld [vmem:[#allocation4 + $0x28] sm:$0x1]
        %v3007 = vld [vmem:[#allocation4 + $0x40] sm:$0xfe]
        %v3008 = vld [vmem:[#allocation4 + $0x48] sm:$0xfe]
        %v3009 = vld [vmem:[#allocation4 + $0x50] sm:$0x1]
        %v3010 = vld [vmem:[#allocation4 + $0x58] sm:$0x1]
        %v3011 = vld [vmem:[#allocation4 + $0x70] sm:$0xfe]
        %v3012 = vld [vmem:[#allocation4 + $0x78] sm:$0xfe]
        %v3013 = vld [vmem:[#allocation4 + $0x80] sm:$0x1]
        %v3014 = vld [vmem:[#allocation4 + $0x88] sm:$0x1]
        %v3015 = vld [vmem:[#allocation4 + $0xa0] sm:$0xfe]
        %v3016 = vld [vmem:[#allocation4 + $0xa8] sm:$0xfe]
        %v3017 = vld [vmem:[#allocation4 + $0xb0] sm:$0x1]
        %v3018 = vld [vmem:[#allocation4 + $0xb8] sm:$0x1]
        %v3019 = vld [vmem:[#allocation4 + $0xd0] sm:$0xfe]
        %v3020 = vld [vmem:[#allocation4 + $0xd8] sm:$0xfe]
        %v3021 = vld [vmem:[#allocation4 + $0xe0] sm:$0x1]
        %v3022 = vld [vmem:[#allocation4 + $0xe8] sm:$0x1]
        %v3023 = vld [vmem:[#allocation4 + $0x100] sm:$0xfe]
        %v3024 = vld [vmem:[#allocation4 + $0x108] sm:$0xfe]
        %v3025 = vld [vmem:[#allocation4 + $0x110] sm:$0x1]
        %v3026 = vld [vmem:[#allocation4 + $0x118] sm:$0x1]
        %v3027 = vld [vmem:[#allocation4 + $0x130] sm:$0xfe]
        %v3028 = vld [vmem:[#allocation4 + $0x138] sm:$0xfe]
        %v3029 = vld [vmem:[#allocation4 + $0x140] sm:$0x1]
        %v3030 = vld [vmem:[#allocation4 + $0x148] sm:$0x1]
        %v3031 = vld [vmem:[#allocation4 + $0x160] sm:$0xfe]
        %v3032 = vld [vmem:[#allocation4 + $0x168] sm:$0xfe]
        %v3033 = vld [vmem:[#allocation4 + $0x170] sm:$0x1]
        %v3034 = vld [vmem:[#allocation4 + $0x178] sm:$0x1]
        %v3035 = vperm.slane %v2787, 2
        %v3036 = vperm.slane %v2788, 2
        %v3037 = vmul.f32 %v3003, %v3035
        %v3038 = vmul.f32 %v3004, %v3036
        %v3039 = vmul.f32 %v3005, %v3035
        %v3040 = vmul.f32 %v3006, %v3036
        %v3041 = vmul.f32 %v3007, %v3035
        %v3042 = vmul.f32 %v3008, %v3036
        %v3043 = vmul.f32 %v3009, %v3035
        %v3044 = vmul.f32 %v3010, %v3036
        %v3045 = vmul.f32 %v3011, %v3035
        %v3046 = vmul.f32 %v3012, %v3036
        %v3047 = vmul.f32 %v3013, %v3035
        %v3048 = vmul.f32 %v3014, %v3036
        %v3049 = vmul.f32 %v3015, %v3035
        %v3050 = vmul.f32 %v3016, %v3036
        %v3051 = vmul.f32 %v3017, %v3035
        %v3052 = vmul.f32 %v3018, %v3036
        %v3053 = vmul.f32 %v3019, %v3035
        %v3054 = vmul.f32 %v3020, %v3036
        %v3055 = vmul.f32 %v3021, %v3035
        %v3056 = vmul.f32 %v3022, %v3036
        %v3057 = vmul.f32 %v3023, %v3035
        %v3058 = vmul.f32 %v3024, %v3036
        %v3059 = vmul.f32 %v3025, %v3035
        %v3060 = vmul.f32 %v3026, %v3036
        %v3061 = vmul.f32 %v3027, %v3035
        %v3062 = vmul.f32 %v3028, %v3036
        %v3063 = vmul.f32 %v3029, %v3035
        %v3064 = vmul.f32 %v3030, %v3036
        %v3065 = vmul.f32 %v3031, %v3035
        %v3066 = vmul.f32 %v3032, %v3036
        %v3067 = vmul.f32 %v3033, %v3035
        %v3068 = vmul.f32 %v3034, %v3036
        %vm3101 = vcmask 1045504
        %v3102 = vrot.slane %v3037, 2
        %v3103 = vrot.slane %v3038, 2
        %v3104 = vrot.slane %v3039, 2
        %v3105 = vsel %vm3101, %v3102, %v3104
        %v3106 = vrot.slane %v3040, 2
        %v3107 = vsel %vm3101, %v3103, %v3106
        %v3108 = vrot.slane %v3041, 2
        %v3109 = vrot.slane %v3042, 2
        %v3110 = vrot.slane %v3043, 2
        %v3111 = vsel %vm3101, %v3108, %v3110
        %v3112 = vrot.slane %v3044, 2
        %v3113 = vsel %vm3101, %v3109, %v3112
        %v3114 = vrot.slane %v3045, 2
        %v3115 = vrot.slane %v3046, 2
        %v3116 = vrot.slane %v3047, 2
        %v3117 = vsel %vm3101, %v3114, %v3116
        %v3118 = vrot.slane %v3048, 2
        %v3119 = vsel %vm3101, %v3115, %v3118
        %v3120 = vrot.slane %v3049, 2
        %v3121 = vrot.slane %v3050, 2
        %v3122 = vrot.slane %v3051, 2
        %v3123 = vsel %vm3101, %v3120, %v3122
        %v3124 = vrot.slane %v3052, 2
        %v3125 = vsel %vm3101, %v3121, %v3124
        %v3126 = vrot.slane %v3053, 2
        %v3127 = vrot.slane %v3054, 2
        %v3128 = vrot.slane %v3055, 2
        %v3129 = vsel %vm3101, %v3126, %v3128
        %v3130 = vrot.slane %v3056, 2
        %v3131 = vsel %vm3101, %v3127, %v3130
        %v3132 = vrot.slane %v3057, 2
        %v3133 = vrot.slane %v3058, 2
        %v3134 = vrot.slane %v3059, 2
        %v3135 = vsel %vm3101, %v3132, %v3134
        %v3136 = vrot.slane %v3060, 2
        %v3137 = vsel %vm3101, %v3133, %v3136
        %v3138 = vrot.slane %v3061, 2
        %v3139 = vrot.slane %v3062, 2
        %v3140 = vrot.slane %v3063, 2
        %v3141 = vsel %vm3101, %v3138, %v3140
        %v3142 = vrot.slane %v3064, 2
        %v3143 = vsel %vm3101, %v3139, %v3142
        %v3144 = vrot.slane %v3065, 2
        %v3145 = vrot.slane %v3066, 2
        %v3146 = vrot.slane %v3067, 2
        %v3147 = vsel %vm3101, %v3144, %v3146
        %v3148 = vrot.slane %v3068, 2
        %v3149 = vsel %vm3101, %v3145, %v3148
        %v3182 = vadd.f32 %v2971, %v3102
        %v3183 = vadd.f32 %v2972, %v3103
        %v3184 = vadd.f32 %v2973, %v3105
        %v3185 = vadd.f32 %v2974, %v3107
        %v3186 = vadd.f32 %v2975, %v3108
        %v3187 = vadd.f32 %v2976, %v3109
        %v3188 = vadd.f32 %v2977, %v3111
        %v3189 = vadd.f32 %v2978, %v3113
        %v3190 = vadd.f32 %v2979, %v3114
        %v3191 = vadd.f32 %v2980, %v3115
        %v3192 = vadd.f32 %v2981, %v3117
        %v3193 = vadd.f32 %v2982, %v3119
        %v3194 = vadd.f32 %v2983, %v3120
        %v3195 = vadd.f32 %v2984, %v3121
        %v3196 = vadd.f32 %v2985, %v3123
        %v3197 = vadd.f32 %v2986, %v3125
        %v3198 = vadd.f32 %v2987, %v3126
        %v3199 = vadd.f32 %v2988, %v3127
        %v3200 = vadd.f32 %v2989, %v3129
        %v3201 = vadd.f32 %v2990, %v3131
        %v3202 = vadd.f32 %v2991, %v3132
        %v3203 = vadd.f32 %v2992, %v3133
        %v3204 = vadd.f32 %v2993, %v3135
        %v3205 = vadd.f32 %v2994, %v3137
        %v3206 = vadd.f32 %v2995, %v3138
        %v3207 = vadd.f32 %v2996, %v3139
        %v3208 = vadd.f32 %v2997, %v3141
        %v3209 = vadd.f32 %v2998, %v3143
        %v3210 = vadd.f32 %v2999, %v3144
        %v3211 = vadd.f32 %v3000, %v3145
        %v3212 = vadd.f32 %v3001, %v3147
        %v3213 = vadd.f32 %v3002, %v3149
        %v3214 = vld [vmem:[%s2718] sm:$0x80]
        %v3215 = vld [vmem:[%s2718 + $0x8] sm:$0x80]
        %v3216 = vld [vmem:[%s2718 + $0x10] sm:$0x7f]
        %v3217 = vld [vmem:[%s2718 + $0x18] sm:$0x7f]
        %v3218 = vld [vmem:[%s2718 + $0x30] sm:$0x80]
        %v3219 = vld [vmem:[%s2718 + $0x38] sm:$0x80]
        %v3220 = vld [vmem:[%s2718 + $0x40] sm:$0x7f]
        %v3221 = vld [vmem:[%s2718 + $0x48] sm:$0x7f]
        %v3222 = vld [vmem:[%s2718 + $0x60] sm:$0x80]
        %v3223 = vld [vmem:[%s2718 + $0x68] sm:$0x80]
        %v3224 = vld [vmem:[%s2718 + $0x70] sm:$0x7f]
        %v3225 = vld [vmem:[%s2718 + $0x78] sm:$0x7f]
        %v3226 = vld [vmem:[%s2718 + $0x90] sm:$0x80]
        %v3227 = vld [vmem:[%s2718 + $0x98] sm:$0x80]
        %v3228 = vld [vmem:[%s2718 + $0xa0] sm:$0x7f]
        %v3229 = vld [vmem:[%s2718 + $0xa8] sm:$0x7f]
        %v3230 = vld [vmem:[%s2718 + $0xc0] sm:$0x80]
        %v3231 = vld [vmem:[%s2718 + $0xc8] sm:$0x80]
        %v3232 = vld [vmem:[%s2718 + $0xd0] sm:$0x7f]
        %v3233 = vld [vmem:[%s2718 + $0xd8] sm:$0x7f]
        %v3234 = vld [vmem:[%s2718 + $0xf0] sm:$0x80]
        %v3235 = vld [vmem:[%s2718 + $0xf8] sm:$0x80]
        %v3236 = vld [vmem:[%s2718 + $0x100] sm:$0x7f]
        %v3237 = vld [vmem:[%s2718 + $0x108] sm:$0x7f]
        %v3238 = vld [vmem:[%s2718 + $0x120] sm:$0x80]
        %v3239 = vld [vmem:[%s2718 + $0x128] sm:$0x80]
        %v3240 = vld [vmem:[%s2718 + $0x130] sm:$0x7f]
        %v3241 = vld [vmem:[%s2718 + $0x138] sm:$0x7f]
        %v3242 = vld [vmem:[%s2718 + $0x150] sm:$0x80]
        %v3243 = vld [vmem:[%s2718 + $0x158] sm:$0x80]
        %v3244 = vld [vmem:[%s2718 + $0x160] sm:$0x7f]
        %v3245 = vld [vmem:[%s2718 + $0x168] sm:$0x7f]
        %v3246 = vperm.slane %v2787, 3
        %v3247 = vperm.slane %v2788, 3
        %v3248 = vmul.f32 %v3214, %v3246
        %v3249 = vmul.f32 %v3215, %v3247
        %v3250 = vmul.f32 %v3216, %v3246
        %v3251 = vmul.f32 %v3217, %v3247
        %v3252 = vmul.f32 %v3218, %v3246
        %v3253 = vmul.f32 %v3219, %v3247
        %v3254 = vmul.f32 %v3220, %v3246
        %v3255 = vmul.f32 %v3221, %v3247
        %v3256 = vmul.f32 %v3222, %v3246
        %v3257 = vmul.f32 %v3223, %v3247
        %v3258 = vmul.f32 %v3224, %v3246
        %v3259 = vmul.f32 %v3225, %v3247
        %v3260 = vmul.f32 %v3226, %v3246
        %v3261 = vmul.f32 %v3227, %v3247
        %v3262 = vmul.f32 %v3228, %v3246
        %v3263 = vmul.f32 %v3229, %v3247
        %v3264 = vmul.f32 %v3230, %v3246
        %v3265 = vmul.f32 %v3231, %v3247
        %v3266 = vmul.f32 %v3232, %v3246
        %v3267 = vmul.f32 %v3233, %v3247
        %v3268 = vmul.f32 %v3234, %v3246
        %v3269 = vmul.f32 %v3235, %v3247
        %v3270 = vmul.f32 %v3236, %v3246
        %v3271 = vmul.f32 %v3237, %v3247
        %v3272 = vmul.f32 %v3238, %v3246
        %v3273 = vmul.f32 %v3239, %v3247
        %v3274 = vmul.f32 %v3240, %v3246
        %v3275 = vmul.f32 %v3241, %v3247
        %v3276 = vmul.f32 %v3242, %v3246
        %v3277 = vmul.f32 %v3243, %v3247
        %v3278 = vmul.f32 %v3244, %v3246
        %v3279 = vmul.f32 %v3245, %v3247
        %v3280 = vadd.f32 %v3182, %v3248
        %v3281 = vadd.f32 %v3183, %v3249
        %v3282 = vadd.f32 %v3184, %v3250
        %v3283 = vadd.f32 %v3185, %v3251
        %v3284 = vadd.f32 %v3186, %v3252
        %v3285 = vadd.f32 %v3187, %v3253
        %v3286 = vadd.f32 %v3188, %v3254
        %v3287 = vadd.f32 %v3189, %v3255
        %v3288 = vadd.f32 %v3190, %v3256
        %v3289 = vadd.f32 %v3191, %v3257
        %v3290 = vadd.f32 %v3192, %v3258
        %v3291 = vadd.f32 %v3193, %v3259
        %v3292 = vadd.f32 %v3194, %v3260
        %v3293 = vadd.f32 %v3195, %v3261
        %v3294 = vadd.f32 %v3196, %v3262
        %v3295 = vadd.f32 %v3197, %v3263
        %v3296 = vadd.f32 %v3198, %v3264
        %v3297 = vadd.f32 %v3199, %v3265
        %v3298 = vadd.f32 %v3200, %v3266
        %v3299 = vadd.f32 %v3201, %v3267
        %v3300 = vadd.f32 %v3202, %v3268
        %v3301 = vadd.f32 %v3203, %v3269
        %v3302 = vadd.f32 %v3204, %v3270
        %v3303 = vadd.f32 %v3205, %v3271
        %v3304 = vadd.f32 %v3206, %v3272
        %v3305 = vadd.f32 %v3207, %v3273
        %v3306 = vadd.f32 %v3208, %v3274
        %v3307 = vadd.f32 %v3209, %v3275
        %v3308 = vadd.f32 %v3210, %v3276
        %v3309 = vadd.f32 %v3211, %v3277
        %v3310 = vadd.f32 %v3212, %v3278
        %v3311 = vadd.f32 %v3213, %v3279
        %v3312 = vld [vmem:[%s2718 + $0x10] sm:$0xff]
        %v3313 = vld [vmem:[%s2718 + $0x18] sm:$0xff]
        %v3314 = vld [vmem:[%s2718 + $0x40] sm:$0xff]
        %v3315 = vld [vmem:[%s2718 + $0x48] sm:$0xff]
        %v3316 = vld [vmem:[%s2718 + $0x70] sm:$0xff]
        %v3317 = vld [vmem:[%s2718 + $0x78] sm:$0xff]
        %v3318 = vld [vmem:[%s2718 + $0xa0] sm:$0xff]
        %v3319 = vld [vmem:[%s2718 + $0xa8] sm:$0xff]
        %v3320 = vld [vmem:[%s2718 + $0xd0] sm:$0xff]
        %v3321 = vld [vmem:[%s2718 + $0xd8] sm:$0xff]
        %v3322 = vld [vmem:[%s2718 + $0x100] sm:$0xff]
        %v3323 = vld [vmem:[%s2718 + $0x108] sm:$0xff]
        %v3324 = vld [vmem:[%s2718 + $0x130] sm:$0xff]
        %v3325 = vld [vmem:[%s2718 + $0x138] sm:$0xff]
        %v3326 = vld [vmem:[%s2718 + $0x160] sm:$0xff]
        %v3327 = vld [vmem:[%s2718 + $0x168] sm:$0xff]
        %v3328 = vperm.slane %v2787, 4
        %v3329 = vperm.slane %v2788, 4
        %v3330 = vmul.f32 %v3312, %v3328
        %v3331 = vmul.f32 %v3313, %v3329
        %v3332 = vmul.f32 %v3314, %v3328
        %v3333 = vmul.f32 %v3315, %v3329
        %v3334 = vmul.f32 %v3316, %v3328
        %v3335 = vmul.f32 %v3317, %v3329
        %v3336 = vmul.f32 %v3318, %v3328
        %v3337 = vmul.f32 %v3319, %v3329
        %v3338 = vmul.f32 %v3320, %v3328
        %v3339 = vmul.f32 %v3321, %v3329
        %v3340 = vmul.f32 %v3322, %v3328
        %v3341 = vmul.f32 %v3323, %v3329
        %v3342 = vmul.f32 %v3324, %v3328
        %v3343 = vmul.f32 %v3325, %v3329
        %v3344 = vmul.f32 %v3326, %v3328
        %v3345 = vmul.f32 %v3327, %v3329
        %v3362 = vrot.slane %v3330, 1
        %v3363 = vrot.slane %v3331, 1
        %v3364 = vrot.slane %v3332, 1
        %v3365 = vrot.slane %v3333, 1
        %v3366 = vrot.slane %v3334, 1
        %v3367 = vrot.slane %v3335, 1
        %v3368 = vrot.slane %v3336, 1
        %v3369 = vrot.slane %v3337, 1
        %v3370 = vrot.slane %v3338, 1
        %v3371 = vrot.slane %v3339, 1
        %v3372 = vrot.slane %v3340, 1
        %v3373 = vrot.slane %v3341, 1
        %v3374 = vrot.slane %v3342, 1
        %v3375 = vrot.slane %v3343, 1
        %v3376 = vrot.slane %v3344, 1
        %v3377 = vrot.slane %v3345, 1
        %v3394 = vadd.f32 %v3280, %v3362
        %v3395 = vadd.f32 %v3281, %v3363
        %v3396 = vadd.f32 %v3282, %v3362
        %v3397 = vadd.f32 %v3283, %v3363
        %v3398 = vadd.f32 %v3284, %v3364
        %v3399 = vadd.f32 %v3285, %v3365
        %v3400 = vadd.f32 %v3286, %v3364
        %v3401 = vadd.f32 %v3287, %v3365
        %v3402 = vadd.f32 %v3288, %v3366
        %v3403 = vadd.f32 %v3289, %v3367
        %v3404 = vadd.f32 %v3290, %v3366
        %v3405 = vadd.f32 %v3291, %v3367
        %v3406 = vadd.f32 %v3292, %v3368
        %v3407 = vadd.f32 %v3293, %v3369
        %v3408 = vadd.f32 %v3294, %v3368
        %v3409 = vadd.f32 %v3295, %v3369
        %v3410 = vadd.f32 %v3296, %v3370
        %v3411 = vadd.f32 %v3297, %v3371
        %v3412 = vadd.f32 %v3298, %v3370
        %v3413 = vadd.f32 %v3299, %v3371
        %v3414 = vadd.f32 %v3300, %v3372
        %v3415 = vadd.f32 %v3301, %v3373
        %v3416 = vadd.f32 %v3302, %v3372
        %v3417 = vadd.f32 %v3303, %v3373
        %v3418 = vadd.f32 %v3304, %v3374
        %v3419 = vadd.f32 %v3305, %v3375
        %v3420 = vadd.f32 %v3306, %v3374
        %v3421 = vadd.f32 %v3307, %v3375
        %v3422 = vadd.f32 %v3308, %v3376
        %v3423 = vadd.f32 %v3309, %v3377
        %v3424 = vadd.f32 %v3310, %v3376
        %v3425 = vadd.f32 %v3311, %v3377
        %v3426 = vld [vmem:[%s2718 + $0x10] sm:$0xfe]
        %v3427 = vld [vmem:[%s2718 + $0x18] sm:$0xfe]
        %v3428 = vld [vmem:[%s2718 + $0x20] sm:$0x1]
        %v3429 = vld [vmem:[%s2718 + $0x28] sm:$0x1]
        %v3430 = vld [vmem:[%s2718 + $0x40] sm:$0xfe]
        %v3431 = vld [vmem:[%s2718 + $0x48] sm:$0xfe]
        %v3432 = vld [vmem:[%s2718 + $0x50] sm:$0x1]
        %v3433 = vld [vmem:[%s2718 + $0x58] sm:$0x1]
        %v3434 = vld [vmem:[%s2718 + $0x70] sm:$0xfe]
        %v3435 = vld [vmem:[%s2718 + $0x78] sm:$0xfe]
        %v3436 = vld [vmem:[%s2718 + $0x80] sm:$0x1]
        %v3437 = vld [vmem:[%s2718 + $0x88] sm:$0x1]
        %v3438 = vld [vmem:[%s2718 + $0xa0] sm:$0xfe]
        %v3439 = vld [vmem:[%s2718 + $0xa8] sm:$0xfe]
        %v3440 = vld [vmem:[%s2718 + $0xb0] sm:$0x1]
        %v3441 = vld [vmem:[%s2718 + $0xb8] sm:$0x1]
        %v3442 = vld [vmem:[%s2718 + $0xd0] sm:$0xfe]
        %v3443 = vld [vmem:[%s2718 + $0xd8] sm:$0xfe]
        %v3444 = vld [vmem:[%s2718 + $0xe0] sm:$0x1]
        %v3445 = vld [vmem:[%s2718 + $0xe8] sm:$0x1]
        %v3446 = vld [vmem:[%s2718 + $0x100] sm:$0xfe]
        %v3447 = vld [vmem:[%s2718 + $0x108] sm:$0xfe]
        %v3448 = vld [vmem:[%s2718 + $0x110] sm:$0x1]
        %v3449 = vld [vmem:[%s2718 + $0x118] sm:$0x1]
        %v3450 = vld [vmem:[%s2718 + $0x130] sm:$0xfe]
        %v3451 = vld [vmem:[%s2718 + $0x138] sm:$0xfe]
        %v3452 = vld [vmem:[%s2718 + $0x140] sm:$0x1]
        %v3453 = vld [vmem:[%s2718 + $0x148] sm:$0x1]
        %v3454 = vld [vmem:[%s2718 + $0x160] sm:$0xfe]
        %v3455 = vld [vmem:[%s2718 + $0x168] sm:$0xfe]
        %v3456 = vld [vmem:[%s2718 + $0x170] sm:$0x1]
        %v3457 = vld [vmem:[%s2718 + $0x178] sm:$0x1]
        %v3458 = vperm.slane %v2787, 5
        %v3459 = vperm.slane %v2788, 5
        %v3460 = vmul.f32 %v3426, %v3458
        %v3461 = vmul.f32 %v3427, %v3459
        %v3462 = vmul.f32 %v3428, %v3458
        %v3463 = vmul.f32 %v3429, %v3459
        %v3464 = vmul.f32 %v3430, %v3458
        %v3465 = vmul.f32 %v3431, %v3459
        %v3466 = vmul.f32 %v3432, %v3458
        %v3467 = vmul.f32 %v3433, %v3459
        %v3468 = vmul.f32 %v3434, %v3458
        %v3469 = vmul.f32 %v3435, %v3459
        %v3470 = vmul.f32 %v3436, %v3458
        %v3471 = vmul.f32 %v3437, %v3459
        %v3472 = vmul.f32 %v3438, %v3458
        %v3473 = vmul.f32 %v3439, %v3459
        %v3474 = vmul.f32 %v3440, %v3458
        %v3475 = vmul.f32 %v3441, %v3459
        %v3476 = vmul.f32 %v3442, %v3458
        %v3477 = vmul.f32 %v3443, %v3459
        %v3478 = vmul.f32 %v3444, %v3458
        %v3479 = vmul.f32 %v3445, %v3459
        %v3480 = vmul.f32 %v3446, %v3458
        %v3481 = vmul.f32 %v3447, %v3459
        %v3482 = vmul.f32 %v3448, %v3458
        %v3483 = vmul.f32 %v3449, %v3459
        %v3484 = vmul.f32 %v3450, %v3458
        %v3485 = vmul.f32 %v3451, %v3459
        %v3486 = vmul.f32 %v3452, %v3458
        %v3487 = vmul.f32 %v3453, %v3459
        %v3488 = vmul.f32 %v3454, %v3458
        %v3489 = vmul.f32 %v3455, %v3459
        %v3490 = vmul.f32 %v3456, %v3458
        %v3491 = vmul.f32 %v3457, %v3459
        %v3524 = vrot.slane %v3460, 2
        %v3525 = vrot.slane %v3461, 2
        %v3526 = vrot.slane %v3462, 2
        %v3527 = vsel %vm3101, %v3524, %v3526
        %v3528 = vrot.slane %v3463, 2
        %v3529 = vsel %vm3101, %v3525, %v3528
        %v3530 = vrot.slane %v3464, 2
        %v3531 = vrot.slane %v3465, 2
        %v3532 = vrot.slane %v3466, 2
        %v3533 = vsel %vm3101, %v3530, %v3532
        %v3534 = vrot.slane %v3467, 2
        %v3535 = vsel %vm3101, %v3531, %v3534
        %v3536 = vrot.slane %v3468, 2
        %v3537 = vrot.slane %v3469, 2
        %v3538 = vrot.slane %v3470, 2
        %v3539 = vsel %vm3101, %v3536, %v3538
        %v3540 = vrot.slane %v3471, 2
        %v3541 = vsel %vm3101, %v3537, %v3540
        %v3542 = vrot.slane %v3472, 2
        %v3543 = vrot.slane %v3473, 2
        %v3544 = vrot.slane %v3474, 2
        %v3545 = vsel %vm3101, %v3542, %v3544
        %v3546 = vrot.slane %v3475, 2
        %v3547 = vsel %vm3101, %v3543, %v3546
        %v3548 = vrot.slane %v3476, 2
        %v3549 = vrot.slane %v3477, 2
        %v3550 = vrot.slane %v3478, 2
        %v3551 = vsel %vm3101, %v3548, %v3550
        %v3552 = vrot.slane %v3479, 2
        %v3553 = vsel %vm3101, %v3549, %v3552
        %v3554 = vrot.slane %v3480, 2
        %v3555 = vrot.slane %v3481, 2
        %v3556 = vrot.slane %v3482, 2
        %v3557 = vsel %vm3101, %v3554, %v3556
        %v3558 = vrot.slane %v3483, 2
        %v3559 = vsel %vm3101, %v3555, %v3558
        %v3560 = vrot.slane %v3484, 2
        %v3561 = vrot.slane %v3485, 2
        %v3562 = vrot.slane %v3486, 2
        %v3563 = vsel %vm3101, %v3560, %v3562
        %v3564 = vrot.slane %v3487, 2
        %v3565 = vsel %vm3101, %v3561, %v3564
        %v3566 = vrot.slane %v3488, 2
        %v3567 = vrot.slane %v3489, 2
        %v3568 = vrot.slane %v3490, 2
        %v3569 = vsel %vm3101, %v3566, %v3568
        %v3570 = vrot.slane %v3491, 2
        %v3571 = vsel %vm3101, %v3567, %v3570
        %v3604 = vadd.f32 %v3394, %v3524
        %v3605 = vadd.f32 %v3395, %v3525
        %v3606 = vadd.f32 %v3396, %v3527
        %v3607 = vadd.f32 %v3397, %v3529
        %v3608 = vadd.f32 %v3398, %v3530
        %v3609 = vadd.f32 %v3399, %v3531
        %v3610 = vadd.f32 %v3400, %v3533
        %v3611 = vadd.f32 %v3401, %v3535
        %v3612 = vadd.f32 %v3402, %v3536
        %v3613 = vadd.f32 %v3403, %v3537
        %v3614 = vadd.f32 %v3404, %v3539
        %v3615 = vadd.f32 %v3405, %v3541
        %v3616 = vadd.f32 %v3406, %v3542
        %v3617 = vadd.f32 %v3407, %v3543
        %v3618 = vadd.f32 %v3408, %v3545
        %v3619 = vadd.f32 %v3409, %v3547
        %v3620 = vadd.f32 %v3410, %v3548
        %v3621 = vadd.f32 %v3411, %v3549
        %v3622 = vadd.f32 %v3412, %v3551
        %v3623 = vadd.f32 %v3413, %v3553
        %v3624 = vadd.f32 %v3414, %v3554
        %v3625 = vadd.f32 %v3415, %v3555
        %v3626 = vadd.f32 %v3416, %v3557
        %v3627 = vadd.f32 %v3417, %v3559
        %v3628 = vadd.f32 %v3418, %v3560
        %v3629 = vadd.f32 %v3419, %v3561
        %v3630 = vadd.f32 %v3420, %v3563
        %v3631 = vadd.f32 %v3421, %v3565
        %v3632 = vadd.f32 %v3422, %v3566
        %v3633 = vadd.f32 %v3423, %v3567
        %v3634 = vadd.f32 %v3424, %v3569
        %v3635 = vadd.f32 %v3425, %v3571
        %s3636 = scalar_lea.vmem [#allocation4], 96
        %v3637 = vld [vmem:[%s3636] sm:$0x80]
        %v3638 = vld [vmem:[%s3636 + $0x8] sm:$0x80]
        %v3639 = vld [vmem:[%s3636 + $0x10] sm:$0x7f]
        %v3640 = vld [vmem:[%s3636 + $0x18] sm:$0x7f]
        %v3641 = vld [vmem:[%s3636 + $0x30] sm:$0x80]
        %v3642 = vld [vmem:[%s3636 + $0x38] sm:$0x80]
        %v3643 = vld [vmem:[%s3636 + $0x40] sm:$0x7f]
        %v3644 = vld [vmem:[%s3636 + $0x48] sm:$0x7f]
        %v3645 = vld [vmem:[%s3636 + $0x60] sm:$0x80]
        %v3646 = vld [vmem:[%s3636 + $0x68] sm:$0x80]
        %v3647 = vld [vmem:[%s3636 + $0x70] sm:$0x7f]
        %v3648 = vld [vmem:[%s3636 + $0x78] sm:$0x7f]
        %v3649 = vld [vmem:[%s3636 + $0x90] sm:$0x80]
        %v3650 = vld [vmem:[%s3636 + $0x98] sm:$0x80]
        %v3651 = vld [vmem:[%s3636 + $0xa0] sm:$0x7f]
        %v3652 = vld [vmem:[%s3636 + $0xa8] sm:$0x7f]
        %v3653 = vld [vmem:[%s3636 + $0xc0] sm:$0x80]
        %v3654 = vld [vmem:[%s3636 + $0xc8] sm:$0x80]
        %v3655 = vld [vmem:[%s3636 + $0xd0] sm:$0x7f]
        %v3656 = vld [vmem:[%s3636 + $0xd8] sm:$0x7f]
        %v3657 = vld [vmem:[%s3636 + $0xf0] sm:$0x80]
        %v3658 = vld [vmem:[%s3636 + $0xf8] sm:$0x80]
        %v3659 = vld [vmem:[%s3636 + $0x100] sm:$0x7f]
        %v3660 = vld [vmem:[%s3636 + $0x108] sm:$0x7f]
        %v3661 = vld [vmem:[%s3636 + $0x120] sm:$0x80]
        %v3662 = vld [vmem:[%s3636 + $0x128] sm:$0x80]
        %v3663 = vld [vmem:[%s3636 + $0x130] sm:$0x7f]
        %v3664 = vld [vmem:[%s3636 + $0x138] sm:$0x7f]
        %v3665 = vld [vmem:[%s3636 + $0x150] sm:$0x80]
        %v3666 = vld [vmem:[%s3636 + $0x158] sm:$0x80]
        %v3667 = vld [vmem:[%s3636 + $0x160] sm:$0x7f]
        %v3668 = vld [vmem:[%s3636 + $0x168] sm:$0x7f]
        %v3669 = vperm.slane %v2787, 6
        %v3670 = vperm.slane %v2788, 6
        %v3671 = vmul.f32 %v3637, %v3669
        %v3672 = vmul.f32 %v3638, %v3670
        %v3673 = vmul.f32 %v3639, %v3669
        %v3674 = vmul.f32 %v3640, %v3670
        %v3675 = vmul.f32 %v3641, %v3669
        %v3676 = vmul.f32 %v3642, %v3670
        %v3677 = vmul.f32 %v3643, %v3669
        %v3678 = vmul.f32 %v3644, %v3670
        %v3679 = vmul.f32 %v3645, %v3669
        %v3680 = vmul.f32 %v3646, %v3670
        %v3681 = vmul.f32 %v3647, %v3669
        %v3682 = vmul.f32 %v3648, %v3670
        %v3683 = vmul.f32 %v3649, %v3669
        %v3684 = vmul.f32 %v3650, %v3670
        %v3685 = vmul.f32 %v3651, %v3669
        %v3686 = vmul.f32 %v3652, %v3670
        %v3687 = vmul.f32 %v3653, %v3669
        %v3688 = vmul.f32 %v3654, %v3670
        %v3689 = vmul.f32 %v3655, %v3669
        %v3690 = vmul.f32 %v3656, %v3670
        %v3691 = vmul.f32 %v3657, %v3669
        %v3692 = vmul.f32 %v3658, %v3670
        %v3693 = vmul.f32 %v3659, %v3669
        %v3694 = vmul.f32 %v3660, %v3670
        %v3695 = vmul.f32 %v3661, %v3669
        %v3696 = vmul.f32 %v3662, %v3670
        %v3697 = vmul.f32 %v3663, %v3669
        %v3698 = vmul.f32 %v3664, %v3670
        %v3699 = vmul.f32 %v3665, %v3669
        %v3700 = vmul.f32 %v3666, %v3670
        %v3701 = vmul.f32 %v3667, %v3669
        %v3702 = vmul.f32 %v3668, %v3670
        %v3703 = vadd.f32 %v3604, %v3671
        %v3704 = vadd.f32 %v3605, %v3672
        %v3705 = vadd.f32 %v3606, %v3673
        %v3706 = vadd.f32 %v3607, %v3674
        %v3707 = vadd.f32 %v3608, %v3675
        %v3708 = vadd.f32 %v3609, %v3676
        %v3709 = vadd.f32 %v3610, %v3677
        %v3710 = vadd.f32 %v3611, %v3678
        %v3711 = vadd.f32 %v3612, %v3679
        %v3712 = vadd.f32 %v3613, %v3680
        %v3713 = vadd.f32 %v3614, %v3681
        %v3714 = vadd.f32 %v3615, %v3682
        %v3715 = vadd.f32 %v3616, %v3683
        %v3716 = vadd.f32 %v3617, %v3684
        %v3717 = vadd.f32 %v3618, %v3685
        %v3718 = vadd.f32 %v3619, %v3686
        %v3719 = vadd.f32 %v3620, %v3687
        %v3720 = vadd.f32 %v3621, %v3688
        %v3721 = vadd.f32 %v3622, %v3689
        %v3722 = vadd.f32 %v3623, %v3690
        %v3723 = vadd.f32 %v3624, %v3691
        %v3724 = vadd.f32 %v3625, %v3692
        %v3725 = vadd.f32 %v3626, %v3693
        %v3726 = vadd.f32 %v3627, %v3694
        %v3727 = vadd.f32 %v3628, %v3695
        %v3728 = vadd.f32 %v3629, %v3696
        %v3729 = vadd.f32 %v3630, %v3697
        %v3730 = vadd.f32 %v3631, %v3698
        %v3731 = vadd.f32 %v3632, %v3699
        %v3732 = vadd.f32 %v3633, %v3700
        %v3733 = vadd.f32 %v3634, %v3701
        %v3734 = vadd.f32 %v3635, %v3702
        %v3735 = vld [vmem:[%s3636 + $0x10] sm:$0xff]
        %v3736 = vld [vmem:[%s3636 + $0x18] sm:$0xff]
        %v3737 = vld [vmem:[%s3636 + $0x40] sm:$0xff]
        %v3738 = vld [vmem:[%s3636 + $0x48] sm:$0xff]
        %v3739 = vld [vmem:[%s3636 + $0x70] sm:$0xff]
        %v3740 = vld [vmem:[%s3636 + $0x78] sm:$0xff]
        %v3741 = vld [vmem:[%s3636 + $0xa0] sm:$0xff]
        %v3742 = vld [vmem:[%s3636 + $0xa8] sm:$0xff]
        %v3743 = vld [vmem:[%s3636 + $0xd0] sm:$0xff]
        %v3744 = vld [vmem:[%s3636 + $0xd8] sm:$0xff]
        %v3745 = vld [vmem:[%s3636 + $0x100] sm:$0xff]
        %v3746 = vld [vmem:[%s3636 + $0x108] sm:$0xff]
        %v3747 = vld [vmem:[%s3636 + $0x130] sm:$0xff]
        %v3748 = vld [vmem:[%s3636 + $0x138] sm:$0xff]
        %v3749 = vld [vmem:[%s3636 + $0x160] sm:$0xff]
        %v3750 = vld [vmem:[%s3636 + $0x168] sm:$0xff]
        %v3751 = vperm.slane %v2787, 7
        %v3752 = vperm.slane %v2788, 7
        %v3753 = vmul.f32 %v3735, %v3751
        %v3754 = vmul.f32 %v3736, %v3752
        %v3755 = vmul.f32 %v3737, %v3751
        %v3756 = vmul.f32 %v3738, %v3752
        %v3757 = vmul.f32 %v3739, %v3751
        %v3758 = vmul.f32 %v3740, %v3752
        %v3759 = vmul.f32 %v3741, %v3751
        %v3760 = vmul.f32 %v3742, %v3752
        %v3761 = vmul.f32 %v3743, %v3751
        %v3762 = vmul.f32 %v3744, %v3752
        %v3763 = vmul.f32 %v3745, %v3751
        %v3764 = vmul.f32 %v3746, %v3752
        %v3765 = vmul.f32 %v3747, %v3751
        %v3766 = vmul.f32 %v3748, %v3752
        %v3767 = vmul.f32 %v3749, %v3751
        %v3768 = vmul.f32 %v3750, %v3752
        %v3785 = vrot.slane %v3753, 1
        %v3786 = vrot.slane %v3754, 1
        %v3787 = vrot.slane %v3755, 1
        %v3788 = vrot.slane %v3756, 1
        %v3789 = vrot.slane %v3757, 1
        %v3790 = vrot.slane %v3758, 1
        %v3791 = vrot.slane %v3759, 1
        %v3792 = vrot.slane %v3760, 1
        %v3793 = vrot.slane %v3761, 1
        %v3794 = vrot.slane %v3762, 1
        %v3795 = vrot.slane %v3763, 1
        %v3796 = vrot.slane %v3764, 1
        %v3797 = vrot.slane %v3765, 1
        %v3798 = vrot.slane %v3766, 1
        %v3799 = vrot.slane %v3767, 1
        %v3800 = vrot.slane %v3768, 1
        %v3817 = vadd.f32 %v3703, %v3785
        %v3818 = vadd.f32 %v3704, %v3786
        %v3819 = vadd.f32 %v3705, %v3785
        %v3820 = vadd.f32 %v3706, %v3786
        %v3821 = vadd.f32 %v3707, %v3787
        %v3822 = vadd.f32 %v3708, %v3788
        %v3823 = vadd.f32 %v3709, %v3787
        %v3824 = vadd.f32 %v3710, %v3788
        %v3825 = vadd.f32 %v3711, %v3789
        %v3826 = vadd.f32 %v3712, %v3790
        %v3827 = vadd.f32 %v3713, %v3789
        %v3828 = vadd.f32 %v3714, %v3790
        %v3829 = vadd.f32 %v3715, %v3791
        %v3830 = vadd.f32 %v3716, %v3792
        %v3831 = vadd.f32 %v3717, %v3791
        %v3832 = vadd.f32 %v3718, %v3792
        %v3833 = vadd.f32 %v3719, %v3793
        %v3834 = vadd.f32 %v3720, %v3794
        %v3835 = vadd.f32 %v3721, %v3793
        %v3836 = vadd.f32 %v3722, %v3794
        %v3837 = vadd.f32 %v3723, %v3795
        %v3838 = vadd.f32 %v3724, %v3796
        %v3839 = vadd.f32 %v3725, %v3795
        %v3840 = vadd.f32 %v3726, %v3796
        %v3841 = vadd.f32 %v3727, %v3797
        %v3842 = vadd.f32 %v3728, %v3798
        %v3843 = vadd.f32 %v3729, %v3797
        %v3844 = vadd.f32 %v3730, %v3798
        %v3845 = vadd.f32 %v3731, %v3799
        %v3846 = vadd.f32 %v3732, %v3800
        %v3847 = vadd.f32 %v3733, %v3799
        %v3848 = vadd.f32 %v3734, %v3800
        %v3849 = vld [vmem:[%s3636 + $0x10] sm:$0xfe]
        %v3850 = vld [vmem:[%s3636 + $0x18] sm:$0xfe]
        %v3851 = vld [vmem:[%s3636 + $0x20] sm:$0x1]
        %v3852 = vld [vmem:[%s3636 + $0x28] sm:$0x1]
        %v3853 = vld [vmem:[%s3636 + $0x40] sm:$0xfe]
        %v3854 = vld [vmem:[%s3636 + $0x48] sm:$0xfe]
        %v3855 = vld [vmem:[%s3636 + $0x50] sm:$0x1]
        %v3856 = vld [vmem:[%s3636 + $0x58] sm:$0x1]
        %v3857 = vld [vmem:[%s3636 + $0x70] sm:$0xfe]
        %v3858 = vld [vmem:[%s3636 + $0x78] sm:$0xfe]
        %v3859 = vld [vmem:[%s3636 + $0x80] sm:$0x1]
        %v3860 = vld [vmem:[%s3636 + $0x88] sm:$0x1]
        %v3861 = vld [vmem:[%s3636 + $0xa0] sm:$0xfe]
        %v3862 = vld [vmem:[%s3636 + $0xa8] sm:$0xfe]
        %v3863 = vld [vmem:[%s3636 + $0xb0] sm:$0x1]
        %v3864 = vld [vmem:[%s3636 + $0xb8] sm:$0x1]
        %v3865 = vld [vmem:[%s3636 + $0xd0] sm:$0xfe]
        %v3866 = vld [vmem:[%s3636 + $0xd8] sm:$0xfe]
        %v3867 = vld [vmem:[%s3636 + $0xe0] sm:$0x1]
        %v3868 = vld [vmem:[%s3636 + $0xe8] sm:$0x1]
        %v3869 = vld [vmem:[%s3636 + $0x100] sm:$0xfe]
        %v3870 = vld [vmem:[%s3636 + $0x108] sm:$0xfe]
        %v3871 = vld [vmem:[%s3636 + $0x110] sm:$0x1]
        %v3872 = vld [vmem:[%s3636 + $0x118] sm:$0x1]
        %v3873 = vld [vmem:[%s3636 + $0x130] sm:$0xfe]
        %v3874 = vld [vmem:[%s3636 + $0x138] sm:$0xfe]
        %v3875 = vld [vmem:[%s3636 + $0x140] sm:$0x1]
        %v3876 = vld [vmem:[%s3636 + $0x148] sm:$0x1]
        %v3877 = vld [vmem:[%s3636 + $0x160] sm:$0xfe]
        %v3878 = vld [vmem:[%s3636 + $0x168] sm:$0xfe]
        %v3879 = vld [vmem:[%s3636 + $0x170] sm:$0x1]
        %v3880 = vld [vmem:[%s3636 + $0x178] sm:$0x1]
        %v3881 = vperm.slane %v2789, 0
        %v3882 = vperm.slane %v2790, 0
        %v3883 = vmul.f32 %v3849, %v3881
        %v3884 = vmul.f32 %v3850, %v3882
        %v3885 = vmul.f32 %v3851, %v3881
        %v3886 = vmul.f32 %v3852, %v3882
        %v3887 = vmul.f32 %v3853, %v3881
        %v3888 = vmul.f32 %v3854, %v3882
        %v3889 = vmul.f32 %v3855, %v3881
        %v3890 = vmul.f32 %v3856, %v3882
        %v3891 = vmul.f32 %v3857, %v3881
        %v3892 = vmul.f32 %v3858, %v3882
        %v3893 = vmul.f32 %v3859, %v3881
        %v3894 = vmul.f32 %v3860, %v3882
        %v3895 = vmul.f32 %v3861, %v3881
        %v3896 = vmul.f32 %v3862, %v3882
        %v3897 = vmul.f32 %v3863, %v3881
        %v3898 = vmul.f32 %v3864, %v3882
        %v3899 = vmul.f32 %v3865, %v3881
        %v3900 = vmul.f32 %v3866, %v3882
        %v3901 = vmul.f32 %v3867, %v3881
        %v3902 = vmul.f32 %v3868, %v3882
        %v3903 = vmul.f32 %v3869, %v3881
        %v3904 = vmul.f32 %v3870, %v3882
        %v3905 = vmul.f32 %v3871, %v3881
        %v3906 = vmul.f32 %v3872, %v3882
        %v3907 = vmul.f32 %v3873, %v3881
        %v3908 = vmul.f32 %v3874, %v3882
        %v3909 = vmul.f32 %v3875, %v3881
        %v3910 = vmul.f32 %v3876, %v3882
        %v3911 = vmul.f32 %v3877, %v3881
        %v3912 = vmul.f32 %v3878, %v3882
        %v3913 = vmul.f32 %v3879, %v3881
        %v3914 = vmul.f32 %v3880, %v3882
        %v3947 = vrot.slane %v3883, 2
        %v3948 = vrot.slane %v3884, 2
        %v3949 = vrot.slane %v3885, 2
        %v3950 = vsel %vm3101, %v3947, %v3949
        %v3951 = vrot.slane %v3886, 2
        %v3952 = vsel %vm3101, %v3948, %v3951
        %v3953 = vrot.slane %v3887, 2
        %v3954 = vrot.slane %v3888, 2
        %v3955 = vrot.slane %v3889, 2
        %v3956 = vsel %vm3101, %v3953, %v3955
        %v3957 = vrot.slane %v3890, 2
        %v3958 = vsel %vm3101, %v3954, %v3957
        %v3959 = vrot.slane %v3891, 2
        %v3960 = vrot.slane %v3892, 2
        %v3961 = vrot.slane %v3893, 2
        %v3962 = vsel %vm3101, %v3959, %v3961
        %v3963 = vrot.slane %v3894, 2
        %v3964 = vsel %vm3101, %v3960, %v3963
        %v3965 = vrot.slane %v3895, 2
        %v3966 = vrot.slane %v3896, 2
        %v3967 = vrot.slane %v3897, 2
        %v3968 = vsel %vm3101, %v3965, %v3967
        %v3969 = vrot.slane %v3898, 2
        %v3970 = vsel %vm3101, %v3966, %v3969
        %v3971 = vrot.slane %v3899, 2
        %v3972 = vrot.slane %v3900, 2
        %v3973 = vrot.slane %v3901, 2
        %v3974 = vsel %vm3101, %v3971, %v3973
        %v3975 = vrot.slane %v3902, 2
        %v3976 = vsel %vm3101, %v3972, %v3975
        %v3977 = vrot.slane %v3903, 2
        %v3978 = vrot.slane %v3904, 2
        %v3979 = vrot.slane %v3905, 2
        %v3980 = vsel %vm3101, %v3977, %v3979
        %v3981 = vrot.slane %v3906, 2
        %v3982 = vsel %vm3101, %v3978, %v3981
        %v3983 = vrot.slane %v3907, 2
        %v3984 = vrot.slane %v3908, 2
        %v3985 = vrot.slane %v3909, 2
        %v3986 = vsel %vm3101, %v3983, %v3985
        %v3987 = vrot.slane %v3910, 2
        %v3988 = vsel %vm3101, %v3984, %v3987
        %v3989 = vrot.slane %v3911, 2
        %v3990 = vrot.slane %v3912, 2
        %v3991 = vrot.slane %v3913, 2
        %v3992 = vsel %vm3101, %v3989, %v3991
        %v3993 = vrot.slane %v3914, 2
        %v3994 = vsel %vm3101, %v3990, %v3993
        %v4027 = vadd.f32 %v3817, %v3947
        %v4028 = vadd.f32 %v3818, %v3948
        %v4029 = vadd.f32 %v3819, %v3950
        %v4030 = vadd.f32 %v3820, %v3952
        %v4031 = vadd.f32 %v3821, %v3953
        %v4032 = vadd.f32 %v3822, %v3954
        %v4033 = vadd.f32 %v3823, %v3956
        %v4034 = vadd.f32 %v3824, %v3958
        %v4035 = vadd.f32 %v3825, %v3959
        %v4036 = vadd.f32 %v3826, %v3960
        %v4037 = vadd.f32 %v3827, %v3962
        %v4038 = vadd.f32 %v3828, %v3964
        %v4039 = vadd.f32 %v3829, %v3965
        %v4040 = vadd.f32 %v3830, %v3966
        %v4041 = vadd.f32 %v3831, %v3968
        %v4042 = vadd.f32 %v3832, %v3970
        %v4043 = vadd.f32 %v3833, %v3971
        %v4044 = vadd.f32 %v3834, %v3972
        %v4045 = vadd.f32 %v3835, %v3974
        %v4046 = vadd.f32 %v3836, %v3976
        %v4047 = vadd.f32 %v3837, %v3977
        %v4048 = vadd.f32 %v3838, %v3978
        %v4049 = vadd.f32 %v3839, %v3980
        %v4050 = vadd.f32 %v3840, %v3982
        %v4051 = vadd.f32 %v3841, %v3983
        %v4052 = vadd.f32 %v3842, %v3984
        %v4053 = vadd.f32 %v3843, %v3986
        %v4054 = vadd.f32 %v3844, %v3988
        %v4055 = vadd.f32 %v3845, %v3989
        %v4056 = vadd.f32 %v3846, %v3990
        %v4057 = vadd.f32 %v3847, %v3992
        %v4058 = vadd.f32 %v3848, %v3994
        %vm4091 = vcmask 1040384
        %v4092 = vrot.slane %v4027, 7
        %v4093 = vrot.slane %v4029, 7
        %v4094 = vsel %vm4091, %v4092, %v4093
        %v4095 = vrot.slane %v4028, 7
        %v4096 = vrot.slane %v4030, 7
        %v4097 = vsel %vm4091, %v4095, %v4096
        %v4098 = vrot.slane %v4031, 7
        %v4099 = vrot.slane %v4033, 7
        %v4100 = vsel %vm4091, %v4098, %v4099
        %v4101 = vrot.slane %v4032, 7
        %v4102 = vrot.slane %v4034, 7
        %v4103 = vsel %vm4091, %v4101, %v4102
        %v4104 = vrot.slane %v4035, 7
        %v4105 = vrot.slane %v4037, 7
        %v4106 = vsel %vm4091, %v4104, %v4105
        %v4107 = vrot.slane %v4036, 7
        %v4108 = vrot.slane %v4038, 7
        %v4109 = vsel %vm4091, %v4107, %v4108
        %v4110 = vrot.slane %v4039, 7
        %v4111 = vrot.slane %v4041, 7
        %v4112 = vsel %vm4091, %v4110, %v4111
        %v4113 = vrot.slane %v4040, 7
        %v4114 = vrot.slane %v4042, 7
        %v4115 = vsel %vm4091, %v4113, %v4114
        %v4116 = vrot.slane %v4043, 7
        %v4117 = vrot.slane %v4045, 7
        %v4118 = vsel %vm4091, %v4116, %v4117
        %v4119 = vrot.slane %v4044, 7
        %v4120 = vrot.slane %v4046, 7
        %v4121 = vsel %vm4091, %v4119, %v4120
        %v4122 = vrot.slane %v4047, 7
        %v4123 = vrot.slane %v4049, 7
        %v4124 = vsel %vm4091, %v4122, %v4123
        %v4125 = vrot.slane %v4048, 7
        %v4126 = vrot.slane %v4050, 7
        %v4127 = vsel %vm4091, %v4125, %v4126
        %v4128 = vrot.slane %v4051, 7
        %v4129 = vrot.slane %v4053, 7
        %v4130 = vsel %vm4091, %v4128, %v4129
        %v4131 = vrot.slane %v4052, 7
        %v4132 = vrot.slane %v4054, 7
        %v4133 = vsel %vm4091, %v4131, %v4132
        %v4134 = vrot.slane %v4055, 7
        %v4135 = vrot.slane %v4057, 7
        %v4136 = vsel %vm4091, %v4134, %v4135
        %v4137 = vrot.slane %v4056, 7
        %v4138 = vrot.slane %v4058, 7
        %v4139 = vsel %vm4091, %v4137, %v4138
        %v4156 = vld [vmem:[%s35] sm:$0x3]
        %v4158 = vperm.slane %v4156, 0
        %v4159 = vperm.slane %v4156, 1
        %v4162 = vadd.f32 %v4094, %v4158
        %v4163 = vadd.f32 %v4097, %v4159
        %v4164 = vadd.f32 %v4100, %v4158
        %v4165 = vadd.f32 %v4103, %v4159
        %v4166 = vadd.f32 %v4106, %v4158
        %v4167 = vadd.f32 %v4109, %v4159
        %v4168 = vadd.f32 %v4112, %v4158
        %v4169 = vadd.f32 %v4115, %v4159
        %v4170 = vadd.f32 %v4118, %v4158
        %v4171 = vadd.f32 %v4121, %v4159
        %v4172 = vadd.f32 %v4124, %v4158
        %v4173 = vadd.f32 %v4127, %v4159
        %v4174 = vadd.f32 %v4130, %v4158
        %v4175 = vadd.f32 %v4133, %v4159
        %v4176 = vadd.f32 %v4136, %v4158
        %v4177 = vadd.f32 %v4139, %v4159
        %v4178 = vmax.f32 %v4162, 0.0
        %v4179 = vmax.f32 %v4163, 0.0
        %v4180 = vmax.f32 %v4164, 0.0
        %v4181 = vmax.f32 %v4165, 0.0
        %v4182 = vmax.f32 %v4166, 0.0
        %v4183 = vmax.f32 %v4167, 0.0
        %v4184 = vmax.f32 %v4168, 0.0
        %v4185 = vmax.f32 %v4169, 0.0
        %v4186 = vmax.f32 %v4170, 0.0
        %v4187 = vmax.f32 %v4171, 0.0
        %v4188 = vmax.f32 %v4172, 0.0
        %v4189 = vmax.f32 %v4173, 0.0
        %v4190 = vmax.f32 %v4174, 0.0
        %v4191 = vmax.f32 %v4175, 0.0
        %v4192 = vmax.f32 %v4176, 0.0
        %v4193 = vmax.f32 %v4177, 0.0
        %v4194 = vmin.f32 %v4178, 6.0
        %v4195 = vmin.f32 %v4179, 6.0
        %v4196 = vmin.f32 %v4180, 6.0
        %v4197 = vmin.f32 %v4181, 6.0
        %v4198 = vmin.f32 %v4182, 6.0
        %v4199 = vmin.f32 %v4183, 6.0
        %v4200 = vmin.f32 %v4184, 6.0
        %v4201 = vmin.f32 %v4185, 6.0
        %v4202 = vmin.f32 %v4186, 6.0
        %v4203 = vmin.f32 %v4187, 6.0
        %v4204 = vmin.f32 %v4188, 6.0
        %v4205 = vmin.f32 %v4189, 6.0
        %v4206 = vmin.f32 %v4190, 6.0
        %v4207 = vmin.f32 %v4191, 6.0
        %v4208 = vmin.f32 %v4192, 6.0
        %v4209 = vmin.f32 %v4193, 6.0
        %v4210 = vld [vmem:[%s7] sm:$0xf]
        %v4211 = vld [vmem:[%s7 + $0x4] sm:$0xf]
        %v4212 = vpack.c.bf16 %v4196, %v4194
        %v4213 = vpack.c.bf16 %v4197, %v4195
        %v4214 = vpack.c.bf16 %v4200, %v4198
        %v4215 = vpack.c.bf16 %v4201, %v4199
        %v4216 = vpack.c.bf16 %v4204, %v4202
        %v4217 = vpack.c.bf16 %v4205, %v4203
        %v4218 = vpack.c.bf16 %v4208, %v4206
        %v4219 = vpack.c.bf16 %v4209, %v4207
        %v4222 = vunpack.c.l.b16 %v4210
        %v4223 = vunpack.c.l.b16 %v4211
        %v4224 = vpack.c.b16 %v4223, %v4222
        %v4226 = vsel %vm2706, %v4224, 0
        %4228 = vmatpush.bf16.msra.mxu0 0
        %4229 = vmatpush.bf16.msra.mxu0 0
        %4230 = vmatpush.bf16.msra.mxu0 0
        %4231 = vmatpush.bf16.msra.mxu0 0
        %4232 = vmatpush.bf16.msra.mxu0 %v4218
        %4233 = vmatpush.bf16.msra.mxu0 %v4216
        %4234 = vmatpush.bf16.msra.mxu0 %v4214
        %4235 = vmatpush.bf16.msra.mxu0 %v4212
        %4236 = vmatmul.bf16.gmra.mxu0 %v4226
        %v4237 = vpop.f32.mrf.mxu0
        %v4238 = vadd.f32 0.0, %v4237
        %v4239 = vpop.f32.mrf.mxu0
        %v4240 = vadd.f32 0.0, %v4239
        %4241 = vdwg.mxu0
        %4242 = vmatpush.bf16.msra.mxu0 0
        %4243 = vmatpush.bf16.msra.mxu0 0
        %4244 = vmatpush.bf16.msra.mxu0 0
        %4245 = vmatpush.bf16.msra.mxu0 0
        %4246 = vmatpush.bf16.msra.mxu0 %v4219
        %4247 = vmatpush.bf16.msra.mxu0 %v4217
        %4248 = vmatpush.bf16.msra.mxu0 %v4215
        %4249 = vmatpush.bf16.msra.mxu0 %v4213
        %4250 = vmatmul.bf16.gmra.mxu0 %v4226
        %v4251 = vpop.f32.mrf.mxu0
        %v4252 = vadd.f32 0.0, %v4251
        %v4253 = vpop.f32.mrf.mxu0
        %v4254 = vadd.f32 0.0, %v4253
        %4255 = vdwg.mxu0
        %v4256 = vadd.f32 %v4238, %v4240
        %v4257 = vrot.slane %v4256, 4
        %v4258 = vadd.f32 %v4256, %v4257
        %v4259 = vrot.slane %v4258, 2
        %v4260 = vadd.f32 %v4258, %v4259
        %v4261 = vrot.slane %v4260, 1
        %v4262 = vadd.f32 %v4260, %v4261
        %v4263 = vsel %vm2706, %v4252, 0.0
        %v4264 = vsel %vm2706, %v4254, 0.0
        %v4265 = vadd.f32 %v4263, %v4264
        %v4266 = vrot.slane %v4265, 4
        %v4267 = vadd.f32 %v4265, %v4266
        %v4268 = vrot.slane %v4267, 2
        %v4269 = vadd.f32 %v4267, %v4268
        %v4270 = vrot.slane %v4269, 1
        %v4271 = vadd.f32 %v4269, %v4270
        %v4272 = vrcp.pop 16.0
        %v4273 = vmul.f32 16.0, %v4272
        %v4274 = vsub.f32 1.0, %v4273
        %v4275 = vmul.f32 %v4272, %v4274
        %v4276 = vadd.f32 %v4272, %v4275
        %vm4277 = vweird.f32 %v4272
        %v4278 = vsel %vm4277, %v4272, %v4276
        %v4279 = vmul.f32 %v4262, %v4278
        %v4280 = vmul.f32 %v4271, %v4278
        %v4281 = vpack.c.bf16 %v4279, %v4279
        %v4282 = vpack.c.bf16 %v4280, %v4280
        %v4283 = vld [vmem:[%s37] sm:$0xf]
        %v4284 = vld [vmem:[%s37 + $0x4] sm:$0xf]
        %v4285 = vld [vmem:[%s37 + $0x8] sm:$0xf]
        %v4286 = vld [vmem:[%s37 + $0xc] sm:$0xf]
        %v4287 = vld [vmem:[%s37 + $0x10] sm:$0xf]
        %v4288 = vld [vmem:[%s37 + $0x14] sm:$0xf]
        %v4289 = vld [vmem:[%s37 + $0x18] sm:$0xf]
        %v4290 = vld [vmem:[%s37 + $0x1c] sm:$0xf]
        %v4291 = vld [vmem:[%s37 + $0x20] sm:$0xf]
        %v4292 = vld [vmem:[%s37 + $0x24] sm:$0xf]
        %v4293 = vld [vmem:[%s37 + $0x28] sm:$0xf]
        %v4294 = vld [vmem:[%s37 + $0x2c] sm:$0xf]
        %v4295 = vld [vmem:[%s37 + $0x30] sm:$0xf]
        %v4296 = vld [vmem:[%s37 + $0x34] sm:$0xf]
        %v4297 = vld [vmem:[%s37 + $0x38] sm:$0xf]
        %v4298 = vld [vmem:[%s37 + $0x3c] sm:$0xf]
        %v4299 = vld [vmem:[%s37 + $0x40] sm:$0xf]
        %v4300 = vld [vmem:[%s37 + $0x44] sm:$0xf]
        %v4301 = vld [vmem:[%s37 + $0x48] sm:$0xf]
        %v4302 = vld [vmem:[%s37 + $0x4c] sm:$0xf]
        %v4303 = vld [vmem:[%s37 + $0x50] sm:$0xf]
        %v4304 = vld [vmem:[%s37 + $0x54] sm:$0xf]
        %v4305 = vld [vmem:[%s37 + $0x58] sm:$0xf]
        %v4306 = vld [vmem:[%s37 + $0x5c] sm:$0xf]
        %v4307 = vld [vmem:[%s39] sm:$0x1]
        %v4332 = vunpack.c.l.b16 %v4283
        %v4333 = vunpack.c.l.b16 %v4284
        %v4334 = vunpack.c.l.b16 %v4285
        %v4335 = vunpack.c.l.b16 %v4286
        %v4336 = vunpack.c.l.b16 %v4287
        %v4337 = vunpack.c.l.b16 %v4288
        %v4338 = vunpack.c.l.b16 %v4289
        %v4339 = vunpack.c.l.b16 %v4290
        %v4340 = vunpack.c.l.b16 %v4291
        %v4341 = vunpack.c.l.b16 %v4292
        %v4342 = vunpack.c.l.b16 %v4293
        %v4343 = vunpack.c.l.b16 %v4294
        %v4344 = vunpack.c.l.b16 %v4295
        %v4345 = vunpack.c.l.b16 %v4296
        %v4346 = vunpack.c.l.b16 %v4297
        %v4347 = vunpack.c.l.b16 %v4298
        %v4348 = vunpack.c.l.b16 %v4299
        %v4349 = vunpack.c.l.b16 %v4300
        %v4350 = vunpack.c.l.b16 %v4301
        %v4351 = vunpack.c.l.b16 %v4302
        %v4352 = vunpack.c.l.b16 %v4303
        %v4353 = vunpack.c.l.b16 %v4304
        %v4354 = vunpack.c.l.b16 %v4305
        %v4355 = vunpack.c.l.b16 %v4306
        %v4356 = vpack.c.b16 %v4333, %v4332
        %v4357 = vpack.c.b16 %v4335, %v4334
        %v4358 = vpack.c.b16 %v4337, %v4336
        %v4359 = vpack.c.b16 %v4339, %v4338
        %v4360 = vpack.c.b16 %v4341, %v4340
        %v4361 = vpack.c.b16 %v4343, %v4342
        %v4362 = vpack.c.b16 %v4345, %v4344
        %v4363 = vpack.c.b16 %v4347, %v4346
        %v4364 = vpack.c.b16 %v4349, %v4348
        %v4365 = vpack.c.b16 %v4351, %v4350
        %v4366 = vpack.c.b16 %v4353, %v4352
        %v4367 = vpack.c.b16 %v4355, %v4354
        %v4381 = vsel %vm2706, %v4282, 0
        %4383 = vmatpush.bf16.msra.mxu0 %v4363
        %4384 = vmatpush.bf16.msra.mxu0 %v4362
        %4385 = vmatpush.bf16.msra.mxu0 %v4361
        %4386 = vmatpush.bf16.msra.mxu0 %v4360
        %4387 = vmatpush.bf16.msra.mxu0 %v4359
        %4388 = vmatpush.bf16.msra.mxu0 %v4358
        %4389 = vmatpush.bf16.msra.mxu0 %v4357
        %4390 = vmatpush.bf16.msra.mxu0 %v4356
        %4391 = vmatmul.bf16.gmra.mxu0 %v4281
        %v4392 = vpop.f32.mrf.mxu0
        %v4393 = vadd.f32 %v4307, %v4392
        %v4394 = vpop.f32.mrf.mxu0
        %4395 = vdwg.mxu0
        %4396 = vmatpush.bf16.msra.mxu0 0
        %4397 = vmatpush.bf16.msra.mxu0 0
        %4398 = vmatpush.bf16.msra.mxu0 0
        %4399 = vmatpush.bf16.msra.mxu0 0
        %4400 = vmatpush.bf16.msra.mxu0 %v4367
        %4401 = vmatpush.bf16.msra.mxu0 %v4366
        %4402 = vmatpush.bf16.msra.mxu0 %v4365
        %4403 = vmatpush.bf16.msra.mxu0 %v4364
        %4404 = vmatmul.bf16.gmra.mxu0 %v4381
        %v4405 = vpop.f32.mrf.mxu0
        %v4406 = vadd.f32 %v4393, %v4405
        %v4407 = vpop.f32.mrf.mxu0
        %4408 = vdwg.mxu0
        %v4409 = vmax.f32 %v4406, 0.0
        %v4410 = vpack.c.bf16 %v4409, %v4409
        %v4411 = vld [vmem:[%s41] sm:$0xff]
        %v4412 = vld [vmem:[%s41 + $0x8] sm:$0xff]
        %v4413 = vld [vmem:[%s41 + $0x10] sm:$0xff]
        %v4414 = vld [vmem:[%s41 + $0x18] sm:$0xff]
        %v4415 = vld [vmem:[%s41 + $0x20] sm:$0xff]
        %v4416 = vld [vmem:[%s41 + $0x28] sm:$0xff]
        %v4417 = vld [vmem:[%s43] sm:$0x3]
        %v4424 = vunpack.c.l.b16 %v4411
        %v4425 = vunpack.c.h.b16 %v4411
        %v4426 = vunpack.c.l.b16 %v4412
        %v4427 = vunpack.c.h.b16 %v4412
        %v4428 = vunpack.c.l.b16 %v4413
        %v4429 = vunpack.c.h.b16 %v4413
        %v4430 = vunpack.c.l.b16 %v4414
        %v4431 = vunpack.c.h.b16 %v4414
        %v4432 = vunpack.c.l.b16 %v4415
        %v4433 = vunpack.c.h.b16 %v4415
        %v4434 = vunpack.c.l.b16 %v4416
        %v4435 = vunpack.c.h.b16 %v4416
        %v4436 = vpack.c.b16 %v4426, %v4424
        %v4437 = vpack.c.b16 %v4427, %v4425
        %v4438 = vpack.c.b16 %v4430, %v4428
        %v4439 = vpack.c.b16 %v4431, %v4429
        %v4440 = vpack.c.b16 %v4434, %v4432
        %v4441 = vpack.c.b16 %v4435, %v4433
        %v4449 = vperm.slane %v4417, 0
        %v4450 = vperm.slane %v4417, 1
        %vm4453 = vcmask 392192
        %v4455 = vsel %vm4453, %v4410, 0
        %4457 = vmatpush.bf16.msra.mxu0 0
        %4458 = vmatpush.bf16.msra.mxu0 0
        %4459 = vmatpush.bf16.msra.mxu0 0
        %4460 = vmatpush.bf16.msra.mxu0 0
        %4461 = vmatpush.bf16.msra.mxu0 0
        %4462 = vmatpush.bf16.msra.mxu0 %v4440
        %4463 = vmatpush.bf16.msra.mxu0 %v4438
        %4464 = vmatpush.bf16.msra.mxu0 %v4436
        %4465 = vmatmul.bf16.gmra.mxu0 %v4455
        %v4466 = vpop.f32.mrf.mxu0
        %v4467 = vadd.f32 %v4449, %v4466
        %v4468 = vpop.f32.mrf.mxu0
        %4469 = vdwg.mxu0
        %4470 = vmatpush.bf16.msra.mxu0 0
        %4471 = vmatpush.bf16.msra.mxu0 0
        %4472 = vmatpush.bf16.msra.mxu0 0
        %4473 = vmatpush.bf16.msra.mxu0 0
        %4474 = vmatpush.bf16.msra.mxu0 0
        %4475 = vmatpush.bf16.msra.mxu0 %v4441
        %4476 = vmatpush.bf16.msra.mxu0 %v4439
        %4477 = vmatpush.bf16.msra.mxu0 %v4437
        %4478 = vmatmul.bf16.gmra.mxu0 %v4455
        %v4479 = vpop.f32.mrf.mxu0
        %v4480 = vadd.f32 %v4450, %v4479
        %v4481 = vpop.f32.mrf.mxu0
        %4482 = vdwg.mxu0
        %v4483 = vxor.u32 %v4467, 2147483648
        %v4484 = vxor.u32 %v4480, 2147483648
        %v4485 = vmul.f32 %v4483, 1.442695
        %v4486 = vpow.pop %v4485
        %v4487 = vmul.f32 %v4484, 1.442695
        %v4488 = vpow.pop %v4487
        %v4489 = vadd.f32 %v4486, 1.0
        %v4490 = vadd.f32 %v4488, 1.0
        %v4491 = vrcp.pop %v4489
        %v4492 = vmul.f32 %v4489, %v4491
        %v4493 = vsub.f32 1.0, %v4492
        %v4494 = vmul.f32 %v4491, %v4493
        %v4495 = vadd.f32 %v4491, %v4494
        %vm4496 = vweird.f32 %v4489
        %vm4497 = vweird.f32 %v4491
        %vm4498 = vmor %vm4496, %vm4497
        %v4499 = vsel %vm4498, %v4491, %v4495
        %v4500 = vand.u32 2147483647, %v4489
        %vm4501 = vcmp.eq.f32.partialorder %v4500, 8.507059e+37
        %v4502 = vand.u32 %v4489, 2147483648
        %v4503 = vor.u32 1.1754944e-38, %v4502
        %v4504 = vsel %vm4501, %v4503, %v4499
        %v4505 = vmul.f32 1.0, %v4504
        %v4506 = vrcp.pop %v4490
        %v4507 = vmul.f32 %v4490, %v4506
        %v4508 = vsub.f32 1.0, %v4507
        %v4509 = vmul.f32 %v4506, %v4508
        %v4510 = vadd.f32 %v4506, %v4509
        %vm4511 = vweird.f32 %v4490
        %vm4512 = vweird.f32 %v4506
        %vm4513 = vmor %vm4511, %vm4512
        %v4514 = vsel %vm4513, %v4506, %v4510
        %v4515 = vand.u32 2147483647, %v4490
        %vm4516 = vcmp.eq.f32.partialorder %v4515, 8.507059e+37
        %v4517 = vand.u32 %v4490, 2147483648
        %v4518 = vor.u32 1.1754944e-38, %v4517
        %v4519 = vsel %vm4516, %v4518, %v4514
        %v4520 = vmul.f32 1.0, %v4519
        %v4521 = vperm.slane %v4505, 0
        %v4522 = vperm.slane %v4520, 0
        %v4523 = vmul.f32 %v4238, %v4521
        %v4524 = vmul.f32 %v4252, %v4522
        %v4525 = vmul.f32 %v4240, %v4521
        %v4526 = vmul.f32 %v4254, %v4522
        %v4527 = vpack.c.bf16 %v4525, %v4523
        %v4528 = vpack.c.bf16 %v4526, %v4524
        %v4529 = vld [vmem:[%s45] sm:$0xf]
        %v4530 = vld [vmem:[%s45 + $0x4] sm:$0xf]
        %v4531 = vld [vmem:[%s45 + $0x8] sm:$0xf]
        %v4532 = vld [vmem:[%s45 + $0xc] sm:$0xf]
        %v4533 = vld [vmem:[%s45 + $0x10] sm:$0xf]
        %v4534 = vld [vmem:[%s45 + $0x14] sm:$0xf]
        %v4535 = vld [vmem:[%s45 + $0x18] sm:$0xf]
        %v4536 = vld [vmem:[%s45 + $0x1c] sm:$0xf]
        %v4537 = vld [vmem:[%s45 + $0x20] sm:$0xf]
        %v4538 = vld [vmem:[%s45 + $0x24] sm:$0xf]
        %v4539 = vld [vmem:[%s45 + $0x28] sm:$0xf]
        %v4540 = vld [vmem:[%s45 + $0x2c] sm:$0xf]
        %v4541 = vld [vmem:[%s45 + $0x30] sm:$0xf]
        %v4542 = vld [vmem:[%s45 + $0x34] sm:$0xf]
        %v4543 = vld [vmem:[%s45 + $0x38] sm:$0xf]
        %v4544 = vld [vmem:[%s45 + $0x3c] sm:$0xf]
        %v4545 = vld [vmem:[%s45 + $0x40] sm:$0xf]
        %v4546 = vld [vmem:[%s45 + $0x44] sm:$0xf]
        %v4547 = vld [vmem:[%s45 + $0x48] sm:$0xf]
        %v4548 = vld [vmem:[%s45 + $0x4c] sm:$0xf]
        %v4549 = vld [vmem:[%s45 + $0x50] sm:$0xf]
        %v4550 = vld [vmem:[%s45 + $0x54] sm:$0xf]
        %v4551 = vld [vmem:[%s45 + $0x58] sm:$0xf]
        %v4552 = vld [vmem:[%s45 + $0x5c] sm:$0xf]
        %v4553 = vld [vmem:[%s47] sm:$0x1]
        %v4555 = vperm.slane %v4553, 0
        %v4581 = vunpack.c.l.b16 %v4529
        %v4582 = vunpack.c.l.b16 %v4530
        %v4583 = vunpack.c.l.b16 %v4531
        %v4584 = vunpack.c.l.b16 %v4532
        %v4585 = vunpack.c.l.b16 %v4533
        %v4586 = vunpack.c.l.b16 %v4534
        %v4587 = vunpack.c.l.b16 %v4535
        %v4588 = vunpack.c.l.b16 %v4536
        %v4589 = vunpack.c.l.b16 %v4537
        %v4590 = vunpack.c.l.b16 %v4538
        %v4591 = vunpack.c.l.b16 %v4539
        %v4592 = vunpack.c.l.b16 %v4540
        %v4593 = vunpack.c.l.b16 %v4541
        %v4594 = vunpack.c.l.b16 %v4542
        %v4595 = vunpack.c.l.b16 %v4543
        %v4596 = vunpack.c.l.b16 %v4544
        %v4597 = vunpack.c.l.b16 %v4545
        %v4598 = vunpack.c.l.b16 %v4546
        %v4599 = vunpack.c.l.b16 %v4547
        %v4600 = vunpack.c.l.b16 %v4548
        %v4601 = vunpack.c.l.b16 %v4549
        %v4602 = vunpack.c.l.b16 %v4550
        %v4603 = vunpack.c.l.b16 %v4551
        %v4604 = vunpack.c.l.b16 %v4552
        %v4605 = vpack.c.b16 %v4582, %v4581
        %v4606 = vpack.c.b16 %v4584, %v4583
        %v4607 = vpack.c.b16 %v4586, %v4585
        %v4608 = vpack.c.b16 %v4588, %v4587
        %v4609 = vpack.c.b16 %v4590, %v4589
        %v4610 = vpack.c.b16 %v4592, %v4591
        %v4611 = vpack.c.b16 %v4594, %v4593
        %v4612 = vpack.c.b16 %v4596, %v4595
        %v4613 = vpack.c.b16 %v4598, %v4597
        %v4614 = vpack.c.b16 %v4600, %v4599
        %v4615 = vpack.c.b16 %v4602, %v4601
        %v4616 = vpack.c.b16 %v4604, %v4603
        %v4630 = vsel %vm2706, %v4528, 0
        %4632 = vmatpush.bf16.msra.mxu0 %v4612
        %4633 = vmatpush.bf16.msra.mxu0 %v4611
        %4634 = vmatpush.bf16.msra.mxu0 %v4610
        %4635 = vmatpush.bf16.msra.mxu0 %v4609
        %4636 = vmatpush.bf16.msra.mxu0 %v4608
        %4637 = vmatpush.bf16.msra.mxu0 %v4607
        %4638 = vmatpush.bf16.msra.mxu0 %v4606
        %4639 = vmatpush.bf16.msra.mxu0 %v4605
        %4640 = vmatmul.bf16.gmra.mxu0 %v4527
        %v4641 = vpop.f32.mrf.mxu0
        %v4642 = vadd.f32 %v4555, %v4641
        %v4643 = vpop.f32.mrf.mxu0
        %v4644 = vadd.f32 %v4555, %v4643
        %4645 = vdwg.mxu0
        %4646 = vmatpush.bf16.msra.mxu0 0
        %4647 = vmatpush.bf16.msra.mxu0 0
        %4648 = vmatpush.bf16.msra.mxu0 0
        %4649 = vmatpush.bf16.msra.mxu0 0
        %4650 = vmatpush.bf16.msra.mxu0 %v4616
        %4651 = vmatpush.bf16.msra.mxu0 %v4615
        %4652 = vmatpush.bf16.msra.mxu0 %v4614
        %4653 = vmatpush.bf16.msra.mxu0 %v4613
        %4654 = vmatmul.bf16.gmra.mxu0 %v4630
        %v4655 = vpop.f32.mrf.mxu0
        %v4656 = vadd.f32 %v4642, %v4655
        %v4657 = vpop.f32.mrf.mxu0
        %v4658 = vadd.f32 %v4644, %v4657
        %4659 = vdwg.mxu0
        %v4660 = vpack.c.bf16 %v4658, %v4656
        %v4661 = vld [vmem:[%s49] sm:$0xff]
        %v4662 = vld [vmem:[%s49 + $0x8] sm:$0xf]
        %v4663 = vld [vmem:[%s49 + $0xc] sm:$0xff]
        %v4664 = vld [vmem:[%s49 + $0x14] sm:$0xf]
        %v4665 = vld [vmem:[%s49 + $0x18] sm:$0xff]
        %v4666 = vld [vmem:[%s49 + $0x20] sm:$0xf]
        %v4667 = vld [vmem:[%s49 + $0x24] sm:$0xff]
        %v4668 = vld [vmem:[%s49 + $0x2c] sm:$0xf]
        %v4669 = vld [vmem:[%s49 + $0x30] sm:$0xff]
        %v4670 = vld [vmem:[%s49 + $0x38] sm:$0xf]
        %v4671 = vld [vmem:[%s49 + $0x3c] sm:$0xff]
        %v4672 = vld [vmem:[%s49 + $0x44] sm:$0xf]
        %v4673 = vld [vmem:[%s49 + $0x48] sm:$0xff]
        %v4674 = vld [vmem:[%s49 + $0x50] sm:$0xf]
        %v4675 = vld [vmem:[%s49 + $0x54] sm:$0xff]
        %v4676 = vld [vmem:[%s49 + $0x5c] sm:$0xf]
        %v4677 = vld [vmem:[%s51] sm:$0x7]
        %v4679 = vperm.slane %v4677, 0
        %v4680 = vperm.slane %v4677, 1
        %v4681 = vperm.slane %v4677, 2
        %v4701 = vunpack.c.l.b16 %v4661
        %v4702 = vunpack.c.h.b16 %v4661
        %v4703 = vunpack.c.l.b16 %v4662
        %v4704 = vunpack.c.l.b16 %v4663
        %v4705 = vunpack.c.h.b16 %v4663
        %v4706 = vunpack.c.l.b16 %v4664
        %v4707 = vunpack.c.l.b16 %v4665
        %v4708 = vunpack.c.h.b16 %v4665
        %v4709 = vunpack.c.l.b16 %v4666
        %v4710 = vunpack.c.l.b16 %v4667
        %v4711 = vunpack.c.h.b16 %v4667
        %v4712 = vunpack.c.l.b16 %v4668
        %v4713 = vunpack.c.l.b16 %v4669
        %v4714 = vunpack.c.h.b16 %v4669
        %v4715 = vunpack.c.l.b16 %v4670
        %v4716 = vunpack.c.l.b16 %v4671
        %v4717 = vunpack.c.h.b16 %v4671
        %v4718 = vunpack.c.l.b16 %v4672
        %v4719 = vunpack.c.l.b16 %v4673
        %v4720 = vunpack.c.h.b16 %v4673
        %v4721 = vunpack.c.l.b16 %v4674
        %v4722 = vunpack.c.l.b16 %v4675
        %v4723 = vunpack.c.h.b16 %v4675
        %v4724 = vunpack.c.l.b16 %v4676
        %v4725 = vpack.c.b16 %v4704, %v4701
        %v4726 = vpack.c.b16 %v4705, %v4702
        %v4727 = vpack.c.b16 %v4706, %v4703
        %v4728 = vpack.c.b16 %v4710, %v4707
        %v4729 = vpack.c.b16 %v4711, %v4708
        %v4730 = vpack.c.b16 %v4712, %v4709
        %v4731 = vpack.c.b16 %v4716, %v4713
        %v4732 = vpack.c.b16 %v4717, %v4714
        %v4733 = vpack.c.b16 %v4718, %v4715
        %v4734 = vpack.c.b16 %v4722, %v4719
        %v4735 = vpack.c.b16 %v4723, %v4720
        %v4736 = vpack.c.b16 %v4724, %v4721
        %v4750 = vsel %vm2706, %v4660, 0
        %4752 = vmatpush.bf16.msra.mxu0 0
        %4753 = vmatpush.bf16.msra.mxu0 0
        %4754 = vmatpush.bf16.msra.mxu0 0
        %4755 = vmatpush.bf16.msra.mxu0 0
        %4756 = vmatpush.bf16.msra.mxu0 %v4734
        %4757 = vmatpush.bf16.msra.mxu0 %v4731
        %4758 = vmatpush.bf16.msra.mxu0 %v4728
        %4759 = vmatpush.bf16.msra.mxu0 %v4725
        %4760 = vmatmul.bf16.gmra.mxu0 %v4750
        %v4761 = vpop.f32.mrf.mxu0
        %v4762 = vadd.f32 %v4679, %v4761
        %v4763 = vpop.f32.mrf.mxu0
        %v4764 = vadd.f32 %v4679, %v4763
        %4765 = vdwg.mxu0
        %4766 = vmatpush.bf16.msra.mxu0 0
        %4767 = vmatpush.bf16.msra.mxu0 0
        %4768 = vmatpush.bf16.msra.mxu0 0
        %4769 = vmatpush.bf16.msra.mxu0 0
        %4770 = vmatpush.bf16.msra.mxu0 %v4735
        %4771 = vmatpush.bf16.msra.mxu0 %v4732
        %4772 = vmatpush.bf16.msra.mxu0 %v4729
        %4773 = vmatpush.bf16.msra.mxu0 %v4726
        %4774 = vmatmul.bf16.gmra.mxu0 %v4750
        %v4775 = vpop.f32.mrf.mxu0
        %v4776 = vadd.f32 %v4680, %v4775
        %v4777 = vpop.f32.mrf.mxu0
        %v4778 = vadd.f32 %v4680, %v4777
        %4779 = vdwg.mxu0
        %4780 = vmatpush.bf16.msra.mxu0 0
        %4781 = vmatpush.bf16.msra.mxu0 0
        %4782 = vmatpush.bf16.msra.mxu0 0
        %4783 = vmatpush.bf16.msra.mxu0 0
        %4784 = vmatpush.bf16.msra.mxu0 %v4736
        %4785 = vmatpush.bf16.msra.mxu0 %v4733
        %4786 = vmatpush.bf16.msra.mxu0 %v4730
        %4787 = vmatpush.bf16.msra.mxu0 %v4727
        %4788 = vmatmul.bf16.gmra.mxu0 %v4750
        %v4789 = vpop.f32.mrf.mxu0
        %v4790 = vadd.f32 %v4681, %v4789
        %v4791 = vpop.f32.mrf.mxu0
        %v4792 = vadd.f32 %v4681, %v4791
        %4793 = vdwg.mxu0
        %v4794 = vmax.f32 %v4762, 0.0
        %v4795 = vmax.f32 %v4776, 0.0
        %v4796 = vmax.f32 %v4790, 0.0
        %v4797 = vmax.f32 %v4764, 0.0
        %v4798 = vmax.f32 %v4778, 0.0
        %v4799 = vmax.f32 %v4792, 0.0
        %v4800 = vmin.f32 %v4794, 6.0
        %v4801 = vmin.f32 %v4795, 6.0
        %v4802 = vmin.f32 %v4796, 6.0
        %v4803 = vmin.f32 %v4797, 6.0
        %v4804 = vmin.f32 %v4798, 6.0
        %v4805 = vmin.f32 %v4799, 6.0
        %4806 = vst [vmem:[#allocation5] sm:$0x80] 0.0
        %4807 = vst [vmem:[#allocation5 + $0x8] sm:$0x80] 0.0
        %4808 = vst [vmem:[#allocation5 + $0x10] sm:$0x80] 0.0
        %4809 = vst [vmem:[#allocation5 + $0x18] sm:$0x1f] 0.0
        %4810 = vst [vmem:[#allocation5 + $0x20] sm:$0x1f] 0.0
        %4811 = vst [vmem:[#allocation5 + $0x28] sm:$0x1f] 0.0
        %s4812 = scalar_lea.vmem [#allocation5], 240
        %4813 = vst [vmem:[%s4812] sm:$0x80] 0.0
        %4814 = vst [vmem:[%s4812 + $0x8] sm:$0x80] 0.0
        %4815 = vst [vmem:[%s4812 + $0x10] sm:$0x80] 0.0
        %4816 = vst [vmem:[%s4812 + $0x18] sm:$0x1f] 0.0
        %4817 = vst [vmem:[%s4812 + $0x20] sm:$0x1f] 0.0
        %4818 = vst [vmem:[%s4812 + $0x28] sm:$0x1f] 0.0
        %s4819 = scalar_lea.vmem [#allocation5], 48
        %vm4820 = vcmp.lt.s32.totalorder %v2719, 384
        %vm4821 = vmand %vm2720, %vm4820
        %s4822 = scalar_lea.vmem %s4819, 7 [#allocation5]
        %4823 = vst.msk [vmem:[%s4822] ss:$8 sm:$0x7] %vm4821, 0.0
        %4824 = vst.msk [vmem:[%s4822] ss:$8 sm:$0x0] %vm4821, 0.0
        %s4825 = scalar_lea.vmem %s4819, 55 [#allocation5]
        %4826 = vst.msk [vmem:[%s4825] ss:$8 sm:$0x7] %vm4821, 0.0
        %4827 = vst.msk [vmem:[%s4825] ss:$8 sm:$0x0] %vm4821, 0.0
        %s4828 = scalar_lea.vmem %s4819, 103 [#allocation5]
        %4829 = vst.msk [vmem:[%s4828] ss:$8 sm:$0x7] %vm4821, 0.0
        %4830 = vst.msk [vmem:[%s4828] ss:$8 sm:$0x0] %vm4821, 0.0
        %s4831 = scalar_lea.vmem %s4819, 151 [#allocation5]
        %4832 = vst.msk [vmem:[%s4831] ss:$8 sm:$0x7] %vm4821, 0.0
        %4833 = vst.msk [vmem:[%s4831] ss:$8 sm:$0x0] %vm4821, 0.0
        %s4834 = scalar_lea.vmem %s4819, 28 [#allocation5]
        %4835 = vst.msk [vmem:[%s4834] ss:$8 sm:$0x7] %vm4821, 0.0
        %4836 = vst.msk [vmem:[%s4834] ss:$8 sm:$0x0] %vm4821, 0.0
        %s4837 = scalar_lea.vmem %s4819, 76 [#allocation5]
        %4838 = vst.msk [vmem:[%s4837] ss:$8 sm:$0x7] %vm4821, 0.0
        %4839 = vst.msk [vmem:[%s4837] ss:$8 sm:$0x0] %vm4821, 0.0
        %s4840 = scalar_lea.vmem %s4819, 124 [#allocation5]
        %4841 = vst.msk [vmem:[%s4840] ss:$8 sm:$0x7] %vm4821, 0.0
        %4842 = vst.msk [vmem:[%s4840] ss:$8 sm:$0x0] %vm4821, 0.0
        %s4843 = scalar_lea.vmem %s4819, 172 [#allocation5]
        %4844 = vst.msk [vmem:[%s4843] ss:$8 sm:$0x7] %vm4821, 0.0
        %4845 = vst.msk [vmem:[%s4843] ss:$8 sm:$0x0] %vm4821, 0.0
        %v4852 = vrot.slane %v4801, 4
        %v4853 = vrot.slane %v4804, 4
        %v4854 = vsel %vm2423, %v4800, %v4852
        %v4855 = vsel %vm2423, %v4852, %v4800
        %v4856 = vrot.slane %v4855, 4
        %v4857 = vrot.slane %v4802, 4
        %v4858 = vsel %vm2423, %v4803, %v4853
        %v4859 = vsel %vm2423, %v4853, %v4803
        %v4860 = vrot.slane %v4859, 4
        %v4861 = vrot.slane %v4805, 4
        %4862 = vst [vmem:[#allocation1] ss:$2 sm:$0xff] %v4854
        %s4863 = scalar_lea.vmem [#allocation1], 16
        %4864 = vst [vmem:[%s4863] ss:$2 sm:$0xff] %v4802
        %v4865 = vld.sshfl [vmem:[#allocation1] sm:$0xff pattern:$0x75316420]
        %v4866 = vld.sshfl [vmem:[#allocation1 + $0x8] sm:$0xff pattern:$0x75316420]
        %v4867 = vld.sshfl [vmem:[#allocation1 + $0x10] sm:$0xff pattern:$0x75316420]
        %s4868 = scalar_lea.vmem [#allocation1], 32
        %4869 = vst [vmem:[%s4868] ss:$2 sm:$0xff] %v4856
        %s4870 = scalar_lea.vmem [#allocation1], 48
        %4871 = vst [vmem:[%s4870] ss:$2 sm:$0xff] %v4857
        %v4872 = vld.sshfl [vmem:[#allocation1 + $0x20] sm:$0xff pattern:$0x75316420]
        %v4873 = vld.sshfl [vmem:[#allocation1 + $0x28] sm:$0xff pattern:$0x75316420]
        %v4874 = vld.sshfl [vmem:[#allocation1 + $0x30] sm:$0xff pattern:$0x75316420]
        %4875 = vst [vmem:[#allocation1] ss:$2 sm:$0xff] %v4858
        %4876 = vst [vmem:[%s4863] ss:$2 sm:$0xff] %v4805
        %v4877 = vld.sshfl [vmem:[#allocation1] sm:$0xff pattern:$0x75316420]
        %v4878 = vld.sshfl [vmem:[#allocation1 + $0x8] sm:$0xff pattern:$0x75316420]
        %v4879 = vld.sshfl [vmem:[#allocation1 + $0x10] sm:$0xff pattern:$0x75316420]
        %4880 = vst [vmem:[%s4868] ss:$2 sm:$0xff] %v4860
        %4881 = vst [vmem:[%s4870] ss:$2 sm:$0xff] %v4861
        %v4882 = vld.sshfl [vmem:[#allocation1 + $0x20] sm:$0xff pattern:$0x75316420]
        %v4883 = vld.sshfl [vmem:[#allocation1 + $0x28] sm:$0xff pattern:$0x75316420]
        %v4884 = vld.sshfl [vmem:[#allocation1 + $0x30] sm:$0xff pattern:$0x75316420]
        %4897 = vst [vmem:[%s4819 + $0x18] sm:$0xf] %v4865
        %4898 = vst [vmem:[%s4819 + $0x20] sm:$0xf] %v4866
        %4899 = vst [vmem:[%s4819 + $0x28] sm:$0xf] %v4867
        %4900 = vst [vmem:[%s4819 + $0x48] sm:$0xf] %v4872
        %4901 = vst [vmem:[%s4819 + $0x50] sm:$0xf] %v4873
        %4902 = vst [vmem:[%s4819 + $0x58] sm:$0xf] %v4874
        %4903 = vst [vmem:[%s4819 + $0x78] sm:$0xf] %v4877
        %4904 = vst [vmem:[%s4819 + $0x80] sm:$0xf] %v4878
        %4905 = vst [vmem:[%s4819 + $0x88] sm:$0xf] %v4879
        %4906 = vst [vmem:[%s4819 + $0xa8] sm:$0xf] %v4882
        %4907 = vst [vmem:[%s4819 + $0xb0] sm:$0xf] %v4883
        %4908 = vst [vmem:[%s4819 + $0xb8] sm:$0xf] %v4884
        %v4909 = vld [vmem:[%s53] sm:$0xff]
        %v4910 = vld [vmem:[%s53 + $0x8] sm:$0xff]
        %v4911 = vld [vmem:[%s53 + $0x10] sm:$0xff]
        %v4912 = vld [vmem:[%s53 + $0x18] sm:$0x1]
        %v4913 = vld [vmem:[%s53 + $0x20] sm:$0x1]
        %v4914 = vld [vmem:[%s53 + $0x28] sm:$0x1]
        %v4915 = vld [vmem:[#allocation5] sm:$0x80]
        %v4916 = vld [vmem:[#allocation5 + $0x8] sm:$0x80]
        %v4917 = vld [vmem:[#allocation5 + $0x10] sm:$0x80]
        %v4918 = vld [vmem:[#allocation5 + $0x18] sm:$0x7]
        %v4919 = vld [vmem:[#allocation5 + $0x20] sm:$0x7]
        %v4920 = vld [vmem:[#allocation5 + $0x28] sm:$0x7]
        %v4921 = vld [vmem:[#allocation5 + $0x30] sm:$0x80]
        %v4922 = vld [vmem:[#allocation5 + $0x38] sm:$0x80]
        %v4923 = vld [vmem:[#allocation5 + $0x40] sm:$0x80]
        %v4924 = vld [vmem:[#allocation5 + $0x48] sm:$0x7]
        %v4925 = vld [vmem:[#allocation5 + $0x50] sm:$0x7]
        %v4926 = vld [vmem:[#allocation5 + $0x58] sm:$0x7]
        %v4927 = vld [vmem:[#allocation5 + $0x60] sm:$0x80]
        %v4928 = vld [vmem:[#allocation5 + $0x68] sm:$0x80]
        %v4929 = vld [vmem:[#allocation5 + $0x70] sm:$0x80]
        %v4930 = vld [vmem:[#allocation5 + $0x78] sm:$0x7]
        %v4931 = vld [vmem:[#allocation5 + $0x80] sm:$0x7]
        %v4932 = vld [vmem:[#allocation5 + $0x88] sm:$0x7]
        %v4933 = vld [vmem:[#allocation5 + $0x90] sm:$0x80]
        %v4934 = vld [vmem:[#allocation5 + $0x98] sm:$0x80]
        %v4935 = vld [vmem:[#allocation5 + $0xa0] sm:$0x80]
        %v4936 = vld [vmem:[#allocation5 + $0xa8] sm:$0x7]
        %v4937 = vld [vmem:[#allocation5 + $0xb0] sm:$0x7]
        %v4938 = vld [vmem:[#allocation5 + $0xb8] sm:$0x7]
        %v4939 = vperm.slane %v4909, 0
        %v4940 = vperm.slane %v4910, 0
        %v4941 = vperm.slane %v4911, 0
        %v4942 = vmul.f32 %v4915, %v4939
        %v4943 = vmul.f32 %v4916, %v4940
        %v4944 = vmul.f32 %v4917, %v4941
        %v4945 = vmul.f32 %v4918, %v4939
        %v4946 = vmul.f32 %v4919, %v4940
        %v4947 = vmul.f32 %v4920, %v4941
        %v4948 = vmul.f32 %v4921, %v4939
        %v4949 = vmul.f32 %v4922, %v4940
        %v4950 = vmul.f32 %v4923, %v4941
        %v4951 = vmul.f32 %v4924, %v4939
        %v4952 = vmul.f32 %v4925, %v4940
        %v4953 = vmul.f32 %v4926, %v4941
        %v4954 = vmul.f32 %v4927, %v4939
        %v4955 = vmul.f32 %v4928, %v4940
        %v4956 = vmul.f32 %v4929, %v4941
        %v4957 = vmul.f32 %v4930, %v4939
        %v4958 = vmul.f32 %v4931, %v4940
        %v4959 = vmul.f32 %v4932, %v4941
        %v4960 = vmul.f32 %v4933, %v4939
        %v4961 = vmul.f32 %v4934, %v4940
        %v4962 = vmul.f32 %v4935, %v4941
        %v4963 = vmul.f32 %v4936, %v4939
        %v4964 = vmul.f32 %v4937, %v4940
        %v4965 = vmul.f32 %v4938, %v4941
        %v4966 = vadd.f32 %v4942, 0.0
        %v4967 = vadd.f32 %v4943, 0.0
        %v4968 = vadd.f32 %v4944, 0.0
        %v4969 = vadd.f32 %v4945, 0.0
        %v4970 = vadd.f32 %v4946, 0.0
        %v4971 = vadd.f32 %v4947, 0.0
        %v4972 = vadd.f32 %v4948, 0.0
        %v4973 = vadd.f32 %v4949, 0.0
        %v4974 = vadd.f32 %v4950, 0.0
        %v4975 = vadd.f32 %v4951, 0.0
        %v4976 = vadd.f32 %v4952, 0.0
        %v4977 = vadd.f32 %v4953, 0.0
        %v4978 = vadd.f32 %v4954, 0.0
        %v4979 = vadd.f32 %v4955, 0.0
        %v4980 = vadd.f32 %v4956, 0.0
        %v4981 = vadd.f32 %v4957, 0.0
        %v4982 = vadd.f32 %v4958, 0.0
        %v4983 = vadd.f32 %v4959, 0.0
        %v4984 = vadd.f32 %v4960, 0.0
        %v4985 = vadd.f32 %v4961, 0.0
        %v4986 = vadd.f32 %v4962, 0.0
        %v4987 = vadd.f32 %v4963, 0.0
        %v4988 = vadd.f32 %v4964, 0.0
        %v4989 = vadd.f32 %v4965, 0.0
        %v4990 = vld [vmem:[#allocation5 + $0x18] sm:$0xf]
        %v4991 = vld [vmem:[#allocation5 + $0x20] sm:$0xf]
        %v4992 = vld [vmem:[#allocation5 + $0x28] sm:$0xf]
        %v4993 = vld [vmem:[#allocation5 + $0x48] sm:$0xf]
        %v4994 = vld [vmem:[#allocation5 + $0x50] sm:$0xf]
        %v4995 = vld [vmem:[#allocation5 + $0x58] sm:$0xf]
        %v4996 = vld [vmem:[#allocation5 + $0x78] sm:$0xf]
        %v4997 = vld [vmem:[#allocation5 + $0x80] sm:$0xf]
        %v4998 = vld [vmem:[#allocation5 + $0x88] sm:$0xf]
        %v4999 = vld [vmem:[#allocation5 + $0xa8] sm:$0xf]
        %v5000 = vld [vmem:[#allocation5 + $0xb0] sm:$0xf]
        %v5001 = vld [vmem:[#allocation5 + $0xb8] sm:$0xf]
        %v5002 = vperm.slane %v4909, 1
        %v5003 = vperm.slane %v4910, 1
        %v5004 = vperm.slane %v4911, 1
        %v5005 = vmul.f32 %v4990, %v5002
        %v5006 = vmul.f32 %v4991, %v5003
        %v5007 = vmul.f32 %v4992, %v5004
        %v5008 = vmul.f32 %v4993, %v5002
        %v5009 = vmul.f32 %v4994, %v5003
        %v5010 = vmul.f32 %v4995, %v5004
        %v5011 = vmul.f32 %v4996, %v5002
        %v5012 = vmul.f32 %v4997, %v5003
        %v5013 = vmul.f32 %v4998, %v5004
        %v5014 = vmul.f32 %v4999, %v5002
        %v5015 = vmul.f32 %v5000, %v5003
        %v5016 = vmul.f32 %v5001, %v5004
        %v5029 = vrot.slane %v5005, 1
        %v5030 = vrot.slane %v5006, 1
        %v5031 = vrot.slane %v5007, 1
        %v5032 = vrot.slane %v5008, 1
        %v5033 = vrot.slane %v5009, 1
        %v5034 = vrot.slane %v5010, 1
        %v5035 = vrot.slane %v5011, 1
        %v5036 = vrot.slane %v5012, 1
        %v5037 = vrot.slane %v5013, 1
        %v5038 = vrot.slane %v5014, 1
        %v5039 = vrot.slane %v5015, 1
        %v5040 = vrot.slane %v5016, 1
        %v5053 = vadd.f32 %v4966, %v5029
        %v5054 = vadd.f32 %v4967, %v5030
        %v5055 = vadd.f32 %v4968, %v5031
        %v5056 = vadd.f32 %v4969, %v5029
        %v5057 = vadd.f32 %v4970, %v5030
        %v5058 = vadd.f32 %v4971, %v5031
        %v5059 = vadd.f32 %v4972, %v5032
        %v5060 = vadd.f32 %v4973, %v5033
        %v5061 = vadd.f32 %v4974, %v5034
        %v5062 = vadd.f32 %v4975, %v5032
        %v5063 = vadd.f32 %v4976, %v5033
        %v5064 = vadd.f32 %v4977, %v5034
        %v5065 = vadd.f32 %v4978, %v5035
        %v5066 = vadd.f32 %v4979, %v5036
        %v5067 = vadd.f32 %v4980, %v5037
        %v5068 = vadd.f32 %v4981, %v5035
        %v5069 = vadd.f32 %v4982, %v5036
        %v5070 = vadd.f32 %v4983, %v5037
        %v5071 = vadd.f32 %v4984, %v5038
        %v5072 = vadd.f32 %v4985, %v5039
        %v5073 = vadd.f32 %v4986, %v5040
        %v5074 = vadd.f32 %v4987, %v5038
        %v5075 = vadd.f32 %v4988, %v5039
        %v5076 = vadd.f32 %v4989, %v5040
        %v5077 = vld [vmem:[#allocation5 + $0x18] sm:$0x1e]
        %v5078 = vld [vmem:[#allocation5 + $0x20] sm:$0x1e]
        %v5079 = vld [vmem:[#allocation5 + $0x28] sm:$0x1e]
        %v5080 = vld [vmem:[#allocation5 + $0x48] sm:$0x1e]
        %v5081 = vld [vmem:[#allocation5 + $0x50] sm:$0x1e]
        %v5082 = vld [vmem:[#allocation5 + $0x58] sm:$0x1e]
        %v5083 = vld [vmem:[#allocation5 + $0x78] sm:$0x1e]
        %v5084 = vld [vmem:[#allocation5 + $0x80] sm:$0x1e]
        %v5085 = vld [vmem:[#allocation5 + $0x88] sm:$0x1e]
        %v5086 = vld [vmem:[#allocation5 + $0xa8] sm:$0x1e]
        %v5087 = vld [vmem:[#allocation5 + $0xb0] sm:$0x1e]
        %v5088 = vld [vmem:[#allocation5 + $0xb8] sm:$0x1e]
        %v5089 = vperm.slane %v4909, 2
        %v5090 = vperm.slane %v4910, 2
        %v5091 = vperm.slane %v4911, 2
        %v5092 = vmul.f32 %v5077, %v5089
        %v5093 = vmul.f32 %v5078, %v5090
        %v5094 = vmul.f32 %v5079, %v5091
        %v5095 = vmul.f32 %v5080, %v5089
        %v5096 = vmul.f32 %v5081, %v5090
        %v5097 = vmul.f32 %v5082, %v5091
        %v5098 = vmul.f32 %v5083, %v5089
        %v5099 = vmul.f32 %v5084, %v5090
        %v5100 = vmul.f32 %v5085, %v5091
        %v5101 = vmul.f32 %v5086, %v5089
        %v5102 = vmul.f32 %v5087, %v5090
        %v5103 = vmul.f32 %v5088, %v5091
        %v5116 = vrot.slane %v5092, 2
        %v5117 = vrot.slane %v5093, 2
        %v5118 = vrot.slane %v5094, 2
        %v5119 = vrot.slane %v5095, 2
        %v5120 = vrot.slane %v5096, 2
        %v5121 = vrot.slane %v5097, 2
        %v5122 = vrot.slane %v5098, 2
        %v5123 = vrot.slane %v5099, 2
        %v5124 = vrot.slane %v5100, 2
        %v5125 = vrot.slane %v5101, 2
        %v5126 = vrot.slane %v5102, 2
        %v5127 = vrot.slane %v5103, 2
        %v5140 = vadd.f32 %v5053, %v5116
        %v5141 = vadd.f32 %v5054, %v5117
        %v5142 = vadd.f32 %v5055, %v5118
        %v5143 = vadd.f32 %v5056, %v5116
        %v5144 = vadd.f32 %v5057, %v5117
        %v5145 = vadd.f32 %v5058, %v5118
        %v5146 = vadd.f32 %v5059, %v5119
        %v5147 = vadd.f32 %v5060, %v5120
        %v5148 = vadd.f32 %v5061, %v5121
        %v5149 = vadd.f32 %v5062, %v5119
        %v5150 = vadd.f32 %v5063, %v5120
        %v5151 = vadd.f32 %v5064, %v5121
        %v5152 = vadd.f32 %v5065, %v5122
        %v5153 = vadd.f32 %v5066, %v5123
        %v5154 = vadd.f32 %v5067, %v5124
        %v5155 = vadd.f32 %v5068, %v5122
        %v5156 = vadd.f32 %v5069, %v5123
        %v5157 = vadd.f32 %v5070, %v5124
        %v5158 = vadd.f32 %v5071, %v5125
        %v5159 = vadd.f32 %v5072, %v5126
        %v5160 = vadd.f32 %v5073, %v5127
        %v5161 = vadd.f32 %v5074, %v5125
        %v5162 = vadd.f32 %v5075, %v5126
        %v5163 = vadd.f32 %v5076, %v5127
        %v5164 = vld [vmem:[%s4819] sm:$0x80]
        %v5165 = vld [vmem:[%s4819 + $0x8] sm:$0x80]
        %v5166 = vld [vmem:[%s4819 + $0x10] sm:$0x80]
        %v5167 = vld [vmem:[%s4819 + $0x18] sm:$0x7]
        %v5168 = vld [vmem:[%s4819 + $0x20] sm:$0x7]
        %v5169 = vld [vmem:[%s4819 + $0x28] sm:$0x7]
        %v5170 = vld [vmem:[%s4819 + $0x30] sm:$0x80]
        %v5171 = vld [vmem:[%s4819 + $0x38] sm:$0x80]
        %v5172 = vld [vmem:[%s4819 + $0x40] sm:$0x80]
        %v5173 = vld [vmem:[%s4819 + $0x48] sm:$0x7]
        %v5174 = vld [vmem:[%s4819 + $0x50] sm:$0x7]
        %v5175 = vld [vmem:[%s4819 + $0x58] sm:$0x7]
        %v5176 = vld [vmem:[%s4819 + $0x60] sm:$0x80]
        %v5177 = vld [vmem:[%s4819 + $0x68] sm:$0x80]
        %v5178 = vld [vmem:[%s4819 + $0x70] sm:$0x80]
        %v5179 = vld [vmem:[%s4819 + $0x78] sm:$0x7]
        %v5180 = vld [vmem:[%s4819 + $0x80] sm:$0x7]
        %v5181 = vld [vmem:[%s4819 + $0x88] sm:$0x7]
        %v5182 = vld [vmem:[%s4819 + $0x90] sm:$0x80]
        %v5183 = vld [vmem:[%s4819 + $0x98] sm:$0x80]
        %v5184 = vld [vmem:[%s4819 + $0xa0] sm:$0x80]
        %v5185 = vld [vmem:[%s4819 + $0xa8] sm:$0x7]
        %v5186 = vld [vmem:[%s4819 + $0xb0] sm:$0x7]
        %v5187 = vld [vmem:[%s4819 + $0xb8] sm:$0x7]
        %v5188 = vperm.slane %v4909, 3
        %v5189 = vperm.slane %v4910, 3
        %v5190 = vperm.slane %v4911, 3
        %v5191 = vmul.f32 %v5164, %v5188
        %v5192 = vmul.f32 %v5165, %v5189
        %v5193 = vmul.f32 %v5166, %v5190
        %v5194 = vmul.f32 %v5167, %v5188
        %v5195 = vmul.f32 %v5168, %v5189
        %v5196 = vmul.f32 %v5169, %v5190
        %v5197 = vmul.f32 %v5170, %v5188
        %v5198 = vmul.f32 %v5171, %v5189
        %v5199 = vmul.f32 %v5172, %v5190
        %v5200 = vmul.f32 %v5173, %v5188
        %v5201 = vmul.f32 %v5174, %v5189
        %v5202 = vmul.f32 %v5175, %v5190
        %v5203 = vmul.f32 %v5176, %v5188
        %v5204 = vmul.f32 %v5177, %v5189
        %v5205 = vmul.f32 %v5178, %v5190
        %v5206 = vmul.f32 %v5179, %v5188
        %v5207 = vmul.f32 %v5180, %v5189
        %v5208 = vmul.f32 %v5181, %v5190
        %v5209 = vmul.f32 %v5182, %v5188
        %v5210 = vmul.f32 %v5183, %v5189
        %v5211 = vmul.f32 %v5184, %v5190
        %v5212 = vmul.f32 %v5185, %v5188
        %v5213 = vmul.f32 %v5186, %v5189
        %v5214 = vmul.f32 %v5187, %v5190
        %v5215 = vadd.f32 %v5140, %v5191
        %v5216 = vadd.f32 %v5141, %v5192
        %v5217 = vadd.f32 %v5142, %v5193
        %v5218 = vadd.f32 %v5143, %v5194
        %v5219 = vadd.f32 %v5144, %v5195
        %v5220 = vadd.f32 %v5145, %v5196
        %v5221 = vadd.f32 %v5146, %v5197
        %v5222 = vadd.f32 %v5147, %v5198
        %v5223 = vadd.f32 %v5148, %v5199
        %v5224 = vadd.f32 %v5149, %v5200
        %v5225 = vadd.f32 %v5150, %v5201
        %v5226 = vadd.f32 %v5151, %v5202
        %v5227 = vadd.f32 %v5152, %v5203
        %v5228 = vadd.f32 %v5153, %v5204
        %v5229 = vadd.f32 %v5154, %v5205
        %v5230 = vadd.f32 %v5155, %v5206
        %v5231 = vadd.f32 %v5156, %v5207
        %v5232 = vadd.f32 %v5157, %v5208
        %v5233 = vadd.f32 %v5158, %v5209
        %v5234 = vadd.f32 %v5159, %v5210
        %v5235 = vadd.f32 %v5160, %v5211
        %v5236 = vadd.f32 %v5161, %v5212
        %v5237 = vadd.f32 %v5162, %v5213
        %v5238 = vadd.f32 %v5163, %v5214
        %v5239 = vld [vmem:[%s4819 + $0x18] sm:$0xf]
        %v5240 = vld [vmem:[%s4819 + $0x20] sm:$0xf]
        %v5241 = vld [vmem:[%s4819 + $0x28] sm:$0xf]
        %v5242 = vld [vmem:[%s4819 + $0x48] sm:$0xf]
        %v5243 = vld [vmem:[%s4819 + $0x50] sm:$0xf]
        %v5244 = vld [vmem:[%s4819 + $0x58] sm:$0xf]
        %v5245 = vld [vmem:[%s4819 + $0x78] sm:$0xf]
        %v5246 = vld [vmem:[%s4819 + $0x80] sm:$0xf]
        %v5247 = vld [vmem:[%s4819 + $0x88] sm:$0xf]
        %v5248 = vld [vmem:[%s4819 + $0xa8] sm:$0xf]
        %v5249 = vld [vmem:[%s4819 + $0xb0] sm:$0xf]
        %v5250 = vld [vmem:[%s4819 + $0xb8] sm:$0xf]
        %v5251 = vperm.slane %v4909, 4
        %v5252 = vperm.slane %v4910, 4
        %v5253 = vperm.slane %v4911, 4
        %v5254 = vmul.f32 %v5239, %v5251
        %v5255 = vmul.f32 %v5240, %v5252
        %v5256 = vmul.f32 %v5241, %v5253
        %v5257 = vmul.f32 %v5242, %v5251
        %v5258 = vmul.f32 %v5243, %v5252
        %v5259 = vmul.f32 %v5244, %v5253
        %v5260 = vmul.f32 %v5245, %v5251
        %v5261 = vmul.f32 %v5246, %v5252
        %v5262 = vmul.f32 %v5247, %v5253
        %v5263 = vmul.f32 %v5248, %v5251
        %v5264 = vmul.f32 %v5249, %v5252
        %v5265 = vmul.f32 %v5250, %v5253
        %v5278 = vrot.slane %v5254, 1
        %v5279 = vrot.slane %v5255, 1
        %v5280 = vrot.slane %v5256, 1
        %v5281 = vrot.slane %v5257, 1
        %v5282 = vrot.slane %v5258, 1
        %v5283 = vrot.slane %v5259, 1
        %v5284 = vrot.slane %v5260, 1
        %v5285 = vrot.slane %v5261, 1
        %v5286 = vrot.slane %v5262, 1
        %v5287 = vrot.slane %v5263, 1
        %v5288 = vrot.slane %v5264, 1
        %v5289 = vrot.slane %v5265, 1
        %v5302 = vadd.f32 %v5215, %v5278
        %v5303 = vadd.f32 %v5216, %v5279
        %v5304 = vadd.f32 %v5217, %v5280
        %v5305 = vadd.f32 %v5218, %v5278
        %v5306 = vadd.f32 %v5219, %v5279
        %v5307 = vadd.f32 %v5220, %v5280
        %v5308 = vadd.f32 %v5221, %v5281
        %v5309 = vadd.f32 %v5222, %v5282
        %v5310 = vadd.f32 %v5223, %v5283
        %v5311 = vadd.f32 %v5224, %v5281
        %v5312 = vadd.f32 %v5225, %v5282
        %v5313 = vadd.f32 %v5226, %v5283
        %v5314 = vadd.f32 %v5227, %v5284
        %v5315 = vadd.f32 %v5228, %v5285
        %v5316 = vadd.f32 %v5229, %v5286
        %v5317 = vadd.f32 %v5230, %v5284
        %v5318 = vadd.f32 %v5231, %v5285
        %v5319 = vadd.f32 %v5232, %v5286
        %v5320 = vadd.f32 %v5233, %v5287
        %v5321 = vadd.f32 %v5234, %v5288
        %v5322 = vadd.f32 %v5235, %v5289
        %v5323 = vadd.f32 %v5236, %v5287
        %v5324 = vadd.f32 %v5237, %v5288
        %v5325 = vadd.f32 %v5238, %v5289
        %v5326 = vld [vmem:[%s4819 + $0x18] sm:$0x1e]
        %v5327 = vld [vmem:[%s4819 + $0x20] sm:$0x1e]
        %v5328 = vld [vmem:[%s4819 + $0x28] sm:$0x1e]
        %v5329 = vld [vmem:[%s4819 + $0x48] sm:$0x1e]
        %v5330 = vld [vmem:[%s4819 + $0x50] sm:$0x1e]
        %v5331 = vld [vmem:[%s4819 + $0x58] sm:$0x1e]
        %v5332 = vld [vmem:[%s4819 + $0x78] sm:$0x1e]
        %v5333 = vld [vmem:[%s4819 + $0x80] sm:$0x1e]
        %v5334 = vld [vmem:[%s4819 + $0x88] sm:$0x1e]
        %v5335 = vld [vmem:[%s4819 + $0xa8] sm:$0x1e]
        %v5336 = vld [vmem:[%s4819 + $0xb0] sm:$0x1e]
        %v5337 = vld [vmem:[%s4819 + $0xb8] sm:$0x1e]
        %v5338 = vperm.slane %v4909, 5
        %v5339 = vperm.slane %v4910, 5
        %v5340 = vperm.slane %v4911, 5
        %v5341 = vmul.f32 %v5326, %v5338
        %v5342 = vmul.f32 %v5327, %v5339
        %v5343 = vmul.f32 %v5328, %v5340
        %v5344 = vmul.f32 %v5329, %v5338
        %v5345 = vmul.f32 %v5330, %v5339
        %v5346 = vmul.f32 %v5331, %v5340
        %v5347 = vmul.f32 %v5332, %v5338
        %v5348 = vmul.f32 %v5333, %v5339
        %v5349 = vmul.f32 %v5334, %v5340
        %v5350 = vmul.f32 %v5335, %v5338
        %v5351 = vmul.f32 %v5336, %v5339
        %v5352 = vmul.f32 %v5337, %v5340
        %v5365 = vrot.slane %v5341, 2
        %v5366 = vrot.slane %v5342, 2
        %v5367 = vrot.slane %v5343, 2
        %v5368 = vrot.slane %v5344, 2
        %v5369 = vrot.slane %v5345, 2
        %v5370 = vrot.slane %v5346, 2
        %v5371 = vrot.slane %v5347, 2
        %v5372 = vrot.slane %v5348, 2
        %v5373 = vrot.slane %v5349, 2
        %v5374 = vrot.slane %v5350, 2
        %v5375 = vrot.slane %v5351, 2
        %v5376 = vrot.slane %v5352, 2
        %v5389 = vadd.f32 %v5302, %v5365
        %v5390 = vadd.f32 %v5303, %v5366
        %v5391 = vadd.f32 %v5304, %v5367
        %v5392 = vadd.f32 %v5305, %v5365
        %v5393 = vadd.f32 %v5306, %v5366
        %v5394 = vadd.f32 %v5307, %v5367
        %v5395 = vadd.f32 %v5308, %v5368
        %v5396 = vadd.f32 %v5309, %v5369
        %v5397 = vadd.f32 %v5310, %v5370
        %v5398 = vadd.f32 %v5311, %v5368
        %v5399 = vadd.f32 %v5312, %v5369
        %v5400 = vadd.f32 %v5313, %v5370
        %v5401 = vadd.f32 %v5314, %v5371
        %v5402 = vadd.f32 %v5315, %v5372
        %v5403 = vadd.f32 %v5316, %v5373
        %v5404 = vadd.f32 %v5317, %v5371
        %v5405 = vadd.f32 %v5318, %v5372
        %v5406 = vadd.f32 %v5319, %v5373
        %v5407 = vadd.f32 %v5320, %v5374
        %v5408 = vadd.f32 %v5321, %v5375
        %v5409 = vadd.f32 %v5322, %v5376
        %v5410 = vadd.f32 %v5323, %v5374
        %v5411 = vadd.f32 %v5324, %v5375
        %v5412 = vadd.f32 %v5325, %v5376
        %s5413 = scalar_lea.vmem [#allocation5], 96
        %v5414 = vld [vmem:[%s5413] sm:$0x80]
        %v5415 = vld [vmem:[%s5413 + $0x8] sm:$0x80]
        %v5416 = vld [vmem:[%s5413 + $0x10] sm:$0x80]
        %v5417 = vld [vmem:[%s5413 + $0x18] sm:$0x7]
        %v5418 = vld [vmem:[%s5413 + $0x20] sm:$0x7]
        %v5419 = vld [vmem:[%s5413 + $0x28] sm:$0x7]
        %v5420 = vld [vmem:[%s5413 + $0x30] sm:$0x80]
        %v5421 = vld [vmem:[%s5413 + $0x38] sm:$0x80]
        %v5422 = vld [vmem:[%s5413 + $0x40] sm:$0x80]
        %v5423 = vld [vmem:[%s5413 + $0x48] sm:$0x7]
        %v5424 = vld [vmem:[%s5413 + $0x50] sm:$0x7]
        %v5425 = vld [vmem:[%s5413 + $0x58] sm:$0x7]
        %v5426 = vld [vmem:[%s5413 + $0x60] sm:$0x80]
        %v5427 = vld [vmem:[%s5413 + $0x68] sm:$0x80]
        %v5428 = vld [vmem:[%s5413 + $0x70] sm:$0x80]
        %v5429 = vld [vmem:[%s5413 + $0x78] sm:$0x7]
        %v5430 = vld [vmem:[%s5413 + $0x80] sm:$0x7]
        %v5431 = vld [vmem:[%s5413 + $0x88] sm:$0x7]
        %v5432 = vld [vmem:[%s5413 + $0x90] sm:$0x80]
        %v5433 = vld [vmem:[%s5413 + $0x98] sm:$0x80]
        %v5434 = vld [vmem:[%s5413 + $0xa0] sm:$0x80]
        %v5435 = vld [vmem:[%s5413 + $0xa8] sm:$0x7]
        %v5436 = vld [vmem:[%s5413 + $0xb0] sm:$0x7]
        %v5437 = vld [vmem:[%s5413 + $0xb8] sm:$0x7]
        %v5438 = vperm.slane %v4909, 6
        %v5439 = vperm.slane %v4910, 6
        %v5440 = vperm.slane %v4911, 6
        %v5441 = vmul.f32 %v5414, %v5438
        %v5442 = vmul.f32 %v5415, %v5439
        %v5443 = vmul.f32 %v5416, %v5440
        %v5444 = vmul.f32 %v5417, %v5438
        %v5445 = vmul.f32 %v5418, %v5439
        %v5446 = vmul.f32 %v5419, %v5440
        %v5447 = vmul.f32 %v5420, %v5438
        %v5448 = vmul.f32 %v5421, %v5439
        %v5449 = vmul.f32 %v5422, %v5440
        %v5450 = vmul.f32 %v5423, %v5438
        %v5451 = vmul.f32 %v5424, %v5439
        %v5452 = vmul.f32 %v5425, %v5440
        %v5453 = vmul.f32 %v5426, %v5438
        %v5454 = vmul.f32 %v5427, %v5439
        %v5455 = vmul.f32 %v5428, %v5440
        %v5456 = vmul.f32 %v5429, %v5438
        %v5457 = vmul.f32 %v5430, %v5439
        %v5458 = vmul.f32 %v5431, %v5440
        %v5459 = vmul.f32 %v5432, %v5438
        %v5460 = vmul.f32 %v5433, %v5439
        %v5461 = vmul.f32 %v5434, %v5440
        %v5462 = vmul.f32 %v5435, %v5438
        %v5463 = vmul.f32 %v5436, %v5439
        %v5464 = vmul.f32 %v5437, %v5440
        %v5465 = vadd.f32 %v5389, %v5441
        %v5466 = vadd.f32 %v5390, %v5442
        %v5467 = vadd.f32 %v5391, %v5443
        %v5468 = vadd.f32 %v5392, %v5444
        %v5469 = vadd.f32 %v5393, %v5445
        %v5470 = vadd.f32 %v5394, %v5446
        %v5471 = vadd.f32 %v5395, %v5447
        %v5472 = vadd.f32 %v5396, %v5448
        %v5473 = vadd.f32 %v5397, %v5449
        %v5474 = vadd.f32 %v5398, %v5450
        %v5475 = vadd.f32 %v5399, %v5451
        %v5476 = vadd.f32 %v5400, %v5452
        %v5477 = vadd.f32 %v5401, %v5453
        %v5478 = vadd.f32 %v5402, %v5454
        %v5479 = vadd.f32 %v5403, %v5455
        %v5480 = vadd.f32 %v5404, %v5456
        %v5481 = vadd.f32 %v5405, %v5457
        %v5482 = vadd.f32 %v5406, %v5458
        %v5483 = vadd.f32 %v5407, %v5459
        %v5484 = vadd.f32 %v5408, %v5460
        %v5485 = vadd.f32 %v5409, %v5461
        %v5486 = vadd.f32 %v5410, %v5462
        %v5487 = vadd.f32 %v5411, %v5463
        %v5488 = vadd.f32 %v5412, %v5464
        %v5489 = vld [vmem:[%s5413 + $0x18] sm:$0xf]
        %v5490 = vld [vmem:[%s5413 + $0x20] sm:$0xf]
        %v5491 = vld [vmem:[%s5413 + $0x28] sm:$0xf]
        %v5492 = vld [vmem:[%s5413 + $0x48] sm:$0xf]
        %v5493 = vld [vmem:[%s5413 + $0x50] sm:$0xf]
        %v5494 = vld [vmem:[%s5413 + $0x58] sm:$0xf]
        %v5495 = vld [vmem:[%s5413 + $0x78] sm:$0xf]
        %v5496 = vld [vmem:[%s5413 + $0x80] sm:$0xf]
        %v5497 = vld [vmem:[%s5413 + $0x88] sm:$0xf]
        %v5498 = vld [vmem:[%s5413 + $0xa8] sm:$0xf]
        %v5499 = vld [vmem:[%s5413 + $0xb0] sm:$0xf]
        %v5500 = vld [vmem:[%s5413 + $0xb8] sm:$0xf]
        %v5501 = vperm.slane %v4909, 7
        %v5502 = vperm.slane %v4910, 7
        %v5503 = vperm.slane %v4911, 7
        %v5504 = vmul.f32 %v5489, %v5501
        %v5505 = vmul.f32 %v5490, %v5502
        %v5506 = vmul.f32 %v5491, %v5503
        %v5507 = vmul.f32 %v5492, %v5501
        %v5508 = vmul.f32 %v5493, %v5502
        %v5509 = vmul.f32 %v5494, %v5503
        %v5510 = vmul.f32 %v5495, %v5501
        %v5511 = vmul.f32 %v5496, %v5502
        %v5512 = vmul.f32 %v5497, %v5503
        %v5513 = vmul.f32 %v5498, %v5501
        %v5514 = vmul.f32 %v5499, %v5502
        %v5515 = vmul.f32 %v5500, %v5503
        %v5528 = vrot.slane %v5504, 1
        %v5529 = vrot.slane %v5505, 1
        %v5530 = vrot.slane %v5506, 1
        %v5531 = vrot.slane %v5507, 1
        %v5532 = vrot.slane %v5508, 1
        %v5533 = vrot.slane %v5509, 1
        %v5534 = vrot.slane %v5510, 1
        %v5535 = vrot.slane %v5511, 1
        %v5536 = vrot.slane %v5512, 1
        %v5537 = vrot.slane %v5513, 1
        %v5538 = vrot.slane %v5514, 1
        %v5539 = vrot.slane %v5515, 1
        %v5552 = vadd.f32 %v5465, %v5528
        %v5553 = vadd.f32 %v5466, %v5529
        %v5554 = vadd.f32 %v5467, %v5530
        %v5555 = vadd.f32 %v5468, %v5528
        %v5556 = vadd.f32 %v5469, %v5529
        %v5557 = vadd.f32 %v5470, %v5530
        %v5558 = vadd.f32 %v5471, %v5531
        %v5559 = vadd.f32 %v5472, %v5532
        %v5560 = vadd.f32 %v5473, %v5533
        %v5561 = vadd.f32 %v5474, %v5531
        %v5562 = vadd.f32 %v5475, %v5532
        %v5563 = vadd.f32 %v5476, %v5533
        %v5564 = vadd.f32 %v5477, %v5534
        %v5565 = vadd.f32 %v5478, %v5535
        %v5566 = vadd.f32 %v5479, %v5536
        %v5567 = vadd.f32 %v5480, %v5534
        %v5568 = vadd.f32 %v5481, %v5535
        %v5569 = vadd.f32 %v5482, %v5536
        %v5570 = vadd.f32 %v5483, %v5537
        %v5571 = vadd.f32 %v5484, %v5538
        %v5572 = vadd.f32 %v5485, %v5539
        %v5573 = vadd.f32 %v5486, %v5537
        %v5574 = vadd.f32 %v5487, %v5538
        %v5575 = vadd.f32 %v5488, %v5539
        %v5576 = vld [vmem:[%s5413 + $0x18] sm:$0x1e]
        %v5577 = vld [vmem:[%s5413 + $0x20] sm:$0x1e]
        %v5578 = vld [vmem:[%s5413 + $0x28] sm:$0x1e]
        %v5579 = vld [vmem:[%s5413 + $0x48] sm:$0x1e]
        %v5580 = vld [vmem:[%s5413 + $0x50] sm:$0x1e]
        %v5581 = vld [vmem:[%s5413 + $0x58] sm:$0x1e]
        %v5582 = vld [vmem:[%s5413 + $0x78] sm:$0x1e]
        %v5583 = vld [vmem:[%s5413 + $0x80] sm:$0x1e]
        %v5584 = vld [vmem:[%s5413 + $0x88] sm:$0x1e]
        %v5585 = vld [vmem:[%s5413 + $0xa8] sm:$0x1e]
        %v5586 = vld [vmem:[%s5413 + $0xb0] sm:$0x1e]
        %v5587 = vld [vmem:[%s5413 + $0xb8] sm:$0x1e]
        %v5588 = vperm.slane %v4912, 0
        %v5589 = vperm.slane %v4913, 0
        %v5590 = vperm.slane %v4914, 0
        %v5591 = vmul.f32 %v5576, %v5588
        %v5592 = vmul.f32 %v5577, %v5589
        %v5593 = vmul.f32 %v5578, %v5590
        %v5594 = vmul.f32 %v5579, %v5588
        %v5595 = vmul.f32 %v5580, %v5589
        %v5596 = vmul.f32 %v5581, %v5590
        %v5597 = vmul.f32 %v5582, %v5588
        %v5598 = vmul.f32 %v5583, %v5589
        %v5599 = vmul.f32 %v5584, %v5590
        %v5600 = vmul.f32 %v5585, %v5588
        %v5601 = vmul.f32 %v5586, %v5589
        %v5602 = vmul.f32 %v5587, %v5590
        %v5615 = vrot.slane %v5591, 2
        %v5616 = vrot.slane %v5592, 2
        %v5617 = vrot.slane %v5593, 2
        %v5618 = vrot.slane %v5594, 2
        %v5619 = vrot.slane %v5595, 2
        %v5620 = vrot.slane %v5596, 2
        %v5621 = vrot.slane %v5597, 2
        %v5622 = vrot.slane %v5598, 2
        %v5623 = vrot.slane %v5599, 2
        %v5624 = vrot.slane %v5600, 2
        %v5625 = vrot.slane %v5601, 2
        %v5626 = vrot.slane %v5602, 2
        %v5639 = vadd.f32 %v5552, %v5615
        %v5640 = vadd.f32 %v5553, %v5616
        %v5641 = vadd.f32 %v5554, %v5617
        %v5642 = vadd.f32 %v5555, %v5615
        %v5643 = vadd.f32 %v5556, %v5616
        %v5644 = vadd.f32 %v5557, %v5617
        %v5645 = vadd.f32 %v5558, %v5618
        %v5646 = vadd.f32 %v5559, %v5619
        %v5647 = vadd.f32 %v5560, %v5620
        %v5648 = vadd.f32 %v5561, %v5618
        %v5649 = vadd.f32 %v5562, %v5619
        %v5650 = vadd.f32 %v5563, %v5620
        %v5651 = vadd.f32 %v5564, %v5621
        %v5652 = vadd.f32 %v5565, %v5622
        %v5653 = vadd.f32 %v5566, %v5623
        %v5654 = vadd.f32 %v5567, %v5621
        %v5655 = vadd.f32 %v5568, %v5622
        %v5656 = vadd.f32 %v5569, %v5623
        %v5657 = vadd.f32 %v5570, %v5624
        %v5658 = vadd.f32 %v5571, %v5625
        %v5659 = vadd.f32 %v5572, %v5626
        %v5660 = vadd.f32 %v5573, %v5624
        %v5661 = vadd.f32 %v5574, %v5625
        %v5662 = vadd.f32 %v5575, %v5626
        %5687 = vst.sshfl [vmem:[#allocation1] sm:$0xff pattern:$0x75316420] %v5639
        %5688 = vst.sshfl [vmem:[#allocation1 + $0x8] sm:$0xff pattern:$0x75316420] %v5640
        %5689 = vst.sshfl [vmem:[#allocation1 + $0x10] sm:$0xff pattern:$0x75316420] %v5641
        %5690 = vst.sshfl [vmem:[#allocation1 + $0x20] sm:$0xff pattern:$0x75316420] %v5642
        %5691 = vst.sshfl [vmem:[#allocation1 + $0x28] sm:$0xff pattern:$0x75316420] %v5643
        %5692 = vst.sshfl [vmem:[#allocation1 + $0x30] sm:$0xff pattern:$0x75316420] %v5644
        %s5693 = scalar_lea.vmem [#allocation1], 1
        %v5694 = vld [vmem:[%s5693] ss:$2 sm:$0xff]
        %s5695 = scalar_lea.vmem [#allocation1], 17
        %v5696 = vld [vmem:[%s5695] ss:$2 sm:$0xff]
        %s5697 = scalar_lea.vmem [#allocation1], 32
        %v5698 = vld [vmem:[%s5697] ss:$2 sm:$0xff]
        %s5699 = scalar_lea.vmem [#allocation1], 48
        %v5700 = vld [vmem:[%s5699] ss:$2 sm:$0xff]
        %5701 = vst.sshfl [vmem:[#allocation1] sm:$0xff pattern:$0x75316420] %v5645
        %5702 = vst.sshfl [vmem:[#allocation1 + $0x8] sm:$0xff pattern:$0x75316420] %v5646
        %5703 = vst.sshfl [vmem:[#allocation1 + $0x10] sm:$0xff pattern:$0x75316420] %v5647
        %5704 = vst.sshfl [vmem:[#allocation1 + $0x20] sm:$0xff pattern:$0x75316420] %v5648
        %5705 = vst.sshfl [vmem:[#allocation1 + $0x28] sm:$0xff pattern:$0x75316420] %v5649
        %5706 = vst.sshfl [vmem:[#allocation1 + $0x30] sm:$0xff pattern:$0x75316420] %v5650
        %v5707 = vld [vmem:[%s5693] ss:$2 sm:$0xff]
        %v5708 = vld [vmem:[%s5695] ss:$2 sm:$0xff]
        %v5709 = vld [vmem:[%s5697] ss:$2 sm:$0xff]
        %v5710 = vld [vmem:[%s5699] ss:$2 sm:$0xff]
        %5711 = vst.sshfl [vmem:[#allocation1] sm:$0xff pattern:$0x75316420] %v5651
        %5712 = vst.sshfl [vmem:[#allocation1 + $0x8] sm:$0xff pattern:$0x75316420] %v5652
        %5713 = vst.sshfl [vmem:[#allocation1 + $0x10] sm:$0xff pattern:$0x75316420] %v5653
        %5714 = vst.sshfl [vmem:[#allocation1 + $0x20] sm:$0xff pattern:$0x75316420] %v5654
        %5715 = vst.sshfl [vmem:[#allocation1 + $0x28] sm:$0xff pattern:$0x75316420] %v5655
        %5716 = vst.sshfl [vmem:[#allocation1 + $0x30] sm:$0xff pattern:$0x75316420] %v5656
        %v5717 = vld [vmem:[%s5693] ss:$2 sm:$0xff]
        %v5718 = vld [vmem:[%s5695] ss:$2 sm:$0xff]
        %v5719 = vld [vmem:[%s5697] ss:$2 sm:$0xff]
        %v5720 = vld [vmem:[%s5699] ss:$2 sm:$0xff]
        %5721 = vst.sshfl [vmem:[#allocation1] sm:$0xff pattern:$0x75316420] %v5657
        %5722 = vst.sshfl [vmem:[#allocation1 + $0x8] sm:$0xff pattern:$0x75316420] %v5658
        %5723 = vst.sshfl [vmem:[#allocation1 + $0x10] sm:$0xff pattern:$0x75316420] %v5659
        %5724 = vst.sshfl [vmem:[#allocation1 + $0x20] sm:$0xff pattern:$0x75316420] %v5660
        %5725 = vst.sshfl [vmem:[#allocation1 + $0x28] sm:$0xff pattern:$0x75316420] %v5661
        %5726 = vst.sshfl [vmem:[#allocation1 + $0x30] sm:$0xff pattern:$0x75316420] %v5662
        %v5727 = vld [vmem:[%s5693] ss:$2 sm:$0xff]
        %v5728 = vld [vmem:[%s5695] ss:$2 sm:$0xff]
        %v5729 = vld [vmem:[%s5697] ss:$2 sm:$0xff]
        %v5730 = vld [vmem:[%s5699] ss:$2 sm:$0xff]
        %vm5731 = vcmask 1044484
        %vm5732 = vmor %vm4091, %vm5731
        %v5733 = vrot.slane %v5694, 7
        %v5734 = vrot.slane %v5733, 4
        %v5735 = vrot.slane %v5698, 7
        %v5736 = vsel %vm5732, %v5734, %v5735
        %v5737 = vrot.slane %v5696, 7
        %v5738 = vrot.slane %v5737, 4
        %v5739 = vrot.slane %v5700, 7
        %v5740 = vsel %vm5732, %v5738, %v5739
        %v5741 = vrot.slane %v5707, 7
        %v5742 = vrot.slane %v5741, 4
        %v5743 = vrot.slane %v5709, 7
        %v5744 = vsel %vm5732, %v5742, %v5743
        %v5745 = vrot.slane %v5708, 7
        %v5746 = vrot.slane %v5745, 4
        %v5747 = vrot.slane %v5710, 7
        %v5748 = vsel %vm5732, %v5746, %v5747
        %v5749 = vrot.slane %v5717, 7
        %v5750 = vrot.slane %v5749, 4
        %v5751 = vrot.slane %v5719, 7
        %v5752 = vsel %vm5732, %v5750, %v5751
        %v5753 = vrot.slane %v5718, 7
        %v5754 = vrot.slane %v5753, 4
        %v5755 = vrot.slane %v5720, 7
        %v5756 = vsel %vm5732, %v5754, %v5755
        %v5757 = vrot.slane %v5727, 7
        %v5758 = vrot.slane %v5757, 4
        %v5759 = vrot.slane %v5729, 7
        %v5760 = vsel %vm5732, %v5758, %v5759
        %v5761 = vrot.slane %v5728, 7
        %v5762 = vrot.slane %v5761, 4
        %v5763 = vrot.slane %v5730, 7
        %v5764 = vsel %vm5732, %v5762, %v5763
        %v5773 = vld [vmem:[%s55] sm:$0x7]
        %v5775 = vperm.slane %v5773, 0
        %v5776 = vperm.slane %v5773, 1
        %v5777 = vperm.slane %v5773, 2
        %v5779 = vrot.slane %v5776, 4
        %v5780 = vsel %vm2423, %v5775, %v5779
        %v5781 = vsel %vm2423, %v5779, %v5775
        %v5782 = vrot.slane %v5781, 4
        %v5783 = vrot.slane %v5777, 4
        %v5787 = vadd.f32 %v5736, %v5780
        %v5788 = vadd.f32 %v5740, %v5777
        %v5789 = vadd.f32 %v5744, %v5782
        %v5790 = vadd.f32 %v5748, %v5783
        %v5791 = vadd.f32 %v5752, %v5780
        %v5792 = vadd.f32 %v5756, %v5777
        %v5793 = vadd.f32 %v5760, %v5782
        %v5794 = vadd.f32 %v5764, %v5783
        %v5795 = vmax.f32 %v5787, 0.0
        %v5796 = vmax.f32 %v5788, 0.0
        %v5797 = vmax.f32 %v5789, 0.0
        %v5798 = vmax.f32 %v5790, 0.0
        %v5799 = vmax.f32 %v5791, 0.0
        %v5800 = vmax.f32 %v5792, 0.0
        %v5801 = vmax.f32 %v5793, 0.0
        %v5802 = vmax.f32 %v5794, 0.0
        %v5803 = vmin.f32 %v5795, 6.0
        %v5804 = vmin.f32 %v5796, 6.0
        %v5805 = vmin.f32 %v5797, 6.0
        %v5806 = vmin.f32 %v5798, 6.0
        %v5807 = vmin.f32 %v5799, 6.0
        %v5808 = vmin.f32 %v5800, 6.0
        %v5809 = vmin.f32 %v5801, 6.0
        %v5810 = vmin.f32 %v5802, 6.0
        %5819 = vst [vmem:[#allocation1] ss:$2 sm:$0xff] %v5803
        %s5820 = scalar_lea.vmem [#allocation1], 1
        %5821 = vst [vmem:[%s5820] ss:$2 sm:$0xff] %v5805
        %s5822 = scalar_lea.vmem [#allocation1], 16
        %5823 = vst [vmem:[%s5822] ss:$2 sm:$0xff] %v5804
        %s5824 = scalar_lea.vmem [#allocation1], 17
        %5825 = vst [vmem:[%s5824] ss:$2 sm:$0xff] %v5806
        %s5826 = scalar_lea.vmem [#allocation1], 32
        %5827 = vst [vmem:[%s5826] ss:$2 sm:$0xff] %v5807
        %s5828 = scalar_lea.vmem [#allocation1], 33
        %5829 = vst [vmem:[%s5828] ss:$2 sm:$0xff] %v5809
        %s5830 = scalar_lea.vmem [#allocation1], 48
        %5831 = vst [vmem:[%s5830] ss:$2 sm:$0xff] %v5808
        %s5832 = scalar_lea.vmem [#allocation1], 49
        %5833 = vst [vmem:[%s5832] ss:$2 sm:$0xff] %v5810
        %v5834 = vld.sshfl [vmem:[#allocation1] sm:$0xff pattern:$0x75316420]
        %v5835 = vld.sshfl [vmem:[#allocation1 + $0x8] sm:$0xff pattern:$0x75316420]
        %v5836 = vld.sshfl [vmem:[#allocation1 + $0x10] sm:$0xff pattern:$0x75316420]
        %v5837 = vld.sshfl [vmem:[#allocation1 + $0x20] sm:$0xff pattern:$0x75316420]
        %v5838 = vld.sshfl [vmem:[#allocation1 + $0x28] sm:$0xff pattern:$0x75316420]
        %v5839 = vld.sshfl [vmem:[#allocation1 + $0x30] sm:$0xff pattern:$0x75316420]
        %v5846 = vadd.f32 %v5834, %v5837
        %v5847 = vrot.slane %v5846, 4
        %v5848 = vadd.f32 %v5846, %v5847
        %v5849 = vrot.slane %v5848, 2
        %v5850 = vadd.f32 %v5848, %v5849
        %v5851 = vrot.slane %v5850, 1
        %v5852 = vadd.f32 %v5850, %v5851
        %v5853 = vadd.f32 %v5835, %v5838
        %v5854 = vrot.slane %v5853, 4
        %v5855 = vadd.f32 %v5853, %v5854
        %v5856 = vrot.slane %v5855, 2
        %v5857 = vadd.f32 %v5855, %v5856
        %v5858 = vrot.slane %v5857, 1
        %v5859 = vadd.f32 %v5857, %v5858
        %v5860 = vadd.f32 %v5836, %v5839
        %v5861 = vrot.slane %v5860, 4
        %v5862 = vadd.f32 %v5860, %v5861
        %v5863 = vrot.slane %v5862, 2
        %v5864 = vadd.f32 %v5862, %v5863
        %v5865 = vrot.slane %v5864, 1
        %v5866 = vadd.f32 %v5864, %v5865
        %v5867 = vmul.f32 %v5852, %v4278
        %v5868 = vmul.f32 %v5859, %v4278
        %v5869 = vmul.f32 %v5866, %v4278
        %v5870 = vpack.c.bf16 %v5867, %v5867
        %v5871 = vpack.c.bf16 %v5868, %v5868
        %v5872 = vpack.c.bf16 %v5869, %v5869
        %v5873 = vld [vmem:[%s57] sm:$0xf]
        %v5874 = vld [vmem:[%s57 + $0x4] sm:$0xf]
        %v5875 = vld [vmem:[%s57 + $0x8] sm:$0xf]
        %v5876 = vld [vmem:[%s57 + $0xc] sm:$0xf]
        %v5877 = vld [vmem:[%s57 + $0x10] sm:$0xf]
        %v5878 = vld [vmem:[%s57 + $0x14] sm:$0xf]
        %v5879 = vld [vmem:[%s57 + $0x18] sm:$0xf]
        %v5880 = vld [vmem:[%s57 + $0x1c] sm:$0xf]
        %v5881 = vld [vmem:[%s57 + $0x20] sm:$0xf]
        %v5882 = vld [vmem:[%s57 + $0x24] sm:$0xf]
        %v5883 = vld [vmem:[%s57 + $0x28] sm:$0xf]
        %v5884 = vld [vmem:[%s57 + $0x2c] sm:$0xf]
        %v5885 = vld [vmem:[%s57 + $0x30] sm:$0xf]
        %v5886 = vld [vmem:[%s57 + $0x34] sm:$0xf]
        %v5887 = vld [vmem:[%s57 + $0x38] sm:$0xf]
        %v5888 = vld [vmem:[%s57 + $0x3c] sm:$0xf]
        %v5889 = vld [vmem:[%s57 + $0x40] sm:$0xf]
        %v5890 = vld [vmem:[%s57 + $0x44] sm:$0xf]
        %v5891 = vld [vmem:[%s57 + $0x48] sm:$0xf]
        %v5892 = vld [vmem:[%s57 + $0x4c] sm:$0xf]
        %v5893 = vld [vmem:[%s57 + $0x50] sm:$0xf]
        %v5894 = vld [vmem:[%s57 + $0x54] sm:$0xf]
        %v5895 = vld [vmem:[%s57 + $0x58] sm:$0xf]
        %v5896 = vld [vmem:[%s57 + $0x5c] sm:$0xf]
        %v5897 = vld [vmem:[%s57 + $0x60] sm:$0xf]
        %v5898 = vld [vmem:[%s57 + $0x64] sm:$0xf]
        %v5899 = vld [vmem:[%s57 + $0x68] sm:$0xf]
        %v5900 = vld [vmem:[%s57 + $0x6c] sm:$0xf]
        %v5901 = vld [vmem:[%s57 + $0x70] sm:$0xf]
        %v5902 = vld [vmem:[%s57 + $0x74] sm:$0xf]
        %v5903 = vld [vmem:[%s57 + $0x78] sm:$0xf]
        %v5904 = vld [vmem:[%s57 + $0x7c] sm:$0xf]
        %v5905 = vld [vmem:[%s57 + $0x80] sm:$0xf]
        %v5906 = vld [vmem:[%s57 + $0x84] sm:$0xf]
        %v5907 = vld [vmem:[%s57 + $0x88] sm:$0xf]
        %v5908 = vld [vmem:[%s57 + $0x8c] sm:$0xf]
        %v5909 = vld [vmem:[%s57 + $0x90] sm:$0xf]
        %v5910 = vld [vmem:[%s57 + $0x94] sm:$0xf]
        %v5911 = vld [vmem:[%s57 + $0x98] sm:$0xf]
        %v5912 = vld [vmem:[%s57 + $0x9c] sm:$0xf]
        %v5913 = vld [vmem:[%s57 + $0xa0] sm:$0xf]
        %v5914 = vld [vmem:[%s57 + $0xa4] sm:$0xf]
        %v5915 = vld [vmem:[%s57 + $0xa8] sm:$0xf]
        %v5916 = vld [vmem:[%s57 + $0xac] sm:$0xf]
        %v5917 = vld [vmem:[%s57 + $0xb0] sm:$0xf]
        %v5918 = vld [vmem:[%s57 + $0xb4] sm:$0xf]
        %v5919 = vld [vmem:[%s57 + $0xb8] sm:$0xf]
        %v5920 = vld [vmem:[%s57 + $0xbc] sm:$0xf]
        %v5921 = vld [vmem:[%s59] sm:$0x1]
        %v5970 = vunpack.c.l.b16 %v5873
        %v5971 = vunpack.c.l.b16 %v5874
        %v5972 = vunpack.c.l.b16 %v5875
        %v5973 = vunpack.c.l.b16 %v5876
        %v5974 = vunpack.c.l.b16 %v5877
        %v5975 = vunpack.c.l.b16 %v5878
        %v5976 = vunpack.c.l.b16 %v5879
        %v5977 = vunpack.c.l.b16 %v5880
        %v5978 = vunpack.c.l.b16 %v5881
        %v5979 = vunpack.c.l.b16 %v5882
        %v5980 = vunpack.c.l.b16 %v5883
        %v5981 = vunpack.c.l.b16 %v5884
        %v5982 = vunpack.c.l.b16 %v5885
        %v5983 = vunpack.c.l.b16 %v5886
        %v5984 = vunpack.c.l.b16 %v5887
        %v5985 = vunpack.c.l.b16 %v5888
        %v5986 = vunpack.c.l.b16 %v5889
        %v5987 = vunpack.c.l.b16 %v5890
        %v5988 = vunpack.c.l.b16 %v5891
        %v5989 = vunpack.c.l.b16 %v5892
        %v5990 = vunpack.c.l.b16 %v5893
        %v5991 = vunpack.c.l.b16 %v5894
        %v5992 = vunpack.c.l.b16 %v5895
        %v5993 = vunpack.c.l.b16 %v5896
        %v5994 = vunpack.c.l.b16 %v5897
        %v5995 = vunpack.c.l.b16 %v5898
        %v5996 = vunpack.c.l.b16 %v5899
        %v5997 = vunpack.c.l.b16 %v5900
        %v5998 = vunpack.c.l.b16 %v5901
        %v5999 = vunpack.c.l.b16 %v5902
        %v6000 = vunpack.c.l.b16 %v5903
        %v6001 = vunpack.c.l.b16 %v5904
        %v6002 = vunpack.c.l.b16 %v5905
        %v6003 = vunpack.c.l.b16 %v5906
        %v6004 = vunpack.c.l.b16 %v5907
        %v6005 = vunpack.c.l.b16 %v5908
        %v6006 = vunpack.c.l.b16 %v5909
        %v6007 = vunpack.c.l.b16 %v5910
        %v6008 = vunpack.c.l.b16 %v5911
        %v6009 = vunpack.c.l.b16 %v5912
        %v6010 = vunpack.c.l.b16 %v5913
        %v6011 = vunpack.c.l.b16 %v5914
        %v6012 = vunpack.c.l.b16 %v5915
        %v6013 = vunpack.c.l.b16 %v5916
        %v6014 = vunpack.c.l.b16 %v5917
        %v6015 = vunpack.c.l.b16 %v5918
        %v6016 = vunpack.c.l.b16 %v5919
        %v6017 = vunpack.c.l.b16 %v5920
        %v6018 = vpack.c.b16 %v5971, %v5970
        %v6019 = vpack.c.b16 %v5973, %v5972
        %v6020 = vpack.c.b16 %v5975, %v5974
        %v6021 = vpack.c.b16 %v5977, %v5976
        %v6022 = vpack.c.b16 %v5979, %v5978
        %v6023 = vpack.c.b16 %v5981, %v5980
        %v6024 = vpack.c.b16 %v5983, %v5982
        %v6025 = vpack.c.b16 %v5985, %v5984
        %v6026 = vpack.c.b16 %v5987, %v5986
        %v6027 = vpack.c.b16 %v5989, %v5988
        %v6028 = vpack.c.b16 %v5991, %v5990
        %v6029 = vpack.c.b16 %v5993, %v5992
        %v6030 = vpack.c.b16 %v5995, %v5994
        %v6031 = vpack.c.b16 %v5997, %v5996
        %v6032 = vpack.c.b16 %v5999, %v5998
        %v6033 = vpack.c.b16 %v6001, %v6000
        %v6034 = vpack.c.b16 %v6003, %v6002
        %v6035 = vpack.c.b16 %v6005, %v6004
        %v6036 = vpack.c.b16 %v6007, %v6006
        %v6037 = vpack.c.b16 %v6009, %v6008
        %v6038 = vpack.c.b16 %v6011, %v6010
        %v6039 = vpack.c.b16 %v6013, %v6012
        %v6040 = vpack.c.b16 %v6015, %v6014
        %v6041 = vpack.c.b16 %v6017, %v6016
        %6066 = vmatpush.bf16.msra.mxu0 %v6025
        %6067 = vmatpush.bf16.msra.mxu0 %v6024
        %6068 = vmatpush.bf16.msra.mxu0 %v6023
        %6069 = vmatpush.bf16.msra.mxu0 %v6022
        %6070 = vmatpush.bf16.msra.mxu0 %v6021
        %6071 = vmatpush.bf16.msra.mxu0 %v6020
        %6072 = vmatpush.bf16.msra.mxu0 %v6019
        %6073 = vmatpush.bf16.msra.mxu0 %v6018
        %6074 = vmatmul.bf16.gmra.mxu0 %v5870
        %v6075 = vpop.f32.mrf.mxu0
        %v6076 = vadd.f32 %v5921, %v6075
        %v6077 = vpop.f32.mrf.mxu0
        %6078 = vdwg.mxu0
        %6079 = vmatpush.bf16.msra.mxu0 %v6033
        %6080 = vmatpush.bf16.msra.mxu0 %v6032
        %6081 = vmatpush.bf16.msra.mxu0 %v6031
        %6082 = vmatpush.bf16.msra.mxu0 %v6030
        %6083 = vmatpush.bf16.msra.mxu0 %v6029
        %6084 = vmatpush.bf16.msra.mxu0 %v6028
        %6085 = vmatpush.bf16.msra.mxu0 %v6027
        %6086 = vmatpush.bf16.msra.mxu0 %v6026
        %6087 = vmatmul.bf16.gmra.mxu0 %v5871
        %v6088 = vpop.f32.mrf.mxu0
        %v6089 = vadd.f32 %v6076, %v6088
        %v6090 = vpop.f32.mrf.mxu0
        %6091 = vdwg.mxu0
        %6092 = vmatpush.bf16.msra.mxu0 %v6041
        %6093 = vmatpush.bf16.msra.mxu0 %v6040
        %6094 = vmatpush.bf16.msra.mxu0 %v6039
        %6095 = vmatpush.bf16.msra.mxu0 %v6038
        %6096 = vmatpush.bf16.msra.mxu0 %v6037
        %6097 = vmatpush.bf16.msra.mxu0 %v6036
        %6098 = vmatpush.bf16.msra.mxu0 %v6035
        %6099 = vmatpush.bf16.msra.mxu0 %v6034
        %6100 = vmatmul.bf16.gmra.mxu0 %v5872
        %v6101 = vpop.f32.mrf.mxu0
        %v6102 = vadd.f32 %v6089, %v6101
        %v6103 = vpop.f32.mrf.mxu0
        %6104 = vdwg.mxu0
        %v6105 = vmax.f32 %v6102, 0.0
        %v6106 = vpack.c.bf16 %v6105, %v6105
        %v6107 = vld [vmem:[%s61] sm:$0xff]
        %v6108 = vld [vmem:[%s61 + $0x8] sm:$0xf]
        %v6109 = vld [vmem:[%s61 + $0xc] sm:$0xff]
        %v6110 = vld [vmem:[%s61 + $0x14] sm:$0xf]
        %v6111 = vld [vmem:[%s61 + $0x18] sm:$0xff]
        %v6112 = vld [vmem:[%s61 + $0x20] sm:$0xf]
        %v6113 = vld [vmem:[%s61 + $0x24] sm:$0xff]
        %v6114 = vld [vmem:[%s61 + $0x2c] sm:$0xf]
        %v6115 = vld [vmem:[%s61 + $0x30] sm:$0xff]
        %v6116 = vld [vmem:[%s61 + $0x38] sm:$0xf]
        %v6117 = vld [vmem:[%s61 + $0x3c] sm:$0xff]
        %v6118 = vld [vmem:[%s61 + $0x44] sm:$0xf]
        %v6119 = vld [vmem:[%s61 + $0x48] sm:$0xff]
        %v6120 = vld [vmem:[%s61 + $0x50] sm:$0xf]
        %v6121 = vld [vmem:[%s61 + $0x54] sm:$0xff]
        %v6122 = vld [vmem:[%s61 + $0x5c] sm:$0xf]
        %v6123 = vld [vmem:[%s61 + $0x60] sm:$0xff]
        %v6124 = vld [vmem:[%s61 + $0x68] sm:$0xf]
        %v6125 = vld [vmem:[%s61 + $0x6c] sm:$0xff]
        %v6126 = vld [vmem:[%s61 + $0x74] sm:$0xf]
        %v6127 = vld [vmem:[%s61 + $0x78] sm:$0xff]
        %v6128 = vld [vmem:[%s61 + $0x80] sm:$0xf]
        %v6129 = vld [vmem:[%s61 + $0x84] sm:$0xff]
        %v6130 = vld [vmem:[%s61 + $0x8c] sm:$0xf]
        %v6131 = vld [vmem:[%s63] sm:$0x7]
        %v6156 = vunpack.c.l.b16 %v6107
        %v6157 = vunpack.c.h.b16 %v6107
        %v6158 = vunpack.c.l.b16 %v6108
        %v6159 = vunpack.c.l.b16 %v6109
        %v6160 = vunpack.c.h.b16 %v6109
        %v6161 = vunpack.c.l.b16 %v6110
        %v6162 = vunpack.c.l.b16 %v6111
        %v6163 = vunpack.c.h.b16 %v6111
        %v6164 = vunpack.c.l.b16 %v6112
        %v6165 = vunpack.c.l.b16 %v6113
        %v6166 = vunpack.c.h.b16 %v6113
        %v6167 = vunpack.c.l.b16 %v6114
        %v6168 = vunpack.c.l.b16 %v6115
        %v6169 = vunpack.c.h.b16 %v6115
        %v6170 = vunpack.c.l.b16 %v6116
        %v6171 = vunpack.c.l.b16 %v6117
        %v6172 = vunpack.c.h.b16 %v6117
        %v6173 = vunpack.c.l.b16 %v6118
        %v6174 = vunpack.c.l.b16 %v6119
        %v6175 = vunpack.c.h.b16 %v6119
        %v6176 = vunpack.c.l.b16 %v6120
        %v6177 = vunpack.c.l.b16 %v6121
        %v6178 = vunpack.c.h.b16 %v6121
        %v6179 = vunpack.c.l.b16 %v6122
        %v6180 = vunpack.c.l.b16 %v6123
        %v6181 = vunpack.c.h.b16 %v6123
        %v6182 = vunpack.c.l.b16 %v6124
        %v6183 = vunpack.c.l.b16 %v6125
        %v6184 = vunpack.c.h.b16 %v6125
        %v6185 = vunpack.c.l.b16 %v6126
        %v6186 = vunpack.c.l.b16 %v6127
        %v6187 = vunpack.c.h.b16 %v6127
        %v6188 = vunpack.c.l.b16 %v6128
        %v6189 = vunpack.c.l.b16 %v6129
        %v6190 = vunpack.c.h.b16 %v6129
        %v6191 = vunpack.c.l.b16 %v6130
        %v6192 = vpack.c.b16 %v6159, %v6156
        %v6193 = vpack.c.b16 %v6160, %v6157
        %v6194 = vpack.c.b16 %v6161, %v6158
        %v6195 = vpack.c.b16 %v6165, %v6162
        %v6196 = vpack.c.b16 %v6166, %v6163
        %v6197 = vpack.c.b16 %v6167, %v6164
        %v6198 = vpack.c.b16 %v6171, %v6168
        %v6199 = vpack.c.b16 %v6172, %v6169
        %v6200 = vpack.c.b16 %v6173, %v6170
        %v6201 = vpack.c.b16 %v6177, %v6174
        %v6202 = vpack.c.b16 %v6178, %v6175
        %v6203 = vpack.c.b16 %v6179, %v6176
        %v6204 = vpack.c.b16 %v6183, %v6180
        %v6205 = vpack.c.b16 %v6184, %v6181
        %v6206 = vpack.c.b16 %v6185, %v6182
        %v6207 = vpack.c.b16 %v6189, %v6186
        %v6208 = vpack.c.b16 %v6190, %v6187
        %v6209 = vpack.c.b16 %v6191, %v6188
        %v6229 = vperm.slane %v6131, 0
        %v6230 = vperm.slane %v6131, 1
        %v6231 = vperm.slane %v6131, 2
        %v6236 = vsel %vm2020, %v6106, 0
        %6238 = vmatpush.bf16.msra.mxu0 0
        %6239 = vmatpush.bf16.msra.mxu0 0
        %6240 = vmatpush.bf16.msra.mxu0 %v6207
        %6241 = vmatpush.bf16.msra.mxu0 %v6204
        %6242 = vmatpush.bf16.msra.mxu0 %v6201
        %6243 = vmatpush.bf16.msra.mxu0 %v6198
        %6244 = vmatpush.bf16.msra.mxu0 %v6195
        %6245 = vmatpush.bf16.msra.mxu0 %v6192
        %6246 = vmatmul.bf16.gmra.mxu0 %v6236
        %v6247 = vpop.f32.mrf.mxu0
        %v6248 = vadd.f32 %v6229, %v6247
        %v6249 = vpop.f32.mrf.mxu0
        %6250 = vdwg.mxu0
        %6251 = vmatpush.bf16.msra.mxu0 0
        %6252 = vmatpush.bf16.msra.mxu0 0
        %6253 = vmatpush.bf16.msra.mxu0 %v6208
        %6254 = vmatpush.bf16.msra.mxu0 %v6205
        %6255 = vmatpush.bf16.msra.mxu0 %v6202
        %6256 = vmatpush.bf16.msra.mxu0 %v6199
        %6257 = vmatpush.bf16.msra.mxu0 %v6196
        %6258 = vmatpush.bf16.msra.mxu0 %v6193
        %6259 = vmatmul.bf16.gmra.mxu0 %v6236
        %v6260 = vpop.f32.mrf.mxu0
        %v6261 = vadd.f32 %v6230, %v6260
        %v6262 = vpop.f32.mrf.mxu0
        %6263 = vdwg.mxu0
        %6264 = vmatpush.bf16.msra.mxu0 0
        %6265 = vmatpush.bf16.msra.mxu0 0
        %6266 = vmatpush.bf16.msra.mxu0 %v6209
        %6267 = vmatpush.bf16.msra.mxu0 %v6206
        %6268 = vmatpush.bf16.msra.mxu0 %v6203
        %6269 = vmatpush.bf16.msra.mxu0 %v6200
        %6270 = vmatpush.bf16.msra.mxu0 %v6197
        %6271 = vmatpush.bf16.msra.mxu0 %v6194
        %6272 = vmatmul.bf16.gmra.mxu0 %v6236
        %v6273 = vpop.f32.mrf.mxu0
        %v6274 = vadd.f32 %v6231, %v6273
        %v6275 = vpop.f32.mrf.mxu0
        %6276 = vdwg.mxu0
        %v6277 = vxor.u32 %v6248, 2147483648
        %v6278 = vxor.u32 %v6261, 2147483648
        %v6279 = vxor.u32 %v6274, 2147483648
        %v6280 = vmul.f32 %v6277, 1.442695
        %v6281 = vpow.pop %v6280
        %v6282 = vmul.f32 %v6278, 1.442695
        %v6283 = vpow.pop %v6282
        %v6284 = vmul.f32 %v6279, 1.442695
        %v6285 = vpow.pop %v6284
        %v6286 = vadd.f32 %v6281, 1.0
        %v6287 = vadd.f32 %v6283, 1.0
        %v6288 = vadd.f32 %v6285, 1.0
        %v6289 = vrcp.pop %v6286
        %v6290 = vmul.f32 %v6286, %v6289
        %v6291 = vsub.f32 1.0, %v6290
        %v6292 = vmul.f32 %v6289, %v6291
        %v6293 = vadd.f32 %v6289, %v6292
        %vm6294 = vweird.f32 %v6286
        %vm6295 = vweird.f32 %v6289
        %vm6296 = vmor %vm6294, %vm6295
        %v6297 = vsel %vm6296, %v6289, %v6293
        %v6298 = vand.u32 2147483647, %v6286
        %vm6299 = vcmp.eq.f32.partialorder %v6298, 8.507059e+37
        %v6300 = vand.u32 %v6286, 2147483648
        %v6301 = vor.u32 1.1754944e-38, %v6300
        %v6302 = vsel %vm6299, %v6301, %v6297
        %v6303 = vmul.f32 1.0, %v6302
        %v6304 = vrcp.pop %v6287
        %v6305 = vmul.f32 %v6287, %v6304
        %v6306 = vsub.f32 1.0, %v6305
        %v6307 = vmul.f32 %v6304, %v6306
        %v6308 = vadd.f32 %v6304, %v6307
        %vm6309 = vweird.f32 %v6287
        %vm6310 = vweird.f32 %v6304
        %vm6311 = vmor %vm6309, %vm6310
        %v6312 = vsel %vm6311, %v6304, %v6308
        %v6313 = vand.u32 2147483647, %v6287
        %vm6314 = vcmp.eq.f32.partialorder %v6313, 8.507059e+37
        %v6315 = vand.u32 %v6287, 2147483648
        %v6316 = vor.u32 1.1754944e-38, %v6315
        %v6317 = vsel %vm6314, %v6316, %v6312
        %v6318 = vmul.f32 1.0, %v6317
        %v6319 = vrcp.pop %v6288
        %v6320 = vmul.f32 %v6288, %v6319
        %v6321 = vsub.f32 1.0, %v6320
        %v6322 = vmul.f32 %v6319, %v6321
        %v6323 = vadd.f32 %v6319, %v6322
        %vm6324 = vweird.f32 %v6288
        %vm6325 = vweird.f32 %v6319
        %vm6326 = vmor %vm6324, %vm6325
        %v6327 = vsel %vm6326, %v6319, %v6323
        %v6328 = vand.u32 2147483647, %v6288
        %vm6329 = vcmp.eq.f32.partialorder %v6328, 8.507059e+37
        %v6330 = vand.u32 %v6288, 2147483648
        %v6331 = vor.u32 1.1754944e-38, %v6330
        %v6332 = vsel %vm6329, %v6331, %v6327
        %v6333 = vmul.f32 1.0, %v6332
        %v6334 = vperm.slane %v6303, 0
        %v6335 = vperm.slane %v6318, 0
        %v6336 = vperm.slane %v6333, 0
        %v6340 = vrot.slane %v6335, 4
        %v6341 = vsel %vm2423, %v6334, %v6340
        %v6342 = vsel %vm2423, %v6340, %v6334
        %v6343 = vrot.slane %v6342, 4
        %v6344 = vrot.slane %v6336, 4
        %v6348 = vmul.f32 %v5803, %v6341
        %v6349 = vmul.f32 %v5804, %v6336
        %v6350 = vmul.f32 %v5805, %v6343
        %v6351 = vmul.f32 %v5806, %v6344
        %v6352 = vmul.f32 %v5807, %v6341
        %v6353 = vmul.f32 %v5808, %v6336
        %v6354 = vmul.f32 %v5809, %v6343
        %v6355 = vmul.f32 %v5810, %v6344
        %6364 = vst [vmem:[#allocation1] ss:$2 sm:$0xff] %v6348
        %s6365 = scalar_lea.vmem [#allocation1], 1
        %6366 = vst [vmem:[%s6365] ss:$2 sm:$0xff] %v6350
        %s6367 = scalar_lea.vmem [#allocation1], 16
        %6368 = vst [vmem:[%s6367] ss:$2 sm:$0xff] %v6349
        %s6369 = scalar_lea.vmem [#allocation1], 17
        %6370 = vst [vmem:[%s6369] ss:$2 sm:$0xff] %v6351
        %s6371 = scalar_lea.vmem [#allocation1], 32
        %6372 = vst [vmem:[%s6371] ss:$2 sm:$0xff] %v6352
        %s6373 = scalar_lea.vmem [#allocation1], 33
        %6374 = vst [vmem:[%s6373] ss:$2 sm:$0xff] %v6354
        %s6375 = scalar_lea.vmem [#allocation1], 48
        %6376 = vst [vmem:[%s6375] ss:$2 sm:$0xff] %v6353
        %s6377 = scalar_lea.vmem [#allocation1], 49
        %6378 = vst [vmem:[%s6377] ss:$2 sm:$0xff] %v6355
        %v6379 = vld.sshfl [vmem:[#allocation1] sm:$0xff pattern:$0x75316420]
        %v6380 = vld.sshfl [vmem:[#allocation1 + $0x8] sm:$0xff pattern:$0x75316420]
        %v6381 = vld.sshfl [vmem:[#allocation1 + $0x10] sm:$0xff pattern:$0x75316420]
        %v6382 = vld.sshfl [vmem:[#allocation1 + $0x20] sm:$0xff pattern:$0x75316420]
        %v6383 = vld.sshfl [vmem:[#allocation1 + $0x28] sm:$0xff pattern:$0x75316420]
        %v6384 = vld.sshfl [vmem:[#allocation1 + $0x30] sm:$0xff pattern:$0x75316420]
        %v6391 = vpack.c.bf16 %v6382, %v6379
        %v6392 = vpack.c.bf16 %v6383, %v6380
        %v6393 = vpack.c.bf16 %v6384, %v6381
        %v6394 = vld [vmem:[%s65] sm:$0xf]
        %v6395 = vld [vmem:[%s65 + $0x4] sm:$0xf]
        %v6396 = vld [vmem:[%s65 + $0x8] sm:$0xf]
        %v6397 = vld [vmem:[%s65 + $0xc] sm:$0xf]
        %v6398 = vld [vmem:[%s65 + $0x10] sm:$0xf]
        %v6399 = vld [vmem:[%s65 + $0x14] sm:$0xf]
        %v6400 = vld [vmem:[%s65 + $0x18] sm:$0xf]
        %v6401 = vld [vmem:[%s65 + $0x1c] sm:$0xf]
        %v6402 = vld [vmem:[%s65 + $0x20] sm:$0xf]
        %v6403 = vld [vmem:[%s65 + $0x24] sm:$0xf]
        %v6404 = vld [vmem:[%s65 + $0x28] sm:$0xf]
        %v6405 = vld [vmem:[%s65 + $0x2c] sm:$0xf]
        %v6406 = vld [vmem:[%s65 + $0x30] sm:$0xf]
        %v6407 = vld [vmem:[%s65 + $0x34] sm:$0xf]
        %v6408 = vld [vmem:[%s65 + $0x38] sm:$0xf]
        %v6409 = vld [vmem:[%s65 + $0x3c] sm:$0xf]
        %v6410 = vld [vmem:[%s65 + $0x40] sm:$0xf]
        %v6411 = vld [vmem:[%s65 + $0x44] sm:$0xf]
        %v6412 = vld [vmem:[%s65 + $0x48] sm:$0xf]
        %v6413 = vld [vmem:[%s65 + $0x4c] sm:$0xf]
        %v6414 = vld [vmem:[%s65 + $0x50] sm:$0xf]
        %v6415 = vld [vmem:[%s65 + $0x54] sm:$0xf]
        %v6416 = vld [vmem:[%s65 + $0x58] sm:$0xf]
        %v6417 = vld [vmem:[%s65 + $0x5c] sm:$0xf]
        %v6418 = vld [vmem:[%s65 + $0x60] sm:$0xf]
        %v6419 = vld [vmem:[%s65 + $0x64] sm:$0xf]
        %v6420 = vld [vmem:[%s65 + $0x68] sm:$0xf]
        %v6421 = vld [vmem:[%s65 + $0x6c] sm:$0xf]
        %v6422 = vld [vmem:[%s65 + $0x70] sm:$0xf]
        %v6423 = vld [vmem:[%s65 + $0x74] sm:$0xf]
        %v6424 = vld [vmem:[%s65 + $0x78] sm:$0xf]
        %v6425 = vld [vmem:[%s65 + $0x7c] sm:$0xf]
        %v6426 = vld [vmem:[%s65 + $0x80] sm:$0xf]
        %v6427 = vld [vmem:[%s65 + $0x84] sm:$0xf]
        %v6428 = vld [vmem:[%s65 + $0x88] sm:$0xf]
        %v6429 = vld [vmem:[%s65 + $0x8c] sm:$0xf]
        %v6430 = vld [vmem:[%s65 + $0x90] sm:$0xf]
        %v6431 = vld [vmem:[%s65 + $0x94] sm:$0xf]
        %v6432 = vld [vmem:[%s65 + $0x98] sm:$0xf]
        %v6433 = vld [vmem:[%s65 + $0x9c] sm:$0xf]
        %v6434 = vld [vmem:[%s65 + $0xa0] sm:$0xf]
        %v6435 = vld [vmem:[%s65 + $0xa4] sm:$0xf]
        %v6436 = vld [vmem:[%s65 + $0xa8] sm:$0xf]
        %v6437 = vld [vmem:[%s65 + $0xac] sm:$0xf]
        %v6438 = vld [vmem:[%s65 + $0xb0] sm:$0xf]
        %v6439 = vld [vmem:[%s65 + $0xb4] sm:$0xf]
        %v6440 = vld [vmem:[%s65 + $0xb8] sm:$0xf]
        %v6441 = vld [vmem:[%s65 + $0xbc] sm:$0xf]
        %v6442 = vld [vmem:[%s67] sm:$0x1]
        %v6444 = vperm.slane %v6442, 0
        %v6494 = vunpack.c.l.b16 %v6394
        %v6495 = vunpack.c.l.b16 %v6395
        %v6496 = vunpack.c.l.b16 %v6396
        %v6497 = vunpack.c.l.b16 %v6397
        %v6498 = vunpack.c.l.b16 %v6398
        %v6499 = vunpack.c.l.b16 %v6399
        %v6500 = vunpack.c.l.b16 %v6400
        %v6501 = vunpack.c.l.b16 %v6401
        %v6502 = vunpack.c.l.b16 %v6402
        %v6503 = vunpack.c.l.b16 %v6403
        %v6504 = vunpack.c.l.b16 %v6404
        %v6505 = vunpack.c.l.b16 %v6405
        %v6506 = vunpack.c.l.b16 %v6406
        %v6507 = vunpack.c.l.b16 %v6407
        %v6508 = vunpack.c.l.b16 %v6408
        %v6509 = vunpack.c.l.b16 %v6409
        %v6510 = vunpack.c.l.b16 %v6410
        %v6511 = vunpack.c.l.b16 %v6411
        %v6512 = vunpack.c.l.b16 %v6412
        %v6513 = vunpack.c.l.b16 %v6413
        %v6514 = vunpack.c.l.b16 %v6414
        %v6515 = vunpack.c.l.b16 %v6415
        %v6516 = vunpack.c.l.b16 %v6416
        %v6517 = vunpack.c.l.b16 %v6417
        %v6518 = vunpack.c.l.b16 %v6418
        %v6519 = vunpack.c.l.b16 %v6419
        %v6520 = vunpack.c.l.b16 %v6420
        %v6521 = vunpack.c.l.b16 %v6421
        %v6522 = vunpack.c.l.b16 %v6422
        %v6523 = vunpack.c.l.b16 %v6423
        %v6524 = vunpack.c.l.b16 %v6424
        %v6525 = vunpack.c.l.b16 %v6425
        %v6526 = vunpack.c.l.b16 %v6426
        %v6527 = vunpack.c.l.b16 %v6427
        %v6528 = vunpack.c.l.b16 %v6428
        %v6529 = vunpack.c.l.b16 %v6429
        %v6530 = vunpack.c.l.b16 %v6430
        %v6531 = vunpack.c.l.b16 %v6431
        %v6532 = vunpack.c.l.b16 %v6432
        %v6533 = vunpack.c.l.b16 %v6433
        %v6534 = vunpack.c.l.b16 %v6434
        %v6535 = vunpack.c.l.b16 %v6435
        %v6536 = vunpack.c.l.b16 %v6436
        %v6537 = vunpack.c.l.b16 %v6437
        %v6538 = vunpack.c.l.b16 %v6438
        %v6539 = vunpack.c.l.b16 %v6439
        %v6540 = vunpack.c.l.b16 %v6440
        %v6541 = vunpack.c.l.b16 %v6441
        %v6542 = vpack.c.b16 %v6495, %v6494
        %v6543 = vpack.c.b16 %v6497, %v6496
        %v6544 = vpack.c.b16 %v6499, %v6498
        %v6545 = vpack.c.b16 %v6501, %v6500
        %v6546 = vpack.c.b16 %v6503, %v6502
        %v6547 = vpack.c.b16 %v6505, %v6504
        %v6548 = vpack.c.b16 %v6507, %v6506
        %v6549 = vpack.c.b16 %v6509, %v6508
        %v6550 = vpack.c.b16 %v6511, %v6510
        %v6551 = vpack.c.b16 %v6513, %v6512
        %v6552 = vpack.c.b16 %v6515, %v6514
        %v6553 = vpack.c.b16 %v6517, %v6516
        %v6554 = vpack.c.b16 %v6519, %v6518
        %v6555 = vpack.c.b16 %v6521, %v6520
        %v6556 = vpack.c.b16 %v6523, %v6522
        %v6557 = vpack.c.b16 %v6525, %v6524
        %v6558 = vpack.c.b16 %v6527, %v6526
        %v6559 = vpack.c.b16 %v6529, %v6528
        %v6560 = vpack.c.b16 %v6531, %v6530
        %v6561 = vpack.c.b16 %v6533, %v6532
        %v6562 = vpack.c.b16 %v6535, %v6534
        %v6563 = vpack.c.b16 %v6537, %v6536
        %v6564 = vpack.c.b16 %v6539, %v6538
        %v6565 = vpack.c.b16 %v6541, %v6540
        %6590 = vmatpush.bf16.msra.mxu0 %v6549
        %6591 = vmatpush.bf16.msra.mxu0 %v6548
        %6592 = vmatpush.bf16.msra.mxu0 %v6547
        %6593 = vmatpush.bf16.msra.mxu0 %v6546
        %6594 = vmatpush.bf16.msra.mxu0 %v6545
        %6595 = vmatpush.bf16.msra.mxu0 %v6544
        %6596 = vmatpush.bf16.msra.mxu0 %v6543
        %6597 = vmatpush.bf16.msra.mxu0 %v6542
        %6598 = vmatmul.bf16.gmra.mxu0 %v6391
        %v6599 = vpop.f32.mrf.mxu0
        %v6600 = vadd.f32 %v6444, %v6599
        %v6601 = vpop.f32.mrf.mxu0
        %v6602 = vadd.f32 %v6444, %v6601
        %6603 = vdwg.mxu0
        %6604 = vmatpush.bf16.msra.mxu0 %v6557
        %6605 = vmatpush.bf16.msra.mxu0 %v6556
        %6606 = vmatpush.bf16.msra.mxu0 %v6555
        %6607 = vmatpush.bf16.msra.mxu0 %v6554
        %6608 = vmatpush.bf16.msra.mxu0 %v6553
        %6609 = vmatpush.bf16.msra.mxu0 %v6552
        %6610 = vmatpush.bf16.msra.mxu0 %v6551
        %6611 = vmatpush.bf16.msra.mxu0 %v6550
        %6612 = vmatmul.bf16.gmra.mxu0 %v6392
        %v6613 = vpop.f32.mrf.mxu0
        %v6614 = vadd.f32 %v6600, %v6613
        %v6615 = vpop.f32.mrf.mxu0
        %v6616 = vadd.f32 %v6602, %v6615
        %6617 = vdwg.mxu0
        %6618 = vmatpush.bf16.msra.mxu0 %v6565
        %6619 = vmatpush.bf16.msra.mxu0 %v6564
        %6620 = vmatpush.bf16.msra.mxu0 %v6563
        %6621 = vmatpush.bf16.msra.mxu0 %v6562
        %6622 = vmatpush.bf16.msra.mxu0 %v6561
        %6623 = vmatpush.bf16.msra.mxu0 %v6560
        %6624 = vmatpush.bf16.msra.mxu0 %v6559
        %6625 = vmatpush.bf16.msra.mxu0 %v6558
        %6626 = vmatmul.bf16.gmra.mxu0 %v6393
        %v6627 = vpop.f32.mrf.mxu0
        %v6628 = vadd.f32 %v6614, %v6627
        %v6629 = vpop.f32.mrf.mxu0
        %v6630 = vadd.f32 %v6616, %v6629
        %6631 = vdwg.mxu0
        %v6632 = vadd.f32 %v6628, %v4656
        %v6633 = vadd.f32 %v6630, %v4658
        %v6634 = vsel %vm2706, %v6632, 0.0
        %6635 = vadd.xlane.f32.xlu0 %v6634
        %v6636 = vpop.xlane.xlu0 %6635
        %v6637 = vsel %vm2706, %v6633, 0.0
        %6638 = vadd.xlane.f32.xlu0 %v6637
        %v6639 = vpop.xlane.xlu0 %6638
        %v6640 = vmul.f32 %v6636, %v2336
        %v6641 = vmul.f32 %v6639, %v2336
        %v6642 = vsub.f32 %v6632, %v6640
        %v6643 = vsub.f32 %v6633, %v6641
        %v6644 = vmul.f32 %v6642, %v6642
        %v6645 = vmul.f32 %v6643, %v6643
        %v6646 = vsel %vm2706, %v6644, 0.0
        %6647 = vadd.xlane.f32.xlu0 %v6646
        %v6648 = vpop.xlane.xlu0 %6647
        %v6649 = vsel %vm2706, %v6645, 0.0
        %6650 = vadd.xlane.f32.xlu0 %v6649
        %v6651 = vpop.xlane.xlu0 %6650
        %v6652 = vmul.f32 %v6648, %v2336
        %v6653 = vmul.f32 %v6651, %v2336
        %v6654 = vadd.f32 %v6652, 1e-05
        %v6655 = vadd.f32 %v6653, 1e-05
        %v6656 = vrsqrt.pop %v6654
        %v6657 = vmul.f32 %v6656, %v6654
        %v6658 = vmul.f32 %v6657, %v6656
        %v6659 = vmul.f32 0.5, %v6658
        %v6660 = vsub.f32 1.5, %v6659
        %v6661 = vmul.f32 %v6656, %v6660
        %vm6662 = vweird.f32 %v6654
        %vm6663 = vweird.f32 %v6656
        %vm6664 = vmor %vm6662, %vm6663
        %v6665 = vsel %vm6664, %v6656, %v6661
        %v6666 = vrsqrt.pop %v6655
        %v6667 = vmul.f32 %v6666, %v6655
        %v6668 = vmul.f32 %v6667, %v6666
        %v6669 = vmul.f32 0.5, %v6668
        %v6670 = vsub.f32 1.5, %v6669
        %v6671 = vmul.f32 %v6666, %v6670
        %vm6672 = vweird.f32 %v6655
        %vm6673 = vweird.f32 %v6666
        %vm6674 = vmor %vm6672, %vm6673
        %v6675 = vsel %vm6674, %v6666, %v6671
        %v6676 = vmul.f32 %v6642, %v6665
        %v6677 = vmul.f32 %v6643, %v6675
        %v6678 = vld [vmem:[%s71] sm:$0x1]
        %v6680 = vperm.slane %v6678, 0
        %v6682 = vmul.f32 %v6676, %v6680
        %v6683 = vmul.f32 %v6677, %v6680
        %v6684 = vld [vmem:[%s73] sm:$0x1]
        %v6686 = vperm.slane %v6684, 0
        %v6688 = vadd.f32 %v6682, %v6686
        %v6689 = vadd.f32 %v6683, %v6686
        %v6690 = vpack.c.bf16 %v6689, %v6688
        %v6691 = vld [vmem:[%s75] sm:$0xf]
        %v6692 = vld [vmem:[%s75 + $0x4] sm:$0xf]
        %v6693 = vld [vmem:[%s75 + $0x8] sm:$0xf]
        %v6694 = vld [vmem:[%s75 + $0xc] sm:$0xf]
        %v6695 = vld [vmem:[%s75 + $0x10] sm:$0xf]
        %v6696 = vld [vmem:[%s75 + $0x14] sm:$0xf]
        %v6697 = vld [vmem:[%s75 + $0x18] sm:$0xf]
        %v6698 = vld [vmem:[%s75 + $0x1c] sm:$0xf]
        %v6699 = vld [vmem:[%s77] sm:$0x1]
        %v6701 = vperm.slane %v6699, 0
        %v6711 = vunpack.c.l.b16 %v6691
        %v6712 = vunpack.c.l.b16 %v6692
        %v6713 = vunpack.c.l.b16 %v6693
        %v6714 = vunpack.c.l.b16 %v6694
        %v6715 = vunpack.c.l.b16 %v6695
        %v6716 = vunpack.c.l.b16 %v6696
        %v6717 = vunpack.c.l.b16 %v6697
        %v6718 = vunpack.c.l.b16 %v6698
        %v6719 = vpack.c.b16 %v6712, %v6711
        %v6720 = vpack.c.b16 %v6714, %v6713
        %v6721 = vpack.c.b16 %v6716, %v6715
        %v6722 = vpack.c.b16 %v6718, %v6717
        %v6728 = vsel %vm2706, %v6690, 0
        %6730 = vmatpush.bf16.msra.mxu0 0
        %6731 = vmatpush.bf16.msra.mxu0 0
        %6732 = vmatpush.bf16.msra.mxu0 0
        %6733 = vmatpush.bf16.msra.mxu0 0
        %6734 = vmatpush.bf16.msra.mxu0 %v6722
        %6735 = vmatpush.bf16.msra.mxu0 %v6721
        %6736 = vmatpush.bf16.msra.mxu0 %v6720
        %6737 = vmatpush.bf16.msra.mxu0 %v6719
        %6738 = vmatmul.bf16.gmra.mxu0 %v6728
        %v6739 = vpop.f32.mrf.mxu0
        %v6740 = vadd.f32 %v6701, %v6739
        %v6741 = vpop.f32.mrf.mxu0
        %v6742 = vadd.f32 %v6701, %v6741
        %6743 = vdwg.mxu0
        %v6744 = vld [vmem:[%s79] sm:$0xf]
        %v6745 = vld [vmem:[%s79 + $0x4] sm:$0xf]
        %v6746 = vld [vmem:[%s79 + $0x8] sm:$0xf]
        %v6747 = vld [vmem:[%s79 + $0xc] sm:$0xf]
        %v6748 = vld [vmem:[%s79 + $0x10] sm:$0xf]
        %v6749 = vld [vmem:[%s79 + $0x14] sm:$0xf]
        %v6750 = vld [vmem:[%s79 + $0x18] sm:$0xf]
        %v6751 = vld [vmem:[%s79 + $0x1c] sm:$0xf]
        %v6752 = vld [vmem:[%s81] sm:$0x1]
        %v6754 = vperm.slane %v6752, 0
        %v6764 = vunpack.c.l.b16 %v6744
        %v6765 = vunpack.c.l.b16 %v6745
        %v6766 = vunpack.c.l.b16 %v6746
        %v6767 = vunpack.c.l.b16 %v6747
        %v6768 = vunpack.c.l.b16 %v6748
        %v6769 = vunpack.c.l.b16 %v6749
        %v6770 = vunpack.c.l.b16 %v6750
        %v6771 = vunpack.c.l.b16 %v6751
        %v6772 = vpack.c.b16 %v6765, %v6764
        %v6773 = vpack.c.b16 %v6767, %v6766
        %v6774 = vpack.c.b16 %v6769, %v6768
        %v6775 = vpack.c.b16 %v6771, %v6770
        %6780 = vmatpush.bf16.msra.mxu0 0
        %6781 = vmatpush.bf16.msra.mxu0 0
        %6782 = vmatpush.bf16.msra.mxu0 0
        %6783 = vmatpush.bf16.msra.mxu0 0
        %6784 = vmatpush.bf16.msra.mxu0 %v6775
        %6785 = vmatpush.bf16.msra.mxu0 %v6774
        %6786 = vmatpush.bf16.msra.mxu0 %v6773
        %6787 = vmatpush.bf16.msra.mxu0 %v6772
        %6788 = vmatmul.bf16.gmra.mxu0 %v6728
        %v6789 = vpop.f32.mrf.mxu0
        %v6790 = vadd.f32 %v6754, %v6789
        %v6791 = vpop.f32.mrf.mxu0
        %v6792 = vadd.f32 %v6754, %v6791
        %6793 = vdwg.mxu0
        %v6794 = vld [vmem:[%s69] sm:$0xff]
        %v6795 = vld [vmem:[%s69 + $0x8] sm:$0x3]
        %v6796 = vld [vmem:[#allocation6] sm:$0xf]
        %v6797 = vld [vmem:[#allocation6 + $0x4] sm:$0xf]
        %v6798 = vld [vmem:[#allocation6 + $0x8] sm:$0xf]
        %v6799 = vld [vmem:[#allocation6 + $0xc] sm:$0xf]
        %v6800 = vld [vmem:[#allocation6 + $0x10] sm:$0xf]
        %v6801 = vld [vmem:[#allocation6 + $0x14] sm:$0xf]
        %v6802 = vld [vmem:[#allocation6 + $0x18] sm:$0xf]
        %v6803 = vld [vmem:[#allocation6 + $0x1c] sm:$0xf]
        %v6804 = vld [vmem:[%s85] sm:$0x1]
        %v6806 = vperm.slane %v6804, 0
        %v6808 = vadd.f32 %v6806, 0.0
        %v6809 = vpack.c.bf16 %v6795, %v6794
        %v6810 = vpack.c.bf16 %v6742, %v6740
        %v6811 = vpack.c.bf16 %v6792, %v6790
        %v6813 = vsel %vm1643, %v6809, 0
        %v6816 = vsel %vm1643, %v6810, 0
        %6818 = vmatpush.bf16.xpose.msra.mxu0 0
        %6819 = vmatpush.bf16.xpose.msra.mxu0 0
        %6820 = vmatpush.bf16.xpose.msra.mxu0 0
        %6821 = vmatpush.bf16.xpose.msra.mxu0 0
        %6822 = vmatpush.bf16.xpose.msra.mxu0 0
        %6823 = vmatpush.bf16.xpose.msra.mxu0 0
        %6824 = vmatpush.bf16.xpose.msra.mxu0 0
        %6825 = vmatpush.bf16.xpose.msra.mxu0 %v6816
        %6826 = vmatmul.bf16.gmra.mxu0 %v6813
        %v6827 = vpop.f32.mrf.mxu0
        %v6828 = vadd.f32 0.0, %v6827
        %v6829 = vpop.f32.mrf.mxu0
        %v6830 = vadd.f32 0.0, %v6829
        %6831 = vdwg.mxu0
        %v6832 = vmul.f32 %v6828, 0.25
        %v6833 = vmul.f32 %v6830, 0.25
        %v6834 = vsel %vm1643, %v6832, -inf
        %6835 = vmax.xlane.f32.xlu0 %v6834
        %v6836 = vpop.xlane.xlu0 %6835
        %vm6837 = vcmask 123904
        %v6838 = vsel %vm6837, %v6833, -inf
        %6839 = vmax.xlane.f32.xlu0 %v6838
        %v6840 = vpop.xlane.xlu0 %6839
        %v6841 = vsub.f32 %v6832, %v6836
        %v6842 = vsub.f32 %v6833, %v6840
        %v6843 = vmul.f32 %v6841, 1.442695
        %v6844 = vpow.pop %v6843
        %v6845 = vmul.f32 %v6842, 1.442695
        %v6846 = vpow.pop %v6845
        %v6847 = vsel %vm1643, %v6844, 0.0
        %6848 = vadd.xlane.f32.xlu0 %v6847
        %v6849 = vpop.xlane.xlu0 %6848
        %v6850 = vsel %vm6837, %v6846, 0.0
        %6851 = vadd.xlane.f32.xlu0 %v6850
        %v6852 = vpop.xlane.xlu0 %6851
        %v6853 = vrcp.pop %v6849
        %v6854 = vmul.f32 %v6849, %v6853
        %v6855 = vsub.f32 1.0, %v6854
        %v6856 = vmul.f32 %v6853, %v6855
        %v6857 = vadd.f32 %v6853, %v6856
        %vm6858 = vweird.f32 %v6849
        %vm6859 = vweird.f32 %v6853
        %vm6860 = vmor %vm6858, %vm6859
        %v6861 = vsel %vm6860, %v6853, %v6857
        %v6862 = vand.u32 2147483647, %v6849
        %vm6863 = vcmp.eq.f32.partialorder %v6862, 8.507059e+37
        %v6864 = vand.u32 %v6849, 2147483648
        %v6865 = vor.u32 1.1754944e-38, %v6864
        %v6866 = vsel %vm6863, %v6865, %v6861
        %v6867 = vmul.f32 %v6844, %v6866
        %v6868 = vrcp.pop %v6852
        %v6869 = vmul.f32 %v6852, %v6868
        %v6870 = vsub.f32 1.0, %v6869
        %v6871 = vmul.f32 %v6868, %v6870
        %v6872 = vadd.f32 %v6868, %v6871
        %vm6873 = vweird.f32 %v6852
        %vm6874 = vweird.f32 %v6868
        %vm6875 = vmor %vm6873, %vm6874
        %v6876 = vsel %vm6875, %v6868, %v6872
        %v6877 = vand.u32 2147483647, %v6852
        %vm6878 = vcmp.eq.f32.partialorder %v6877, 8.507059e+37
        %v6879 = vand.u32 %v6852, 2147483648
        %v6880 = vor.u32 1.1754944e-38, %v6879
        %v6881 = vsel %vm6878, %v6880, %v6876
        %v6882 = vmul.f32 %v6846, %v6881
        %v6883 = vpack.c.bf16 %v6882, %v6867
        %v6885 = vsel %vm1643, %v6883, 0
        %6887 = vmatpush.bf16.msra.mxu0 0
        %6888 = vmatpush.bf16.msra.mxu0 0
        %6889 = vmatpush.bf16.msra.mxu0 0
        %6890 = vmatpush.bf16.msra.mxu0 0
        %6891 = vmatpush.bf16.msra.mxu0 0
        %6892 = vmatpush.bf16.msra.mxu0 0
        %6893 = vmatpush.bf16.msra.mxu0 0
        %6894 = vmatpush.bf16.msra.mxu0 %v6811
        %6895 = vmatmul.bf16.gmra.mxu0 %v6885
        %v6896 = vpop.f32.mrf.mxu0
        %v6897 = vadd.f32 0.0, %v6896
        %v6898 = vpop.f32.mrf.mxu0
        %v6899 = vadd.f32 0.0, %v6898
        %6900 = vdwg.mxu0
        %v6901 = vpack.c.bf16 %v6899, %v6897
        %v6904 = vunpack.c.l.b16 %v6796
        %v6905 = vunpack.c.l.b16 %v6797
        %v6906 = vpack.c.b16 %v6905, %v6904
        %v6909 = vsel %vm1643, %v6901, 0
        %6911 = vmatpush.bf16.msra.mxu0 0
        %6912 = vmatpush.bf16.msra.mxu0 0
        %6913 = vmatpush.bf16.msra.mxu0 0
        %6914 = vmatpush.bf16.msra.mxu0 0
        %6915 = vmatpush.bf16.msra.mxu0 0
        %6916 = vmatpush.bf16.msra.mxu0 0
        %6917 = vmatpush.bf16.msra.mxu0 0
        %6918 = vmatpush.bf16.msra.mxu0 %v6906
        %6919 = vmatmul.bf16.gmra.mxu0 %v6909
        %v6920 = vpop.f32.mrf.mxu0
        %v6921 = vadd.f32 0.0, %v6920
        %v6922 = vpop.f32.mrf.mxu0
        %v6923 = vadd.f32 0.0, %v6922
        %6924 = vdwg.mxu0
        %v6925 = vadd.f32 %v6808, %v6921
        %v6926 = vadd.f32 %v6808, %v6923
        %6928 = vrot.lane.b32.xlu0 %v6809, 112
        %v6929 = vpop.permute.xlu0 %6928
        %6931 = vrot.lane.b32.xlu0 %v6810, 112
        %v6932 = vpop.permute.xlu0 %6931
        %v6934 = vsel %vm1643, %v6929, 0
        %v6937 = vsel %vm1643, %v6932, 0
        %6939 = vmatpush.bf16.xpose.msra.mxu0 0
        %6940 = vmatpush.bf16.xpose.msra.mxu0 0
        %6941 = vmatpush.bf16.xpose.msra.mxu0 0
        %6942 = vmatpush.bf16.xpose.msra.mxu0 0
        %6943 = vmatpush.bf16.xpose.msra.mxu0 0
        %6944 = vmatpush.bf16.xpose.msra.mxu0 0
        %6945 = vmatpush.bf16.xpose.msra.mxu0 0
        %6946 = vmatpush.bf16.xpose.msra.mxu0 %v6937
        %6947 = vmatmul.bf16.gmra.mxu0 %v6934
        %v6948 = vpop.f32.mrf.mxu0
        %v6949 = vadd.f32 0.0, %v6948
        %v6950 = vpop.f32.mrf.mxu0
        %v6951 = vadd.f32 0.0, %v6950
        %6952 = vdwg.mxu0
        %v6953 = vmul.f32 %v6949, 0.25
        %v6954 = vmul.f32 %v6951, 0.25
        %v6955 = vsel %vm1643, %v6953, -inf
        %6956 = vmax.xlane.f32.xlu0 %v6955
        %v6957 = vpop.xlane.xlu0 %6956
        %v6958 = vsel %vm6837, %v6954, -inf
        %6959 = vmax.xlane.f32.xlu0 %v6958
        %v6960 = vpop.xlane.xlu0 %6959
        %v6961 = vsub.f32 %v6953, %v6957
        %v6962 = vsub.f32 %v6954, %v6960
        %v6963 = vmul.f32 %v6961, 1.442695
        %v6964 = vpow.pop %v6963
        %v6965 = vmul.f32 %v6962, 1.442695
        %v6966 = vpow.pop %v6965
        %v6967 = vsel %vm1643, %v6964, 0.0
        %6968 = vadd.xlane.f32.xlu0 %v6967
        %v6969 = vpop.xlane.xlu0 %6968
        %v6970 = vsel %vm6837, %v6966, 0.0
        %6971 = vadd.xlane.f32.xlu0 %v6970
        %v6972 = vpop.xlane.xlu0 %6971
        %v6973 = vrcp.pop %v6969
        %v6974 = vmul.f32 %v6969, %v6973
        %v6975 = vsub.f32 1.0, %v6974
        %v6976 = vmul.f32 %v6973, %v6975
        %v6977 = vadd.f32 %v6973, %v6976
        %vm6978 = vweird.f32 %v6969
        %vm6979 = vweird.f32 %v6973
        %vm6980 = vmor %vm6978, %vm6979
        %v6981 = vsel %vm6980, %v6973, %v6977
        %v6982 = vand.u32 2147483647, %v6969
        %vm6983 = vcmp.eq.f32.partialorder %v6982, 8.507059e+37
        %v6984 = vand.u32 %v6969, 2147483648
        %v6985 = vor.u32 1.1754944e-38, %v6984
        %v6986 = vsel %vm6983, %v6985, %v6981
        %v6987 = vmul.f32 %v6964, %v6986
        %v6988 = vrcp.pop %v6972
        %v6989 = vmul.f32 %v6972, %v6988
        %v6990 = vsub.f32 1.0, %v6989
        %v6991 = vmul.f32 %v6988, %v6990
        %v6992 = vadd.f32 %v6988, %v6991
        %vm6993 = vweird.f32 %v6972
        %vm6994 = vweird.f32 %v6988
        %vm6995 = vmor %vm6993, %vm6994
        %v6996 = vsel %vm6995, %v6988, %v6992
        %v6997 = vand.u32 2147483647, %v6972
        %vm6998 = vcmp.eq.f32.partialorder %v6997, 8.507059e+37
        %v6999 = vand.u32 %v6972, 2147483648
        %v7000 = vor.u32 1.1754944e-38, %v6999
        %v7001 = vsel %vm6998, %v7000, %v6996
        %v7002 = vmul.f32 %v6966, %v7001
        %v7003 = vpack.c.bf16 %v7002, %v6987
        %7005 = vrot.lane.b32.xlu0 %v6811, 112
        %v7006 = vpop.permute.xlu0 %7005
        %v7009 = vsel %vm1643, %v7003, 0
        %7011 = vmatpush.bf16.msra.mxu0 0
        %7012 = vmatpush.bf16.msra.mxu0 0
        %7013 = vmatpush.bf16.msra.mxu0 0
        %7014 = vmatpush.bf16.msra.mxu0 0
        %7015 = vmatpush.bf16.msra.mxu0 0
        %7016 = vmatpush.bf16.msra.mxu0 0
        %7017 = vmatpush.bf16.msra.mxu0 0
        %7018 = vmatpush.bf16.msra.mxu0 %v7006
        %7019 = vmatmul.bf16.gmra.mxu0 %v7009
        %v7020 = vpop.f32.mrf.mxu0
        %v7021 = vadd.f32 0.0, %v7020
        %v7022 = vpop.f32.mrf.mxu0
        %v7023 = vadd.f32 0.0, %v7022
        %7024 = vdwg.mxu0
        %v7025 = vpack.c.bf16 %v7023, %v7021
        %v7028 = vunpack.c.l.b16 %v6798
        %v7029 = vunpack.c.l.b16 %v6799
        %v7030 = vpack.c.b16 %v7029, %v7028
        %v7033 = vsel %vm1643, %v7025, 0
        %7035 = vmatpush.bf16.msra.mxu0 0
        %7036 = vmatpush.bf16.msra.mxu0 0
        %7037 = vmatpush.bf16.msra.mxu0 0
        %7038 = vmatpush.bf16.msra.mxu0 0
        %7039 = vmatpush.bf16.msra.mxu0 0
        %7040 = vmatpush.bf16.msra.mxu0 0
        %7041 = vmatpush.bf16.msra.mxu0 0
        %7042 = vmatpush.bf16.msra.mxu0 %v7030
        %7043 = vmatmul.bf16.gmra.mxu0 %v7033
        %v7044 = vpop.f32.mrf.mxu0
        %v7045 = vadd.f32 0.0, %v7044
        %v7046 = vpop.f32.mrf.mxu0
        %v7047 = vadd.f32 0.0, %v7046
        %7048 = vdwg.mxu0
        %v7049 = vadd.f32 %v6925, %v7045
        %v7050 = vadd.f32 %v6926, %v7047
        %7051 = vrot.lane.b32.xlu0 %v6809, 96
        %v7052 = vpop.permute.xlu0 %7051
        %7053 = vrot.lane.b32.xlu0 %v6810, 96
        %v7054 = vpop.permute.xlu0 %7053
        %v7056 = vsel %vm1643, %v7052, 0
        %v7059 = vsel %vm1643, %v7054, 0
        %7061 = vmatpush.bf16.xpose.msra.mxu0 0
        %7062 = vmatpush.bf16.xpose.msra.mxu0 0
        %7063 = vmatpush.bf16.xpose.msra.mxu0 0
        %7064 = vmatpush.bf16.xpose.msra.mxu0 0
        %7065 = vmatpush.bf16.xpose.msra.mxu0 0
        %7066 = vmatpush.bf16.xpose.msra.mxu0 0
        %7067 = vmatpush.bf16.xpose.msra.mxu0 0
        %7068 = vmatpush.bf16.xpose.msra.mxu0 %v7059
        %7069 = vmatmul.bf16.gmra.mxu0 %v7056
        %v7070 = vpop.f32.mrf.mxu0
        %v7071 = vadd.f32 0.0, %v7070
        %v7072 = vpop.f32.mrf.mxu0
        %v7073 = vadd.f32 0.0, %v7072
        %7074 = vdwg.mxu0
        %v7075 = vmul.f32 %v7071, 0.25
        %v7076 = vmul.f32 %v7073, 0.25
        %v7077 = vsel %vm1643, %v7075, -inf
        %7078 = vmax.xlane.f32.xlu0 %v7077
        %v7079 = vpop.xlane.xlu0 %7078
        %v7080 = vsel %vm6837, %v7076, -inf
        %7081 = vmax.xlane.f32.xlu0 %v7080
        %v7082 = vpop.xlane.xlu0 %7081
        %v7083 = vsub.f32 %v7075, %v7079
        %v7084 = vsub.f32 %v7076, %v7082
        %v7085 = vmul.f32 %v7083, 1.442695
        %v7086 = vpow.pop %v7085
        %v7087 = vmul.f32 %v7084, 1.442695
        %v7088 = vpow.pop %v7087
        %v7089 = vsel %vm1643, %v7086, 0.0
        %7090 = vadd.xlane.f32.xlu0 %v7089
        %v7091 = vpop.xlane.xlu0 %7090
        %v7092 = vsel %vm6837, %v7088, 0.0
        %7093 = vadd.xlane.f32.xlu0 %v7092
        %v7094 = vpop.xlane.xlu0 %7093
        %v7095 = vrcp.pop %v7091
        %v7096 = vmul.f32 %v7091, %v7095
        %v7097 = vsub.f32 1.0, %v7096
        %v7098 = vmul.f32 %v7095, %v7097
        %v7099 = vadd.f32 %v7095, %v7098
        %vm7100 = vweird.f32 %v7091
        %vm7101 = vweird.f32 %v7095
        %vm7102 = vmor %vm7100, %vm7101
        %v7103 = vsel %vm7102, %v7095, %v7099
        %v7104 = vand.u32 2147483647, %v7091
        %vm7105 = vcmp.eq.f32.partialorder %v7104, 8.507059e+37
        %v7106 = vand.u32 %v7091, 2147483648
        %v7107 = vor.u32 1.1754944e-38, %v7106
        %v7108 = vsel %vm7105, %v7107, %v7103
        %v7109 = vmul.f32 %v7086, %v7108
        %v7110 = vrcp.pop %v7094
        %v7111 = vmul.f32 %v7094, %v7110
        %v7112 = vsub.f32 1.0, %v7111
        %v7113 = vmul.f32 %v7110, %v7112
        %v7114 = vadd.f32 %v7110, %v7113
        %vm7115 = vweird.f32 %v7094
        %vm7116 = vweird.f32 %v7110
        %vm7117 = vmor %vm7115, %vm7116
        %v7118 = vsel %vm7117, %v7110, %v7114
        %v7119 = vand.u32 2147483647, %v7094
        %vm7120 = vcmp.eq.f32.partialorder %v7119, 8.507059e+37
        %v7121 = vand.u32 %v7094, 2147483648
        %v7122 = vor.u32 1.1754944e-38, %v7121
        %v7123 = vsel %vm7120, %v7122, %v7118
        %v7124 = vmul.f32 %v7088, %v7123
        %v7125 = vpack.c.bf16 %v7124, %v7109
        %7126 = vrot.lane.b32.xlu0 %v6811, 96
        %v7127 = vpop.permute.xlu0 %7126
        %v7130 = vsel %vm1643, %v7125, 0
        %7132 = vmatpush.bf16.msra.mxu0 0
        %7133 = vmatpush.bf16.msra.mxu0 0
        %7134 = vmatpush.bf16.msra.mxu0 0
        %7135 = vmatpush.bf16.msra.mxu0 0
        %7136 = vmatpush.bf16.msra.mxu0 0
        %7137 = vmatpush.bf16.msra.mxu0 0
        %7138 = vmatpush.bf16.msra.mxu0 0
        %7139 = vmatpush.bf16.msra.mxu0 %v7127
        %7140 = vmatmul.bf16.gmra.mxu0 %v7130
        %v7141 = vpop.f32.mrf.mxu0
        %v7142 = vadd.f32 0.0, %v7141
        %v7143 = vpop.f32.mrf.mxu0
        %v7144 = vadd.f32 0.0, %v7143
        %7145 = vdwg.mxu0
        %v7146 = vpack.c.bf16 %v7144, %v7142
        %v7149 = vunpack.c.l.b16 %v6800
        %v7150 = vunpack.c.l.b16 %v6801
        %v7151 = vpack.c.b16 %v7150, %v7149
        %v7154 = vsel %vm1643, %v7146, 0
        %7156 = vmatpush.bf16.msra.mxu0 0
        %7157 = vmatpush.bf16.msra.mxu0 0
        %7158 = vmatpush.bf16.msra.mxu0 0
        %7159 = vmatpush.bf16.msra.mxu0 0
        %7160 = vmatpush.bf16.msra.mxu0 0
        %7161 = vmatpush.bf16.msra.mxu0 0
        %7162 = vmatpush.bf16.msra.mxu0 0
        %7163 = vmatpush.bf16.msra.mxu0 %v7151
        %7164 = vmatmul.bf16.gmra.mxu0 %v7154
        %v7165 = vpop.f32.mrf.mxu0
        %v7166 = vadd.f32 0.0, %v7165
        %v7167 = vpop.f32.mrf.mxu0
        %v7168 = vadd.f32 0.0, %v7167
        %7169 = vdwg.mxu0
        %v7170 = vadd.f32 %v7049, %v7166
        %v7171 = vadd.f32 %v7050, %v7168
        %7172 = vrot.lane.b32.xlu0 %v6809, 80
        %v7173 = vpop.permute.xlu0 %7172
        %7174 = vrot.lane.b32.xlu0 %v6810, 80
        %v7175 = vpop.permute.xlu0 %7174
        %v7177 = vsel %vm1643, %v7173, 0
        %v7180 = vsel %vm1643, %v7175, 0
        %7182 = vmatpush.bf16.xpose.msra.mxu0 0
        %7183 = vmatpush.bf16.xpose.msra.mxu0 0
        %7184 = vmatpush.bf16.xpose.msra.mxu0 0
        %7185 = vmatpush.bf16.xpose.msra.mxu0 0
        %7186 = vmatpush.bf16.xpose.msra.mxu0 0
        %7187 = vmatpush.bf16.xpose.msra.mxu0 0
        %7188 = vmatpush.bf16.xpose.msra.mxu0 0
        %7189 = vmatpush.bf16.xpose.msra.mxu0 %v7180
        %7190 = vmatmul.bf16.gmra.mxu0 %v7177
        %v7191 = vpop.f32.mrf.mxu0
        %v7192 = vadd.f32 0.0, %v7191
        %v7193 = vpop.f32.mrf.mxu0
        %v7194 = vadd.f32 0.0, %v7193
        %7195 = vdwg.mxu0
        %v7196 = vmul.f32 %v7192, 0.25
        %v7197 = vmul.f32 %v7194, 0.25
        %v7198 = vsel %vm1643, %v7196, -inf
        %7199 = vmax.xlane.f32.xlu0 %v7198
        %v7200 = vpop.xlane.xlu0 %7199
        %v7201 = vsel %vm6837, %v7197, -inf
        %7202 = vmax.xlane.f32.xlu0 %v7201
        %v7203 = vpop.xlane.xlu0 %7202
        %v7204 = vsub.f32 %v7196, %v7200
        %v7205 = vsub.f32 %v7197, %v7203
        %v7206 = vmul.f32 %v7204, 1.442695
        %v7207 = vpow.pop %v7206
        %v7208 = vmul.f32 %v7205, 1.442695
        %v7209 = vpow.pop %v7208
        %v7210 = vsel %vm1643, %v7207, 0.0
        %7211 = vadd.xlane.f32.xlu0 %v7210
        %v7212 = vpop.xlane.xlu0 %7211
        %v7213 = vsel %vm6837, %v7209, 0.0
        %7214 = vadd.xlane.f32.xlu0 %v7213
        %v7215 = vpop.xlane.xlu0 %7214
        %v7216 = vrcp.pop %v7212
        %v7217 = vmul.f32 %v7212, %v7216
        %v7218 = vsub.f32 1.0, %v7217
        %v7219 = vmul.f32 %v7216, %v7218
        %v7220 = vadd.f32 %v7216, %v7219
        %vm7221 = vweird.f32 %v7212
        %vm7222 = vweird.f32 %v7216
        %vm7223 = vmor %vm7221, %vm7222
        %v7224 = vsel %vm7223, %v7216, %v7220
        %v7225 = vand.u32 2147483647, %v7212
        %vm7226 = vcmp.eq.f32.partialorder %v7225, 8.507059e+37
        %v7227 = vand.u32 %v7212, 2147483648
        %v7228 = vor.u32 1.1754944e-38, %v7227
        %v7229 = vsel %vm7226, %v7228, %v7224
        %v7230 = vmul.f32 %v7207, %v7229
        %v7231 = vrcp.pop %v7215
        %v7232 = vmul.f32 %v7215, %v7231
        %v7233 = vsub.f32 1.0, %v7232
        %v7234 = vmul.f32 %v7231, %v7233
        %v7235 = vadd.f32 %v7231, %v7234
        %vm7236 = vweird.f32 %v7215
        %vm7237 = vweird.f32 %v7231
        %vm7238 = vmor %vm7236, %vm7237
        %v7239 = vsel %vm7238, %v7231, %v7235
        %v7240 = vand.u32 2147483647, %v7215
        %vm7241 = vcmp.eq.f32.partialorder %v7240, 8.507059e+37
        %v7242 = vand.u32 %v7215, 2147483648
        %v7243 = vor.u32 1.1754944e-38, %v7242
        %v7244 = vsel %vm7241, %v7243, %v7239
        %v7245 = vmul.f32 %v7209, %v7244
        %v7246 = vpack.c.bf16 %v7245, %v7230
        %7247 = vrot.lane.b32.xlu0 %v6811, 80
        %v7248 = vpop.permute.xlu0 %7247
        %v7251 = vsel %vm1643, %v7246, 0
        %7253 = vmatpush.bf16.msra.mxu0 0
        %7254 = vmatpush.bf16.msra.mxu0 0
        %7255 = vmatpush.bf16.msra.mxu0 0
        %7256 = vmatpush.bf16.msra.mxu0 0
        %7257 = vmatpush.bf16.msra.mxu0 0
        %7258 = vmatpush.bf16.msra.mxu0 0
        %7259 = vmatpush.bf16.msra.mxu0 0
        %7260 = vmatpush.bf16.msra.mxu0 %v7248
        %7261 = vmatmul.bf16.gmra.mxu0 %v7251
        %v7262 = vpop.f32.mrf.mxu0
        %v7263 = vadd.f32 0.0, %v7262
        %v7264 = vpop.f32.mrf.mxu0
        %v7265 = vadd.f32 0.0, %v7264
        %7266 = vdwg.mxu0
        %v7267 = vpack.c.bf16 %v7265, %v7263
        %v7270 = vunpack.c.l.b16 %v6802
        %v7271 = vunpack.c.l.b16 %v6803
        %v7272 = vpack.c.b16 %v7271, %v7270
        %v7275 = vsel %vm1643, %v7267, 0
        %7277 = vmatpush.bf16.msra.mxu0 0
        %7278 = vmatpush.bf16.msra.mxu0 0
        %7279 = vmatpush.bf16.msra.mxu0 0
        %7280 = vmatpush.bf16.msra.mxu0 0
        %7281 = vmatpush.bf16.msra.mxu0 0
        %7282 = vmatpush.bf16.msra.mxu0 0
        %7283 = vmatpush.bf16.msra.mxu0 0
        %7284 = vmatpush.bf16.msra.mxu0 %v7272
        %7285 = vmatmul.bf16.gmra.mxu0 %v7275
        %v7286 = vpop.f32.mrf.mxu0
        %v7287 = vadd.f32 0.0, %v7286
        %v7288 = vpop.f32.mrf.mxu0
        %v7289 = vadd.f32 0.0, %v7288
        %7290 = vdwg.mxu0
        %v7291 = vadd.f32 %v7170, %v7287
        %v7292 = vadd.f32 %v7171, %v7289
        %v7293 = vsel %vm2706, %v7291, 0.0
        %7294 = vadd.xlane.f32.xlu0 %v7293
        %v7295 = vpop.xlane.xlu0 %7294
        %vm7296 = vcmask 517120
        %v7297 = vsel %vm7296, %v7292, 0.0
        %7298 = vadd.xlane.f32.xlu0 %v7297
        %v7299 = vpop.xlane.xlu0 %7298
        %v7300 = vmul.f32 %v7295, %v2336
        %v7301 = vmul.f32 %v7299, %v2336
        %v7302 = vsub.f32 %v7291, %v7300
        %v7303 = vsub.f32 %v7292, %v7301
        %v7304 = vmul.f32 %v7302, %v7302
        %v7305 = vmul.f32 %v7303, %v7303
        %v7306 = vsel %vm2706, %v7304, 0.0
        %7307 = vadd.xlane.f32.xlu0 %v7306
        %v7308 = vpop.xlane.xlu0 %7307
        %v7309 = vsel %vm7296, %v7305, 0.0
        %7310 = vadd.xlane.f32.xlu0 %v7309
        %v7311 = vpop.xlane.xlu0 %7310
        %v7312 = vmul.f32 %v7308, %v2336
        %v7313 = vmul.f32 %v7311, %v2336
        %v7314 = vadd.f32 %v7312, 1e-05
        %v7315 = vadd.f32 %v7313, 1e-05
        %v7316 = vrsqrt.pop %v7314
        %v7317 = vmul.f32 %v7316, %v7314
        %v7318 = vmul.f32 %v7317, %v7316
        %v7319 = vmul.f32 0.5, %v7318
        %v7320 = vsub.f32 1.5, %v7319
        %v7321 = vmul.f32 %v7316, %v7320
        %vm7322 = vweird.f32 %v7314
        %vm7323 = vweird.f32 %v7316
        %vm7324 = vmor %vm7322, %vm7323
        %v7325 = vsel %vm7324, %v7316, %v7321
        %v7326 = vrsqrt.pop %v7315
        %v7327 = vmul.f32 %v7326, %v7315
        %v7328 = vmul.f32 %v7327, %v7326
        %v7329 = vmul.f32 0.5, %v7328
        %v7330 = vsub.f32 1.5, %v7329
        %v7331 = vmul.f32 %v7326, %v7330
        %vm7332 = vweird.f32 %v7315
        %vm7333 = vweird.f32 %v7326
        %vm7334 = vmor %vm7332, %vm7333
        %v7335 = vsel %vm7334, %v7326, %v7331
        %v7336 = vmul.f32 %v7302, %v7325
        %v7337 = vmul.f32 %v7303, %v7335
        %v7338 = vld [vmem:[%s87] sm:$0x1]
        %v7340 = vperm.slane %v7338, 0
        %v7342 = vmul.f32 %v7336, %v7340
        %v7343 = vmul.f32 %v7337, %v7340
        %v7344 = vld [vmem:[%s89] sm:$0x1]
        %v7346 = vperm.slane %v7344, 0
        %v7348 = vadd.f32 %v7342, %v7346
        %v7349 = vadd.f32 %v7343, %v7346
        %v7350 = vpack.c.bf16 %v7349, %v7348
        %v7351 = vld [vmem:[%s91] sm:$0xff]
        %v7352 = vld [vmem:[%s91 + $0x8] sm:$0xff]
        %v7353 = vld [vmem:[%s91 + $0x10] sm:$0xff]
        %v7354 = vld [vmem:[%s91 + $0x18] sm:$0xff]
        %v7355 = vld [vmem:[%s91 + $0x20] sm:$0xff]
        %v7356 = vld [vmem:[%s91 + $0x28] sm:$0xff]
        %v7357 = vld [vmem:[%s91 + $0x30] sm:$0xff]
        %v7358 = vld [vmem:[%s91 + $0x38] sm:$0xff]
        %v7359 = vld [vmem:[%s93] sm:$0x3]
        %v7361 = vperm.slane %v7359, 0
        %v7362 = vperm.slane %v7359, 1
        %v7373 = vunpack.c.l.b16 %v7351
        %v7374 = vunpack.c.h.b16 %v7351
        %v7375 = vunpack.c.l.b16 %v7352
        %v7376 = vunpack.c.h.b16 %v7352
        %v7377 = vunpack.c.l.b16 %v7353
        %v7378 = vunpack.c.h.b16 %v7353
        %v7379 = vunpack.c.l.b16 %v7354
        %v7380 = vunpack.c.h.b16 %v7354
        %v7381 = vunpack.c.l.b16 %v7355
        %v7382 = vunpack.c.h.b16 %v7355
        %v7383 = vunpack.c.l.b16 %v7356
        %v7384 = vunpack.c.h.b16 %v7356
        %v7385 = vunpack.c.l.b16 %v7357
        %v7386 = vunpack.c.h.b16 %v7357
        %v7387 = vunpack.c.l.b16 %v7358
        %v7388 = vunpack.c.h.b16 %v7358
        %v7389 = vpack.c.b16 %v7375, %v7373
        %v7390 = vpack.c.b16 %v7376, %v7374
        %v7391 = vpack.c.b16 %v7379, %v7377
        %v7392 = vpack.c.b16 %v7380, %v7378
        %v7393 = vpack.c.b16 %v7383, %v7381
        %v7394 = vpack.c.b16 %v7384, %v7382
        %v7395 = vpack.c.b16 %v7387, %v7385
        %v7396 = vpack.c.b16 %v7388, %v7386
        %v7406 = vsel %vm2706, %v7350, 0
        %7408 = vmatpush.bf16.msra.mxu0 0
        %7409 = vmatpush.bf16.msra.mxu0 0
        %7410 = vmatpush.bf16.msra.mxu0 0
        %7411 = vmatpush.bf16.msra.mxu0 0
        %7412 = vmatpush.bf16.msra.mxu0 %v7395
        %7413 = vmatpush.bf16.msra.mxu0 %v7393
        %7414 = vmatpush.bf16.msra.mxu0 %v7391
        %7415 = vmatpush.bf16.msra.mxu0 %v7389
        %7416 = vmatmul.bf16.gmra.mxu0 %v7406
        %v7417 = vpop.f32.mrf.mxu0
        %v7418 = vadd.f32 %v7361, %v7417
        %v7419 = vpop.f32.mrf.mxu0
        %v7420 = vadd.f32 %v7361, %v7419
        %7421 = vdwg.mxu0
        %7422 = vmatpush.bf16.msra.mxu0 0
        %7423 = vmatpush.bf16.msra.mxu0 0
        %7424 = vmatpush.bf16.msra.mxu0 0
        %7425 = vmatpush.bf16.msra.mxu0 0
        %7426 = vmatpush.bf16.msra.mxu0 %v7396
        %7427 = vmatpush.bf16.msra.mxu0 %v7394
        %7428 = vmatpush.bf16.msra.mxu0 %v7392
        %7429 = vmatpush.bf16.msra.mxu0 %v7390
        %7430 = vmatmul.bf16.gmra.mxu0 %v7406
        %v7431 = vpop.f32.mrf.mxu0
        %v7432 = vadd.f32 %v7362, %v7431
        %v7433 = vpop.f32.mrf.mxu0
        %v7434 = vadd.f32 %v7362, %v7433
        %7435 = vdwg.mxu0
        %v7436 = vxor.u32 %v7418, 2147483648
        %v7437 = vxor.u32 %v7432, 2147483648
        %v7438 = vxor.u32 %v7420, 2147483648
        %v7439 = vxor.u32 %v7434, 2147483648
        %v7440 = vmul.f32 %v7436, 1.442695
        %v7441 = vpow.pop %v7440
        %v7442 = vmul.f32 %v7437, 1.442695
        %v7443 = vpow.pop %v7442
        %v7444 = vmul.f32 %v7438, 1.442695
        %v7445 = vpow.pop %v7444
        %v7446 = vmul.f32 %v7439, 1.442695
        %v7447 = vpow.pop %v7446
        %v7448 = vadd.f32 %v7441, 1.0
        %v7449 = vadd.f32 %v7443, 1.0
        %v7450 = vadd.f32 %v7445, 1.0
        %v7451 = vadd.f32 %v7447, 1.0
        %v7452 = vrcp.pop %v7448
        %v7453 = vmul.f32 %v7448, %v7452
        %v7454 = vsub.f32 1.0, %v7453
        %v7455 = vmul.f32 %v7452, %v7454
        %v7456 = vadd.f32 %v7452, %v7455
        %vm7457 = vweird.f32 %v7448
        %vm7458 = vweird.f32 %v7452
        %vm7459 = vmor %vm7457, %vm7458
        %v7460 = vsel %vm7459, %v7452, %v7456
        %v7461 = vand.u32 2147483647, %v7448
        %vm7462 = vcmp.eq.f32.partialorder %v7461, 8.507059e+37
        %v7463 = vand.u32 %v7448, 2147483648
        %v7464 = vor.u32 1.1754944e-38, %v7463
        %v7465 = vsel %vm7462, %v7464, %v7460
        %v7466 = vmul.f32 1.0, %v7465
        %v7467 = vrcp.pop %v7449
        %v7468 = vmul.f32 %v7449, %v7467
        %v7469 = vsub.f32 1.0, %v7468
        %v7470 = vmul.f32 %v7467, %v7469
        %v7471 = vadd.f32 %v7467, %v7470
        %vm7472 = vweird.f32 %v7449
        %vm7473 = vweird.f32 %v7467
        %vm7474 = vmor %vm7472, %vm7473
        %v7475 = vsel %vm7474, %v7467, %v7471
        %v7476 = vand.u32 2147483647, %v7449
        %vm7477 = vcmp.eq.f32.partialorder %v7476, 8.507059e+37
        %v7478 = vand.u32 %v7449, 2147483648
        %v7479 = vor.u32 1.1754944e-38, %v7478
        %v7480 = vsel %vm7477, %v7479, %v7475
        %v7481 = vmul.f32 1.0, %v7480
        %v7482 = vrcp.pop %v7450
        %v7483 = vmul.f32 %v7450, %v7482
        %v7484 = vsub.f32 1.0, %v7483
        %v7485 = vmul.f32 %v7482, %v7484
        %v7486 = vadd.f32 %v7482, %v7485
        %vm7487 = vweird.f32 %v7450
        %vm7488 = vweird.f32 %v7482
        %vm7489 = vmor %vm7487, %vm7488
        %v7490 = vsel %vm7489, %v7482, %v7486
        %v7491 = vand.u32 2147483647, %v7450
        %vm7492 = vcmp.eq.f32.partialorder %v7491, 8.507059e+37
        %v7493 = vand.u32 %v7450, 2147483648
        %v7494 = vor.u32 1.1754944e-38, %v7493
        %v7495 = vsel %vm7492, %v7494, %v7490
        %v7496 = vmul.f32 1.0, %v7495
        %v7497 = vrcp.pop %v7451
        %v7498 = vmul.f32 %v7451, %v7497
        %v7499 = vsub.f32 1.0, %v7498
        %v7500 = vmul.f32 %v7497, %v7499
        %v7501 = vadd.f32 %v7497, %v7500
        %vm7502 = vweird.f32 %v7451
        %vm7503 = vweird.f32 %v7497
        %vm7504 = vmor %vm7502, %vm7503
        %v7505 = vsel %vm7504, %v7497, %v7501
        %v7506 = vand.u32 2147483647, %v7451
        %vm7507 = vcmp.eq.f32.partialorder %v7506, 8.507059e+37
        %v7508 = vand.u32 %v7451, 2147483648
        %v7509 = vor.u32 1.1754944e-38, %v7508
        %v7510 = vsel %vm7507, %v7509, %v7505
        %v7511 = vmul.f32 1.0, %v7510
        %v7512 = vmul.f32 %v7418, %v7466
        %v7513 = vmul.f32 %v7432, %v7481
        %v7514 = vmul.f32 %v7420, %v7496
        %v7515 = vmul.f32 %v7434, %v7511
        %v7516 = vpack.c.bf16 %v7514, %v7512
        %v7517 = vpack.c.bf16 %v7515, %v7513
        %v7518 = vld [vmem:[%s95] sm:$0xf]
        %v7519 = vld [vmem:[%s95 + $0x4] sm:$0xf]
        %v7520 = vld [vmem:[%s95 + $0x8] sm:$0xf]
        %v7521 = vld [vmem:[%s95 + $0xc] sm:$0xf]
        %v7522 = vld [vmem:[%s95 + $0x10] sm:$0xf]
        %v7523 = vld [vmem:[%s95 + $0x14] sm:$0xf]
        %v7524 = vld [vmem:[%s95 + $0x18] sm:$0xf]
        %v7525 = vld [vmem:[%s95 + $0x1c] sm:$0xf]
        %v7526 = vld [vmem:[%s95 + $0x20] sm:$0xf]
        %v7527 = vld [vmem:[%s95 + $0x24] sm:$0xf]
        %v7528 = vld [vmem:[%s95 + $0x28] sm:$0xf]
        %v7529 = vld [vmem:[%s95 + $0x2c] sm:$0xf]
        %v7530 = vld [vmem:[%s95 + $0x30] sm:$0xf]
        %v7531 = vld [vmem:[%s95 + $0x34] sm:$0xf]
        %v7532 = vld [vmem:[%s95 + $0x38] sm:$0xf]
        %v7533 = vld [vmem:[%s95 + $0x3c] sm:$0xf]
        %v7534 = vld [vmem:[%s95 + $0x40] sm:$0xf]
        %v7535 = vld [vmem:[%s95 + $0x44] sm:$0xf]
        %v7536 = vld [vmem:[%s95 + $0x48] sm:$0xf]
        %v7537 = vld [vmem:[%s95 + $0x4c] sm:$0xf]
        %v7538 = vld [vmem:[%s95 + $0x50] sm:$0xf]
        %v7539 = vld [vmem:[%s95 + $0x54] sm:$0xf]
        %v7540 = vld [vmem:[%s95 + $0x58] sm:$0xf]
        %v7541 = vld [vmem:[%s95 + $0x5c] sm:$0xf]
        %v7542 = vld [vmem:[%s95 + $0x60] sm:$0xf]
        %v7543 = vld [vmem:[%s95 + $0x64] sm:$0xf]
        %v7544 = vld [vmem:[%s95 + $0x68] sm:$0xf]
        %v7545 = vld [vmem:[%s95 + $0x6c] sm:$0xf]
        %v7546 = vld [vmem:[%s95 + $0x70] sm:$0xf]
        %v7547 = vld [vmem:[%s95 + $0x74] sm:$0xf]
        %v7548 = vld [vmem:[%s95 + $0x78] sm:$0xf]
        %v7549 = vld [vmem:[%s95 + $0x7c] sm:$0xf]
        %v7550 = vld [vmem:[%s97] sm:$0x1]
        %v7552 = vperm.slane %v7550, 0
        %v7586 = vunpack.c.l.b16 %v7518
        %v7587 = vunpack.c.l.b16 %v7519
        %v7588 = vunpack.c.l.b16 %v7520
        %v7589 = vunpack.c.l.b16 %v7521
        %v7590 = vunpack.c.l.b16 %v7522
        %v7591 = vunpack.c.l.b16 %v7523
        %v7592 = vunpack.c.l.b16 %v7524
        %v7593 = vunpack.c.l.b16 %v7525
        %v7594 = vunpack.c.l.b16 %v7526
        %v7595 = vunpack.c.l.b16 %v7527
        %v7596 = vunpack.c.l.b16 %v7528
        %v7597 = vunpack.c.l.b16 %v7529
        %v7598 = vunpack.c.l.b16 %v7530
        %v7599 = vunpack.c.l.b16 %v7531
        %v7600 = vunpack.c.l.b16 %v7532
        %v7601 = vunpack.c.l.b16 %v7533
        %v7602 = vunpack.c.l.b16 %v7534
        %v7603 = vunpack.c.l.b16 %v7535
        %v7604 = vunpack.c.l.b16 %v7536
        %v7605 = vunpack.c.l.b16 %v7537
        %v7606 = vunpack.c.l.b16 %v7538
        %v7607 = vunpack.c.l.b16 %v7539
        %v7608 = vunpack.c.l.b16 %v7540
        %v7609 = vunpack.c.l.b16 %v7541
        %v7610 = vunpack.c.l.b16 %v7542
        %v7611 = vunpack.c.l.b16 %v7543
        %v7612 = vunpack.c.l.b16 %v7544
        %v7613 = vunpack.c.l.b16 %v7545
        %v7614 = vunpack.c.l.b16 %v7546
        %v7615 = vunpack.c.l.b16 %v7547
        %v7616 = vunpack.c.l.b16 %v7548
        %v7617 = vunpack.c.l.b16 %v7549
        %v7618 = vpack.c.b16 %v7587, %v7586
        %v7619 = vpack.c.b16 %v7589, %v7588
        %v7620 = vpack.c.b16 %v7591, %v7590
        %v7621 = vpack.c.b16 %v7593, %v7592
        %v7622 = vpack.c.b16 %v7595, %v7594
        %v7623 = vpack.c.b16 %v7597, %v7596
        %v7624 = vpack.c.b16 %v7599, %v7598
        %v7625 = vpack.c.b16 %v7601, %v7600
        %v7626 = vpack.c.b16 %v7603, %v7602
        %v7627 = vpack.c.b16 %v7605, %v7604
        %v7628 = vpack.c.b16 %v7607, %v7606
        %v7629 = vpack.c.b16 %v7609, %v7608
        %v7630 = vpack.c.b16 %v7611, %v7610
        %v7631 = vpack.c.b16 %v7613, %v7612
        %v7632 = vpack.c.b16 %v7615, %v7614
        %v7633 = vpack.c.b16 %v7617, %v7616
        %7650 = vmatpush.bf16.msra.mxu0 %v7625
        %7651 = vmatpush.bf16.msra.mxu0 %v7624
        %7652 = vmatpush.bf16.msra.mxu0 %v7623
        %7653 = vmatpush.bf16.msra.mxu0 %v7622
        %7654 = vmatpush.bf16.msra.mxu0 %v7621
        %7655 = vmatpush.bf16.msra.mxu0 %v7620
        %7656 = vmatpush.bf16.msra.mxu0 %v7619
        %7657 = vmatpush.bf16.msra.mxu0 %v7618
        %7658 = vmatmul.bf16.gmra.mxu0 %v7516
        %v7659 = vpop.f32.mrf.mxu0
        %v7660 = vadd.f32 %v7552, %v7659
        %v7661 = vpop.f32.mrf.mxu0
        %v7662 = vadd.f32 %v7552, %v7661
        %7663 = vdwg.mxu0
        %7664 = vmatpush.bf16.msra.mxu0 %v7633
        %7665 = vmatpush.bf16.msra.mxu0 %v7632
        %7666 = vmatpush.bf16.msra.mxu0 %v7631
        %7667 = vmatpush.bf16.msra.mxu0 %v7630
        %7668 = vmatpush.bf16.msra.mxu0 %v7629
        %7669 = vmatpush.bf16.msra.mxu0 %v7628
        %7670 = vmatpush.bf16.msra.mxu0 %v7627
        %7671 = vmatpush.bf16.msra.mxu0 %v7626
        %7672 = vmatmul.bf16.gmra.mxu0 %v7517
        %v7673 = vpop.f32.mrf.mxu0
        %v7674 = vadd.f32 %v7660, %v7673
        %v7675 = vpop.f32.mrf.mxu0
        %v7676 = vadd.f32 %v7662, %v7675
        %7677 = vdwg.mxu0
        %v7678 = vadd.f32 %v7291, %v7674
        %v7679 = vadd.f32 %v7292, %v7676
        %v7680 = vpack.c.bf16 %v7679, %v7678
        %v7681 = vld [vmem:[#allocation8] sm:$0xf]
        %v7682 = vld [vmem:[#allocation8 + $0x4] sm:$0xf]
        %v7683 = vld [vmem:[#allocation8 + $0x8] sm:$0xf]
        %v7684 = vld [vmem:[#allocation8 + $0xc] sm:$0xf]
        %v7685 = vld [vmem:[#allocation8 + $0x10] sm:$0xf]
        %v7686 = vld [vmem:[#allocation8 + $0x14] sm:$0xf]
        %v7687 = vld [vmem:[#allocation8 + $0x18] sm:$0xf]
        %v7688 = vld [vmem:[#allocation8 + $0x1c] sm:$0xf]
        %v7689 = vld [vmem:[%s101] sm:$0x1]
        %v7691 = vperm.slane %v7689, 0
        %v7701 = vunpack.c.l.b16 %v7681
        %v7702 = vunpack.c.l.b16 %v7682
        %v7703 = vunpack.c.l.b16 %v7683
        %v7704 = vunpack.c.l.b16 %v7684
        %v7705 = vunpack.c.l.b16 %v7685
        %v7706 = vunpack.c.l.b16 %v7686
        %v7707 = vunpack.c.l.b16 %v7687
        %v7708 = vunpack.c.l.b16 %v7688
        %v7709 = vpack.c.b16 %v7702, %v7701
        %v7710 = vpack.c.b16 %v7704, %v7703
        %v7711 = vpack.c.b16 %v7706, %v7705
        %v7712 = vpack.c.b16 %v7708, %v7707
        %v7718 = vsel %vm2706, %v7680, 0
        %7720 = vmatpush.bf16.msra.mxu0 0
        %7721 = vmatpush.bf16.msra.mxu0 0
        %7722 = vmatpush.bf16.msra.mxu0 0
        %7723 = vmatpush.bf16.msra.mxu0 0
        %7724 = vmatpush.bf16.msra.mxu0 %v7712
        %7725 = vmatpush.bf16.msra.mxu0 %v7711
        %7726 = vmatpush.bf16.msra.mxu0 %v7710
        %7727 = vmatpush.bf16.msra.mxu0 %v7709
        %7728 = vmatmul.bf16.gmra.mxu0 %v7718
        %v7729 = vpop.f32.mrf.mxu0
        %v7730 = vadd.f32 %v7691, %v7729
        %v7731 = vpop.f32.mrf.mxu0
        %v7732 = vadd.f32 %v7691, %v7731
        %7733 = vdwg.mxu0
        %v7734 = vld [vmem:[#allocation10] sm:$0xff]
        %v7735 = vld [vmem:[#allocation10 + $0x8] sm:$0x3]
        %v7736 = vadd.f32 %v7730, %v7734
        %7739 = vrot.lane.b32.xlu0 %v7734, 1
        %v7740 = vpop.permute.xlu0 %7739
        %7741 = vrot.lane.b32.xlu0 %v7735, 1
        %v7742 = vpop.permute.xlu0 %7741
        %v7745 = vadd.f32 %v7730, %v7740
        %v7746 = vadd.f32 %v7732, %v7742
        %vm7747 = vcmask 0
        %7748 = vst.msk [vmem:[%s1628] sm:$0x1] %vm7747, %v7736
        %7751 = vrot.lane.b32.xlu0 %v7745, 127
        %v7752 = vpop.permute.xlu0 %7751
        %7753 = vrot.lane.b32.xlu0 %v7746, 127
        %v7754 = vpop.permute.xlu0 %7753
        %vm7757 = vcmask 7169
        %7758 = vst.msk [vmem:[%s1633 - $0x1] sm:$0xfe] %vm7757, %v7752
        %vm7759 = vcmask 1024
        %7760 = vst.msk [vmem:[%s1633 + $0x7] sm:$0x3] %vm7759, %v7754
        %p7761 = scmp.lt.s32.totalorder %s121, 1
        %s7762 = scalar_select %p7761, %s121, 1
        %s7763 = scalar_lea.vmem %s105, %s7762
        %p7764 = scmp.lt.s32.totalorder %s121, 1
        %s7765 = scalar_select %p7764, %s121, 1
        %s7766 = smul.addr %s7765, 2
        %s7767 = smul.addr %s7766, 8
        %s7768 = scalar_lea.vmem %s107, %s7767
        // Predicated region
        $region241: #{_lambda_.1} parent=227 // pred_check
          %p7769 = pneg %p1236
        $region242: #{_lambda_.1} parent=227 // pred_check_branch
          %7771 = sbr.rel (%p7769) target = $region244
        $region243: #{_lambda_.1} parent=227 // pred_region
          _
        $region244: #{_lambda_.1} parent=227 // pred_fallthru
          _
        // Predicated region
        $region245: #{_lambda_.1} parent=227 // pred_check
          %p7772 = pneg %p1262
        $region246: #{_lambda_.1} parent=227 // pred_check_branch
          %7774 = sbr.rel (%p7772) target = $region248
        $region247: #{_lambda_.1} parent=227 // pred_region
          _
        $region248: #{_lambda_.1} parent=227 // pred_fallthru
          _
      $region228: #{_lambda_.1} parent=5 // pred_fallthru
        _
      %p7775 = scmp.le.s32.totalorder 2, %s116
      // Predicated region
      $region249: #{_lambda_.1} parent=5 // pred_check
        %p7776 = pneg %p7775
      $region250: #{_lambda_.1} parent=5 // pred_check_branch
        %7778 = sbr.rel (%p7776) target = $region252
      $region251: #{_lambda_.1} parent=5 // pred_region
        %s7779 = ssub.s32 %s116, 2
        // Predicated region
        $region253: #{_lambda_.1} parent=251 // pred_check
          %p7780 = pneg %p1242
        $region254: #{_lambda_.1} parent=251 // pred_check_branch
          %7782 = sbr.rel (%p7780) target = $region256
        $region255: #{_lambda_.1} parent=251 // pred_region
          %p7783 = scmp.lt.s32.totalorder %s122, 1
          %s7784 = scalar_select %p7783, %s122, 1
          %s7785 = scalar_lea.vmem %s105, %s7784
        $region256: #{_lambda_.1} parent=251 // pred_fallthru
          _
        // Predicated region
        $region257: #{_lambda_.1} parent=251 // pred_check
          %p7786 = pneg %p1268
        $region258: #{_lambda_.1} parent=251 // pred_check_branch
          %7788 = sbr.rel (%p7786) target = $region260
        $region259: #{_lambda_.1} parent=251 // pred_region
          %p7789 = scmp.lt.s32.totalorder %s122, 1
          %s7790 = scalar_select %p7789, %s122, 1
          %s7791 = smul.addr %s7790, 2
          %s7792 = smul.addr %s7791, 8
          %s7793 = scalar_lea.vmem %s107, %s7792
        $region260: #{_lambda_.1} parent=251 // pred_fallthru
          _
      $region252: #{_lambda_.1} parent=5 // pred_fallthru
        _
    $region6: #{_lambda_.1} parent=1 // loop_footer
      %s120 = sadd.s32 1, %s116
    $region7: #{_lambda_.1} parent=1 // loop_footer_branch
      %115 = sbr.rel target = $region3
    $region8: #{_lambda_.1} parent=1 // loop_exit
      _
    %7794 = vsyncpa [#allocation7], 1
    %s7795 = scalar_lea.sflag [#allocation7], 1
    %7796 = vsyncpa %s7795, 1
    %7797 = vsyncpa [#allocation9], 1

</llo_original>
